<compile_context>
chip_gen: v7x
topology: tpu7x:2x2x1
jax: 0.10.0
libtpu: 0.0.40
codegen_flags: <defaults>
</compile_context>

<pallas_src>
import functools

import jax
import jax.numpy as jnp
from jax.experimental import pallas as pl
from jax.experimental.pallas import tpu as pltpu


# ----------------------------------------------------------------------------
# Fused Pallas kernel: whole residual block for one batch element (all T).
# ----------------------------------------------------------------------------
def _res3d_fused_kernel(x_ref, w1_ref, b1_ref, w2_ref, b2_ref, w3_ref, b3_ref,
                        smask_ref, o_ref, y1_ref, *, T, H, W, KT, K, pt, ph,
                        pw, c_in, c_btn, c_out, has_residual):
    HW = H * W
    f32 = jnp.float32
    hi = jax.lax.Precision.HIGHEST

    # Small parameters: load once per grid step (they sit in VMEM).
    w1 = w1_ref[...]        # (btn, c_in)      BN1 scale folded in
    b1 = b1_ref[...]        # (btn, 1)         BN1 shift
    w2 = w2_ref[...]        # (btn, KT*K*K)    BN2 scale folded in
    b2 = b2_ref[...]        # (btn, 1)         BN2 shift
    w3 = w3_ref[...]        # (c_out, btn)     BN3 scale folded in
    b3 = b3_ref[...]        # (c_out, 1)       BN3 shift
    smask = smask_ref[...]  # (K*K, HW)        0/1 spatial edge masks

    # -- Stage 1: conv1 (1x1x1 conv + BN + ReLU) on every input frame, ONCE ---
    # MXU matmul: (c_btn, c_in) @ (c_in, HW) -> (c_btn, HW), stored to scratch.
    for t in range(T):
        xt = x_ref[t].astype(f32)                                # (c_in, HW)
        y = jnp.dot(w1, xt, preferred_element_type=f32, precision=hi)
        y1_ref[t] = jnp.maximum(y + b1, 0.0)

    # -- Stage 2+3 per output frame: depthwise KTxKxK conv + BN + ReLU,
    #    then 1x1x1 conv + BN, identity residual, final ReLU. ----------------
    for t in range(T):
        # Temporal halo: validity is static, out-of-range frames contribute 0.
        halo = []
        for f in range(KT):
            tf = t + f - pt
            if 0 <= tf < T:
                halo.append((f, y1_ref[tf]))                     # (c_btn, HW)

        acc = jnp.zeros((c_btn, HW), f32)
        for ih in range(K):
            oh = ih - ph
            for iw in range(K):
                ow = iw - pw
                # Temporal sum FIRST (commutes with the lane roll and the 0/1
                # mask) -> exactly one roll + one mask multiply per (ih, iw).
                tmp = None
                for f, yf in halo:
                    tap = f * K * K + ih * K + iw
                    term = yf * w2[:, tap:tap + 1]
                    tmp = term if tmp is None else tmp + term
                s = oh * W + ow                                  # flat HW shift
                if s != 0:
                    tmp = pltpu.roll(tmp, shift=(-s) % HW, axis=1)
                if oh != 0 or ow != 0:                           # zero padding
                    j = ih * K + iw
                    tmp = tmp * smask[j:j + 1, :]
                acc = acc + tmp
        y2 = jnp.maximum(acc + b2, 0.0)                          # (c_btn, HW)

        # conv3 on the MXU: (c_out, c_btn) @ (c_btn, HW) -> (c_out, HW)
        y3 = jnp.dot(w3, y2, preferred_element_type=f32, precision=hi) + b3
        if has_residual:
            y3 = y3 + x_ref[t].astype(f32)                       # identity res
        o_ref[t] = jnp.maximum(y3, 0.0).astype(o_ref.dtype)


# ----------------------------------------------------------------------------
# Wrapper: layout + BN folding + mask precompute + single pallas_call.
# ----------------------------------------------------------------------------
def res3d_k1dwk1_forward(x_ncdhw, params):
    """x_ncdhw: (N, C, T, H, W) float32 (PyTorch layout).  stride == 1 only."""
    N, c_in, T, H, W = x_ncdhw.shape
    kt, k, _, c_btn = params["w2"].shape
    c_out = params["w3"].shape[1]
    pt, ph, pw = params["pad"]          # "same" padding (module default)
    HW = H * W
    has_residual = (c_in == c_out)

    # Fail loudly on unimplemented module configurations.
    assert params.get("stride", 1) == 1, "stride==2 path not implemented"
    assert not params.get("force_resproj", False), "force_resproj not implemented"
    # TODO(synk): stride==2 (strided depthwise + AvgPool3d(1,2,2) residual) and
    #             force_resproj 1x1x1 residual projection.
    assert HW % 128 == 0, "pad H*W to a multiple of 128 for lane-dense stores"

    # NCDHW -> (N, T, C, H*W): flattened spatial on lanes, channels on sublanes.
    x = jnp.transpose(x_ncdhw, (0, 2, 1, 3, 4)).reshape(N, T, c_in, HW)

    # Fold BN scale into the conv weights (done once, outside the kernel).
    w1k = (params["w1"] * params["scale1"][None, :]).T                    # (btn, cin)
    b1 = params["shift1"].reshape(c_btn, 1)
    w2k = (params["w2"] * params["scale2"]).reshape(kt * k * k, c_btn).T  # (btn, kt*k*k)
    b2 = params["shift2"].reshape(c_btn, 1)
    w3k = (params["w3"] * params["scale3"][None, :]).T                    # (cout, btn)
    b3 = params["shift3"].reshape(c_out, 1)

    # Precompute the K*K spatial edge masks (0/1) for the rolled taps.
    row = jnp.arange(H).reshape(H, 1)
    col = jnp.arange(W).reshape(1, W)
    masks = []
    for ih in range(k):
        oh = ih - ph
        for iw in range(k):
            ow = iw - pw
            m = ((row + oh >= 0) & (row + oh < H) &
                 (col + ow >= 0) & (col + ow < W))
            masks.append(m.astype(jnp.float32).reshape(HW))
    smask = jnp.stack(masks)                                              # (k*k, HW)

    kernel = functools.partial(
        _res3d_fused_kernel, T=T, H=H, W=W, KT=kt, K=k, pt=pt, ph=ph, pw=pw,
        c_in=c_in, c_btn=c_btn, c_out=c_out, has_residual=has_residual)

    const2 = lambda n: (0, 0)
    out = pl.pallas_call(
        kernel,
        out_shape=jax.ShapeDtypeStruct((N, T, c_out, HW), x_ncdhw.dtype),
        grid=(N,),
        in_specs=[
            # Whole T per batch; conv1 computed once per frame into scratch.
            pl.BlockSpec((None, T, c_in, HW), lambda n: (n, 0, 0, 0)),
            pl.BlockSpec((c_btn, c_in), const2),
            pl.BlockSpec((c_btn, 1), const2),
            pl.BlockSpec((c_btn, kt * k * k), const2),
            pl.BlockSpec((c_btn, 1), const2),
            pl.BlockSpec((c_out, c_btn), const2),
            pl.BlockSpec((c_out, 1), const2),
            pl.BlockSpec((k * k, HW), const2),
        ],
        out_specs=pl.BlockSpec((None, T, c_out, HW), lambda n: (n, 0, 0, 0)),
        scratch_shapes=[pltpu.VMEM((T, c_btn, HW), jnp.float32)],
        compiler_params=pltpu.CompilerParams(
            dimension_semantics=("parallel",)),
    )(x, w1k, b1, w2k, b2, w3k, b3, smask)

    # (N, T, C_out, H*W) -> NCDHW
    return jnp.transpose(out.reshape(N, T, c_out, H, W), (0, 2, 1, 3, 4))


# ----------------------------------------------------------------------------
# Deterministic parameter construction (conv weights + folded eval-mode BN).
# ----------------------------------------------------------------------------
def make_params(key, cin, cout, btn, k, kt, eps=1e-5):
    ks = jax.random.split(key, 12)

    def bn_fold(kg, kb, km, kv, c):
        gamma = jax.random.uniform(kg, (c,), jnp.float32, 0.5, 1.5)
        beta = 0.1 * jax.random.normal(kb, (c,), jnp.float32)
        mean = 0.1 * jax.random.normal(km, (c,), jnp.float32)
        var = jax.random.uniform(kv, (c,), jnp.float32, 0.5, 1.5)
        scale = gamma / jnp.sqrt(var + eps)
        shift = beta - mean * scale
        return scale, shift

    w1 = 0.2 * jax.random.normal(ks[0], (cin, btn), jnp.float32)
    w2 = 0.2 * jax.random.normal(ks[1], (kt, k, k, btn), jnp.float32)
    w3 = 0.2 * jax.random.normal(ks[2], (btn, cout), jnp.float32)
    scale1, shift1 = bn_fold(ks[3], ks[4], ks[5], ks[6], btn)
    scale2, shift2 = bn_fold(ks[7], ks[8], ks[9], ks[10], btn)
    scale3, shift3 = bn_fold(ks[11], ks[3], ks[7], ks[0], cout)
    return dict(w1=w1, w2=w2, w3=w3,
                scale1=scale1, shift1=shift1,
                scale2=scale2, shift2=shift2,
                scale3=scale3, shift3=shift3,
                pad=((kt - 1) // 2, (k - 1) // 2, (k - 1) // 2))


# ----------------------------------------------------------------------------
# Pure-JAX reference (same math) for validation.
# ----------------------------------------------------------------------------
def reference_forward(x_ncdhw, params):
    hi = jax.lax.Precision.HIGHEST
    N, cin, T, H, W = x_ncdhw.shape
    kt, k, _, btn = params["w2"].shape
    cout = params["w3"].shape[1]
    pt, ph, pw = params["pad"]
    xc = jnp.transpose(x_ncdhw, (0, 2, 3, 4, 1)).astype(jnp.float32)  # N,T,H,W,C
    y = jnp.einsum("nthwc,cb->nthwb", xc, params["w1"], precision=hi)
    y = jnp.maximum(y * params["scale1"] + params["shift1"], 0.0)
    yp = jnp.pad(y, ((0, 0), (pt, pt), (ph, ph), (pw, pw), (0, 0)))
    acc = jnp.zeros_like(y)
    for dt in range(kt):
        for dh in range(k):
            for dw in range(k):
                acc = acc + (yp[:, dt:dt + T, dh:dh + H, dw:dw + W, :]
                             * params["w2"][dt, dh, dw])
    y2 = jnp.maximum(acc * params["scale2"] + params["shift2"], 0.0)
    y3 = (jnp.einsum("nthwb,bo->nthwo", y2, params["w3"], precision=hi)
          * params["scale3"] + params["shift3"])
    if cin == cout:
        y3 = y3 + xc                     # identity residual (stride 1)
    out = jnp.maximum(y3, 0.0)
    return jnp.transpose(out, (0, 4, 1, 2, 3))


if __name__ == "__main__":
    # structure_info: in=8, out=8, btn=16, k=3, kt=3, s=1 -> identity residual.
    # H=W=16 so the flattened spatial axis (256) is lane-dense (multiple of 128).
    N, CIN, COUT, BTN, T, H, W, K, KT = 2, 8, 8, 16, 4, 16, 16, 3, 3

    key = jax.random.PRNGKey(0)
    kx, kp = jax.random.split(key)
    x = jax.random.normal(kx, (N, CIN, T, H, W), jnp.float32)   # PyTorch NCDHW
    params = make_params(kp, CIN, COUT, BTN, K, KT)

    out = jax.block_until_ready(res3d_k1dwk1_forward(x, params))
    ref = jax.block_until_ready(reference_forward(x, params))

    assert out.shape == (N, COUT, T, H, W), out.shape
    max_err = float(jnp.max(jnp.abs(out - ref)))
    assert jnp.allclose(out, ref, atol=2e-4, rtol=2e-4), max_err
    print("KERNEL_OK")
</pallas_src>

<mosaic_0001>
module attributes {stable_mosaic.version = 11 : i64} {
  func.func @_res3d_fused_kernel(%arg0: i32, %arg1: memref<1x4x8x256xf32, #tpu.memory_space<vmem>>, %arg2: memref<16x8xf32, #tpu.memory_space<vmem>>, %arg3: memref<16x1xf32, #tpu.memory_space<vmem>>, %arg4: memref<16x27xf32, #tpu.memory_space<vmem>>, %arg5: memref<16x1xf32, #tpu.memory_space<vmem>>, %arg6: memref<8x16xf32, #tpu.memory_space<vmem>>, %arg7: memref<8x1xf32, #tpu.memory_space<vmem>>, %arg8: memref<9x256xf32, #tpu.memory_space<vmem>>, %arg9: memref<1x4x8x256xf32, #tpu.memory_space<vmem>>, %arg10: memref<4x16x256xf32, #tpu.memory_space<vmem>>) attributes {dimension_semantics = [#tpu.dimension_semantics<parallel>], iteration_bounds = array<i64: 2>, scalar_prefetch = 0 : i64, scratch_operands = 1 : i64, tpu.core_type = #tpu.core_type<tc>, window_params = [{transform_indices = @transform_0, window_bounds = array<i64: 1, 4, 8, 256>}, {pipeline_mode = #tpu.pipeline_mode<synchronous>, transform_indices = @transform_1, window_bounds = array<i64: 16, 8>}, {pipeline_mode = #tpu.pipeline_mode<synchronous>, transform_indices = @transform_2, window_bounds = array<i64: 16, 1>}, {pipeline_mode = #tpu.pipeline_mode<synchronous>, transform_indices = @transform_3, window_bounds = array<i64: 16, 27>}, {pipeline_mode = #tpu.pipeline_mode<synchronous>, transform_indices = @transform_4, window_bounds = array<i64: 16, 1>}, {pipeline_mode = #tpu.pipeline_mode<synchronous>, transform_indices = @transform_5, window_bounds = array<i64: 8, 16>}, {pipeline_mode = #tpu.pipeline_mode<synchronous>, transform_indices = @transform_6, window_bounds = array<i64: 8, 1>}, {pipeline_mode = #tpu.pipeline_mode<synchronous>, transform_indices = @transform_7, window_bounds = array<i64: 9, 256>}, {transform_indices = @transform_8, window_bounds = array<i64: 1, 4, 8, 256>}]} {
    %c0 = arith.constant 0 : index
    %c0_0 = arith.constant 0 : index
    %0 = vector.load %arg2[%c0, %c0_0] : memref<16x8xf32, #tpu.memory_space<vmem>>, vector<16x8xf32>
    %c0_1 = arith.constant 0 : index
    %c0_2 = arith.constant 0 : index
    %1 = vector.load %arg3[%c0_1, %c0_2] : memref<16x1xf32, #tpu.memory_space<vmem>>, vector<16x1xf32>
    %c0_3 = arith.constant 0 : index
    %c0_4 = arith.constant 0 : index
    %2 = vector.load %arg4[%c0_3, %c0_4] : memref<16x27xf32, #tpu.memory_space<vmem>>, vector<16x27xf32>
    %c0_5 = arith.constant 0 : index
    %c0_6 = arith.constant 0 : index
    %3 = vector.load %arg5[%c0_5, %c0_6] : memref<16x1xf32, #tpu.memory_space<vmem>>, vector<16x1xf32>
    %c0_7 = arith.constant 0 : index
    %c0_8 = arith.constant 0 : index
    %4 = vector.load %arg6[%c0_7, %c0_8] : memref<8x16xf32, #tpu.memory_space<vmem>>, vector<8x16xf32>
    %c0_9 = arith.constant 0 : index
    %c0_10 = arith.constant 0 : index
    %5 = vector.load %arg7[%c0_9, %c0_10] : memref<8x1xf32, #tpu.memory_space<vmem>>, vector<8x1xf32>
    %c0_11 = arith.constant 0 : index
    %c0_12 = arith.constant 0 : index
    %6 = vector.load %arg8[%c0_11, %c0_12] : memref<9x256xf32, #tpu.memory_space<vmem>>, vector<9x256xf32>
    %c0_13 = arith.constant 0 : index
    %c0_14 = arith.constant 0 : index
    %c0_15 = arith.constant 0 : index
    %c0_16 = arith.constant 0 : index
    %7 = vector.load %arg1[%c0_13, %c0_14, %c0_15, %c0_16] : memref<1x4x8x256xf32, #tpu.memory_space<vmem>>, vector<1x1x8x256xf32>
    %8 = vector.shape_cast %7 : vector<1x1x8x256xf32> to vector<8x256xf32>
    %cst = arith.constant dense<0.000000e+00> : vector<16x256xf32>
    %9 = tpu.matmul %0, %8, %cst {dimension_numbers = #tpu.dot_dimension_numbers<[1], [0], [0], [1], [0, 0, 1, 1], [], []>, precision = #tpu.contract_precision<fp32>} : vector<16x8xf32>, vector<8x256xf32>, vector<16x256xf32> -> vector<16x256xf32>
    %10 = vector.broadcast %1 : vector<16x1xf32> to vector<16x256xf32>
    %11 = arith.addf %9, %10 : vector<16x256xf32>
    %cst_17 = arith.constant 0.000000e+00 : f32
    %12 = vector.broadcast %cst_17 : f32 to vector<16x256xf32>
    %13 = arith.maximumf %11, %12 : vector<16x256xf32>
    %c0_18 = arith.constant 0 : index
    %c0_19 = arith.constant 0 : index
    %c0_20 = arith.constant 0 : index
    %14 = vector.load %arg10[%c0_18, %c0_19, %c0_20] : memref<4x16x256xf32, #tpu.memory_space<vmem>>, vector<1x16x256xf32>
    %15 = vector.shape_cast %14 : vector<1x16x256xf32> to vector<16x256xf32>
    %16 = vector.shape_cast %13 : vector<16x256xf32> to vector<1x16x256xf32>
    tpu.vector_store %arg10[%c0_18, %c0_19, %c0_20], %16 {strides = array<i32>} : memref<4x16x256xf32, #tpu.memory_space<vmem>>, vector<1x16x256xf32>,
    %c0_21 = arith.constant 0 : index
    %c1 = arith.constant 1 : index
    %c0_22 = arith.constant 0 : index
    %c0_23 = arith.constant 0 : index
    %17 = vector.load %arg1[%c0_21, %c1, %c0_22, %c0_23] : memref<1x4x8x256xf32, #tpu.memory_space<vmem>>, vector<1x1x8x256xf32>
    %18 = vector.shape_cast %17 : vector<1x1x8x256xf32> to vector<8x256xf32>
    %cst_24 = arith.constant dense<0.000000e+00> : vector<16x256xf32>
    %19 = tpu.matmul %0, %18, %cst_24 {dimension_numbers = #tpu.dot_dimension_numbers<[1], [0], [0], [1], [0, 0, 1, 1], [], []>, precision = #tpu.contract_precision<fp32>} : vector<16x8xf32>, vector<8x256xf32>, vector<16x256xf32> -> vector<16x256xf32>
    %20 = vector.broadcast %1 : vector<16x1xf32> to vector<16x256xf32>
    %21 = arith.addf %19, %20 : vector<16x256xf32>
    %cst_25 = arith.constant 0.000000e+00 : f32
    %22 = vector.broadcast %cst_25 : f32 to vector<16x256xf32>
    %23 = arith.maximumf %21, %22 : vector<16x256xf32>
    %c1_26 = arith.constant 1 : index
    %c0_27 = arith.constant 0 : index
    %c0_28 = arith.constant 0 : index
    %24 = vector.load %arg10[%c1_26, %c0_27, %c0_28] : memref<4x16x256xf32, #tpu.memory_space<vmem>>, vector<1x16x256xf32>
    %25 = vector.shape_cast %24 : vector<1x16x256xf32> to vector<16x256xf32>
    %26 = vector.shape_cast %23 : vector<16x256xf32> to vector<1x16x256xf32>
    tpu.vector_store %arg10[%c1_26, %c0_27, %c0_28], %26 {strides = array<i32>} : memref<4x16x256xf32, #tpu.memory_space<vmem>>, vector<1x16x256xf32>,
    %c0_29 = arith.constant 0 : index
    %c2 = arith.constant 2 : index
    %c0_30 = arith.constant 0 : index
    %c0_31 = arith.constant 0 : index
    %27 = vector.load %arg1[%c0_29, %c2, %c0_30, %c0_31] : memref<1x4x8x256xf32, #tpu.memory_space<vmem>>, vector<1x1x8x256xf32>
    %28 = vector.shape_cast %27 : vector<1x1x8x256xf32> to vector<8x256xf32>
    %cst_32 = arith.constant dense<0.000000e+00> : vector<16x256xf32>
    %29 = tpu.matmul %0, %28, %cst_32 {dimension_numbers = #tpu.dot_dimension_numbers<[1], [0], [0], [1], [0, 0, 1, 1], [], []>, precision = #tpu.contract_precision<fp32>} : vector<16x8xf32>, vector<8x256xf32>, vector<16x256xf32> -> vector<16x256xf32>
    %30 = vector.broadcast %1 : vector<16x1xf32> to vector<16x256xf32>
    %31 = arith.addf %29, %30 : vector<16x256xf32>
    %cst_33 = arith.constant 0.000000e+00 : f32
    %32 = vector.broadcast %cst_33 : f32 to vector<16x256xf32>
    %33 = arith.maximumf %31, %32 : vector<16x256xf32>
    %c2_34 = arith.constant 2 : index
    %c0_35 = arith.constant 0 : index
    %c0_36 = arith.constant 0 : index
    %34 = vector.load %arg10[%c2_34, %c0_35, %c0_36] : memref<4x16x256xf32, #tpu.memory_space<vmem>>, vector<1x16x256xf32>
    %35 = vector.shape_cast %34 : vector<1x16x256xf32> to vector<16x256xf32>
    %36 = vector.shape_cast %33 : vector<16x256xf32> to vector<1x16x256xf32>
    tpu.vector_store %arg10[%c2_34, %c0_35, %c0_36], %36 {strides = array<i32>} : memref<4x16x256xf32, #tpu.memory_space<vmem>>, vector<1x16x256xf32>,
    %c0_37 = arith.constant 0 : index
    %c3 = arith.constant 3 : index
    %c0_38 = arith.constant 0 : index
    %c0_39 = arith.constant 0 : index
    %37 = vector.load %arg1[%c0_37, %c3, %c0_38, %c0_39] : memref<1x4x8x256xf32, #tpu.memory_space<vmem>>, vector<1x1x8x256xf32>
    %38 = vector.shape_cast %37 : vector<1x1x8x256xf32> to vector<8x256xf32>
    %cst_40 = arith.constant dense<0.000000e+00> : vector<16x256xf32>
    %39 = tpu.matmul %0, %38, %cst_40 {dimension_numbers = #tpu.dot_dimension_numbers<[1], [0], [0], [1], [0, 0, 1, 1], [], []>, precision = #tpu.contract_precision<fp32>} : vector<16x8xf32>, vector<8x256xf32>, vector<16x256xf32> -> vector<16x256xf32>
    %40 = vector.broadcast %1 : vector<16x1xf32> to vector<16x256xf32>
    %41 = arith.addf %39, %40 : vector<16x256xf32>
    %cst_41 = arith.constant 0.000000e+00 : f32
    %42 = vector.broadcast %cst_41 : f32 to vector<16x256xf32>
    %43 = arith.maximumf %41, %42 : vector<16x256xf32>
    %c3_42 = arith.constant 3 : index
    %c0_43 = arith.constant 0 : index
    %c0_44 = arith.constant 0 : index
    %44 = vector.load %arg10[%c3_42, %c0_43, %c0_44] : memref<4x16x256xf32, #tpu.memory_space<vmem>>, vector<1x16x256xf32>
    %45 = vector.shape_cast %44 : vector<1x16x256xf32> to vector<16x256xf32>
    %46 = vector.shape_cast %43 : vector<16x256xf32> to vector<1x16x256xf32>
    tpu.vector_store %arg10[%c3_42, %c0_43, %c0_44], %46 {strides = array<i32>} : memref<4x16x256xf32, #tpu.memory_space<vmem>>, vector<1x16x256xf32>,
    %c0_45 = arith.constant 0 : index
    %c0_46 = arith.constant 0 : index
    %c0_47 = arith.constant 0 : index
    %47 = vector.load %arg10[%c0_45, %c0_46, %c0_47] : memref<4x16x256xf32, #tpu.memory_space<vmem>>, vector<1x16x256xf32>
    %48 = vector.shape_cast %47 : vector<1x16x256xf32> to vector<16x256xf32>
    %c1_48 = arith.constant 1 : index
    %c0_49 = arith.constant 0 : index
    %c0_50 = arith.constant 0 : index
    %49 = vector.load %arg10[%c1_48, %c0_49, %c0_50] : memref<4x16x256xf32, #tpu.memory_space<vmem>>, vector<1x16x256xf32>
    %50 = vector.shape_cast %49 : vector<1x16x256xf32> to vector<16x256xf32>
    %cst_51 = arith.constant 0.000000e+00 : f32
    %51 = vector.broadcast %cst_51 : f32 to vector<16x256xf32>
    %52 = vector.extract_strided_slice %2 {offsets = [0, 9], sizes = [16, 1], strides = [1, 1]} : vector<16x27xf32> to vector<16x1xf32>
    %53 = vector.broadcast %52 : vector<16x1xf32> to vector<16x256xf32>
    %54 = arith.mulf %48, %53 : vector<16x256xf32>
    %55 = vector.extract_strided_slice %2 {offsets = [0, 18], sizes = [16, 1], strides = [1, 1]} : vector<16x27xf32> to vector<16x1xf32>
    %56 = vector.broadcast %55 : vector<16x1xf32> to vector<16x256xf32>
    %57 = arith.mulf %50, %56 : vector<16x256xf32>
    %58 = arith.addf %54, %57 : vector<16x256xf32>
    %c17_i32 = arith.constant 17 : i32
    %59 = tpu.dynamic_rotate %58 by %c17_i32 dim 1 : vector<16x256xf32>, i32 -> vector<16x256xf32>
    %60 = vector.extract_strided_slice %6 {offsets = [0, 0], sizes = [1, 256], strides = [1, 1]} : vector<9x256xf32> to vector<1x256xf32>
    %61 = vector.broadcast %60 : vector<1x256xf32> to vector<16x256xf32>
    %62 = arith.mulf %59, %61 : vector<16x256xf32>
    %63 = arith.addf %51, %62 : vector<16x256xf32>
    %64 = vector.extract_strided_slice %2 {offsets = [0, 10], sizes = [16, 1], strides = [1, 1]} : vector<16x27xf32> to vector<16x1xf32>
    %65 = vector.broadcast %64 : vector<16x1xf32> to vector<16x256xf32>
    %66 = arith.mulf %48, %65 : vector<16x256xf32>
    %67 = vector.extract_strided_slice %2 {offsets = [0, 19], sizes = [16, 1], strides = [1, 1]} : vector<16x27xf32> to vector<16x1xf32>
    %68 = vector.broadcast %67 : vector<16x1xf32> to vector<16x256xf32>
    %69 = arith.mulf %50, %68 : vector<16x256xf32>
    %70 = arith.addf %66, %69 : vector<16x256xf32>
    %c16_i32 = arith.constant 16 : i32
    %71 = tpu.dynamic_rotate %70 by %c16_i32 dim 1 : vector<16x256xf32>, i32 -> vector<16x256xf32>
    %72 = vector.extract_strided_slice %6 {offsets = [1, 0], sizes = [1, 256], strides = [1, 1]} : vector<9x256xf32> to vector<1x256xf32>
    %73 = vector.broadcast %72 : vector<1x256xf32> to vector<16x256xf32>
    %74 = arith.mulf %71, %73 : vector<16x256xf32>
    %75 = arith.addf %63, %74 : vector<16x256xf32>
    %76 = vector.extract_strided_slice %2 {offsets = [0, 11], sizes = [16, 1], strides = [1, 1]} : vector<16x27xf32> to vector<16x1xf32>
    %77 = vector.broadcast %76 : vector<16x1xf32> to vector<16x256xf32>
    %78 = arith.mulf %48, %77 : vector<16x256xf32>
    %79 = vector.extract_strided_slice %2 {offsets = [0, 20], sizes = [16, 1], strides = [1, 1]} : vector<16x27xf32> to vector<16x1xf32>
    %80 = vector.broadcast %79 : vector<16x1xf32> to vector<16x256xf32>
    %81 = arith.mulf %50, %80 : vector<16x256xf32>
    %82 = arith.addf %78, %81 : vector<16x256xf32>
    %c15_i32 = arith.constant 15 : i32
    %83 = tpu.dynamic_rotate %82 by %c15_i32 dim 1 : vector<16x256xf32>, i32 -> vector<16x256xf32>
    %84 = vector.extract_strided_slice %6 {offsets = [2, 0], sizes = [1, 256], strides = [1, 1]} : vector<9x256xf32> to vector<1x256xf32>
    %85 = vector.broadcast %84 : vector<1x256xf32> to vector<16x256xf32>
    %86 = arith.mulf %83, %85 : vector<16x256xf32>
    %87 = arith.addf %75, %86 : vector<16x256xf32>
    %88 = vector.extract_strided_slice %2 {offsets = [0, 12], sizes = [16, 1], strides = [1, 1]} : vector<16x27xf32> to vector<16x1xf32>
    %89 = vector.broadcast %88 : vector<16x1xf32> to vector<16x256xf32>
    %90 = arith.mulf %48, %89 : vector<16x256xf32>
    %91 = vector.extract_strided_slice %2 {offsets = [0, 21], sizes = [16, 1], strides = [1, 1]} : vector<16x27xf32> to vector<16x1xf32>
    %92 = vector.broadcast %91 : vector<16x1xf32> to vector<16x256xf32>
    %93 = arith.mulf %50, %92 : vector<16x256xf32>
    %94 = arith.addf %90, %93 : vector<16x256xf32>
    %c1_i32 = arith.constant 1 : i32
    %95 = tpu.dynamic_rotate %94 by %c1_i32 dim 1 : vector<16x256xf32>, i32 -> vector<16x256xf32>
    %96 = vector.extract_strided_slice %6 {offsets = [3, 0], sizes = [1, 256], strides = [1, 1]} : vector<9x256xf32> to vector<1x256xf32>
    %97 = vector.broadcast %96 : vector<1x256xf32> to vector<16x256xf32>
    %98 = arith.mulf %95, %97 : vector<16x256xf32>
    %99 = arith.addf %87, %98 : vector<16x256xf32>
    %100 = vector.extract_strided_slice %2 {offsets = [0, 13], sizes = [16, 1], strides = [1, 1]} : vector<16x27xf32> to vector<16x1xf32>
    %101 = vector.broadcast %100 : vector<16x1xf32> to vector<16x256xf32>
    %102 = arith.mulf %48, %101 : vector<16x256xf32>
    %103 = vector.extract_strided_slice %2 {offsets = [0, 22], sizes = [16, 1], strides = [1, 1]} : vector<16x27xf32> to vector<16x1xf32>
    %104 = vector.broadcast %103 : vector<16x1xf32> to vector<16x256xf32>
    %105 = arith.mulf %50, %104 : vector<16x256xf32>
    %106 = arith.addf %102, %105 : vector<16x256xf32>
    %107 = arith.addf %99, %106 : vector<16x256xf32>
    %108 = vector.extract_strided_slice %2 {offsets = [0, 14], sizes = [16, 1], strides = [1, 1]} : vector<16x27xf32> to vector<16x1xf32>
    %109 = vector.broadcast %108 : vector<16x1xf32> to vector<16x256xf32>
    %110 = arith.mulf %48, %109 : vector<16x256xf32>
    %111 = vector.extract_strided_slice %2 {offsets = [0, 23], sizes = [16, 1], strides = [1, 1]} : vector<16x27xf32> to vector<16x1xf32>
    %112 = vector.broadcast %111 : vector<16x1xf32> to vector<16x256xf32>
    %113 = arith.mulf %50, %112 : vector<16x256xf32>
    %114 = arith.addf %110, %113 : vector<16x256xf32>
    %c255_i32 = arith.constant 255 : i32
    %115 = tpu.dynamic_rotate %114 by %c255_i32 dim 1 : vector<16x256xf32>, i32 -> vector<16x256xf32>
    %116 = vector.extract_strided_slice %6 {offsets = [5, 0], sizes = [1, 256], strides = [1, 1]} : vector<9x256xf32> to vector<1x256xf32>
    %117 = vector.broadcast %116 : vector<1x256xf32> to vector<16x256xf32>
    %118 = arith.mulf %115, %117 : vector<16x256xf32>
    %119 = arith.addf %107, %118 : vector<16x256xf32>
    %120 = vector.extract_strided_slice %2 {offsets = [0, 15], sizes = [16, 1], strides = [1, 1]} : vector<16x27xf32> to vector<16x1xf32>
    %121 = vector.broadcast %120 : vector<16x1xf32> to vector<16x256xf32>
    %122 = arith.mulf %48, %121 : vector<16x256xf32>
    %123 = vector.extract_strided_slice %2 {offsets = [0, 24], sizes = [16, 1], strides = [1, 1]} : vector<16x27xf32> to vector<16x1xf32>
    %124 = vector.broadcast %123 : vector<16x1xf32> to vector<16x256xf32>
    %125 = arith.mulf %50, %124 : vector<16x256xf32>
    %126 = arith.addf %122, %125 : vector<16x256xf32>
    %c241_i32 = arith.constant 241 : i32
    %127 = tpu.dynamic_rotate %126 by %c241_i32 dim 1 : vector<16x256xf32>, i32 -> vector<16x256xf32>
    %128 = vector.extract_strided_slice %6 {offsets = [6, 0], sizes = [1, 256], strides = [1, 1]} : vector<9x256xf32> to vector<1x256xf32>
    %129 = vector.broadcast %128 : vector<1x256xf32> to vector<16x256xf32>
    %130 = arith.mulf %127, %129 : vector<16x256xf32>
    %131 = arith.addf %119, %130 : vector<16x256xf32>
    %132 = vector.extract_strided_slice %2 {offsets = [0, 16], sizes = [16, 1], strides = [1, 1]} : vector<16x27xf32> to vector<16x1xf32>
    %133 = vector.broadcast %132 : vector<16x1xf32> to vector<16x256xf32>
    %134 = arith.mulf %48, %133 : vector<16x256xf32>
    %135 = vector.extract_strided_slice %2 {offsets = [0, 25], sizes = [16, 1], strides = [1, 1]} : vector<16x27xf32> to vector<16x1xf32>
    %136 = vector.broadcast %135 : vector<16x1xf32> to vector<16x256xf32>
    %137 = arith.mulf %50, %136 : vector<16x256xf32>
    %138 = arith.addf %134, %137 : vector<16x256xf32>
    %c240_i32 = arith.constant 240 : i32
    %139 = tpu.dynamic_rotate %138 by %c240_i32 dim 1 : vector<16x256xf32>, i32 -> vector<16x256xf32>
    %140 = vector.extract_strided_slice %6 {offsets = [7, 0], sizes = [1, 256], strides = [1, 1]} : vector<9x256xf32> to vector<1x256xf32>
    %141 = vector.broadcast %140 : vector<1x256xf32> to vector<16x256xf32>
    %142 = arith.mulf %139, %141 : vector<16x256xf32>
    %143 = arith.addf %131, %142 : vector<16x256xf32>
    %144 = vector.extract_strided_slice %2 {offsets = [0, 17], sizes = [16, 1], strides = [1, 1]} : vector<16x27xf32> to vector<16x1xf32>
    %145 = vector.broadcast %144 : vector<16x1xf32> to vector<16x256xf32>
    %146 = arith.mulf %48, %145 : vector<16x256xf32>
    %147 = vector.extract_strided_slice %2 {offsets = [0, 26], sizes = [16, 1], strides = [1, 1]} : vector<16x27xf32> to vector<16x1xf32>
    %148 = vector.broadcast %147 : vector<16x1xf32> to vector<16x256xf32>
    %149 = arith.mulf %50, %148 : vector<16x256xf32>
    %150 = arith.addf %146, %149 : vector<16x256xf32>
    %c239_i32 = arith.constant 239 : i32
    %151 = tpu.dynamic_rotate %150 by %c239_i32 dim 1 : vector<16x256xf32>, i32 -> vector<16x256xf32>
    %152 = vector.extract_strided_slice %6 {offsets = [8, 0], sizes = [1, 256], strides = [1, 1]} : vector<9x256xf32> to vector<1x256xf32>
    %153 = vector.broadcast %152 : vector<1x256xf32> to vector<16x256xf32>
    %154 = arith.mulf %151, %153 : vector<16x256xf32>
    %155 = arith.addf %143, %154 : vector<16x256xf32>
    %156 = vector.broadcast %3 : vector<16x1xf32> to vector<16x256xf32>
    %157 = arith.addf %155, %156 : vector<16x256xf32>
    %cst_52 = arith.constant 0.000000e+00 : f32
    %158 = vector.broadcast %cst_52 : f32 to vector<16x256xf32>
    %159 = arith.maximumf %157, %158 : vector<16x256xf32>
    %cst_53 = arith.constant dense<0.000000e+00> : vector<8x256xf32>
    %160 = tpu.matmul %4, %159, %cst_53 {dimension_numbers = #tpu.dot_dimension_numbers<[1], [0], [0], [1], [0, 0, 1, 1], [], []>, precision = #tpu.contract_precision<fp32>} : vector<8x16xf32>, vector<16x256xf32>, vector<8x256xf32> -> vector<8x256xf32>
    %161 = vector.broadcast %5 : vector<8x1xf32> to vector<8x256xf32>
    %162 = arith.addf %160, %161 : vector<8x256xf32>
    %c0_54 = arith.constant 0 : index
    %c0_55 = arith.constant 0 : index
    %c0_56 = arith.constant 0 : index
    %c0_57 = arith.constant 0 : index
    %163 = vector.load %arg1[%c0_54, %c0_55, %c0_56, %c0_57] : memref<1x4x8x256xf32, #tpu.memory_space<vmem>>, vector<1x1x8x256xf32>
    %164 = vector.shape_cast %163 : vector<1x1x8x256xf32> to vector<8x256xf32>
    %165 = arith.addf %162, %164 : vector<8x256xf32>
    %cst_58 = arith.constant 0.000000e+00 : f32
    %166 = vector.broadcast %cst_58 : f32 to vector<8x256xf32>
    %167 = arith.maximumf %165, %166 : vector<8x256xf32>
    %c0_59 = arith.constant 0 : index
    %c0_60 = arith.constant 0 : index
    %c0_61 = arith.constant 0 : index
    %c0_62 = arith.constant 0 : index
    %168 = vector.load %arg9[%c0_59, %c0_60, %c0_61, %c0_62] : memref<1x4x8x256xf32, #tpu.memory_space<vmem>>, vector<1x1x8x256xf32>
    %169 = vector.shape_cast %168 : vector<1x1x8x256xf32> to vector<8x256xf32>
    %170 = vector.shape_cast %167 : vector<8x256xf32> to vector<1x1x8x256xf32>
    tpu.vector_store %arg9[%c0_59, %c0_60, %c0_61, %c0_62], %170 {strides = array<i32>} : memref<1x4x8x256xf32, #tpu.memory_space<vmem>>, vector<1x1x8x256xf32>,
    %c0_63 = arith.constant 0 : index
    %c0_64 = arith.constant 0 : index
    %c0_65 = arith.constant 0 : index
    %171 = vector.load %arg10[%c0_63, %c0_64, %c0_65] : memref<4x16x256xf32, #tpu.memory_space<vmem>>, vector<1x16x256xf32>
    %172 = vector.shape_cast %171 : vector<1x16x256xf32> to vector<16x256xf32>
    %c1_66 = arith.constant 1 : index
    %c0_67 = arith.constant 0 : index
    %c0_68 = arith.constant 0 : index
    %173 = vector.load %arg10[%c1_66, %c0_67, %c0_68] : memref<4x16x256xf32, #tpu.memory_space<vmem>>, vector<1x16x256xf32>
    %174 = vector.shape_cast %173 : vector<1x16x256xf32> to vector<16x256xf32>
    %c2_69 = arith.constant 2 : index
    %c0_70 = arith.constant 0 : index
    %c0_71 = arith.constant 0 : index
    %175 = vector.load %arg10[%c2_69, %c0_70, %c0_71] : memref<4x16x256xf32, #tpu.memory_space<vmem>>, vector<1x16x256xf32>
    %176 = vector.shape_cast %175 : vector<1x16x256xf32> to vector<16x256xf32>
    %cst_72 = arith.constant 0.000000e+00 : f32
    %177 = vector.broadcast %cst_72 : f32 to vector<16x256xf32>
    %178 = vector.extract_strided_slice %2 {offsets = [0, 0], sizes = [16, 1], strides = [1, 1]} : vector<16x27xf32> to vector<16x1xf32>
    %179 = vector.broadcast %178 : vector<16x1xf32> to vector<16x256xf32>
    %180 = arith.mulf %172, %179 : vector<16x256xf32>
    %181 = vector.extract_strided_slice %2 {offsets = [0, 9], sizes = [16, 1], strides = [1, 1]} : vector<16x27xf32> to vector<16x1xf32>
    %182 = vector.broadcast %181 : vector<16x1xf32> to vector<16x256xf32>
    %183 = arith.mulf %174, %182 : vector<16x256xf32>
    %184 = arith.addf %180, %183 : vector<16x256xf32>
    %185 = vector.extract_strided_slice %2 {offsets = [0, 18], sizes = [16, 1], strides = [1, 1]} : vector<16x27xf32> to vector<16x1xf32>
    %186 = vector.broadcast %185 : vector<16x1xf32> to vector<16x256xf32>
    %187 = arith.mulf %176, %186 : vector<16x256xf32>
    %188 = arith.addf %184, %187 : vector<16x256xf32>
    %c17_i32_73 = arith.constant 17 : i32
    %189 = tpu.dynamic_rotate %188 by %c17_i32_73 dim 1 : vector<16x256xf32>, i32 -> vector<16x256xf32>
    %190 = vector.extract_strided_slice %6 {offsets = [0, 0], sizes = [1, 256], strides = [1, 1]} : vector<9x256xf32> to vector<1x256xf32>
    %191 = vector.broadcast %190 : vector<1x256xf32> to vector<16x256xf32>
    %192 = arith.mulf %189, %191 : vector<16x256xf32>
    %193 = arith.addf %177, %192 : vector<16x256xf32>
    %194 = vector.extract_strided_slice %2 {offsets = [0, 1], sizes = [16, 1], strides = [1, 1]} : vector<16x27xf32> to vector<16x1xf32>
    %195 = vector.broadcast %194 : vector<16x1xf32> to vector<16x256xf32>
    %196 = arith.mulf %172, %195 : vector<16x256xf32>
    %197 = vector.extract_strided_slice %2 {offsets = [0, 10], sizes = [16, 1], strides = [1, 1]} : vector<16x27xf32> to vector<16x1xf32>
    %198 = vector.broadcast %197 : vector<16x1xf32> to vector<16x256xf32>
    %199 = arith.mulf %174, %198 : vector<16x256xf32>
    %200 = arith.addf %196, %199 : vector<16x256xf32>
    %201 = vector.extract_strided_slice %2 {offsets = [0, 19], sizes = [16, 1], strides = [1, 1]} : vector<16x27xf32> to vector<16x1xf32>
    %202 = vector.broadcast %201 : vector<16x1xf32> to vector<16x256xf32>
    %203 = arith.mulf %176, %202 : vector<16x256xf32>
    %204 = arith.addf %200, %203 : vector<16x256xf32>
    %c16_i32_74 = arith.constant 16 : i32
    %205 = tpu.dynamic_rotate %204 by %c16_i32_74 dim 1 : vector<16x256xf32>, i32 -> vector<16x256xf32>
    %206 = vector.extract_strided_slice %6 {offsets = [1, 0], sizes = [1, 256], strides = [1, 1]} : vector<9x256xf32> to vector<1x256xf32>
    %207 = vector.broadcast %206 : vector<1x256xf32> to vector<16x256xf32>
    %208 = arith.mulf %205, %207 : vector<16x256xf32>
    %209 = arith.addf %193, %208 : vector<16x256xf32>
    %210 = vector.extract_strided_slice %2 {offsets = [0, 2], sizes = [16, 1], strides = [1, 1]} : vector<16x27xf32> to vector<16x1xf32>
    %211 = vector.broadcast %210 : vector<16x1xf32> to vector<16x256xf32>
    %212 = arith.mulf %172, %211 : vector<16x256xf32>
    %213 = vector.extract_strided_slice %2 {offsets = [0, 11], sizes = [16, 1], strides = [1, 1]} : vector<16x27xf32> to vector<16x1xf32>
    %214 = vector.broadcast %213 : vector<16x1xf32> to vector<16x256xf32>
    %215 = arith.mulf %174, %214 : vector<16x256xf32>
    %216 = arith.addf %212, %215 : vector<16x256xf32>
    %217 = vector.extract_strided_slice %2 {offsets = [0, 20], sizes = [16, 1], strides = [1, 1]} : vector<16x27xf32> to vector<16x1xf32>
    %218 = vector.broadcast %217 : vector<16x1xf32> to vector<16x256xf32>
    %219 = arith.mulf %176, %218 : vector<16x256xf32>
    %220 = arith.addf %216, %219 : vector<16x256xf32>
    %c15_i32_75 = arith.constant 15 : i32
    %221 = tpu.dynamic_rotate %220 by %c15_i32_75 dim 1 : vector<16x256xf32>, i32 -> vector<16x256xf32>
    %222 = vector.extract_strided_slice %6 {offsets = [2, 0], sizes = [1, 256], strides = [1, 1]} : vector<9x256xf32> to vector<1x256xf32>
    %223 = vector.broadcast %222 : vector<1x256xf32> to vector<16x256xf32>
    %224 = arith.mulf %221, %223 : vector<16x256xf32>
    %225 = arith.addf %209, %224 : vector<16x256xf32>
    %226 = vector.extract_strided_slice %2 {offsets = [0, 3], sizes = [16, 1], strides = [1, 1]} : vector<16x27xf32> to vector<16x1xf32>
    %227 = vector.broadcast %226 : vector<16x1xf32> to vector<16x256xf32>
    %228 = arith.mulf %172, %227 : vector<16x256xf32>
    %229 = vector.extract_strided_slice %2 {offsets = [0, 12], sizes = [16, 1], strides = [1, 1]} : vector<16x27xf32> to vector<16x1xf32>
    %230 = vector.broadcast %229 : vector<16x1xf32> to vector<16x256xf32>
    %231 = arith.mulf %174, %230 : vector<16x256xf32>
    %232 = arith.addf %228, %231 : vector<16x256xf32>
    %233 = vector.extract_strided_slice %2 {offsets = [0, 21], sizes = [16, 1], strides = [1, 1]} : vector<16x27xf32> to vector<16x1xf32>
    %234 = vector.broadcast %233 : vector<16x1xf32> to vector<16x256xf32>
    %235 = arith.mulf %176, %234 : vector<16x256xf32>
    %236 = arith.addf %232, %235 : vector<16x256xf32>
    %c1_i32_76 = arith.constant 1 : i32
    %237 = tpu.dynamic_rotate %236 by %c1_i32_76 dim 1 : vector<16x256xf32>, i32 -> vector<16x256xf32>
    %238 = vector.extract_strided_slice %6 {offsets = [3, 0], sizes = [1, 256], strides = [1, 1]} : vector<9x256xf32> to vector<1x256xf32>
    %239 = vector.broadcast %238 : vector<1x256xf32> to vector<16x256xf32>
    %240 = arith.mulf %237, %239 : vector<16x256xf32>
    %241 = arith.addf %225, %240 : vector<16x256xf32>
    %242 = vector.extract_strided_slice %2 {offsets = [0, 4], sizes = [16, 1], strides = [1, 1]} : vector<16x27xf32> to vector<16x1xf32>
    %243 = vector.broadcast %242 : vector<16x1xf32> to vector<16x256xf32>
    %244 = arith.mulf %172, %243 : vector<16x256xf32>
    %245 = vector.extract_strided_slice %2 {offsets = [0, 13], sizes = [16, 1], strides = [1, 1]} : vector<16x27xf32> to vector<16x1xf32>
    %246 = vector.broadcast %245 : vector<16x1xf32> to vector<16x256xf32>
    %247 = arith.mulf %174, %246 : vector<16x256xf32>
    %248 = arith.addf %244, %247 : vector<16x256xf32>
    %249 = vector.extract_strided_slice %2 {offsets = [0, 22], sizes = [16, 1], strides = [1, 1]} : vector<16x27xf32> to vector<16x1xf32>
    %250 = vector.broadcast %249 : vector<16x1xf32> to vector<16x256xf32>
    %251 = arith.mulf %176, %250 : vector<16x256xf32>
    %252 = arith.addf %248, %251 : vector<16x256xf32>
    %253 = arith.addf %241, %252 : vector<16x256xf32>
    %254 = vector.extract_strided_slice %2 {offsets = [0, 5], sizes = [16, 1], strides = [1, 1]} : vector<16x27xf32> to vector<16x1xf32>
    %255 = vector.broadcast %254 : vector<16x1xf32> to vector<16x256xf32>
    %256 = arith.mulf %172, %255 : vector<16x256xf32>
    %257 = vector.extract_strided_slice %2 {offsets = [0, 14], sizes = [16, 1], strides = [1, 1]} : vector<16x27xf32> to vector<16x1xf32>
    %258 = vector.broadcast %257 : vector<16x1xf32> to vector<16x256xf32>
    %259 = arith.mulf %174, %258 : vector<16x256xf32>
    %260 = arith.addf %256, %259 : vector<16x256xf32>
    %261 = vector.extract_strided_slice %2 {offsets = [0, 23], sizes = [16, 1], strides = [1, 1]} : vector<16x27xf32> to vector<16x1xf32>
    %262 = vector.broadcast %261 : vector<16x1xf32> to vector<16x256xf32>
    %263 = arith.mulf %176, %262 : vector<16x256xf32>
    %264 = arith.addf %260, %263 : vector<16x256xf32>
    %c255_i32_77 = arith.constant 255 : i32
    %265 = tpu.dynamic_rotate %264 by %c255_i32_77 dim 1 : vector<16x256xf32>, i32 -> vector<16x256xf32>
    %266 = vector.extract_strided_slice %6 {offsets = [5, 0], sizes = [1, 256], strides = [1, 1]} : vector<9x256xf32> to vector<1x256xf32>
    %267 = vector.broadcast %266 : vector<1x256xf32> to vector<16x256xf32>
    %268 = arith.mulf %265, %267 : vector<16x256xf32>
    %269 = arith.addf %253, %268 : vector<16x256xf32>
    %270 = vector.extract_strided_slice %2 {offsets = [0, 6], sizes = [16, 1], strides = [1, 1]} : vector<16x27xf32> to vector<16x1xf32>
    %271 = vector.broadcast %270 : vector<16x1xf32> to vector<16x256xf32>
    %272 = arith.mulf %172, %271 : vector<16x256xf32>
    %273 = vector.extract_strided_slice %2 {offsets = [0, 15], sizes = [16, 1], strides = [1, 1]} : vector<16x27xf32> to vector<16x1xf32>
    %274 = vector.broadcast %273 : vector<16x1xf32> to vector<16x256xf32>
    %275 = arith.mulf %174, %274 : vector<16x256xf32>
    %276 = arith.addf %272, %275 : vector<16x256xf32>
    %277 = vector.extract_strided_slice %2 {offsets = [0, 24], sizes = [16, 1], strides = [1, 1]} : vector<16x27xf32> to vector<16x1xf32>
    %278 = vector.broadcast %277 : vector<16x1xf32> to vector<16x256xf32>
    %279 = arith.mulf %176, %278 : vector<16x256xf32>
    %280 = arith.addf %276, %279 : vector<16x256xf32>
    %c241_i32_78 = arith.constant 241 : i32
    %281 = tpu.dynamic_rotate %280 by %c241_i32_78 dim 1 : vector<16x256xf32>, i32 -> vector<16x256xf32>
    %282 = vector.extract_strided_slice %6 {offsets = [6, 0], sizes = [1, 256], strides = [1, 1]} : vector<9x256xf32> to vector<1x256xf32>
    %283 = vector.broadcast %282 : vector<1x256xf32> to vector<16x256xf32>
    %284 = arith.mulf %281, %283 : vector<16x256xf32>
    %285 = arith.addf %269, %284 : vector<16x256xf32>
    %286 = vector.extract_strided_slice %2 {offsets = [0, 7], sizes = [16, 1], strides = [1, 1]} : vector<16x27xf32> to vector<16x1xf32>
    %287 = vector.broadcast %286 : vector<16x1xf32> to vector<16x256xf32>
    %288 = arith.mulf %172, %287 : vector<16x256xf32>
    %289 = vector.extract_strided_slice %2 {offsets = [0, 16], sizes = [16, 1], strides = [1, 1]} : vector<16x27xf32> to vector<16x1xf32>
    %290 = vector.broadcast %289 : vector<16x1xf32> to vector<16x256xf32>
    %291 = arith.mulf %174, %290 : vector<16x256xf32>
    %292 = arith.addf %288, %291 : vector<16x256xf32>
    %293 = vector.extract_strided_slice %2 {offsets = [0, 25], sizes = [16, 1], strides = [1, 1]} : vector<16x27xf32> to vector<16x1xf32>
    %294 = vector.broadcast %293 : vector<16x1xf32> to vector<16x256xf32>
    %295 = arith.mulf %176, %294 : vector<16x256xf32>
    %296 = arith.addf %292, %295 : vector<16x256xf32>
    %c240_i32_79 = arith.constant 240 : i32
    %297 = tpu.dynamic_rotate %296 by %c240_i32_79 dim 1 : vector<16x256xf32>, i32 -> vector<16x256xf32>
    %298 = vector.extract_strided_slice %6 {offsets = [7, 0], sizes = [1, 256], strides = [1, 1]} : vector<9x256xf32> to vector<1x256xf32>
    %299 = vector.broadcast %298 : vector<1x256xf32> to vector<16x256xf32>
    %300 = arith.mulf %297, %299 : vector<16x256xf32>
    %301 = arith.addf %285, %300 : vector<16x256xf32>
    %302 = vector.extract_strided_slice %2 {offsets = [0, 8], sizes = [16, 1], strides = [1, 1]} : vector<16x27xf32> to vector<16x1xf32>
    %303 = vector.broadcast %302 : vector<16x1xf32> to vector<16x256xf32>
    %304 = arith.mulf %172, %303 : vector<16x256xf32>
    %305 = vector.extract_strided_slice %2 {offsets = [0, 17], sizes = [16, 1], strides = [1, 1]} : vector<16x27xf32> to vector<16x1xf32>
    %306 = vector.broadcast %305 : vector<16x1xf32> to vector<16x256xf32>
    %307 = arith.mulf %174, %306 : vector<16x256xf32>
    %308 = arith.addf %304, %307 : vector<16x256xf32>
    %309 = vector.extract_strided_slice %2 {offsets = [0, 26], sizes = [16, 1], strides = [1, 1]} : vector<16x27xf32> to vector<16x1xf32>
    %310 = vector.broadcast %309 : vector<16x1xf32> to vector<16x256xf32>
    %311 = arith.mulf %176, %310 : vector<16x256xf32>
    %312 = arith.addf %308, %311 : vector<16x256xf32>
    %c239_i32_80 = arith.constant 239 : i32
    %313 = tpu.dynamic_rotate %312 by %c239_i32_80 dim 1 : vector<16x256xf32>, i32 -> vector<16x256xf32>
    %314 = vector.extract_strided_slice %6 {offsets = [8, 0], sizes = [1, 256], strides = [1, 1]} : vector<9x256xf32> to vector<1x256xf32>
    %315 = vector.broadcast %314 : vector<1x256xf32> to vector<16x256xf32>
    %316 = arith.mulf %313, %315 : vector<16x256xf32>
    %317 = arith.addf %301, %316 : vector<16x256xf32>
    %318 = vector.broadcast %3 : vector<16x1xf32> to vector<16x256xf32>
    %319 = arith.addf %317, %318 : vector<16x256xf32>
    %cst_81 = arith.constant 0.000000e+00 : f32
    %320 = vector.broadcast %cst_81 : f32 to vector<16x256xf32>
    %321 = arith.maximumf %319, %320 : vector<16x256xf32>
    %cst_82 = arith.constant dense<0.000000e+00> : vector<8x256xf32>
    %322 = tpu.matmul %4, %321, %cst_82 {dimension_numbers = #tpu.dot_dimension_numbers<[1], [0], [0], [1], [0, 0, 1, 1], [], []>, precision = #tpu.contract_precision<fp32>} : vector<8x16xf32>, vector<16x256xf32>, vector<8x256xf32> -> vector<8x256xf32>
    %323 = vector.broadcast %5 : vector<8x1xf32> to vector<8x256xf32>
    %324 = arith.addf %322, %323 : vector<8x256xf32>
    %c0_83 = arith.constant 0 : index
    %c1_84 = arith.constant 1 : index
    %c0_85 = arith.constant 0 : index
    %c0_86 = arith.constant 0 : index
    %325 = vector.load %arg1[%c0_83, %c1_84, %c0_85, %c0_86] : memref<1x4x8x256xf32, #tpu.memory_space<vmem>>, vector<1x1x8x256xf32>
    %326 = vector.shape_cast %325 : vector<1x1x8x256xf32> to vector<8x256xf32>
    %327 = arith.addf %324, %326 : vector<8x256xf32>
    %cst_87 = arith.constant 0.000000e+00 : f32
    %328 = vector.broadcast %cst_87 : f32 to vector<8x256xf32>
    %329 = arith.maximumf %327, %328 : vector<8x256xf32>
    %c0_88 = arith.constant 0 : index
    %c1_89 = arith.constant 1 : index
    %c0_90 = arith.constant 0 : index
    %c0_91 = arith.constant 0 : index
    %330 = vector.load %arg9[%c0_88, %c1_89, %c0_90, %c0_91] : memref<1x4x8x256xf32, #tpu.memory_space<vmem>>, vector<1x1x8x256xf32>
    %331 = vector.shape_cast %330 : vector<1x1x8x256xf32> to vector<8x256xf32>
    %332 = vector.shape_cast %329 : vector<8x256xf32> to vector<1x1x8x256xf32>
    tpu.vector_store %arg9[%c0_88, %c1_89, %c0_90, %c0_91], %332 {strides = array<i32>} : memref<1x4x8x256xf32, #tpu.memory_space<vmem>>, vector<1x1x8x256xf32>,
    %c1_92 = arith.constant 1 : index
    %c0_93 = arith.constant 0 : index
    %c0_94 = arith.constant 0 : index
    %333 = vector.load %arg10[%c1_92, %c0_93, %c0_94] : memref<4x16x256xf32, #tpu.memory_space<vmem>>, vector<1x16x256xf32>
    %334 = vector.shape_cast %333 : vector<1x16x256xf32> to vector<16x256xf32>
    %c2_95 = arith.constant 2 : index
    %c0_96 = arith.constant 0 : index
    %c0_97 = arith.constant 0 : index
    %335 = vector.load %arg10[%c2_95, %c0_96, %c0_97] : memref<4x16x256xf32, #tpu.memory_space<vmem>>, vector<1x16x256xf32>
    %336 = vector.shape_cast %335 : vector<1x16x256xf32> to vector<16x256xf32>
    %c3_98 = arith.constant 3 : index
    %c0_99 = arith.constant 0 : index
    %c0_100 = arith.constant 0 : index
    %337 = vector.load %arg10[%c3_98, %c0_99, %c0_100] : memref<4x16x256xf32, #tpu.memory_space<vmem>>, vector<1x16x256xf32>
    %338 = vector.shape_cast %337 : vector<1x16x256xf32> to vector<16x256xf32>
    %cst_101 = arith.constant 0.000000e+00 : f32
    %339 = vector.broadcast %cst_101 : f32 to vector<16x256xf32>
    %340 = vector.extract_strided_slice %2 {offsets = [0, 0], sizes = [16, 1], strides = [1, 1]} : vector<16x27xf32> to vector<16x1xf32>
    %341 = vector.broadcast %340 : vector<16x1xf32> to vector<16x256xf32>
    %342 = arith.mulf %334, %341 : vector<16x256xf32>
    %343 = vector.extract_strided_slice %2 {offsets = [0, 9], sizes = [16, 1], strides = [1, 1]} : vector<16x27xf32> to vector<16x1xf32>
    %344 = vector.broadcast %343 : vector<16x1xf32> to vector<16x256xf32>
    %345 = arith.mulf %336, %344 : vector<16x256xf32>
    %346 = arith.addf %342, %345 : vector<16x256xf32>
    %347 = vector.extract_strided_slice %2 {offsets = [0, 18], sizes = [16, 1], strides = [1, 1]} : vector<16x27xf32> to vector<16x1xf32>
    %348 = vector.broadcast %347 : vector<16x1xf32> to vector<16x256xf32>
    %349 = arith.mulf %338, %348 : vector<16x256xf32>
    %350 = arith.addf %346, %349 : vector<16x256xf32>
    %c17_i32_102 = arith.constant 17 : i32
    %351 = tpu.dynamic_rotate %350 by %c17_i32_102 dim 1 : vector<16x256xf32>, i32 -> vector<16x256xf32>
    %352 = vector.extract_strided_slice %6 {offsets = [0, 0], sizes = [1, 256], strides = [1, 1]} : vector<9x256xf32> to vector<1x256xf32>
    %353 = vector.broadcast %352 : vector<1x256xf32> to vector<16x256xf32>
    %354 = arith.mulf %351, %353 : vector<16x256xf32>
    %355 = arith.addf %339, %354 : vector<16x256xf32>
    %356 = vector.extract_strided_slice %2 {offsets = [0, 1], sizes = [16, 1], strides = [1, 1]} : vector<16x27xf32> to vector<16x1xf32>
    %357 = vector.broadcast %356 : vector<16x1xf32> to vector<16x256xf32>
    %358 = arith.mulf %334, %357 : vector<16x256xf32>
    %359 = vector.extract_strided_slice %2 {offsets = [0, 10], sizes = [16, 1], strides = [1, 1]} : vector<16x27xf32> to vector<16x1xf32>
    %360 = vector.broadcast %359 : vector<16x1xf32> to vector<16x256xf32>
    %361 = arith.mulf %336, %360 : vector<16x256xf32>
    %362 = arith.addf %358, %361 : vector<16x256xf32>
    %363 = vector.extract_strided_slice %2 {offsets = [0, 19], sizes = [16, 1], strides = [1, 1]} : vector<16x27xf32> to vector<16x1xf32>
    %364 = vector.broadcast %363 : vector<16x1xf32> to vector<16x256xf32>
    %365 = arith.mulf %338, %364 : vector<16x256xf32>
    %366 = arith.addf %362, %365 : vector<16x256xf32>
    %c16_i32_103 = arith.constant 16 : i32
    %367 = tpu.dynamic_rotate %366 by %c16_i32_103 dim 1 : vector<16x256xf32>, i32 -> vector<16x256xf32>
    %368 = vector.extract_strided_slice %6 {offsets = [1, 0], sizes = [1, 256], strides = [1, 1]} : vector<9x256xf32> to vector<1x256xf32>
    %369 = vector.broadcast %368 : vector<1x256xf32> to vector<16x256xf32>
    %370 = arith.mulf %367, %369 : vector<16x256xf32>
    %371 = arith.addf %355, %370 : vector<16x256xf32>
    %372 = vector.extract_strided_slice %2 {offsets = [0, 2], sizes = [16, 1], strides = [1, 1]} : vector<16x27xf32> to vector<16x1xf32>
    %373 = vector.broadcast %372 : vector<16x1xf32> to vector<16x256xf32>
    %374 = arith.mulf %334, %373 : vector<16x256xf32>
    %375 = vector.extract_strided_slice %2 {offsets = [0, 11], sizes = [16, 1], strides = [1, 1]} : vector<16x27xf32> to vector<16x1xf32>
    %376 = vector.broadcast %375 : vector<16x1xf32> to vector<16x256xf32>
    %377 = arith.mulf %336, %376 : vector<16x256xf32>
    %378 = arith.addf %374, %377 : vector<16x256xf32>
    %379 = vector.extract_strided_slice %2 {offsets = [0, 20], sizes = [16, 1], strides = [1, 1]} : vector<16x27xf32> to vector<16x1xf32>
    %380 = vector.broadcast %379 : vector<16x1xf32> to vector<16x256xf32>
    %381 = arith.mulf %338, %380 : vector<16x256xf32>
    %382 = arith.addf %378, %381 : vector<16x256xf32>
    %c15_i32_104 = arith.constant 15 : i32
    %383 = tpu.dynamic_rotate %382 by %c15_i32_104 dim 1 : vector<16x256xf32>, i32 -> vector<16x256xf32>
    %384 = vector.extract_strided_slice %6 {offsets = [2, 0], sizes = [1, 256], strides = [1, 1]} : vector<9x256xf32> to vector<1x256xf32>
    %385 = vector.broadcast %384 : vector<1x256xf32> to vector<16x256xf32>
    %386 = arith.mulf %383, %385 : vector<16x256xf32>
    %387 = arith.addf %371, %386 : vector<16x256xf32>
    %388 = vector.extract_strided_slice %2 {offsets = [0, 3], sizes = [16, 1], strides = [1, 1]} : vector<16x27xf32> to vector<16x1xf32>
    %389 = vector.broadcast %388 : vector<16x1xf32> to vector<16x256xf32>
    %390 = arith.mulf %334, %389 : vector<16x256xf32>
    %391 = vector.extract_strided_slice %2 {offsets = [0, 12], sizes = [16, 1], strides = [1, 1]} : vector<16x27xf32> to vector<16x1xf32>
    %392 = vector.broadcast %391 : vector<16x1xf32> to vector<16x256xf32>
    %393 = arith.mulf %336, %392 : vector<16x256xf32>
    %394 = arith.addf %390, %393 : vector<16x256xf32>
    %395 = vector.extract_strided_slice %2 {offsets = [0, 21], sizes = [16, 1], strides = [1, 1]} : vector<16x27xf32> to vector<16x1xf32>
    %396 = vector.broadcast %395 : vector<16x1xf32> to vector<16x256xf32>
    %397 = arith.mulf %338, %396 : vector<16x256xf32>
    %398 = arith.addf %394, %397 : vector<16x256xf32>
    %c1_i32_105 = arith.constant 1 : i32
    %399 = tpu.dynamic_rotate %398 by %c1_i32_105 dim 1 : vector<16x256xf32>, i32 -> vector<16x256xf32>
    %400 = vector.extract_strided_slice %6 {offsets = [3, 0], sizes = [1, 256], strides = [1, 1]} : vector<9x256xf32> to vector<1x256xf32>
    %401 = vector.broadcast %400 : vector<1x256xf32> to vector<16x256xf32>
    %402 = arith.mulf %399, %401 : vector<16x256xf32>
    %403 = arith.addf %387, %402 : vector<16x256xf32>
    %404 = vector.extract_strided_slice %2 {offsets = [0, 4], sizes = [16, 1], strides = [1, 1]} : vector<16x27xf32> to vector<16x1xf32>
    %405 = vector.broadcast %404 : vector<16x1xf32> to vector<16x256xf32>
    %406 = arith.mulf %334, %405 : vector<16x256xf32>
    %407 = vector.extract_strided_slice %2 {offsets = [0, 13], sizes = [16, 1], strides = [1, 1]} : vector<16x27xf32> to vector<16x1xf32>
    %408 = vector.broadcast %407 : vector<16x1xf32> to vector<16x256xf32>
    %409 = arith.mulf %336, %408 : vector<16x256xf32>
    %410 = arith.addf %406, %409 : vector<16x256xf32>
    %411 = vector.extract_strided_slice %2 {offsets = [0, 22], sizes = [16, 1], strides = [1, 1]} : vector<16x27xf32> to vector<16x1xf32>
    %412 = vector.broadcast %411 : vector<16x1xf32> to vector<16x256xf32>
    %413 = arith.mulf %338, %412 : vector<16x256xf32>
    %414 = arith.addf %410, %413 : vector<16x256xf32>
    %415 = arith.addf %403, %414 : vector<16x256xf32>
    %416 = vector.extract_strided_slice %2 {offsets = [0, 5], sizes = [16, 1], strides = [1, 1]} : vector<16x27xf32> to vector<16x1xf32>
    %417 = vector.broadcast %416 : vector<16x1xf32> to vector<16x256xf32>
    %418 = arith.mulf %334, %417 : vector<16x256xf32>
    %419 = vector.extract_strided_slice %2 {offsets = [0, 14], sizes = [16, 1], strides = [1, 1]} : vector<16x27xf32> to vector<16x1xf32>
    %420 = vector.broadcast %419 : vector<16x1xf32> to vector<16x256xf32>
    %421 = arith.mulf %336, %420 : vector<16x256xf32>
    %422 = arith.addf %418, %421 : vector<16x256xf32>
    %423 = vector.extract_strided_slice %2 {offsets = [0, 23], sizes = [16, 1], strides = [1, 1]} : vector<16x27xf32> to vector<16x1xf32>
    %424 = vector.broadcast %423 : vector<16x1xf32> to vector<16x256xf32>
    %425 = arith.mulf %338, %424 : vector<16x256xf32>
    %426 = arith.addf %422, %425 : vector<16x256xf32>
    %c255_i32_106 = arith.constant 255 : i32
    %427 = tpu.dynamic_rotate %426 by %c255_i32_106 dim 1 : vector<16x256xf32>, i32 -> vector<16x256xf32>
    %428 = vector.extract_strided_slice %6 {offsets = [5, 0], sizes = [1, 256], strides = [1, 1]} : vector<9x256xf32> to vector<1x256xf32>
    %429 = vector.broadcast %428 : vector<1x256xf32> to vector<16x256xf32>
    %430 = arith.mulf %427, %429 : vector<16x256xf32>
    %431 = arith.addf %415, %430 : vector<16x256xf32>
    %432 = vector.extract_strided_slice %2 {offsets = [0, 6], sizes = [16, 1], strides = [1, 1]} : vector<16x27xf32> to vector<16x1xf32>
    %433 = vector.broadcast %432 : vector<16x1xf32> to vector<16x256xf32>
    %434 = arith.mulf %334, %433 : vector<16x256xf32>
    %435 = vector.extract_strided_slice %2 {offsets = [0, 15], sizes = [16, 1], strides = [1, 1]} : vector<16x27xf32> to vector<16x1xf32>
    %436 = vector.broadcast %435 : vector<16x1xf32> to vector<16x256xf32>
    %437 = arith.mulf %336, %436 : vector<16x256xf32>
    %438 = arith.addf %434, %437 : vector<16x256xf32>
    %439 = vector.extract_strided_slice %2 {offsets = [0, 24], sizes = [16, 1], strides = [1, 1]} : vector<16x27xf32> to vector<16x1xf32>
    %440 = vector.broadcast %439 : vector<16x1xf32> to vector<16x256xf32>
    %441 = arith.mulf %338, %440 : vector<16x256xf32>
    %442 = arith.addf %438, %441 : vector<16x256xf32>
    %c241_i32_107 = arith.constant 241 : i32
    %443 = tpu.dynamic_rotate %442 by %c241_i32_107 dim 1 : vector<16x256xf32>, i32 -> vector<16x256xf32>
    %444 = vector.extract_strided_slice %6 {offsets = [6, 0], sizes = [1, 256], strides = [1, 1]} : vector<9x256xf32> to vector<1x256xf32>
    %445 = vector.broadcast %444 : vector<1x256xf32> to vector<16x256xf32>
    %446 = arith.mulf %443, %445 : vector<16x256xf32>
    %447 = arith.addf %431, %446 : vector<16x256xf32>
    %448 = vector.extract_strided_slice %2 {offsets = [0, 7], sizes = [16, 1], strides = [1, 1]} : vector<16x27xf32> to vector<16x1xf32>
    %449 = vector.broadcast %448 : vector<16x1xf32> to vector<16x256xf32>
    %450 = arith.mulf %334, %449 : vector<16x256xf32>
    %451 = vector.extract_strided_slice %2 {offsets = [0, 16], sizes = [16, 1], strides = [1, 1]} : vector<16x27xf32> to vector<16x1xf32>
    %452 = vector.broadcast %451 : vector<16x1xf32> to vector<16x256xf32>
    %453 = arith.mulf %336, %452 : vector<16x256xf32>
    %454 = arith.addf %450, %453 : vector<16x256xf32>
    %455 = vector.extract_strided_slice %2 {offsets = [0, 25], sizes = [16, 1], strides = [1, 1]} : vector<16x27xf32> to vector<16x1xf32>
    %456 = vector.broadcast %455 : vector<16x1xf32> to vector<16x256xf32>
    %457 = arith.mulf %338, %456 : vector<16x256xf32>
    %458 = arith.addf %454, %457 : vector<16x256xf32>
    %c240_i32_108 = arith.constant 240 : i32
    %459 = tpu.dynamic_rotate %458 by %c240_i32_108 dim 1 : vector<16x256xf32>, i32 -> vector<16x256xf32>
    %460 = vector.extract_strided_slice %6 {offsets = [7, 0], sizes = [1, 256], strides = [1, 1]} : vector<9x256xf32> to vector<1x256xf32>
    %461 = vector.broadcast %460 : vector<1x256xf32> to vector<16x256xf32>
    %462 = arith.mulf %459, %461 : vector<16x256xf32>
    %463 = arith.addf %447, %462 : vector<16x256xf32>
    %464 = vector.extract_strided_slice %2 {offsets = [0, 8], sizes = [16, 1], strides = [1, 1]} : vector<16x27xf32> to vector<16x1xf32>
    %465 = vector.broadcast %464 : vector<16x1xf32> to vector<16x256xf32>
    %466 = arith.mulf %334, %465 : vector<16x256xf32>
    %467 = vector.extract_strided_slice %2 {offsets = [0, 17], sizes = [16, 1], strides = [1, 1]} : vector<16x27xf32> to vector<16x1xf32>
    %468 = vector.broadcast %467 : vector<16x1xf32> to vector<16x256xf32>
    %469 = arith.mulf %336, %468 : vector<16x256xf32>
    %470 = arith.addf %466, %469 : vector<16x256xf32>
    %471 = vector.extract_strided_slice %2 {offsets = [0, 26], sizes = [16, 1], strides = [1, 1]} : vector<16x27xf32> to vector<16x1xf32>
    %472 = vector.broadcast %471 : vector<16x1xf32> to vector<16x256xf32>
    %473 = arith.mulf %338, %472 : vector<16x256xf32>
    %474 = arith.addf %470, %473 : vector<16x256xf32>
    %c239_i32_109 = arith.constant 239 : i32
    %475 = tpu.dynamic_rotate %474 by %c239_i32_109 dim 1 : vector<16x256xf32>, i32 -> vector<16x256xf32>
    %476 = vector.extract_strided_slice %6 {offsets = [8, 0], sizes = [1, 256], strides = [1, 1]} : vector<9x256xf32> to vector<1x256xf32>
    %477 = vector.broadcast %476 : vector<1x256xf32> to vector<16x256xf32>
    %478 = arith.mulf %475, %477 : vector<16x256xf32>
    %479 = arith.addf %463, %478 : vector<16x256xf32>
    %480 = vector.broadcast %3 : vector<16x1xf32> to vector<16x256xf32>
    %481 = arith.addf %479, %480 : vector<16x256xf32>
    %cst_110 = arith.constant 0.000000e+00 : f32
    %482 = vector.broadcast %cst_110 : f32 to vector<16x256xf32>
    %483 = arith.maximumf %481, %482 : vector<16x256xf32>
    %cst_111 = arith.constant dense<0.000000e+00> : vector<8x256xf32>
    %484 = tpu.matmul %4, %483, %cst_111 {dimension_numbers = #tpu.dot_dimension_numbers<[1], [0], [0], [1], [0, 0, 1, 1], [], []>, precision = #tpu.contract_precision<fp32>} : vector<8x16xf32>, vector<16x256xf32>, vector<8x256xf32> -> vector<8x256xf32>
    %485 = vector.broadcast %5 : vector<8x1xf32> to vector<8x256xf32>
    %486 = arith.addf %484, %485 : vector<8x256xf32>
    %c0_112 = arith.constant 0 : index
    %c2_113 = arith.constant 2 : index
    %c0_114 = arith.constant 0 : index
    %c0_115 = arith.constant 0 : index
    %487 = vector.load %arg1[%c0_112, %c2_113, %c0_114, %c0_115] : memref<1x4x8x256xf32, #tpu.memory_space<vmem>>, vector<1x1x8x256xf32>
    %488 = vector.shape_cast %487 : vector<1x1x8x256xf32> to vector<8x256xf32>
    %489 = arith.addf %486, %488 : vector<8x256xf32>
    %cst_116 = arith.constant 0.000000e+00 : f32
    %490 = vector.broadcast %cst_116 : f32 to vector<8x256xf32>
    %491 = arith.maximumf %489, %490 : vector<8x256xf32>
    %c0_117 = arith.constant 0 : index
    %c2_118 = arith.constant 2 : index
    %c0_119 = arith.constant 0 : index
    %c0_120 = arith.constant 0 : index
    %492 = vector.load %arg9[%c0_117, %c2_118, %c0_119, %c0_120] : memref<1x4x8x256xf32, #tpu.memory_space<vmem>>, vector<1x1x8x256xf32>
    %493 = vector.shape_cast %492 : vector<1x1x8x256xf32> to vector<8x256xf32>
    %494 = vector.shape_cast %491 : vector<8x256xf32> to vector<1x1x8x256xf32>
    tpu.vector_store %arg9[%c0_117, %c2_118, %c0_119, %c0_120], %494 {strides = array<i32>} : memref<1x4x8x256xf32, #tpu.memory_space<vmem>>, vector<1x1x8x256xf32>,
    %c2_121 = arith.constant 2 : index
    %c0_122 = arith.constant 0 : index
    %c0_123 = arith.constant 0 : index
    %495 = vector.load %arg10[%c2_121, %c0_122, %c0_123] : memref<4x16x256xf32, #tpu.memory_space<vmem>>, vector<1x16x256xf32>
    %496 = vector.shape_cast %495 : vector<1x16x256xf32> to vector<16x256xf32>
    %c3_124 = arith.constant 3 : index
    %c0_125 = arith.constant 0 : index
    %c0_126 = arith.constant 0 : index
    %497 = vector.load %arg10[%c3_124, %c0_125, %c0_126] : memref<4x16x256xf32, #tpu.memory_space<vmem>>, vector<1x16x256xf32>
    %498 = vector.shape_cast %497 : vector<1x16x256xf32> to vector<16x256xf32>
    %cst_127 = arith.constant 0.000000e+00 : f32
    %499 = vector.broadcast %cst_127 : f32 to vector<16x256xf32>
    %500 = vector.extract_strided_slice %2 {offsets = [0, 0], sizes = [16, 1], strides = [1, 1]} : vector<16x27xf32> to vector<16x1xf32>
    %501 = vector.broadcast %500 : vector<16x1xf32> to vector<16x256xf32>
    %502 = arith.mulf %496, %501 : vector<16x256xf32>
    %503 = vector.extract_strided_slice %2 {offsets = [0, 9], sizes = [16, 1], strides = [1, 1]} : vector<16x27xf32> to vector<16x1xf32>
    %504 = vector.broadcast %503 : vector<16x1xf32> to vector<16x256xf32>
    %505 = arith.mulf %498, %504 : vector<16x256xf32>
    %506 = arith.addf %502, %505 : vector<16x256xf32>
    %c17_i32_128 = arith.constant 17 : i32
    %507 = tpu.dynamic_rotate %506 by %c17_i32_128 dim 1 : vector<16x256xf32>, i32 -> vector<16x256xf32>
    %508 = vector.extract_strided_slice %6 {offsets = [0, 0], sizes = [1, 256], strides = [1, 1]} : vector<9x256xf32> to vector<1x256xf32>
    %509 = vector.broadcast %508 : vector<1x256xf32> to vector<16x256xf32>
    %510 = arith.mulf %507, %509 : vector<16x256xf32>
    %511 = arith.addf %499, %510 : vector<16x256xf32>
    %512 = vector.extract_strided_slice %2 {offsets = [0, 1], sizes = [16, 1], strides = [1, 1]} : vector<16x27xf32> to vector<16x1xf32>
    %513 = vector.broadcast %512 : vector<16x1xf32> to vector<16x256xf32>
    %514 = arith.mulf %496, %513 : vector<16x256xf32>
    %515 = vector.extract_strided_slice %2 {offsets = [0, 10], sizes = [16, 1], strides = [1, 1]} : vector<16x27xf32> to vector<16x1xf32>
    %516 = vector.broadcast %515 : vector<16x1xf32> to vector<16x256xf32>
    %517 = arith.mulf %498, %516 : vector<16x256xf32>
    %518 = arith.addf %514, %517 : vector<16x256xf32>
    %c16_i32_129 = arith.constant 16 : i32
    %519 = tpu.dynamic_rotate %518 by %c16_i32_129 dim 1 : vector<16x256xf32>, i32 -> vector<16x256xf32>
    %520 = vector.extract_strided_slice %6 {offsets = [1, 0], sizes = [1, 256], strides = [1, 1]} : vector<9x256xf32> to vector<1x256xf32>
    %521 = vector.broadcast %520 : vector<1x256xf32> to vector<16x256xf32>
    %522 = arith.mulf %519, %521 : vector<16x256xf32>
    %523 = arith.addf %511, %522 : vector<16x256xf32>
    %524 = vector.extract_strided_slice %2 {offsets = [0, 2], sizes = [16, 1], strides = [1, 1]} : vector<16x27xf32> to vector<16x1xf32>
    %525 = vector.broadcast %524 : vector<16x1xf32> to vector<16x256xf32>
    %526 = arith.mulf %496, %525 : vector<16x256xf32>
    %527 = vector.extract_strided_slice %2 {offsets = [0, 11], sizes = [16, 1], strides = [1, 1]} : vector<16x27xf32> to vector<16x1xf32>
    %528 = vector.broadcast %527 : vector<16x1xf32> to vector<16x256xf32>
    %529 = arith.mulf %498, %528 : vector<16x256xf32>
    %530 = arith.addf %526, %529 : vector<16x256xf32>
    %c15_i32_130 = arith.constant 15 : i32
    %531 = tpu.dynamic_rotate %530 by %c15_i32_130 dim 1 : vector<16x256xf32>, i32 -> vector<16x256xf32>
    %532 = vector.extract_strided_slice %6 {offsets = [2, 0], sizes = [1, 256], strides = [1, 1]} : vector<9x256xf32> to vector<1x256xf32>
    %533 = vector.broadcast %532 : vector<1x256xf32> to vector<16x256xf32>
    %534 = arith.mulf %531, %533 : vector<16x256xf32>
    %535 = arith.addf %523, %534 : vector<16x256xf32>
    %536 = vector.extract_strided_slice %2 {offsets = [0, 3], sizes = [16, 1], strides = [1, 1]} : vector<16x27xf32> to vector<16x1xf32>
    %537 = vector.broadcast %536 : vector<16x1xf32> to vector<16x256xf32>
    %538 = arith.mulf %496, %537 : vector<16x256xf32>
    %539 = vector.extract_strided_slice %2 {offsets = [0, 12], sizes = [16, 1], strides = [1, 1]} : vector<16x27xf32> to vector<16x1xf32>
    %540 = vector.broadcast %539 : vector<16x1xf32> to vector<16x256xf32>
    %541 = arith.mulf %498, %540 : vector<16x256xf32>
    %542 = arith.addf %538, %541 : vector<16x256xf32>
    %c1_i32_131 = arith.constant 1 : i32
    %543 = tpu.dynamic_rotate %542 by %c1_i32_131 dim 1 : vector<16x256xf32>, i32 -> vector<16x256xf32>
    %544 = vector.extract_strided_slice %6 {offsets = [3, 0], sizes = [1, 256], strides = [1, 1]} : vector<9x256xf32> to vector<1x256xf32>
    %545 = vector.broadcast %544 : vector<1x256xf32> to vector<16x256xf32>
    %546 = arith.mulf %543, %545 : vector<16x256xf32>
    %547 = arith.addf %535, %546 : vector<16x256xf32>
    %548 = vector.extract_strided_slice %2 {offsets = [0, 4], sizes = [16, 1], strides = [1, 1]} : vector<16x27xf32> to vector<16x1xf32>
    %549 = vector.broadcast %548 : vector<16x1xf32> to vector<16x256xf32>
    %550 = arith.mulf %496, %549 : vector<16x256xf32>
    %551 = vector.extract_strided_slice %2 {offsets = [0, 13], sizes = [16, 1], strides = [1, 1]} : vector<16x27xf32> to vector<16x1xf32>
    %552 = vector.broadcast %551 : vector<16x1xf32> to vector<16x256xf32>
    %553 = arith.mulf %498, %552 : vector<16x256xf32>
    %554 = arith.addf %550, %553 : vector<16x256xf32>
    %555 = arith.addf %547, %554 : vector<16x256xf32>
    %556 = vector.extract_strided_slice %2 {offsets = [0, 5], sizes = [16, 1], strides = [1, 1]} : vector<16x27xf32> to vector<16x1xf32>
    %557 = vector.broadcast %556 : vector<16x1xf32> to vector<16x256xf32>
    %558 = arith.mulf %496, %557 : vector<16x256xf32>
    %559 = vector.extract_strided_slice %2 {offsets = [0, 14], sizes = [16, 1], strides = [1, 1]} : vector<16x27xf32> to vector<16x1xf32>
    %560 = vector.broadcast %559 : vector<16x1xf32> to vector<16x256xf32>
    %561 = arith.mulf %498, %560 : vector<16x256xf32>
    %562 = arith.addf %558, %561 : vector<16x256xf32>
    %c255_i32_132 = arith.constant 255 : i32
    %563 = tpu.dynamic_rotate %562 by %c255_i32_132 dim 1 : vector<16x256xf32>, i32 -> vector<16x256xf32>
    %564 = vector.extract_strided_slice %6 {offsets = [5, 0], sizes = [1, 256], strides = [1, 1]} : vector<9x256xf32> to vector<1x256xf32>
    %565 = vector.broadcast %564 : vector<1x256xf32> to vector<16x256xf32>
    %566 = arith.mulf %563, %565 : vector<16x256xf32>
    %567 = arith.addf %555, %566 : vector<16x256xf32>
    %568 = vector.extract_strided_slice %2 {offsets = [0, 6], sizes = [16, 1], strides = [1, 1]} : vector<16x27xf32> to vector<16x1xf32>
    %569 = vector.broadcast %568 : vector<16x1xf32> to vector<16x256xf32>
    %570 = arith.mulf %496, %569 : vector<16x256xf32>
    %571 = vector.extract_strided_slice %2 {offsets = [0, 15], sizes = [16, 1], strides = [1, 1]} : vector<16x27xf32> to vector<16x1xf32>
    %572 = vector.broadcast %571 : vector<16x1xf32> to vector<16x256xf32>
    %573 = arith.mulf %498, %572 : vector<16x256xf32>
    %574 = arith.addf %570, %573 : vector<16x256xf32>
    %c241_i32_133 = arith.constant 241 : i32
    %575 = tpu.dynamic_rotate %574 by %c241_i32_133 dim 1 : vector<16x256xf32>, i32 -> vector<16x256xf32>
    %576 = vector.extract_strided_slice %6 {offsets = [6, 0], sizes = [1, 256], strides = [1, 1]} : vector<9x256xf32> to vector<1x256xf32>
    %577 = vector.broadcast %576 : vector<1x256xf32> to vector<16x256xf32>
    %578 = arith.mulf %575, %577 : vector<16x256xf32>
    %579 = arith.addf %567, %578 : vector<16x256xf32>
    %580 = vector.extract_strided_slice %2 {offsets = [0, 7], sizes = [16, 1], strides = [1, 1]} : vector<16x27xf32> to vector<16x1xf32>
    %581 = vector.broadcast %580 : vector<16x1xf32> to vector<16x256xf32>
    %582 = arith.mulf %496, %581 : vector<16x256xf32>
    %583 = vector.extract_strided_slice %2 {offsets = [0, 16], sizes = [16, 1], strides = [1, 1]} : vector<16x27xf32> to vector<16x1xf32>
    %584 = vector.broadcast %583 : vector<16x1xf32> to vector<16x256xf32>
    %585 = arith.mulf %498, %584 : vector<16x256xf32>
    %586 = arith.addf %582, %585 : vector<16x256xf32>
    %c240_i32_134 = arith.constant 240 : i32
    %587 = tpu.dynamic_rotate %586 by %c240_i32_134 dim 1 : vector<16x256xf32>, i32 -> vector<16x256xf32>
    %588 = vector.extract_strided_slice %6 {offsets = [7, 0], sizes = [1, 256], strides = [1, 1]} : vector<9x256xf32> to vector<1x256xf32>
    %589 = vector.broadcast %588 : vector<1x256xf32> to vector<16x256xf32>
    %590 = arith.mulf %587, %589 : vector<16x256xf32>
    %591 = arith.addf %579, %590 : vector<16x256xf32>
    %592 = vector.extract_strided_slice %2 {offsets = [0, 8], sizes = [16, 1], strides = [1, 1]} : vector<16x27xf32> to vector<16x1xf32>
    %593 = vector.broadcast %592 : vector<16x1xf32> to vector<16x256xf32>
    %594 = arith.mulf %496, %593 : vector<16x256xf32>
    %595 = vector.extract_strided_slice %2 {offsets = [0, 17], sizes = [16, 1], strides = [1, 1]} : vector<16x27xf32> to vector<16x1xf32>
    %596 = vector.broadcast %595 : vector<16x1xf32> to vector<16x256xf32>
    %597 = arith.mulf %498, %596 : vector<16x256xf32>
    %598 = arith.addf %594, %597 : vector<16x256xf32>
    %c239_i32_135 = arith.constant 239 : i32
    %599 = tpu.dynamic_rotate %598 by %c239_i32_135 dim 1 : vector<16x256xf32>, i32 -> vector<16x256xf32>
    %600 = vector.extract_strided_slice %6 {offsets = [8, 0], sizes = [1, 256], strides = [1, 1]} : vector<9x256xf32> to vector<1x256xf32>
    %601 = vector.broadcast %600 : vector<1x256xf32> to vector<16x256xf32>
    %602 = arith.mulf %599, %601 : vector<16x256xf32>
    %603 = arith.addf %591, %602 : vector<16x256xf32>
    %604 = vector.broadcast %3 : vector<16x1xf32> to vector<16x256xf32>
    %605 = arith.addf %603, %604 : vector<16x256xf32>
    %cst_136 = arith.constant 0.000000e+00 : f32
    %606 = vector.broadcast %cst_136 : f32 to vector<16x256xf32>
    %607 = arith.maximumf %605, %606 : vector<16x256xf32>
    %cst_137 = arith.constant dense<0.000000e+00> : vector<8x256xf32>
    %608 = tpu.matmul %4, %607, %cst_137 {dimension_numbers = #tpu.dot_dimension_numbers<[1], [0], [0], [1], [0, 0, 1, 1], [], []>, precision = #tpu.contract_precision<fp32>} : vector<8x16xf32>, vector<16x256xf32>, vector<8x256xf32> -> vector<8x256xf32>
    %609 = vector.broadcast %5 : vector<8x1xf32> to vector<8x256xf32>
    %610 = arith.addf %608, %609 : vector<8x256xf32>
    %c0_138 = arith.constant 0 : index
    %c3_139 = arith.constant 3 : index
    %c0_140 = arith.constant 0 : index
    %c0_141 = arith.constant 0 : index
    %611 = vector.load %arg1[%c0_138, %c3_139, %c0_140, %c0_141] : memref<1x4x8x256xf32, #tpu.memory_space<vmem>>, vector<1x1x8x256xf32>
    %612 = vector.shape_cast %611 : vector<1x1x8x256xf32> to vector<8x256xf32>
    %613 = arith.addf %610, %612 : vector<8x256xf32>
    %cst_142 = arith.constant 0.000000e+00 : f32
    %614 = vector.broadcast %cst_142 : f32 to vector<8x256xf32>
    %615 = arith.maximumf %613, %614 : vector<8x256xf32>
    %c0_143 = arith.constant 0 : index
    %c3_144 = arith.constant 3 : index
    %c0_145 = arith.constant 0 : index
    %c0_146 = arith.constant 0 : index
    %616 = vector.load %arg9[%c0_143, %c3_144, %c0_145, %c0_146] : memref<1x4x8x256xf32, #tpu.memory_space<vmem>>, vector<1x1x8x256xf32>
    %617 = vector.shape_cast %616 : vector<1x1x8x256xf32> to vector<8x256xf32>
    %618 = vector.shape_cast %615 : vector<8x256xf32> to vector<1x1x8x256xf32>
    tpu.vector_store %arg9[%c0_143, %c3_144, %c0_145, %c0_146], %618 {strides = array<i32>} : memref<1x4x8x256xf32, #tpu.memory_space<vmem>>, vector<1x1x8x256xf32>,
    return
  }
  func.func @transform_0(%arg0: i32) -> (i32, i32, i32, i32) {
    %c0_i32 = arith.constant 0 : i32
    %c0_i32_0 = arith.constant 0 : i32
    %c0_i32_1 = arith.constant 0 : i32
    %c0_i32_2 = arith.constant 0 : i32
    return %arg0, %c0_i32, %c0_i32_0, %c0_i32_1 : i32, i32, i32, i32
  }
  func.func @transform_1(%arg0: i32) -> (i32, i32) {
    %c0_i32 = arith.constant 0 : i32
    %c0_i32_0 = arith.constant 0 : i32
    %c0_i32_1 = arith.constant 0 : i32
    return %c0_i32, %c0_i32_0 : i32, i32
  }
  func.func @transform_2(%arg0: i32) -> (i32, i32) {
    %c0_i32 = arith.constant 0 : i32
    %c0_i32_0 = arith.constant 0 : i32
    %c0_i32_1 = arith.constant 0 : i32
    return %c0_i32, %c0_i32_0 : i32, i32
  }
  func.func @transform_3(%arg0: i32) -> (i32, i32) {
    %c0_i32 = arith.constant 0 : i32
    %c0_i32_0 = arith.constant 0 : i32
    %c0_i32_1 = arith.constant 0 : i32
    return %c0_i32, %c0_i32_0 : i32, i32
  }
  func.func @transform_4(%arg0: i32) -> (i32, i32) {
    %c0_i32 = arith.constant 0 : i32
    %c0_i32_0 = arith.constant 0 : i32
    %c0_i32_1 = arith.constant 0 : i32
    return %c0_i32, %c0_i32_0 : i32, i32
  }
  func.func @transform_5(%arg0: i32) -> (i32, i32) {
    %c0_i32 = arith.constant 0 : i32
    %c0_i32_0 = arith.constant 0 : i32
    %c0_i32_1 = arith.constant 0 : i32
    return %c0_i32, %c0_i32_0 : i32, i32
  }
  func.func @transform_6(%arg0: i32) -> (i32, i32) {
    %c0_i32 = arith.constant 0 : i32
    %c0_i32_0 = arith.constant 0 : i32
    %c0_i32_1 = arith.constant 0 : i32
    return %c0_i32, %c0_i32_0 : i32, i32
  }
  func.func @transform_7(%arg0: i32) -> (i32, i32) {
    %c0_i32 = arith.constant 0 : i32
    %c0_i32_0 = arith.constant 0 : i32
    %c0_i32_1 = arith.constant 0 : i32
    return %c0_i32, %c0_i32_0 : i32, i32
  }
  func.func @transform_8(%arg0: i32) -> (i32, i32, i32, i32) {
    %c0_i32 = arith.constant 0 : i32
    %c0_i32_0 = arith.constant 0 : i32
    %c0_i32_1 = arith.constant 0 : i32
    %c0_i32_2 = arith.constant 0 : i32
    return %arg0, %c0_i32, %c0_i32_0, %c0_i32_1 : i32, i32, i32, i32
  }
}

</mosaic_0001>

<llo_original>
// kernel: tpu_custom_call.1
$region0: #{tpu_custom_call.1}
  #allocation0 [shape = 'u32[]', space=smem, size = 0x4, offset = 0x4, fixed_abs, tag = 'smem constant byte address 0x4 - core index']
  #allocation1 [shape = 'u32[144,128]{1,0:T(1,128)}', space=vmem, size = 0x12000, scoped, tag = 'internal scratch']
  #allocation2 [shape = 'f32[4,16,256]{2,1,0:T(8,128)}', space=vmem, size = 0x10000, scoped, tag = 'scratch operand']
  %s0 = inlined_call_operand.hbm [shape: f32[2,4,8,256], index: 0, kind: input, shape index: {}]
  %s1 = inlined_call_operand.vmem [shape: f32[16,8], index: 1, kind: input, shape index: {}]
  %s2 = inlined_call_operand.vmem [shape: f32[16,1], index: 2, kind: input, shape index: {}]
  %s3 = inlined_call_operand.vmem [shape: f32[16,27], index: 3, kind: input, shape index: {}]
  %s4 = inlined_call_operand.vmem [shape: f32[16,1], index: 4, kind: input, shape index: {}]
  %s5 = inlined_call_operand.vmem [shape: f32[8,16], index: 5, kind: input, shape index: {}]
  %s6 = inlined_call_operand.vmem [shape: f32[8,1], index: 6, kind: input, shape index: {}]
  %s7 = inlined_call_operand.vmem [shape: f32[9,256], index: 7, kind: input, shape index: {}]
  %s8 = inlined_call_operand.hbm [shape: f32[2,4,8,256], index: 8, kind: output, shape index: {}]
  %s9 = sld [smem:[#allocation0]]
  $region69: #{tpu_custom_call.1} parent=0
    _
  %s11 = ssub.s32 1, %s9
  %s12 = scalar_select 0, %s11, %s9
  $region1: #{tpu_custom_call.1} parent=0
    #allocation3 [shape = 'u8[65536]{0}', space=vmem, size = 0x10000, scoped, tag = 'input window, operand 0']
    #allocation4 [shape = 's32[2]{0}', space=sflag, size = 0x8, scoped, tag = 'scoped memory for tpu_custom_call.1']
    #allocation5 [shape = 's32[2]{0}', space=sflag, size = 0x8, scoped, tag = 'scoped memory for tpu_custom_call.1']
    #allocation6 [shape = 'u8[65536]{0}', space=vmem, size = 0x10000, scoped, tag = 'output window, operand 0']
    %13 = vsyncpa [#allocation4], 0
    %s14 = scalar_lea.sflag [#allocation4], 1
    %15 = vsyncpa %s14, 0
    %16 = vsyncpa [#allocation5], 0
    %s17 = scalar_lea.sflag [#allocation5], 1
    %18 = vsyncpa %s17, 0
    loop: start=0, step=1, limit=4
    $region2: #{tpu_custom_call.1} parent=1 // loop_pre_header
      _
    $region3: #{tpu_custom_call.1} parent=1 // loop_header
      %s20 = sphi 0, %s24
      %p21 = scmp.ge.s32.totalorder %s20, 4
      %s30 = sphi 0, %s32
      %s33 = sphi 0, %s30
      %s34 = sphi 0, %s33
      %s50 = sphi 0, %s34
      %s54 = sphi 0, %s54
      %s56 = sphi 0, %s54
      %s57 = sphi 0, %s56
      %s71 = sphi 0, %s57
      %s75 = sphi 0, %s75
      %s77 = sphi 0, %s75
      %s78 = sphi 0, %s77
      %s92 = sphi 0, %s78
      %s96 = sphi 0, %s96
      %s98 = sphi 0, %s96
      %s99 = sphi 0, %s98
      %s113 = sphi 0, %s99
      %s117 = sphi 0, %s117
      %s119 = sphi 0, %s117
      %s120 = sphi 0, %s119
      %s134 = sphi 0, %s120
      %s138 = sphi 0, %s138
      %s140 = sphi 0, %s138
      %s141 = sphi 0, %s140
      %s155 = sphi 0, %s141
      %s159 = sphi 0, %s159
      %s161 = sphi 0, %s159
      %s162 = sphi 0, %s161
      %s176 = sphi 0, %s162
      %s180 = sphi 0, %s180
      %s182 = sphi 0, %s180
      %s183 = sphi 0, %s182
      %s197 = sphi 0, %s183
      %s203 = sphi 0, %s205
      %s206 = sphi 0, %s203
      %s207 = sphi 0, %s206
      %s223 = sphi 0, %s207
    $region4: #{tpu_custom_call.1} parent=1 // loop_header_branch
      %23 = sbr.rel (%p21) target = $region8
    $region5: #{tpu_custom_call.1} parent=1 // loop_body
      %s25 = ssub.s32 %s20, 1
      %s26 = ssub.s32 %s20, 2
      %s27 = sadd.s32 %s20, 1
      %s28 = ssub.s32 %s20, %s27
      %p29 = scmp.eq.s32.totalorder %s28, 0
      %s31 = sadd.s32 %s30, 1
      %s32 = scalar_select %p29, %s30, %s31
      %p35 = pneg %p29
      %p36 = scmp.eq.s32.totalorder %s20, 1
      %p37 = por %p35, %p36
      %p38 = scmp.ne.s32.totalorder %s30, %s33
      %p39 = scmp.eq.s32.totalorder %s20, 0
      %p40 = por %p38, %p39
      %p41 = scmp.ne.s32.totalorder %s30, %s33
      %p42 = scmp.eq.s32.totalorder %s25, 1
      %p43 = por %p41, %p42
      %p44 = scmp.ne.s32.totalorder %s33, %s34
      %p45 = scmp.eq.s32.totalorder %s25, 0
      %p46 = por %p44, %p45
      %p47 = scmp.ne.s32.totalorder %s33, %s34
      %p48 = scmp.eq.s32.totalorder %s26, 1
      %p49 = por %p47, %p48
      %p51 = scmp.ne.s32.totalorder %s34, %s50
      %p52 = scmp.eq.s32.totalorder %s26, 0
      %p53 = por %p51, %p52
      %s55 = sadd.s32 %s54, 1
      %p58 = scmp.eq.s32.totalorder %s20, 1
      %p59 = scmp.ne.s32.totalorder %s54, %s56
      %p60 = scmp.eq.s32.totalorder %s20, 0
      %p61 = por %p59, %p60
      %p62 = scmp.ne.s32.totalorder %s54, %s56
      %p63 = scmp.eq.s32.totalorder %s25, 1
      %p64 = por %p62, %p63
      %p65 = scmp.ne.s32.totalorder %s56, %s57
      %p66 = scmp.eq.s32.totalorder %s25, 0
      %p67 = por %p65, %p66
      %p68 = scmp.ne.s32.totalorder %s56, %s57
      %p69 = scmp.eq.s32.totalorder %s26, 1
      %p70 = por %p68, %p69
      %p72 = scmp.ne.s32.totalorder %s57, %s71
      %p73 = scmp.eq.s32.totalorder %s26, 0
      %p74 = por %p72, %p73
      %s76 = sadd.s32 %s75, 1
      %p79 = scmp.eq.s32.totalorder %s20, 1
      %p80 = scmp.ne.s32.totalorder %s75, %s77
      %p81 = scmp.eq.s32.totalorder %s20, 0
      %p82 = por %p80, %p81
      %p83 = scmp.ne.s32.totalorder %s75, %s77
      %p84 = scmp.eq.s32.totalorder %s25, 1
      %p85 = por %p83, %p84
      %p86 = scmp.ne.s32.totalorder %s77, %s78
      %p87 = scmp.eq.s32.totalorder %s25, 0
      %p88 = por %p86, %p87
      %p89 = scmp.ne.s32.totalorder %s77, %s78
      %p90 = scmp.eq.s32.totalorder %s26, 1
      %p91 = por %p89, %p90
      %p93 = scmp.ne.s32.totalorder %s78, %s92
      %p94 = scmp.eq.s32.totalorder %s26, 0
      %p95 = por %p93, %p94
      %s97 = sadd.s32 %s96, 1
      %p100 = scmp.eq.s32.totalorder %s20, 1
      %p101 = scmp.ne.s32.totalorder %s96, %s98
      %p102 = scmp.eq.s32.totalorder %s20, 0
      %p103 = por %p101, %p102
      %p104 = scmp.ne.s32.totalorder %s96, %s98
      %p105 = scmp.eq.s32.totalorder %s25, 1
      %p106 = por %p104, %p105
      %p107 = scmp.ne.s32.totalorder %s98, %s99
      %p108 = scmp.eq.s32.totalorder %s25, 0
      %p109 = por %p107, %p108
      %p110 = scmp.ne.s32.totalorder %s98, %s99
      %p111 = scmp.eq.s32.totalorder %s26, 1
      %p112 = por %p110, %p111
      %p114 = scmp.ne.s32.totalorder %s99, %s113
      %p115 = scmp.eq.s32.totalorder %s26, 0
      %p116 = por %p114, %p115
      %s118 = sadd.s32 %s117, 1
      %p121 = scmp.eq.s32.totalorder %s20, 1
      %p122 = scmp.ne.s32.totalorder %s117, %s119
      %p123 = scmp.eq.s32.totalorder %s20, 0
      %p124 = por %p122, %p123
      %p125 = scmp.ne.s32.totalorder %s117, %s119
      %p126 = scmp.eq.s32.totalorder %s25, 1
      %p127 = por %p125, %p126
      %p128 = scmp.ne.s32.totalorder %s119, %s120
      %p129 = scmp.eq.s32.totalorder %s25, 0
      %p130 = por %p128, %p129
      %p131 = scmp.ne.s32.totalorder %s119, %s120
      %p132 = scmp.eq.s32.totalorder %s26, 1
      %p133 = por %p131, %p132
      %p135 = scmp.ne.s32.totalorder %s120, %s134
      %p136 = scmp.eq.s32.totalorder %s26, 0
      %p137 = por %p135, %p136
      %s139 = sadd.s32 %s138, 1
      %p142 = scmp.eq.s32.totalorder %s20, 1
      %p143 = scmp.ne.s32.totalorder %s138, %s140
      %p144 = scmp.eq.s32.totalorder %s20, 0
      %p145 = por %p143, %p144
      %p146 = scmp.ne.s32.totalorder %s138, %s140
      %p147 = scmp.eq.s32.totalorder %s25, 1
      %p148 = por %p146, %p147
      %p149 = scmp.ne.s32.totalorder %s140, %s141
      %p150 = scmp.eq.s32.totalorder %s25, 0
      %p151 = por %p149, %p150
      %p152 = scmp.ne.s32.totalorder %s140, %s141
      %p153 = scmp.eq.s32.totalorder %s26, 1
      %p154 = por %p152, %p153
      %p156 = scmp.ne.s32.totalorder %s141, %s155
      %p157 = scmp.eq.s32.totalorder %s26, 0
      %p158 = por %p156, %p157
      %s160 = sadd.s32 %s159, 1
      %p163 = scmp.eq.s32.totalorder %s20, 1
      %p164 = scmp.ne.s32.totalorder %s159, %s161
      %p165 = scmp.eq.s32.totalorder %s20, 0
      %p166 = por %p164, %p165
      %p167 = scmp.ne.s32.totalorder %s159, %s161
      %p168 = scmp.eq.s32.totalorder %s25, 1
      %p169 = por %p167, %p168
      %p170 = scmp.ne.s32.totalorder %s161, %s162
      %p171 = scmp.eq.s32.totalorder %s25, 0
      %p172 = por %p170, %p171
      %p173 = scmp.ne.s32.totalorder %s161, %s162
      %p174 = scmp.eq.s32.totalorder %s26, 1
      %p175 = por %p173, %p174
      %p177 = scmp.ne.s32.totalorder %s162, %s176
      %p178 = scmp.eq.s32.totalorder %s26, 0
      %p179 = por %p177, %p178
      %s181 = sadd.s32 %s180, 1
      %p184 = scmp.eq.s32.totalorder %s20, 1
      %p185 = scmp.ne.s32.totalorder %s180, %s182
      %p186 = scmp.eq.s32.totalorder %s20, 0
      %p187 = por %p185, %p186
      %p188 = scmp.ne.s32.totalorder %s180, %s182
      %p189 = scmp.eq.s32.totalorder %s25, 1
      %p190 = por %p188, %p189
      %p191 = scmp.ne.s32.totalorder %s182, %s183
      %p192 = scmp.eq.s32.totalorder %s25, 0
      %p193 = por %p191, %p192
      %p194 = scmp.ne.s32.totalorder %s182, %s183
      %p195 = scmp.eq.s32.totalorder %s26, 1
      %p196 = por %p194, %p195
      %p198 = scmp.ne.s32.totalorder %s183, %s197
      %p199 = scmp.eq.s32.totalorder %s26, 0
      %p200 = por %p198, %p199
      %s201 = ssub.s32 %s20, %s27
      %p202 = scmp.eq.s32.totalorder %s201, 0
      %s204 = sadd.s32 %s203, 1
      %s205 = scalar_select %p202, %s203, %s204
      %p208 = pneg %p202
      %p209 = scmp.eq.s32.totalorder %s20, 1
      %p210 = por %p208, %p209
      %p211 = scmp.ne.s32.totalorder %s203, %s206
      %p212 = scmp.eq.s32.totalorder %s20, 0
      %p213 = por %p211, %p212
      %p214 = scmp.ne.s32.totalorder %s203, %s206
      %p215 = scmp.eq.s32.totalorder %s25, 1
      %p216 = por %p214, %p215
      %p217 = scmp.ne.s32.totalorder %s206, %s207
      %p218 = scmp.eq.s32.totalorder %s25, 0
      %p219 = por %p217, %p218
      %p220 = scmp.ne.s32.totalorder %s206, %s207
      %p221 = scmp.eq.s32.totalorder %s26, 1
      %p222 = por %p220, %p221
      %p224 = scmp.ne.s32.totalorder %s207, %s223
      %p225 = scmp.eq.s32.totalorder %s26, 0
      %p226 = por %p224, %p225
      %p227 = scmp.le.s32.totalorder 1, %s20
      %p228 = scmp.lt.s32.totalorder %s20, 3
      %p229 = pnand %p227, %p228
      %p230 = pneg %p229
      // Predicated region
      $region9: #{tpu_custom_call.1} parent=5 // pred_check
        _
      $region10: #{tpu_custom_call.1} parent=5 // pred_check_branch
        %232 = sbr.rel (%p229) target = $region12
      $region11: #{tpu_custom_call.1} parent=5 // pred_region
        %s233 = ssub.s32 %s20, 1
        // Predicated region
        $region13: #{tpu_custom_call.1} parent=11 // pred_check
          %p234 = pneg %p67
        $region14: #{tpu_custom_call.1} parent=11 // pred_check_branch
          %236 = sbr.rel (%p234) target = $region16
        $region15: #{tpu_custom_call.1} parent=11 // pred_region
          _
        $region16: #{tpu_custom_call.1} parent=11 // pred_fallthru
          _
        // Predicated region
        $region17: #{tpu_custom_call.1} parent=11 // pred_check
          %p237 = pneg %p88
        $region18: #{tpu_custom_call.1} parent=11 // pred_check_branch
          %239 = sbr.rel (%p237) target = $region20
        $region19: #{tpu_custom_call.1} parent=11 // pred_region
          _
        $region20: #{tpu_custom_call.1} parent=11 // pred_fallthru
          _
        // Predicated region
        $region21: #{tpu_custom_call.1} parent=11 // pred_check
          %p240 = pneg %p109
        $region22: #{tpu_custom_call.1} parent=11 // pred_check_branch
          %242 = sbr.rel (%p240) target = $region24
        $region23: #{tpu_custom_call.1} parent=11 // pred_region
          _
        $region24: #{tpu_custom_call.1} parent=11 // pred_fallthru
          _
        // Predicated region
        $region25: #{tpu_custom_call.1} parent=11 // pred_check
          %p243 = pneg %p130
        $region26: #{tpu_custom_call.1} parent=11 // pred_check_branch
          %245 = sbr.rel (%p243) target = $region28
        $region27: #{tpu_custom_call.1} parent=11 // pred_region
          _
        $region28: #{tpu_custom_call.1} parent=11 // pred_fallthru
          _
        // Predicated region
        $region29: #{tpu_custom_call.1} parent=11 // pred_check
          %p246 = pneg %p151
        $region30: #{tpu_custom_call.1} parent=11 // pred_check_branch
          %248 = sbr.rel (%p246) target = $region32
        $region31: #{tpu_custom_call.1} parent=11 // pred_region
          _
        $region32: #{tpu_custom_call.1} parent=11 // pred_fallthru
          _
        // Predicated region
        $region33: #{tpu_custom_call.1} parent=11 // pred_check
          %p249 = pneg %p172
        $region34: #{tpu_custom_call.1} parent=11 // pred_check_branch
          %251 = sbr.rel (%p249) target = $region36
        $region35: #{tpu_custom_call.1} parent=11 // pred_region
          _
        $region36: #{tpu_custom_call.1} parent=11 // pred_fallthru
          _
        // Predicated region
        $region37: #{tpu_custom_call.1} parent=11 // pred_check
          %p252 = pneg %p193
        $region38: #{tpu_custom_call.1} parent=11 // pred_check_branch
          %254 = sbr.rel (%p252) target = $region40
        $region39: #{tpu_custom_call.1} parent=11 // pred_region
          _
        $region40: #{tpu_custom_call.1} parent=11 // pred_fallthru
          _
      $region12: #{tpu_custom_call.1} parent=5 // pred_fallthru
        _
      %p255 = scmp.lt.s32.totalorder %s20, 2
      // Predicated region
      $region41: #{tpu_custom_call.1} parent=5 // pred_check
        %p256 = pneg %p255
      $region42: #{tpu_custom_call.1} parent=5 // pred_check_branch
        %258 = sbr.rel (%p256) target = $region44
      $region43: #{tpu_custom_call.1} parent=5 // pred_region
        // Predicated region
        $region45: #{tpu_custom_call.1} parent=43 // pred_check
          %p259 = pneg %p40
        $region46: #{tpu_custom_call.1} parent=43 // pred_check_branch
          %261 = sbr.rel (%p259) target = $region48
        $region47: #{tpu_custom_call.1} parent=43 // pred_region
          %s262 = sand.u32 %s30, 1
          %s263 = scalar_lea.sflag [#allocation4], %s262
          %s264 = sand.u32 %s30, 1
          %s265 = smul.addr %s264, 64
          %s266 = scalar_lea.vmem [#allocation3], %s265
          %s268 = ssub.s32 1024, 1024
          %269 = vsyncadd %s263, %s268
          %s270 = smul.addr %s20, 8
          %s271 = smul.addr %s270, 128
          %s272 = scalar_lea.hbm %s0, %s271
          %s273 = sshll.u32 %s266, 4
          %s274 = int_to_ptr.vmem [resolvable:$true] %s273
          %279 = dma.hbm_to_vmem [thread:$0]  %s272, 1024, %s274, %s263, 256, 256, 16
        $region48: #{tpu_custom_call.1} parent=43 // pred_fallthru
          _
      $region44: #{tpu_custom_call.1} parent=5 // pred_fallthru
        _
      %p280 = scmp.le.s32.totalorder 1, %s20
      %p281 = scmp.lt.s32.totalorder %s20, 3
      %p282 = pnand %p280, %p281
      %p283 = pneg %p282
      // Predicated region
      $region49: #{tpu_custom_call.1} parent=5 // pred_check
        _
      $region50: #{tpu_custom_call.1} parent=5 // pred_check_branch
        %285 = sbr.rel (%p282) target = $region52
      $region51: #{tpu_custom_call.1} parent=5 // pred_region
        %s286 = ssub.s32 %s20, 1
        %s287 = sand.u32 %s33, 1
        %s288 = scalar_lea.sflag [#allocation4], %s287
        %s289 = sand.u32 %s33, 1
        %s290 = smul.addr %s289, 64
        %s291 = scalar_lea.vmem [#allocation3], %s290
        // Predicated region
        $region53: #{tpu_custom_call.1} parent=51 // pred_check
          %p292 = pneg %p46
        $region54: #{tpu_custom_call.1} parent=51 // pred_check_branch
          %294 = sbr.rel (%p292) target = $region56
        $region55: #{tpu_custom_call.1} parent=51 // pred_region
          %295 = dma.done %s288, 1024
        $region56: #{tpu_custom_call.1} parent=51 // pred_fallthru
          _
        %s296 = sand.u32 %s33, 1
        %s297 = scalar_lea.sflag [#allocation4], %s296
        %s298 = sand.u32 %s33, 1
        %s299 = smul.addr %s298, 64
        %s300 = scalar_lea.vmem [#allocation3], %s299
        %p301 = pneg %p46
        %p302 = pneg %p43
        %p303 = pneg %p67
        %p304 = pneg %p64
        %p305 = pneg %p88
        %p306 = pneg %p85
        %p307 = pneg %p109
        %p308 = pneg %p106
        %p309 = pneg %p130
        %p310 = pneg %p127
        %p311 = pneg %p151
        %p312 = pneg %p148
        %p313 = pneg %p172
        %p314 = pneg %p169
        %p315 = pneg %p193
        %p316 = pneg %p190
        %p317 = pneg %p219
        %p318 = pneg %p216
        %s319 = sand.u32 %s206, 1
        %s320 = scalar_lea.sflag [#allocation5], %s319
        %s321 = sand.u32 %s206, 1
        %s322 = smul.addr %s321, 64
        %s323 = scalar_lea.vmem [#allocation6], %s322
        %v324 = vld [vmem:[%s1] sm:$0xff]
        %v325 = vld [vmem:[%s1 + $0x8] sm:$0xff]
        %v326 = vld [vmem:[%s2] sm:$0xff]
        %v327 = vld [vmem:[%s2 + $0x8] sm:$0xff]
        %v328 = vld [vmem:[%s3] sm:$0xff]
        %v329 = vld [vmem:[%s3 + $0x8] sm:$0xff]
        %v330 = vld [vmem:[%s4] sm:$0xff]
        %v331 = vld [vmem:[%s4 + $0x8] sm:$0xff]
        %v332 = vld [vmem:[%s5] sm:$0xff]
        %v333 = vld [vmem:[%s6] sm:$0xff]
        %v334 = vld [vmem:[%s7] sm:$0xff]
        %v335 = vld [vmem:[%s7 + $0x8] sm:$0xff]
        %v336 = vld [vmem:[%s7 + $0x10] sm:$0x1]
        %v337 = vld [vmem:[%s7 + $0x18] sm:$0x1]
        %v338 = vld [vmem:[%s291] sm:$0xff]
        %v339 = vld [vmem:[%s291 + $0x8] sm:$0xff]
        %341 = vset.pattern.permute.xlu0 0
        %342 = vperm.xlu0 %341, %v326
        %v343 = vpop.permute.xlu0 %342
        %346 = vset.pattern.permute.xlu0 0
        %347 = vperm.xlu0 %346, %v327
        %v348 = vpop.permute.xlu0 %347
        %vm350 = vcmask 64512
        %v352 = vsel %vm350, %v324, 0
        %v355 = vsel %vm350, %v325, 0
        %v357 = vand.u32 %v339, 4294901760
        %358 = vmatprep.subr.mxu0 %v357
        %v359 = vand.u32 %v338, 4294901760
        %360 = vmatpush1.msra.mxu0 %v359
        %361 = vmatprep.subr.mxu0 0.0
        %362 = vmatpush1.msra.mxu0 0.0
        %363 = vmatprep.subr.mxu0 0.0
        %364 = vmatpush1.msra.mxu0 0.0
        %365 = vmatprep.subr.mxu0 0.0
        %366 = vmatpush1.msra.mxu0 0.0
        %367 = vmatprep.subr.mxu0 0.0
        %368 = vmatpush1.msra.mxu0 0.0
        %369 = vmatprep.subr.mxu0 0.0
        %370 = vmatpush1.msra.mxu0 0.0
        %371 = vmatprep.subr.mxu0 0.0
        %372 = vmatpush1.msra.mxu0 0.0
        %373 = vmatprep.subr.mxu0 0.0
        %374 = vmatpush1.msra.mxu0 0.0
        %375 = vmatprep.subr.mxu0 0.0
        %376 = vmatpush1.msra.mxu0 0.0
        %377 = vmatprep.subr.mxu0 0.0
        %378 = vmatpush1.msra.mxu0 0.0
        %379 = vmatprep.subr.mxu0 0.0
        %380 = vmatpush1.msra.mxu0 0.0
        %381 = vmatprep.subr.mxu0 0.0
        %382 = vmatpush1.msra.mxu0 0.0
        %383 = vmatprep.subr.mxu0 0.0
        %384 = vmatpush1.msra.mxu0 0.0
        %385 = vmatprep.subr.mxu0 0.0
        %386 = vmatpush1.msra.mxu0 0.0
        %387 = vmatprep.subr.mxu0 0.0
        %388 = vmatpush1.msra.mxu0 0.0
        %389 = vmatprep.subr.mxu0 0.0
        %390 = vmatpush1.msra.mxu0 0.0
        %391 = vmatprep.subr.mxu0 0.0
        %392 = vmatpush1.msra.mxu0 0.0
        %393 = vmatprep.subr.mxu0 0.0
        %394 = vmatpush1.msra.mxu0 0.0
        %395 = vmatprep.subr.mxu0 0.0
        %396 = vmatpush1.msra.mxu0 0.0
        %397 = vmatprep.subr.mxu0 0.0
        %398 = vmatpush1.msra.mxu0 0.0
        %399 = vmatprep.subr.mxu0 0.0
        %400 = vmatpush1.msra.mxu0 0.0
        %401 = vmatprep.subr.mxu0 0.0
        %402 = vmatpush1.msra.mxu0 0.0
        %403 = vmatprep.subr.mxu0 0.0
        %404 = vmatpush1.msra.mxu0 0.0
        %405 = vmatprep.subr.mxu0 0.0
        %406 = vmatpush1.msra.mxu0 0.0
        %407 = vmatprep.subr.mxu0 0.0
        %408 = vmatpush1.msra.mxu0 0.0
        %409 = vmatprep.subr.mxu0 0.0
        %410 = vmatpush1.msra.mxu0 0.0
        %411 = vmatprep.subr.mxu0 0.0
        %412 = vmatpush1.msra.mxu0 0.0
        %413 = vmatprep.subr.mxu0 0.0
        %414 = vmatpush1.msra.mxu0 0.0
        %415 = vmatprep.subr.mxu0 0.0
        %416 = vmatpush1.msra.mxu0 0.0
        %417 = vmatprep.subr.mxu0 0.0
        %418 = vmatpush1.msra.mxu0 0.0
        %419 = vmatprep.subr.mxu0 0.0
        %420 = vmatpush1.msra.mxu0 0.0
        %421 = vmatprep.subr.mxu0 0.0
        %422 = vmatpush1.msra.mxu0 0.0
        %423 = vmatprep.mubr.f32.mxu0 0.0
        %v424 = vand.u32 %v352, 4294901760
        %v425 = vsub.f32 %v352, %v424
        %v426 = vand.u32 %v425, 4294901760
        %v427 = vsub.f32 %v425, %v426
        %v428 = vand.u32 %v427, 4294901760
        %429 = vmatmul.mubr.f32.gmra.mrb[0].mxu0 %v428
        %v430 = vpop.f32.mrb[0].mxu0
        %v431 = vadd.f32 %v343, %v430
        %v432 = vpop.f32.mrb[0].mxu0
        %v433 = vadd.f32 %v343, %v432
        %434 = vmatprep.mubr.f32.mxu0 0.0
        %v435 = vand.u32 %v355, 4294901760
        %v436 = vsub.f32 %v355, %v435
        %v437 = vand.u32 %v436, 4294901760
        %v438 = vsub.f32 %v436, %v437
        %v439 = vand.u32 %v438, 4294901760
        %440 = vmatmul.mubr.f32.gmra.mrb[0].mxu0 %v439
        %v441 = vpop.f32.mrb[0].mxu0
        %v442 = vadd.f32 %v348, %v441
        %v443 = vpop.f32.mrb[0].mxu0
        %v444 = vadd.f32 %v348, %v443
        %445 = vdwg.mxu0
        %v446 = vand.u32 %v339, 4294901760
        %v447 = vsub.f32 %v339, %v446
        %v448 = vand.u32 %v447, 4294901760
        %v449 = vsub.f32 %v447, %v448
        %v450 = vand.u32 %v449, 4294901760
        %451 = vmatprep.subr.mxu0 %v450
        %v452 = vand.u32 %v338, 4294901760
        %v453 = vsub.f32 %v338, %v452
        %v454 = vand.u32 %v453, 4294901760
        %v455 = vsub.f32 %v453, %v454
        %v456 = vand.u32 %v455, 4294901760
        %457 = vmatpush1.msra.mxu0 %v456
        %458 = vmatprep.subr.mxu0 0.0
        %459 = vmatpush1.msra.mxu0 0.0
        %460 = vmatprep.subr.mxu0 0.0
        %461 = vmatpush1.msra.mxu0 0.0
        %462 = vmatprep.subr.mxu0 0.0
        %463 = vmatpush1.msra.mxu0 0.0
        %464 = vmatprep.subr.mxu0 0.0
        %465 = vmatpush1.msra.mxu0 0.0
        %466 = vmatprep.subr.mxu0 0.0
        %467 = vmatpush1.msra.mxu0 0.0
        %468 = vmatprep.subr.mxu0 0.0
        %469 = vmatpush1.msra.mxu0 0.0
        %470 = vmatprep.subr.mxu0 0.0
        %471 = vmatpush1.msra.mxu0 0.0
        %472 = vmatprep.subr.mxu0 0.0
        %473 = vmatpush1.msra.mxu0 0.0
        %474 = vmatprep.subr.mxu0 0.0
        %475 = vmatpush1.msra.mxu0 0.0
        %476 = vmatprep.subr.mxu0 0.0
        %477 = vmatpush1.msra.mxu0 0.0
        %478 = vmatprep.subr.mxu0 0.0
        %479 = vmatpush1.msra.mxu0 0.0
        %480 = vmatprep.subr.mxu0 0.0
        %481 = vmatpush1.msra.mxu0 0.0
        %482 = vmatprep.subr.mxu0 0.0
        %483 = vmatpush1.msra.mxu0 0.0
        %484 = vmatprep.subr.mxu0 0.0
        %485 = vmatpush1.msra.mxu0 0.0
        %486 = vmatprep.subr.mxu0 0.0
        %487 = vmatpush1.msra.mxu0 0.0
        %488 = vmatprep.subr.mxu0 0.0
        %489 = vmatpush1.msra.mxu0 0.0
        %490 = vmatprep.subr.mxu0 0.0
        %491 = vmatpush1.msra.mxu0 0.0
        %492 = vmatprep.subr.mxu0 0.0
        %493 = vmatpush1.msra.mxu0 0.0
        %494 = vmatprep.subr.mxu0 0.0
        %495 = vmatpush1.msra.mxu0 0.0
        %496 = vmatprep.subr.mxu0 0.0
        %497 = vmatpush1.msra.mxu0 0.0
        %498 = vmatprep.subr.mxu0 0.0
        %499 = vmatpush1.msra.mxu0 0.0
        %500 = vmatprep.subr.mxu0 0.0
        %501 = vmatpush1.msra.mxu0 0.0
        %502 = vmatprep.subr.mxu0 0.0
        %503 = vmatpush1.msra.mxu0 0.0
        %504 = vmatprep.subr.mxu0 0.0
        %505 = vmatpush1.msra.mxu0 0.0
        %506 = vmatprep.subr.mxu0 0.0
        %507 = vmatpush1.msra.mxu0 0.0
        %508 = vmatprep.subr.mxu0 0.0
        %509 = vmatpush1.msra.mxu0 0.0
        %510 = vmatprep.subr.mxu0 0.0
        %511 = vmatpush1.msra.mxu0 0.0
        %512 = vmatprep.subr.mxu0 0.0
        %513 = vmatpush1.msra.mxu0 0.0
        %514 = vmatprep.subr.mxu0 0.0
        %515 = vmatpush1.msra.mxu0 0.0
        %516 = vmatprep.subr.mxu0 0.0
        %517 = vmatpush1.msra.mxu0 0.0
        %518 = vmatprep.subr.mxu0 0.0
        %519 = vmatpush1.msra.mxu0 0.0
        %520 = vmatprep.mubr.f32.mxu0 0.0
        %v521 = vand.u32 %v352, 4294901760
        %522 = vmatmul.mubr.f32.gmra.mrb[0].mxu0 %v521
        %v523 = vpop.f32.mrb[0].mxu0
        %v524 = vadd.f32 %v431, %v523
        %v525 = vpop.f32.mrb[0].mxu0
        %v526 = vadd.f32 %v433, %v525
        %527 = vmatprep.mubr.f32.mxu0 0.0
        %v528 = vand.u32 %v355, 4294901760
        %529 = vmatmul.mubr.f32.gmra.mrb[0].mxu0 %v528
        %v530 = vpop.f32.mrb[0].mxu0
        %v531 = vadd.f32 %v442, %v530
        %v532 = vpop.f32.mrb[0].mxu0
        %v533 = vadd.f32 %v444, %v532
        %534 = vdwg.mxu0
        %v535 = vand.u32 %v339, 4294901760
        %v536 = vsub.f32 %v339, %v535
        %537 = vmatprep.subr.mxu0 %v536
        %v538 = vand.u32 %v338, 4294901760
        %v539 = vsub.f32 %v338, %v538
        %540 = vmatpush1.msra.mxu0 %v539
        %541 = vmatprep.subr.mxu0 0.0
        %542 = vmatpush1.msra.mxu0 0.0
        %543 = vmatprep.subr.mxu0 0.0
        %544 = vmatpush1.msra.mxu0 0.0
        %545 = vmatprep.subr.mxu0 0.0
        %546 = vmatpush1.msra.mxu0 0.0
        %547 = vmatprep.subr.mxu0 0.0
        %548 = vmatpush1.msra.mxu0 0.0
        %549 = vmatprep.subr.mxu0 0.0
        %550 = vmatpush1.msra.mxu0 0.0
        %551 = vmatprep.subr.mxu0 0.0
        %552 = vmatpush1.msra.mxu0 0.0
        %553 = vmatprep.subr.mxu0 0.0
        %554 = vmatpush1.msra.mxu0 0.0
        %555 = vmatprep.subr.mxu0 0.0
        %556 = vmatpush1.msra.mxu0 0.0
        %557 = vmatprep.subr.mxu0 0.0
        %558 = vmatpush1.msra.mxu0 0.0
        %559 = vmatprep.subr.mxu0 0.0
        %560 = vmatpush1.msra.mxu0 0.0
        %561 = vmatprep.subr.mxu0 0.0
        %562 = vmatpush1.msra.mxu0 0.0
        %563 = vmatprep.subr.mxu0 0.0
        %564 = vmatpush1.msra.mxu0 0.0
        %565 = vmatprep.subr.mxu0 0.0
        %566 = vmatpush1.msra.mxu0 0.0
        %567 = vmatprep.subr.mxu0 0.0
        %568 = vmatpush1.msra.mxu0 0.0
        %569 = vmatprep.subr.mxu0 0.0
        %570 = vmatpush1.msra.mxu0 0.0
        %571 = vmatprep.subr.mxu0 0.0
        %572 = vmatpush1.msra.mxu0 0.0
        %573 = vmatprep.subr.mxu0 0.0
        %574 = vmatpush1.msra.mxu0 0.0
        %575 = vmatprep.subr.mxu0 0.0
        %576 = vmatpush1.msra.mxu0 0.0
        %577 = vmatprep.subr.mxu0 0.0
        %578 = vmatpush1.msra.mxu0 0.0
        %579 = vmatprep.subr.mxu0 0.0
        %580 = vmatpush1.msra.mxu0 0.0
        %581 = vmatprep.subr.mxu0 0.0
        %582 = vmatpush1.msra.mxu0 0.0
        %583 = vmatprep.subr.mxu0 0.0
        %584 = vmatpush1.msra.mxu0 0.0
        %585 = vmatprep.subr.mxu0 0.0
        %586 = vmatpush1.msra.mxu0 0.0
        %587 = vmatprep.subr.mxu0 0.0
        %588 = vmatpush1.msra.mxu0 0.0
        %589 = vmatprep.subr.mxu0 0.0
        %590 = vmatpush1.msra.mxu0 0.0
        %591 = vmatprep.subr.mxu0 0.0
        %592 = vmatpush1.msra.mxu0 0.0
        %593 = vmatprep.subr.mxu0 0.0
        %594 = vmatpush1.msra.mxu0 0.0
        %595 = vmatprep.subr.mxu0 0.0
        %596 = vmatpush1.msra.mxu0 0.0
        %597 = vmatprep.subr.mxu0 0.0
        %598 = vmatpush1.msra.mxu0 0.0
        %599 = vmatprep.subr.mxu0 0.0
        %600 = vmatpush1.msra.mxu0 0.0
        %601 = vmatprep.subr.mxu0 0.0
        %602 = vmatpush1.msra.mxu0 0.0
        %603 = vmatprep.mubr.f32.mxu0 0.0
        %v604 = vand.u32 %v352, 4294901760
        %v605 = vsub.f32 %v352, %v604
        %606 = vmatmul.mubr.f32.gmra.mrb[0].mxu0 %v605
        %v607 = vpop.f32.mrb[0].mxu0
        %v608 = vadd.f32 %v524, %v607
        %v609 = vpop.f32.mrb[0].mxu0
        %v610 = vadd.f32 %v526, %v609
        %611 = vmatprep.mubr.f32.mxu0 0.0
        %v612 = vand.u32 %v355, 4294901760
        %v613 = vsub.f32 %v355, %v612
        %614 = vmatmul.mubr.f32.gmra.mrb[0].mxu0 %v613
        %v615 = vpop.f32.mrb[0].mxu0
        %v616 = vadd.f32 %v531, %v615
        %v617 = vpop.f32.mrb[0].mxu0
        %v618 = vadd.f32 %v533, %v617
        %619 = vdwg.mxu0
        %v620 = vand.u32 %v339, 4294901760
        %621 = vmatprep.subr.mxu0 %v620
        %v622 = vand.u32 %v338, 4294901760
        %623 = vmatpush1.msra.mxu0 %v622
        %624 = vmatprep.subr.mxu0 0.0
        %625 = vmatpush1.msra.mxu0 0.0
        %626 = vmatprep.subr.mxu0 0.0
        %627 = vmatpush1.msra.mxu0 0.0
        %628 = vmatprep.subr.mxu0 0.0
        %629 = vmatpush1.msra.mxu0 0.0
        %630 = vmatprep.subr.mxu0 0.0
        %631 = vmatpush1.msra.mxu0 0.0
        %632 = vmatprep.subr.mxu0 0.0
        %633 = vmatpush1.msra.mxu0 0.0
        %634 = vmatprep.subr.mxu0 0.0
        %635 = vmatpush1.msra.mxu0 0.0
        %636 = vmatprep.subr.mxu0 0.0
        %637 = vmatpush1.msra.mxu0 0.0
        %638 = vmatprep.subr.mxu0 0.0
        %639 = vmatpush1.msra.mxu0 0.0
        %640 = vmatprep.subr.mxu0 0.0
        %641 = vmatpush1.msra.mxu0 0.0
        %642 = vmatprep.subr.mxu0 0.0
        %643 = vmatpush1.msra.mxu0 0.0
        %644 = vmatprep.subr.mxu0 0.0
        %645 = vmatpush1.msra.mxu0 0.0
        %646 = vmatprep.subr.mxu0 0.0
        %647 = vmatpush1.msra.mxu0 0.0
        %648 = vmatprep.subr.mxu0 0.0
        %649 = vmatpush1.msra.mxu0 0.0
        %650 = vmatprep.subr.mxu0 0.0
        %651 = vmatpush1.msra.mxu0 0.0
        %652 = vmatprep.subr.mxu0 0.0
        %653 = vmatpush1.msra.mxu0 0.0
        %654 = vmatprep.subr.mxu0 0.0
        %655 = vmatpush1.msra.mxu0 0.0
        %656 = vmatprep.subr.mxu0 0.0
        %657 = vmatpush1.msra.mxu0 0.0
        %658 = vmatprep.subr.mxu0 0.0
        %659 = vmatpush1.msra.mxu0 0.0
        %660 = vmatprep.subr.mxu0 0.0
        %661 = vmatpush1.msra.mxu0 0.0
        %662 = vmatprep.subr.mxu0 0.0
        %663 = vmatpush1.msra.mxu0 0.0
        %664 = vmatprep.subr.mxu0 0.0
        %665 = vmatpush1.msra.mxu0 0.0
        %666 = vmatprep.subr.mxu0 0.0
        %667 = vmatpush1.msra.mxu0 0.0
        %668 = vmatprep.subr.mxu0 0.0
        %669 = vmatpush1.msra.mxu0 0.0
        %670 = vmatprep.subr.mxu0 0.0
        %671 = vmatpush1.msra.mxu0 0.0
        %672 = vmatprep.subr.mxu0 0.0
        %673 = vmatpush1.msra.mxu0 0.0
        %674 = vmatprep.subr.mxu0 0.0
        %675 = vmatpush1.msra.mxu0 0.0
        %676 = vmatprep.subr.mxu0 0.0
        %677 = vmatpush1.msra.mxu0 0.0
        %678 = vmatprep.subr.mxu0 0.0
        %679 = vmatpush1.msra.mxu0 0.0
        %680 = vmatprep.subr.mxu0 0.0
        %681 = vmatpush1.msra.mxu0 0.0
        %682 = vmatprep.subr.mxu0 0.0
        %683 = vmatpush1.msra.mxu0 0.0
        %684 = vmatprep.subr.mxu0 0.0
        %685 = vmatpush1.msra.mxu0 0.0
        %686 = vmatprep.mubr.f32.mxu0 0.0
        %v687 = vand.u32 %v352, 4294901760
        %v688 = vsub.f32 %v352, %v687
        %v689 = vand.u32 %v688, 4294901760
        %690 = vmatmul.mubr.f32.gmra.mrb[0].mxu0 %v689
        %v691 = vpop.f32.mrb[0].mxu0
        %v692 = vadd.f32 %v608, %v691
        %v693 = vpop.f32.mrb[0].mxu0
        %v694 = vadd.f32 %v610, %v693
        %695 = vmatprep.mubr.f32.mxu0 0.0
        %v696 = vand.u32 %v355, 4294901760
        %v697 = vsub.f32 %v355, %v696
        %v698 = vand.u32 %v697, 4294901760
        %699 = vmatmul.mubr.f32.gmra.mrb[0].mxu0 %v698
        %v700 = vpop.f32.mrb[0].mxu0
        %v701 = vadd.f32 %v616, %v700
        %v702 = vpop.f32.mrb[0].mxu0
        %v703 = vadd.f32 %v618, %v702
        %704 = vdwg.mxu0
        %v705 = vand.u32 %v339, 4294901760
        %v706 = vsub.f32 %v339, %v705
        %v707 = vand.u32 %v706, 4294901760
        %708 = vmatprep.subr.mxu0 %v707
        %v709 = vand.u32 %v338, 4294901760
        %v710 = vsub.f32 %v338, %v709
        %v711 = vand.u32 %v710, 4294901760
        %712 = vmatpush1.msra.mxu0 %v711
        %713 = vmatprep.subr.mxu0 0.0
        %714 = vmatpush1.msra.mxu0 0.0
        %715 = vmatprep.subr.mxu0 0.0
        %716 = vmatpush1.msra.mxu0 0.0
        %717 = vmatprep.subr.mxu0 0.0
        %718 = vmatpush1.msra.mxu0 0.0
        %719 = vmatprep.subr.mxu0 0.0
        %720 = vmatpush1.msra.mxu0 0.0
        %721 = vmatprep.subr.mxu0 0.0
        %722 = vmatpush1.msra.mxu0 0.0
        %723 = vmatprep.subr.mxu0 0.0
        %724 = vmatpush1.msra.mxu0 0.0
        %725 = vmatprep.subr.mxu0 0.0
        %726 = vmatpush1.msra.mxu0 0.0
        %727 = vmatprep.subr.mxu0 0.0
        %728 = vmatpush1.msra.mxu0 0.0
        %729 = vmatprep.subr.mxu0 0.0
        %730 = vmatpush1.msra.mxu0 0.0
        %731 = vmatprep.subr.mxu0 0.0
        %732 = vmatpush1.msra.mxu0 0.0
        %733 = vmatprep.subr.mxu0 0.0
        %734 = vmatpush1.msra.mxu0 0.0
        %735 = vmatprep.subr.mxu0 0.0
        %736 = vmatpush1.msra.mxu0 0.0
        %737 = vmatprep.subr.mxu0 0.0
        %738 = vmatpush1.msra.mxu0 0.0
        %739 = vmatprep.subr.mxu0 0.0
        %740 = vmatpush1.msra.mxu0 0.0
        %741 = vmatprep.subr.mxu0 0.0
        %742 = vmatpush1.msra.mxu0 0.0
        %743 = vmatprep.subr.mxu0 0.0
        %744 = vmatpush1.msra.mxu0 0.0
        %745 = vmatprep.subr.mxu0 0.0
        %746 = vmatpush1.msra.mxu0 0.0
        %747 = vmatprep.subr.mxu0 0.0
        %748 = vmatpush1.msra.mxu0 0.0
        %749 = vmatprep.subr.mxu0 0.0
        %750 = vmatpush1.msra.mxu0 0.0
        %751 = vmatprep.subr.mxu0 0.0
        %752 = vmatpush1.msra.mxu0 0.0
        %753 = vmatprep.subr.mxu0 0.0
        %754 = vmatpush1.msra.mxu0 0.0
        %755 = vmatprep.subr.mxu0 0.0
        %756 = vmatpush1.msra.mxu0 0.0
        %757 = vmatprep.subr.mxu0 0.0
        %758 = vmatpush1.msra.mxu0 0.0
        %759 = vmatprep.subr.mxu0 0.0
        %760 = vmatpush1.msra.mxu0 0.0
        %761 = vmatprep.subr.mxu0 0.0
        %762 = vmatpush1.msra.mxu0 0.0
        %763 = vmatprep.subr.mxu0 0.0
        %764 = vmatpush1.msra.mxu0 0.0
        %765 = vmatprep.subr.mxu0 0.0
        %766 = vmatpush1.msra.mxu0 0.0
        %767 = vmatprep.subr.mxu0 0.0
        %768 = vmatpush1.msra.mxu0 0.0
        %769 = vmatprep.subr.mxu0 0.0
        %770 = vmatpush1.msra.mxu0 0.0
        %771 = vmatprep.subr.mxu0 0.0
        %772 = vmatpush1.msra.mxu0 0.0
        %773 = vmatprep.subr.mxu0 0.0
        %774 = vmatpush1.msra.mxu0 0.0
        %775 = vmatprep.mubr.f32.mxu0 0.0
        %v776 = vand.u32 %v352, 4294901760
        %777 = vmatmul.mubr.f32.gmra.mrb[0].mxu0 %v776
        %v778 = vpop.f32.mrb[0].mxu0
        %v779 = vadd.f32 %v692, %v778
        %v780 = vpop.f32.mrb[0].mxu0
        %v781 = vadd.f32 %v694, %v780
        %782 = vmatprep.mubr.f32.mxu0 0.0
        %v783 = vand.u32 %v355, 4294901760
        %784 = vmatmul.mubr.f32.gmra.mrb[0].mxu0 %v783
        %v785 = vpop.f32.mrb[0].mxu0
        %v786 = vadd.f32 %v701, %v785
        %v787 = vpop.f32.mrb[0].mxu0
        %v788 = vadd.f32 %v703, %v787
        %789 = vdwg.mxu0
        %v790 = vand.u32 %v339, 4294901760
        %791 = vmatprep.subr.mxu0 %v790
        %v792 = vand.u32 %v338, 4294901760
        %793 = vmatpush1.msra.mxu0 %v792
        %794 = vmatprep.subr.mxu0 0.0
        %795 = vmatpush1.msra.mxu0 0.0
        %796 = vmatprep.subr.mxu0 0.0
        %797 = vmatpush1.msra.mxu0 0.0
        %798 = vmatprep.subr.mxu0 0.0
        %799 = vmatpush1.msra.mxu0 0.0
        %800 = vmatprep.subr.mxu0 0.0
        %801 = vmatpush1.msra.mxu0 0.0
        %802 = vmatprep.subr.mxu0 0.0
        %803 = vmatpush1.msra.mxu0 0.0
        %804 = vmatprep.subr.mxu0 0.0
        %805 = vmatpush1.msra.mxu0 0.0
        %806 = vmatprep.subr.mxu0 0.0
        %807 = vmatpush1.msra.mxu0 0.0
        %808 = vmatprep.subr.mxu0 0.0
        %809 = vmatpush1.msra.mxu0 0.0
        %810 = vmatprep.subr.mxu0 0.0
        %811 = vmatpush1.msra.mxu0 0.0
        %812 = vmatprep.subr.mxu0 0.0
        %813 = vmatpush1.msra.mxu0 0.0
        %814 = vmatprep.subr.mxu0 0.0
        %815 = vmatpush1.msra.mxu0 0.0
        %816 = vmatprep.subr.mxu0 0.0
        %817 = vmatpush1.msra.mxu0 0.0
        %818 = vmatprep.subr.mxu0 0.0
        %819 = vmatpush1.msra.mxu0 0.0
        %820 = vmatprep.subr.mxu0 0.0
        %821 = vmatpush1.msra.mxu0 0.0
        %822 = vmatprep.subr.mxu0 0.0
        %823 = vmatpush1.msra.mxu0 0.0
        %824 = vmatprep.subr.mxu0 0.0
        %825 = vmatpush1.msra.mxu0 0.0
        %826 = vmatprep.subr.mxu0 0.0
        %827 = vmatpush1.msra.mxu0 0.0
        %828 = vmatprep.subr.mxu0 0.0
        %829 = vmatpush1.msra.mxu0 0.0
        %830 = vmatprep.subr.mxu0 0.0
        %831 = vmatpush1.msra.mxu0 0.0
        %832 = vmatprep.subr.mxu0 0.0
        %833 = vmatpush1.msra.mxu0 0.0
        %834 = vmatprep.subr.mxu0 0.0
        %835 = vmatpush1.msra.mxu0 0.0
        %836 = vmatprep.subr.mxu0 0.0
        %837 = vmatpush1.msra.mxu0 0.0
        %838 = vmatprep.subr.mxu0 0.0
        %839 = vmatpush1.msra.mxu0 0.0
        %840 = vmatprep.subr.mxu0 0.0
        %841 = vmatpush1.msra.mxu0 0.0
        %842 = vmatprep.subr.mxu0 0.0
        %843 = vmatpush1.msra.mxu0 0.0
        %844 = vmatprep.subr.mxu0 0.0
        %845 = vmatpush1.msra.mxu0 0.0
        %846 = vmatprep.subr.mxu0 0.0
        %847 = vmatpush1.msra.mxu0 0.0
        %848 = vmatprep.subr.mxu0 0.0
        %849 = vmatpush1.msra.mxu0 0.0
        %850 = vmatprep.subr.mxu0 0.0
        %851 = vmatpush1.msra.mxu0 0.0
        %852 = vmatprep.subr.mxu0 0.0
        %853 = vmatpush1.msra.mxu0 0.0
        %854 = vmatprep.subr.mxu0 0.0
        %855 = vmatpush1.msra.mxu0 0.0
        %856 = vmatprep.mubr.f32.mxu0 0.0
        %v857 = vand.u32 %v352, 4294901760
        %858 = vmatmul.mubr.f32.gmra.mrb[0].mxu0 %v857
        %v859 = vpop.f32.mrb[0].mxu0
        %v860 = vadd.f32 %v779, %v859
        %v861 = vpop.f32.mrb[0].mxu0
        %v862 = vadd.f32 %v781, %v861
        %863 = vmatprep.mubr.f32.mxu0 0.0
        %v864 = vand.u32 %v355, 4294901760
        %865 = vmatmul.mubr.f32.gmra.mrb[0].mxu0 %v864
        %v866 = vpop.f32.mrb[0].mxu0
        %v867 = vadd.f32 %v786, %v866
        %v868 = vpop.f32.mrb[0].mxu0
        %v869 = vadd.f32 %v788, %v868
        %870 = vdwg.mxu0
        %v871 = vmax.f32 %v860, 0.0
        %v872 = vmax.f32 %v862, 0.0
        %v873 = vmax.f32 %v867, 0.0
        %v874 = vmax.f32 %v869, 0.0
        %875 = vst [vmem:[#allocation2] sm:$0xff] %v871
        %876 = vst [vmem:[#allocation2 + $0x8] sm:$0xff] %v872
        %877 = vst [vmem:[#allocation2 + $0x10] sm:$0xff] %v873
        %878 = vst [vmem:[#allocation2 + $0x18] sm:$0xff] %v874
        %s879 = scalar_lea.vmem %s291, 16 [#allocation3]
        %v880 = vld [vmem:[%s879] sm:$0xff]
        %v881 = vld [vmem:[%s879 + $0x8] sm:$0xff]
        %v882 = vand.u32 %v881, 4294901760
        %883 = vmatprep.subr.mxu0 %v882
        %v884 = vand.u32 %v880, 4294901760
        %885 = vmatpush1.msra.mxu0 %v884
        %886 = vmatprep.subr.mxu0 0.0
        %887 = vmatpush1.msra.mxu0 0.0
        %888 = vmatprep.subr.mxu0 0.0
        %889 = vmatpush1.msra.mxu0 0.0
        %890 = vmatprep.subr.mxu0 0.0
        %891 = vmatpush1.msra.mxu0 0.0
        %892 = vmatprep.subr.mxu0 0.0
        %893 = vmatpush1.msra.mxu0 0.0
        %894 = vmatprep.subr.mxu0 0.0
        %895 = vmatpush1.msra.mxu0 0.0
        %896 = vmatprep.subr.mxu0 0.0
        %897 = vmatpush1.msra.mxu0 0.0
        %898 = vmatprep.subr.mxu0 0.0
        %899 = vmatpush1.msra.mxu0 0.0
        %900 = vmatprep.subr.mxu0 0.0
        %901 = vmatpush1.msra.mxu0 0.0
        %902 = vmatprep.subr.mxu0 0.0
        %903 = vmatpush1.msra.mxu0 0.0
        %904 = vmatprep.subr.mxu0 0.0
        %905 = vmatpush1.msra.mxu0 0.0
        %906 = vmatprep.subr.mxu0 0.0
        %907 = vmatpush1.msra.mxu0 0.0
        %908 = vmatprep.subr.mxu0 0.0
        %909 = vmatpush1.msra.mxu0 0.0
        %910 = vmatprep.subr.mxu0 0.0
        %911 = vmatpush1.msra.mxu0 0.0
        %912 = vmatprep.subr.mxu0 0.0
        %913 = vmatpush1.msra.mxu0 0.0
        %914 = vmatprep.subr.mxu0 0.0
        %915 = vmatpush1.msra.mxu0 0.0
        %916 = vmatprep.subr.mxu0 0.0
        %917 = vmatpush1.msra.mxu0 0.0
        %918 = vmatprep.subr.mxu0 0.0
        %919 = vmatpush1.msra.mxu0 0.0
        %920 = vmatprep.subr.mxu0 0.0
        %921 = vmatpush1.msra.mxu0 0.0
        %922 = vmatprep.subr.mxu0 0.0
        %923 = vmatpush1.msra.mxu0 0.0
        %924 = vmatprep.subr.mxu0 0.0
        %925 = vmatpush1.msra.mxu0 0.0
        %926 = vmatprep.subr.mxu0 0.0
        %927 = vmatpush1.msra.mxu0 0.0
        %928 = vmatprep.subr.mxu0 0.0
        %929 = vmatpush1.msra.mxu0 0.0
        %930 = vmatprep.subr.mxu0 0.0
        %931 = vmatpush1.msra.mxu0 0.0
        %932 = vmatprep.subr.mxu0 0.0
        %933 = vmatpush1.msra.mxu0 0.0
        %934 = vmatprep.subr.mxu0 0.0
        %935 = vmatpush1.msra.mxu0 0.0
        %936 = vmatprep.subr.mxu0 0.0
        %937 = vmatpush1.msra.mxu0 0.0
        %938 = vmatprep.subr.mxu0 0.0
        %939 = vmatpush1.msra.mxu0 0.0
        %940 = vmatprep.subr.mxu0 0.0
        %941 = vmatpush1.msra.mxu0 0.0
        %942 = vmatprep.subr.mxu0 0.0
        %943 = vmatpush1.msra.mxu0 0.0
        %944 = vmatprep.subr.mxu0 0.0
        %945 = vmatpush1.msra.mxu0 0.0
        %946 = vmatprep.subr.mxu0 0.0
        %947 = vmatpush1.msra.mxu0 0.0
        %948 = vmatprep.mubr.f32.mxu0 0.0
        %v949 = vand.u32 %v352, 4294901760
        %v950 = vsub.f32 %v352, %v949
        %v951 = vand.u32 %v950, 4294901760
        %v952 = vsub.f32 %v950, %v951
        %v953 = vand.u32 %v952, 4294901760
        %954 = vmatmul.mubr.f32.gmra.mrb[0].mxu0 %v953
        %v955 = vpop.f32.mrb[0].mxu0
        %v956 = vadd.f32 %v343, %v955
        %v957 = vpop.f32.mrb[0].mxu0
        %v958 = vadd.f32 %v343, %v957
        %959 = vmatprep.mubr.f32.mxu0 0.0
        %v960 = vand.u32 %v355, 4294901760
        %v961 = vsub.f32 %v355, %v960
        %v962 = vand.u32 %v961, 4294901760
        %v963 = vsub.f32 %v961, %v962
        %v964 = vand.u32 %v963, 4294901760
        %965 = vmatmul.mubr.f32.gmra.mrb[0].mxu0 %v964
        %v966 = vpop.f32.mrb[0].mxu0
        %v967 = vadd.f32 %v348, %v966
        %v968 = vpop.f32.mrb[0].mxu0
        %v969 = vadd.f32 %v348, %v968
        %970 = vdwg.mxu0
        %v971 = vand.u32 %v881, 4294901760
        %v972 = vsub.f32 %v881, %v971
        %v973 = vand.u32 %v972, 4294901760
        %v974 = vsub.f32 %v972, %v973
        %v975 = vand.u32 %v974, 4294901760
        %976 = vmatprep.subr.mxu0 %v975
        %v977 = vand.u32 %v880, 4294901760
        %v978 = vsub.f32 %v880, %v977
        %v979 = vand.u32 %v978, 4294901760
        %v980 = vsub.f32 %v978, %v979
        %v981 = vand.u32 %v980, 4294901760
        %982 = vmatpush1.msra.mxu0 %v981
        %983 = vmatprep.subr.mxu0 0.0
        %984 = vmatpush1.msra.mxu0 0.0
        %985 = vmatprep.subr.mxu0 0.0
        %986 = vmatpush1.msra.mxu0 0.0
        %987 = vmatprep.subr.mxu0 0.0
        %988 = vmatpush1.msra.mxu0 0.0
        %989 = vmatprep.subr.mxu0 0.0
        %990 = vmatpush1.msra.mxu0 0.0
        %991 = vmatprep.subr.mxu0 0.0
        %992 = vmatpush1.msra.mxu0 0.0
        %993 = vmatprep.subr.mxu0 0.0
        %994 = vmatpush1.msra.mxu0 0.0
        %995 = vmatprep.subr.mxu0 0.0
        %996 = vmatpush1.msra.mxu0 0.0
        %997 = vmatprep.subr.mxu0 0.0
        %998 = vmatpush1.msra.mxu0 0.0
        %999 = vmatprep.subr.mxu0 0.0
        %1000 = vmatpush1.msra.mxu0 0.0
        %1001 = vmatprep.subr.mxu0 0.0
        %1002 = vmatpush1.msra.mxu0 0.0
        %1003 = vmatprep.subr.mxu0 0.0
        %1004 = vmatpush1.msra.mxu0 0.0
        %1005 = vmatprep.subr.mxu0 0.0
        %1006 = vmatpush1.msra.mxu0 0.0
        %1007 = vmatprep.subr.mxu0 0.0
        %1008 = vmatpush1.msra.mxu0 0.0
        %1009 = vmatprep.subr.mxu0 0.0
        %1010 = vmatpush1.msra.mxu0 0.0
        %1011 = vmatprep.subr.mxu0 0.0
        %1012 = vmatpush1.msra.mxu0 0.0
        %1013 = vmatprep.subr.mxu0 0.0
        %1014 = vmatpush1.msra.mxu0 0.0
        %1015 = vmatprep.subr.mxu0 0.0
        %1016 = vmatpush1.msra.mxu0 0.0
        %1017 = vmatprep.subr.mxu0 0.0
        %1018 = vmatpush1.msra.mxu0 0.0
        %1019 = vmatprep.subr.mxu0 0.0
        %1020 = vmatpush1.msra.mxu0 0.0
        %1021 = vmatprep.subr.mxu0 0.0
        %1022 = vmatpush1.msra.mxu0 0.0
        %1023 = vmatprep.subr.mxu0 0.0
        %1024 = vmatpush1.msra.mxu0 0.0
        %1025 = vmatprep.subr.mxu0 0.0
        %1026 = vmatpush1.msra.mxu0 0.0
        %1027 = vmatprep.subr.mxu0 0.0
        %1028 = vmatpush1.msra.mxu0 0.0
        %1029 = vmatprep.subr.mxu0 0.0
        %1030 = vmatpush1.msra.mxu0 0.0
        %1031 = vmatprep.subr.mxu0 0.0
        %1032 = vmatpush1.msra.mxu0 0.0
        %1033 = vmatprep.subr.mxu0 0.0
        %1034 = vmatpush1.msra.mxu0 0.0
        %1035 = vmatprep.subr.mxu0 0.0
        %1036 = vmatpush1.msra.mxu0 0.0
        %1037 = vmatprep.subr.mxu0 0.0
        %1038 = vmatpush1.msra.mxu0 0.0
        %1039 = vmatprep.subr.mxu0 0.0
        %1040 = vmatpush1.msra.mxu0 0.0
        %1041 = vmatprep.subr.mxu0 0.0
        %1042 = vmatpush1.msra.mxu0 0.0
        %1043 = vmatprep.subr.mxu0 0.0
        %1044 = vmatpush1.msra.mxu0 0.0
        %1045 = vmatprep.mubr.f32.mxu0 0.0
        %v1046 = vand.u32 %v352, 4294901760
        %1047 = vmatmul.mubr.f32.gmra.mrb[0].mxu0 %v1046
        %v1048 = vpop.f32.mrb[0].mxu0
        %v1049 = vadd.f32 %v956, %v1048
        %v1050 = vpop.f32.mrb[0].mxu0
        %v1051 = vadd.f32 %v958, %v1050
        %1052 = vmatprep.mubr.f32.mxu0 0.0
        %v1053 = vand.u32 %v355, 4294901760
        %1054 = vmatmul.mubr.f32.gmra.mrb[0].mxu0 %v1053
        %v1055 = vpop.f32.mrb[0].mxu0
        %v1056 = vadd.f32 %v967, %v1055
        %v1057 = vpop.f32.mrb[0].mxu0
        %v1058 = vadd.f32 %v969, %v1057
        %1059 = vdwg.mxu0
        %v1060 = vand.u32 %v881, 4294901760
        %v1061 = vsub.f32 %v881, %v1060
        %1062 = vmatprep.subr.mxu0 %v1061
        %v1063 = vand.u32 %v880, 4294901760
        %v1064 = vsub.f32 %v880, %v1063
        %1065 = vmatpush1.msra.mxu0 %v1064
        %1066 = vmatprep.subr.mxu0 0.0
        %1067 = vmatpush1.msra.mxu0 0.0
        %1068 = vmatprep.subr.mxu0 0.0
        %1069 = vmatpush1.msra.mxu0 0.0
        %1070 = vmatprep.subr.mxu0 0.0
        %1071 = vmatpush1.msra.mxu0 0.0
        %1072 = vmatprep.subr.mxu0 0.0
        %1073 = vmatpush1.msra.mxu0 0.0
        %1074 = vmatprep.subr.mxu0 0.0
        %1075 = vmatpush1.msra.mxu0 0.0
        %1076 = vmatprep.subr.mxu0 0.0
        %1077 = vmatpush1.msra.mxu0 0.0
        %1078 = vmatprep.subr.mxu0 0.0
        %1079 = vmatpush1.msra.mxu0 0.0
        %1080 = vmatprep.subr.mxu0 0.0
        %1081 = vmatpush1.msra.mxu0 0.0
        %1082 = vmatprep.subr.mxu0 0.0
        %1083 = vmatpush1.msra.mxu0 0.0
        %1084 = vmatprep.subr.mxu0 0.0
        %1085 = vmatpush1.msra.mxu0 0.0
        %1086 = vmatprep.subr.mxu0 0.0
        %1087 = vmatpush1.msra.mxu0 0.0
        %1088 = vmatprep.subr.mxu0 0.0
        %1089 = vmatpush1.msra.mxu0 0.0
        %1090 = vmatprep.subr.mxu0 0.0
        %1091 = vmatpush1.msra.mxu0 0.0
        %1092 = vmatprep.subr.mxu0 0.0
        %1093 = vmatpush1.msra.mxu0 0.0
        %1094 = vmatprep.subr.mxu0 0.0
        %1095 = vmatpush1.msra.mxu0 0.0
        %1096 = vmatprep.subr.mxu0 0.0
        %1097 = vmatpush1.msra.mxu0 0.0
        %1098 = vmatprep.subr.mxu0 0.0
        %1099 = vmatpush1.msra.mxu0 0.0
        %1100 = vmatprep.subr.mxu0 0.0
        %1101 = vmatpush1.msra.mxu0 0.0
        %1102 = vmatprep.subr.mxu0 0.0
        %1103 = vmatpush1.msra.mxu0 0.0
        %1104 = vmatprep.subr.mxu0 0.0
        %1105 = vmatpush1.msra.mxu0 0.0
        %1106 = vmatprep.subr.mxu0 0.0
        %1107 = vmatpush1.msra.mxu0 0.0
        %1108 = vmatprep.subr.mxu0 0.0
        %1109 = vmatpush1.msra.mxu0 0.0
        %1110 = vmatprep.subr.mxu0 0.0
        %1111 = vmatpush1.msra.mxu0 0.0
        %1112 = vmatprep.subr.mxu0 0.0
        %1113 = vmatpush1.msra.mxu0 0.0
        %1114 = vmatprep.subr.mxu0 0.0
        %1115 = vmatpush1.msra.mxu0 0.0
        %1116 = vmatprep.subr.mxu0 0.0
        %1117 = vmatpush1.msra.mxu0 0.0
        %1118 = vmatprep.subr.mxu0 0.0
        %1119 = vmatpush1.msra.mxu0 0.0
        %1120 = vmatprep.subr.mxu0 0.0
        %1121 = vmatpush1.msra.mxu0 0.0
        %1122 = vmatprep.subr.mxu0 0.0
        %1123 = vmatpush1.msra.mxu0 0.0
        %1124 = vmatprep.subr.mxu0 0.0
        %1125 = vmatpush1.msra.mxu0 0.0
        %1126 = vmatprep.subr.mxu0 0.0
        %1127 = vmatpush1.msra.mxu0 0.0
        %1128 = vmatprep.mubr.f32.mxu0 0.0
        %v1129 = vand.u32 %v352, 4294901760
        %v1130 = vsub.f32 %v352, %v1129
        %1131 = vmatmul.mubr.f32.gmra.mrb[0].mxu0 %v1130
        %v1132 = vpop.f32.mrb[0].mxu0
        %v1133 = vadd.f32 %v1049, %v1132
        %v1134 = vpop.f32.mrb[0].mxu0
        %v1135 = vadd.f32 %v1051, %v1134
        %1136 = vmatprep.mubr.f32.mxu0 0.0
        %v1137 = vand.u32 %v355, 4294901760
        %v1138 = vsub.f32 %v355, %v1137
        %1139 = vmatmul.mubr.f32.gmra.mrb[0].mxu0 %v1138
        %v1140 = vpop.f32.mrb[0].mxu0
        %v1141 = vadd.f32 %v1056, %v1140
        %v1142 = vpop.f32.mrb[0].mxu0
        %v1143 = vadd.f32 %v1058, %v1142
        %1144 = vdwg.mxu0
        %v1145 = vand.u32 %v881, 4294901760
        %1146 = vmatprep.subr.mxu0 %v1145
        %v1147 = vand.u32 %v880, 4294901760
        %1148 = vmatpush1.msra.mxu0 %v1147
        %1149 = vmatprep.subr.mxu0 0.0
        %1150 = vmatpush1.msra.mxu0 0.0
        %1151 = vmatprep.subr.mxu0 0.0
        %1152 = vmatpush1.msra.mxu0 0.0
        %1153 = vmatprep.subr.mxu0 0.0
        %1154 = vmatpush1.msra.mxu0 0.0
        %1155 = vmatprep.subr.mxu0 0.0
        %1156 = vmatpush1.msra.mxu0 0.0
        %1157 = vmatprep.subr.mxu0 0.0
        %1158 = vmatpush1.msra.mxu0 0.0
        %1159 = vmatprep.subr.mxu0 0.0
        %1160 = vmatpush1.msra.mxu0 0.0
        %1161 = vmatprep.subr.mxu0 0.0
        %1162 = vmatpush1.msra.mxu0 0.0
        %1163 = vmatprep.subr.mxu0 0.0
        %1164 = vmatpush1.msra.mxu0 0.0
        %1165 = vmatprep.subr.mxu0 0.0
        %1166 = vmatpush1.msra.mxu0 0.0
        %1167 = vmatprep.subr.mxu0 0.0
        %1168 = vmatpush1.msra.mxu0 0.0
        %1169 = vmatprep.subr.mxu0 0.0
        %1170 = vmatpush1.msra.mxu0 0.0
        %1171 = vmatprep.subr.mxu0 0.0
        %1172 = vmatpush1.msra.mxu0 0.0
        %1173 = vmatprep.subr.mxu0 0.0
        %1174 = vmatpush1.msra.mxu0 0.0
        %1175 = vmatprep.subr.mxu0 0.0
        %1176 = vmatpush1.msra.mxu0 0.0
        %1177 = vmatprep.subr.mxu0 0.0
        %1178 = vmatpush1.msra.mxu0 0.0
        %1179 = vmatprep.subr.mxu0 0.0
        %1180 = vmatpush1.msra.mxu0 0.0
        %1181 = vmatprep.subr.mxu0 0.0
        %1182 = vmatpush1.msra.mxu0 0.0
        %1183 = vmatprep.subr.mxu0 0.0
        %1184 = vmatpush1.msra.mxu0 0.0
        %1185 = vmatprep.subr.mxu0 0.0
        %1186 = vmatpush1.msra.mxu0 0.0
        %1187 = vmatprep.subr.mxu0 0.0
        %1188 = vmatpush1.msra.mxu0 0.0
        %1189 = vmatprep.subr.mxu0 0.0
        %1190 = vmatpush1.msra.mxu0 0.0
        %1191 = vmatprep.subr.mxu0 0.0
        %1192 = vmatpush1.msra.mxu0 0.0
        %1193 = vmatprep.subr.mxu0 0.0
        %1194 = vmatpush1.msra.mxu0 0.0
        %1195 = vmatprep.subr.mxu0 0.0
        %1196 = vmatpush1.msra.mxu0 0.0
        %1197 = vmatprep.subr.mxu0 0.0
        %1198 = vmatpush1.msra.mxu0 0.0
        %1199 = vmatprep.subr.mxu0 0.0
        %1200 = vmatpush1.msra.mxu0 0.0
        %1201 = vmatprep.subr.mxu0 0.0
        %1202 = vmatpush1.msra.mxu0 0.0
        %1203 = vmatprep.subr.mxu0 0.0
        %1204 = vmatpush1.msra.mxu0 0.0
        %1205 = vmatprep.subr.mxu0 0.0
        %1206 = vmatpush1.msra.mxu0 0.0
        %1207 = vmatprep.subr.mxu0 0.0
        %1208 = vmatpush1.msra.mxu0 0.0
        %1209 = vmatprep.subr.mxu0 0.0
        %1210 = vmatpush1.msra.mxu0 0.0
        %1211 = vmatprep.mubr.f32.mxu0 0.0
        %v1212 = vand.u32 %v352, 4294901760
        %v1213 = vsub.f32 %v352, %v1212
        %v1214 = vand.u32 %v1213, 4294901760
        %1215 = vmatmul.mubr.f32.gmra.mrb[0].mxu0 %v1214
        %v1216 = vpop.f32.mrb[0].mxu0
        %v1217 = vadd.f32 %v1133, %v1216
        %v1218 = vpop.f32.mrb[0].mxu0
        %v1219 = vadd.f32 %v1135, %v1218
        %1220 = vmatprep.mubr.f32.mxu0 0.0
        %v1221 = vand.u32 %v355, 4294901760
        %v1222 = vsub.f32 %v355, %v1221
        %v1223 = vand.u32 %v1222, 4294901760
        %1224 = vmatmul.mubr.f32.gmra.mrb[0].mxu0 %v1223
        %v1225 = vpop.f32.mrb[0].mxu0
        %v1226 = vadd.f32 %v1141, %v1225
        %v1227 = vpop.f32.mrb[0].mxu0
        %v1228 = vadd.f32 %v1143, %v1227
        %1229 = vdwg.mxu0
        %v1230 = vand.u32 %v881, 4294901760
        %v1231 = vsub.f32 %v881, %v1230
        %v1232 = vand.u32 %v1231, 4294901760
        %1233 = vmatprep.subr.mxu0 %v1232
        %v1234 = vand.u32 %v880, 4294901760
        %v1235 = vsub.f32 %v880, %v1234
        %v1236 = vand.u32 %v1235, 4294901760
        %1237 = vmatpush1.msra.mxu0 %v1236
        %1238 = vmatprep.subr.mxu0 0.0
        %1239 = vmatpush1.msra.mxu0 0.0
        %1240 = vmatprep.subr.mxu0 0.0
        %1241 = vmatpush1.msra.mxu0 0.0
        %1242 = vmatprep.subr.mxu0 0.0
        %1243 = vmatpush1.msra.mxu0 0.0
        %1244 = vmatprep.subr.mxu0 0.0
        %1245 = vmatpush1.msra.mxu0 0.0
        %1246 = vmatprep.subr.mxu0 0.0
        %1247 = vmatpush1.msra.mxu0 0.0
        %1248 = vmatprep.subr.mxu0 0.0
        %1249 = vmatpush1.msra.mxu0 0.0
        %1250 = vmatprep.subr.mxu0 0.0
        %1251 = vmatpush1.msra.mxu0 0.0
        %1252 = vmatprep.subr.mxu0 0.0
        %1253 = vmatpush1.msra.mxu0 0.0
        %1254 = vmatprep.subr.mxu0 0.0
        %1255 = vmatpush1.msra.mxu0 0.0
        %1256 = vmatprep.subr.mxu0 0.0
        %1257 = vmatpush1.msra.mxu0 0.0
        %1258 = vmatprep.subr.mxu0 0.0
        %1259 = vmatpush1.msra.mxu0 0.0
        %1260 = vmatprep.subr.mxu0 0.0
        %1261 = vmatpush1.msra.mxu0 0.0
        %1262 = vmatprep.subr.mxu0 0.0
        %1263 = vmatpush1.msra.mxu0 0.0
        %1264 = vmatprep.subr.mxu0 0.0
        %1265 = vmatpush1.msra.mxu0 0.0
        %1266 = vmatprep.subr.mxu0 0.0
        %1267 = vmatpush1.msra.mxu0 0.0
        %1268 = vmatprep.subr.mxu0 0.0
        %1269 = vmatpush1.msra.mxu0 0.0
        %1270 = vmatprep.subr.mxu0 0.0
        %1271 = vmatpush1.msra.mxu0 0.0
        %1272 = vmatprep.subr.mxu0 0.0
        %1273 = vmatpush1.msra.mxu0 0.0
        %1274 = vmatprep.subr.mxu0 0.0
        %1275 = vmatpush1.msra.mxu0 0.0
        %1276 = vmatprep.subr.mxu0 0.0
        %1277 = vmatpush1.msra.mxu0 0.0
        %1278 = vmatprep.subr.mxu0 0.0
        %1279 = vmatpush1.msra.mxu0 0.0
        %1280 = vmatprep.subr.mxu0 0.0
        %1281 = vmatpush1.msra.mxu0 0.0
        %1282 = vmatprep.subr.mxu0 0.0
        %1283 = vmatpush1.msra.mxu0 0.0
        %1284 = vmatprep.subr.mxu0 0.0
        %1285 = vmatpush1.msra.mxu0 0.0
        %1286 = vmatprep.subr.mxu0 0.0
        %1287 = vmatpush1.msra.mxu0 0.0
        %1288 = vmatprep.subr.mxu0 0.0
        %1289 = vmatpush1.msra.mxu0 0.0
        %1290 = vmatprep.subr.mxu0 0.0
        %1291 = vmatpush1.msra.mxu0 0.0
        %1292 = vmatprep.subr.mxu0 0.0
        %1293 = vmatpush1.msra.mxu0 0.0
        %1294 = vmatprep.subr.mxu0 0.0
        %1295 = vmatpush1.msra.mxu0 0.0
        %1296 = vmatprep.subr.mxu0 0.0
        %1297 = vmatpush1.msra.mxu0 0.0
        %1298 = vmatprep.subr.mxu0 0.0
        %1299 = vmatpush1.msra.mxu0 0.0
        %1300 = vmatprep.mubr.f32.mxu0 0.0
        %v1301 = vand.u32 %v352, 4294901760
        %1302 = vmatmul.mubr.f32.gmra.mrb[0].mxu0 %v1301
        %v1303 = vpop.f32.mrb[0].mxu0
        %v1304 = vadd.f32 %v1217, %v1303
        %v1305 = vpop.f32.mrb[0].mxu0
        %v1306 = vadd.f32 %v1219, %v1305
        %1307 = vmatprep.mubr.f32.mxu0 0.0
        %v1308 = vand.u32 %v355, 4294901760
        %1309 = vmatmul.mubr.f32.gmra.mrb[0].mxu0 %v1308
        %v1310 = vpop.f32.mrb[0].mxu0
        %v1311 = vadd.f32 %v1226, %v1310
        %v1312 = vpop.f32.mrb[0].mxu0
        %v1313 = vadd.f32 %v1228, %v1312
        %1314 = vdwg.mxu0
        %v1315 = vand.u32 %v881, 4294901760
        %1316 = vmatprep.subr.mxu0 %v1315
        %v1317 = vand.u32 %v880, 4294901760
        %1318 = vmatpush1.msra.mxu0 %v1317
        %1319 = vmatprep.subr.mxu0 0.0
        %1320 = vmatpush1.msra.mxu0 0.0
        %1321 = vmatprep.subr.mxu0 0.0
        %1322 = vmatpush1.msra.mxu0 0.0
        %1323 = vmatprep.subr.mxu0 0.0
        %1324 = vmatpush1.msra.mxu0 0.0
        %1325 = vmatprep.subr.mxu0 0.0
        %1326 = vmatpush1.msra.mxu0 0.0
        %1327 = vmatprep.subr.mxu0 0.0
        %1328 = vmatpush1.msra.mxu0 0.0
        %1329 = vmatprep.subr.mxu0 0.0
        %1330 = vmatpush1.msra.mxu0 0.0
        %1331 = vmatprep.subr.mxu0 0.0
        %1332 = vmatpush1.msra.mxu0 0.0
        %1333 = vmatprep.subr.mxu0 0.0
        %1334 = vmatpush1.msra.mxu0 0.0
        %1335 = vmatprep.subr.mxu0 0.0
        %1336 = vmatpush1.msra.mxu0 0.0
        %1337 = vmatprep.subr.mxu0 0.0
        %1338 = vmatpush1.msra.mxu0 0.0
        %1339 = vmatprep.subr.mxu0 0.0
        %1340 = vmatpush1.msra.mxu0 0.0
        %1341 = vmatprep.subr.mxu0 0.0
        %1342 = vmatpush1.msra.mxu0 0.0
        %1343 = vmatprep.subr.mxu0 0.0
        %1344 = vmatpush1.msra.mxu0 0.0
        %1345 = vmatprep.subr.mxu0 0.0
        %1346 = vmatpush1.msra.mxu0 0.0
        %1347 = vmatprep.subr.mxu0 0.0
        %1348 = vmatpush1.msra.mxu0 0.0
        %1349 = vmatprep.subr.mxu0 0.0
        %1350 = vmatpush1.msra.mxu0 0.0
        %1351 = vmatprep.subr.mxu0 0.0
        %1352 = vmatpush1.msra.mxu0 0.0
        %1353 = vmatprep.subr.mxu0 0.0
        %1354 = vmatpush1.msra.mxu0 0.0
        %1355 = vmatprep.subr.mxu0 0.0
        %1356 = vmatpush1.msra.mxu0 0.0
        %1357 = vmatprep.subr.mxu0 0.0
        %1358 = vmatpush1.msra.mxu0 0.0
        %1359 = vmatprep.subr.mxu0 0.0
        %1360 = vmatpush1.msra.mxu0 0.0
        %1361 = vmatprep.subr.mxu0 0.0
        %1362 = vmatpush1.msra.mxu0 0.0
        %1363 = vmatprep.subr.mxu0 0.0
        %1364 = vmatpush1.msra.mxu0 0.0
        %1365 = vmatprep.subr.mxu0 0.0
        %1366 = vmatpush1.msra.mxu0 0.0
        %1367 = vmatprep.subr.mxu0 0.0
        %1368 = vmatpush1.msra.mxu0 0.0
        %1369 = vmatprep.subr.mxu0 0.0
        %1370 = vmatpush1.msra.mxu0 0.0
        %1371 = vmatprep.subr.mxu0 0.0
        %1372 = vmatpush1.msra.mxu0 0.0
        %1373 = vmatprep.subr.mxu0 0.0
        %1374 = vmatpush1.msra.mxu0 0.0
        %1375 = vmatprep.subr.mxu0 0.0
        %1376 = vmatpush1.msra.mxu0 0.0
        %1377 = vmatprep.subr.mxu0 0.0
        %1378 = vmatpush1.msra.mxu0 0.0
        %1379 = vmatprep.subr.mxu0 0.0
        %1380 = vmatpush1.msra.mxu0 0.0
        %1381 = vmatprep.mubr.f32.mxu0 0.0
        %v1382 = vand.u32 %v352, 4294901760
        %1383 = vmatmul.mubr.f32.gmra.mrb[0].mxu0 %v1382
        %v1384 = vpop.f32.mrb[0].mxu0
        %v1385 = vadd.f32 %v1304, %v1384
        %v1386 = vpop.f32.mrb[0].mxu0
        %v1387 = vadd.f32 %v1306, %v1386
        %1388 = vmatprep.mubr.f32.mxu0 0.0
        %v1389 = vand.u32 %v355, 4294901760
        %1390 = vmatmul.mubr.f32.gmra.mrb[0].mxu0 %v1389
        %v1391 = vpop.f32.mrb[0].mxu0
        %v1392 = vadd.f32 %v1311, %v1391
        %v1393 = vpop.f32.mrb[0].mxu0
        %v1394 = vadd.f32 %v1313, %v1393
        %1395 = vdwg.mxu0
        %v1396 = vmax.f32 %v1385, 0.0
        %v1397 = vmax.f32 %v1387, 0.0
        %v1398 = vmax.f32 %v1392, 0.0
        %v1399 = vmax.f32 %v1394, 0.0
        %s1400 = scalar_lea.vmem [#allocation2], 32
        %1401 = vst [vmem:[%s1400] sm:$0xff] %v1396
        %1402 = vst [vmem:[%s1400 + $0x8] sm:$0xff] %v1397
        %1403 = vst [vmem:[%s1400 + $0x10] sm:$0xff] %v1398
        %1404 = vst [vmem:[%s1400 + $0x18] sm:$0xff] %v1399
        %s1405 = scalar_lea.vmem %s291, 32 [#allocation3]
        %v1406 = vld [vmem:[%s1405] sm:$0xff]
        %v1407 = vld [vmem:[%s1405 + $0x8] sm:$0xff]
        %v1408 = vand.u32 %v1407, 4294901760
        %1409 = vmatprep.subr.mxu0 %v1408
        %v1410 = vand.u32 %v1406, 4294901760
        %1411 = vmatpush1.msra.mxu0 %v1410
        %1412 = vmatprep.subr.mxu0 0.0
        %1413 = vmatpush1.msra.mxu0 0.0
        %1414 = vmatprep.subr.mxu0 0.0
        %1415 = vmatpush1.msra.mxu0 0.0
        %1416 = vmatprep.subr.mxu0 0.0
        %1417 = vmatpush1.msra.mxu0 0.0
        %1418 = vmatprep.subr.mxu0 0.0
        %1419 = vmatpush1.msra.mxu0 0.0
        %1420 = vmatprep.subr.mxu0 0.0
        %1421 = vmatpush1.msra.mxu0 0.0
        %1422 = vmatprep.subr.mxu0 0.0
        %1423 = vmatpush1.msra.mxu0 0.0
        %1424 = vmatprep.subr.mxu0 0.0
        %1425 = vmatpush1.msra.mxu0 0.0
        %1426 = vmatprep.subr.mxu0 0.0
        %1427 = vmatpush1.msra.mxu0 0.0
        %1428 = vmatprep.subr.mxu0 0.0
        %1429 = vmatpush1.msra.mxu0 0.0
        %1430 = vmatprep.subr.mxu0 0.0
        %1431 = vmatpush1.msra.mxu0 0.0
        %1432 = vmatprep.subr.mxu0 0.0
        %1433 = vmatpush1.msra.mxu0 0.0
        %1434 = vmatprep.subr.mxu0 0.0
        %1435 = vmatpush1.msra.mxu0 0.0
        %1436 = vmatprep.subr.mxu0 0.0
        %1437 = vmatpush1.msra.mxu0 0.0
        %1438 = vmatprep.subr.mxu0 0.0
        %1439 = vmatpush1.msra.mxu0 0.0
        %1440 = vmatprep.subr.mxu0 0.0
        %1441 = vmatpush1.msra.mxu0 0.0
        %1442 = vmatprep.subr.mxu0 0.0
        %1443 = vmatpush1.msra.mxu0 0.0
        %1444 = vmatprep.subr.mxu0 0.0
        %1445 = vmatpush1.msra.mxu0 0.0
        %1446 = vmatprep.subr.mxu0 0.0
        %1447 = vmatpush1.msra.mxu0 0.0
        %1448 = vmatprep.subr.mxu0 0.0
        %1449 = vmatpush1.msra.mxu0 0.0
        %1450 = vmatprep.subr.mxu0 0.0
        %1451 = vmatpush1.msra.mxu0 0.0
        %1452 = vmatprep.subr.mxu0 0.0
        %1453 = vmatpush1.msra.mxu0 0.0
        %1454 = vmatprep.subr.mxu0 0.0
        %1455 = vmatpush1.msra.mxu0 0.0
        %1456 = vmatprep.subr.mxu0 0.0
        %1457 = vmatpush1.msra.mxu0 0.0
        %1458 = vmatprep.subr.mxu0 0.0
        %1459 = vmatpush1.msra.mxu0 0.0
        %1460 = vmatprep.subr.mxu0 0.0
        %1461 = vmatpush1.msra.mxu0 0.0
        %1462 = vmatprep.subr.mxu0 0.0
        %1463 = vmatpush1.msra.mxu0 0.0
        %1464 = vmatprep.subr.mxu0 0.0
        %1465 = vmatpush1.msra.mxu0 0.0
        %1466 = vmatprep.subr.mxu0 0.0
        %1467 = vmatpush1.msra.mxu0 0.0
        %1468 = vmatprep.subr.mxu0 0.0
        %1469 = vmatpush1.msra.mxu0 0.0
        %1470 = vmatprep.subr.mxu0 0.0
        %1471 = vmatpush1.msra.mxu0 0.0
        %1472 = vmatprep.subr.mxu0 0.0
        %1473 = vmatpush1.msra.mxu0 0.0
        %1474 = vmatprep.mubr.f32.mxu0 0.0
        %v1475 = vand.u32 %v352, 4294901760
        %v1476 = vsub.f32 %v352, %v1475
        %v1477 = vand.u32 %v1476, 4294901760
        %v1478 = vsub.f32 %v1476, %v1477
        %v1479 = vand.u32 %v1478, 4294901760
        %1480 = vmatmul.mubr.f32.gmra.mrb[0].mxu0 %v1479
        %v1481 = vpop.f32.mrb[0].mxu0
        %v1482 = vadd.f32 %v343, %v1481
        %v1483 = vpop.f32.mrb[0].mxu0
        %v1484 = vadd.f32 %v343, %v1483
        %1485 = vmatprep.mubr.f32.mxu0 0.0
        %v1486 = vand.u32 %v355, 4294901760
        %v1487 = vsub.f32 %v355, %v1486
        %v1488 = vand.u32 %v1487, 4294901760
        %v1489 = vsub.f32 %v1487, %v1488
        %v1490 = vand.u32 %v1489, 4294901760
        %1491 = vmatmul.mubr.f32.gmra.mrb[0].mxu0 %v1490
        %v1492 = vpop.f32.mrb[0].mxu0
        %v1493 = vadd.f32 %v348, %v1492
        %v1494 = vpop.f32.mrb[0].mxu0
        %v1495 = vadd.f32 %v348, %v1494
        %1496 = vdwg.mxu0
        %v1497 = vand.u32 %v1407, 4294901760
        %v1498 = vsub.f32 %v1407, %v1497
        %v1499 = vand.u32 %v1498, 4294901760
        %v1500 = vsub.f32 %v1498, %v1499
        %v1501 = vand.u32 %v1500, 4294901760
        %1502 = vmatprep.subr.mxu0 %v1501
        %v1503 = vand.u32 %v1406, 4294901760
        %v1504 = vsub.f32 %v1406, %v1503
        %v1505 = vand.u32 %v1504, 4294901760
        %v1506 = vsub.f32 %v1504, %v1505
        %v1507 = vand.u32 %v1506, 4294901760
        %1508 = vmatpush1.msra.mxu0 %v1507
        %1509 = vmatprep.subr.mxu0 0.0
        %1510 = vmatpush1.msra.mxu0 0.0
        %1511 = vmatprep.subr.mxu0 0.0
        %1512 = vmatpush1.msra.mxu0 0.0
        %1513 = vmatprep.subr.mxu0 0.0
        %1514 = vmatpush1.msra.mxu0 0.0
        %1515 = vmatprep.subr.mxu0 0.0
        %1516 = vmatpush1.msra.mxu0 0.0
        %1517 = vmatprep.subr.mxu0 0.0
        %1518 = vmatpush1.msra.mxu0 0.0
        %1519 = vmatprep.subr.mxu0 0.0
        %1520 = vmatpush1.msra.mxu0 0.0
        %1521 = vmatprep.subr.mxu0 0.0
        %1522 = vmatpush1.msra.mxu0 0.0
        %1523 = vmatprep.subr.mxu0 0.0
        %1524 = vmatpush1.msra.mxu0 0.0
        %1525 = vmatprep.subr.mxu0 0.0
        %1526 = vmatpush1.msra.mxu0 0.0
        %1527 = vmatprep.subr.mxu0 0.0
        %1528 = vmatpush1.msra.mxu0 0.0
        %1529 = vmatprep.subr.mxu0 0.0
        %1530 = vmatpush1.msra.mxu0 0.0
        %1531 = vmatprep.subr.mxu0 0.0
        %1532 = vmatpush1.msra.mxu0 0.0
        %1533 = vmatprep.subr.mxu0 0.0
        %1534 = vmatpush1.msra.mxu0 0.0
        %1535 = vmatprep.subr.mxu0 0.0
        %1536 = vmatpush1.msra.mxu0 0.0
        %1537 = vmatprep.subr.mxu0 0.0
        %1538 = vmatpush1.msra.mxu0 0.0
        %1539 = vmatprep.subr.mxu0 0.0
        %1540 = vmatpush1.msra.mxu0 0.0
        %1541 = vmatprep.subr.mxu0 0.0
        %1542 = vmatpush1.msra.mxu0 0.0
        %1543 = vmatprep.subr.mxu0 0.0
        %1544 = vmatpush1.msra.mxu0 0.0
        %1545 = vmatprep.subr.mxu0 0.0
        %1546 = vmatpush1.msra.mxu0 0.0
        %1547 = vmatprep.subr.mxu0 0.0
        %1548 = vmatpush1.msra.mxu0 0.0
        %1549 = vmatprep.subr.mxu0 0.0
        %1550 = vmatpush1.msra.mxu0 0.0
        %1551 = vmatprep.subr.mxu0 0.0
        %1552 = vmatpush1.msra.mxu0 0.0
        %1553 = vmatprep.subr.mxu0 0.0
        %1554 = vmatpush1.msra.mxu0 0.0
        %1555 = vmatprep.subr.mxu0 0.0
        %1556 = vmatpush1.msra.mxu0 0.0
        %1557 = vmatprep.subr.mxu0 0.0
        %1558 = vmatpush1.msra.mxu0 0.0
        %1559 = vmatprep.subr.mxu0 0.0
        %1560 = vmatpush1.msra.mxu0 0.0
        %1561 = vmatprep.subr.mxu0 0.0
        %1562 = vmatpush1.msra.mxu0 0.0
        %1563 = vmatprep.subr.mxu0 0.0
        %1564 = vmatpush1.msra.mxu0 0.0
        %1565 = vmatprep.subr.mxu0 0.0
        %1566 = vmatpush1.msra.mxu0 0.0
        %1567 = vmatprep.subr.mxu0 0.0
        %1568 = vmatpush1.msra.mxu0 0.0
        %1569 = vmatprep.subr.mxu0 0.0
        %1570 = vmatpush1.msra.mxu0 0.0
        %1571 = vmatprep.mubr.f32.mxu0 0.0
        %v1572 = vand.u32 %v352, 4294901760
        %1573 = vmatmul.mubr.f32.gmra.mrb[0].mxu0 %v1572
        %v1574 = vpop.f32.mrb[0].mxu0
        %v1575 = vadd.f32 %v1482, %v1574
        %v1576 = vpop.f32.mrb[0].mxu0
        %v1577 = vadd.f32 %v1484, %v1576
        %1578 = vmatprep.mubr.f32.mxu0 0.0
        %v1579 = vand.u32 %v355, 4294901760
        %1580 = vmatmul.mubr.f32.gmra.mrb[0].mxu0 %v1579
        %v1581 = vpop.f32.mrb[0].mxu0
        %v1582 = vadd.f32 %v1493, %v1581
        %v1583 = vpop.f32.mrb[0].mxu0
        %v1584 = vadd.f32 %v1495, %v1583
        %1585 = vdwg.mxu0
        %v1586 = vand.u32 %v1407, 4294901760
        %v1587 = vsub.f32 %v1407, %v1586
        %1588 = vmatprep.subr.mxu0 %v1587
        %v1589 = vand.u32 %v1406, 4294901760
        %v1590 = vsub.f32 %v1406, %v1589
        %1591 = vmatpush1.msra.mxu0 %v1590
        %1592 = vmatprep.subr.mxu0 0.0
        %1593 = vmatpush1.msra.mxu0 0.0
        %1594 = vmatprep.subr.mxu0 0.0
        %1595 = vmatpush1.msra.mxu0 0.0
        %1596 = vmatprep.subr.mxu0 0.0
        %1597 = vmatpush1.msra.mxu0 0.0
        %1598 = vmatprep.subr.mxu0 0.0
        %1599 = vmatpush1.msra.mxu0 0.0
        %1600 = vmatprep.subr.mxu0 0.0
        %1601 = vmatpush1.msra.mxu0 0.0
        %1602 = vmatprep.subr.mxu0 0.0
        %1603 = vmatpush1.msra.mxu0 0.0
        %1604 = vmatprep.subr.mxu0 0.0
        %1605 = vmatpush1.msra.mxu0 0.0
        %1606 = vmatprep.subr.mxu0 0.0
        %1607 = vmatpush1.msra.mxu0 0.0
        %1608 = vmatprep.subr.mxu0 0.0
        %1609 = vmatpush1.msra.mxu0 0.0
        %1610 = vmatprep.subr.mxu0 0.0
        %1611 = vmatpush1.msra.mxu0 0.0
        %1612 = vmatprep.subr.mxu0 0.0
        %1613 = vmatpush1.msra.mxu0 0.0
        %1614 = vmatprep.subr.mxu0 0.0
        %1615 = vmatpush1.msra.mxu0 0.0
        %1616 = vmatprep.subr.mxu0 0.0
        %1617 = vmatpush1.msra.mxu0 0.0
        %1618 = vmatprep.subr.mxu0 0.0
        %1619 = vmatpush1.msra.mxu0 0.0
        %1620 = vmatprep.subr.mxu0 0.0
        %1621 = vmatpush1.msra.mxu0 0.0
        %1622 = vmatprep.subr.mxu0 0.0
        %1623 = vmatpush1.msra.mxu0 0.0
        %1624 = vmatprep.subr.mxu0 0.0
        %1625 = vmatpush1.msra.mxu0 0.0
        %1626 = vmatprep.subr.mxu0 0.0
        %1627 = vmatpush1.msra.mxu0 0.0
        %1628 = vmatprep.subr.mxu0 0.0
        %1629 = vmatpush1.msra.mxu0 0.0
        %1630 = vmatprep.subr.mxu0 0.0
        %1631 = vmatpush1.msra.mxu0 0.0
        %1632 = vmatprep.subr.mxu0 0.0
        %1633 = vmatpush1.msra.mxu0 0.0
        %1634 = vmatprep.subr.mxu0 0.0
        %1635 = vmatpush1.msra.mxu0 0.0
        %1636 = vmatprep.subr.mxu0 0.0
        %1637 = vmatpush1.msra.mxu0 0.0
        %1638 = vmatprep.subr.mxu0 0.0
        %1639 = vmatpush1.msra.mxu0 0.0
        %1640 = vmatprep.subr.mxu0 0.0
        %1641 = vmatpush1.msra.mxu0 0.0
        %1642 = vmatprep.subr.mxu0 0.0
        %1643 = vmatpush1.msra.mxu0 0.0
        %1644 = vmatprep.subr.mxu0 0.0
        %1645 = vmatpush1.msra.mxu0 0.0
        %1646 = vmatprep.subr.mxu0 0.0
        %1647 = vmatpush1.msra.mxu0 0.0
        %1648 = vmatprep.subr.mxu0 0.0
        %1649 = vmatpush1.msra.mxu0 0.0
        %1650 = vmatprep.subr.mxu0 0.0
        %1651 = vmatpush1.msra.mxu0 0.0
        %1652 = vmatprep.subr.mxu0 0.0
        %1653 = vmatpush1.msra.mxu0 0.0
        %1654 = vmatprep.mubr.f32.mxu0 0.0
        %v1655 = vand.u32 %v352, 4294901760
        %v1656 = vsub.f32 %v352, %v1655
        %1657 = vmatmul.mubr.f32.gmra.mrb[0].mxu0 %v1656
        %v1658 = vpop.f32.mrb[0].mxu0
        %v1659 = vadd.f32 %v1575, %v1658
        %v1660 = vpop.f32.mrb[0].mxu0
        %v1661 = vadd.f32 %v1577, %v1660
        %1662 = vmatprep.mubr.f32.mxu0 0.0
        %v1663 = vand.u32 %v355, 4294901760
        %v1664 = vsub.f32 %v355, %v1663
        %1665 = vmatmul.mubr.f32.gmra.mrb[0].mxu0 %v1664
        %v1666 = vpop.f32.mrb[0].mxu0
        %v1667 = vadd.f32 %v1582, %v1666
        %v1668 = vpop.f32.mrb[0].mxu0
        %v1669 = vadd.f32 %v1584, %v1668
        %1670 = vdwg.mxu0
        %v1671 = vand.u32 %v1407, 4294901760
        %1672 = vmatprep.subr.mxu0 %v1671
        %v1673 = vand.u32 %v1406, 4294901760
        %1674 = vmatpush1.msra.mxu0 %v1673
        %1675 = vmatprep.subr.mxu0 0.0
        %1676 = vmatpush1.msra.mxu0 0.0
        %1677 = vmatprep.subr.mxu0 0.0
        %1678 = vmatpush1.msra.mxu0 0.0
        %1679 = vmatprep.subr.mxu0 0.0
        %1680 = vmatpush1.msra.mxu0 0.0
        %1681 = vmatprep.subr.mxu0 0.0
        %1682 = vmatpush1.msra.mxu0 0.0
        %1683 = vmatprep.subr.mxu0 0.0
        %1684 = vmatpush1.msra.mxu0 0.0
        %1685 = vmatprep.subr.mxu0 0.0
        %1686 = vmatpush1.msra.mxu0 0.0
        %1687 = vmatprep.subr.mxu0 0.0
        %1688 = vmatpush1.msra.mxu0 0.0
        %1689 = vmatprep.subr.mxu0 0.0
        %1690 = vmatpush1.msra.mxu0 0.0
        %1691 = vmatprep.subr.mxu0 0.0
        %1692 = vmatpush1.msra.mxu0 0.0
        %1693 = vmatprep.subr.mxu0 0.0
        %1694 = vmatpush1.msra.mxu0 0.0
        %1695 = vmatprep.subr.mxu0 0.0
        %1696 = vmatpush1.msra.mxu0 0.0
        %1697 = vmatprep.subr.mxu0 0.0
        %1698 = vmatpush1.msra.mxu0 0.0
        %1699 = vmatprep.subr.mxu0 0.0
        %1700 = vmatpush1.msra.mxu0 0.0
        %1701 = vmatprep.subr.mxu0 0.0
        %1702 = vmatpush1.msra.mxu0 0.0
        %1703 = vmatprep.subr.mxu0 0.0
        %1704 = vmatpush1.msra.mxu0 0.0
        %1705 = vmatprep.subr.mxu0 0.0
        %1706 = vmatpush1.msra.mxu0 0.0
        %1707 = vmatprep.subr.mxu0 0.0
        %1708 = vmatpush1.msra.mxu0 0.0
        %1709 = vmatprep.subr.mxu0 0.0
        %1710 = vmatpush1.msra.mxu0 0.0
        %1711 = vmatprep.subr.mxu0 0.0
        %1712 = vmatpush1.msra.mxu0 0.0
        %1713 = vmatprep.subr.mxu0 0.0
        %1714 = vmatpush1.msra.mxu0 0.0
        %1715 = vmatprep.subr.mxu0 0.0
        %1716 = vmatpush1.msra.mxu0 0.0
        %1717 = vmatprep.subr.mxu0 0.0
        %1718 = vmatpush1.msra.mxu0 0.0
        %1719 = vmatprep.subr.mxu0 0.0
        %1720 = vmatpush1.msra.mxu0 0.0
        %1721 = vmatprep.subr.mxu0 0.0
        %1722 = vmatpush1.msra.mxu0 0.0
        %1723 = vmatprep.subr.mxu0 0.0
        %1724 = vmatpush1.msra.mxu0 0.0
        %1725 = vmatprep.subr.mxu0 0.0
        %1726 = vmatpush1.msra.mxu0 0.0
        %1727 = vmatprep.subr.mxu0 0.0
        %1728 = vmatpush1.msra.mxu0 0.0
        %1729 = vmatprep.subr.mxu0 0.0
        %1730 = vmatpush1.msra.mxu0 0.0
        %1731 = vmatprep.subr.mxu0 0.0
        %1732 = vmatpush1.msra.mxu0 0.0
        %1733 = vmatprep.subr.mxu0 0.0
        %1734 = vmatpush1.msra.mxu0 0.0
        %1735 = vmatprep.subr.mxu0 0.0
        %1736 = vmatpush1.msra.mxu0 0.0
        %1737 = vmatprep.mubr.f32.mxu0 0.0
        %v1738 = vand.u32 %v352, 4294901760
        %v1739 = vsub.f32 %v352, %v1738
        %v1740 = vand.u32 %v1739, 4294901760
        %1741 = vmatmul.mubr.f32.gmra.mrb[0].mxu0 %v1740
        %v1742 = vpop.f32.mrb[0].mxu0
        %v1743 = vadd.f32 %v1659, %v1742
        %v1744 = vpop.f32.mrb[0].mxu0
        %v1745 = vadd.f32 %v1661, %v1744
        %1746 = vmatprep.mubr.f32.mxu0 0.0
        %v1747 = vand.u32 %v355, 4294901760
        %v1748 = vsub.f32 %v355, %v1747
        %v1749 = vand.u32 %v1748, 4294901760
        %1750 = vmatmul.mubr.f32.gmra.mrb[0].mxu0 %v1749
        %v1751 = vpop.f32.mrb[0].mxu0
        %v1752 = vadd.f32 %v1667, %v1751
        %v1753 = vpop.f32.mrb[0].mxu0
        %v1754 = vadd.f32 %v1669, %v1753
        %1755 = vdwg.mxu0
        %v1756 = vand.u32 %v1407, 4294901760
        %v1757 = vsub.f32 %v1407, %v1756
        %v1758 = vand.u32 %v1757, 4294901760
        %1759 = vmatprep.subr.mxu0 %v1758
        %v1760 = vand.u32 %v1406, 4294901760
        %v1761 = vsub.f32 %v1406, %v1760
        %v1762 = vand.u32 %v1761, 4294901760
        %1763 = vmatpush1.msra.mxu0 %v1762
        %1764 = vmatprep.subr.mxu0 0.0
        %1765 = vmatpush1.msra.mxu0 0.0
        %1766 = vmatprep.subr.mxu0 0.0
        %1767 = vmatpush1.msra.mxu0 0.0
        %1768 = vmatprep.subr.mxu0 0.0
        %1769 = vmatpush1.msra.mxu0 0.0
        %1770 = vmatprep.subr.mxu0 0.0
        %1771 = vmatpush1.msra.mxu0 0.0
        %1772 = vmatprep.subr.mxu0 0.0
        %1773 = vmatpush1.msra.mxu0 0.0
        %1774 = vmatprep.subr.mxu0 0.0
        %1775 = vmatpush1.msra.mxu0 0.0
        %1776 = vmatprep.subr.mxu0 0.0
        %1777 = vmatpush1.msra.mxu0 0.0
        %1778 = vmatprep.subr.mxu0 0.0
        %1779 = vmatpush1.msra.mxu0 0.0
        %1780 = vmatprep.subr.mxu0 0.0
        %1781 = vmatpush1.msra.mxu0 0.0
        %1782 = vmatprep.subr.mxu0 0.0
        %1783 = vmatpush1.msra.mxu0 0.0
        %1784 = vmatprep.subr.mxu0 0.0
        %1785 = vmatpush1.msra.mxu0 0.0
        %1786 = vmatprep.subr.mxu0 0.0
        %1787 = vmatpush1.msra.mxu0 0.0
        %1788 = vmatprep.subr.mxu0 0.0
        %1789 = vmatpush1.msra.mxu0 0.0
        %1790 = vmatprep.subr.mxu0 0.0
        %1791 = vmatpush1.msra.mxu0 0.0
        %1792 = vmatprep.subr.mxu0 0.0
        %1793 = vmatpush1.msra.mxu0 0.0
        %1794 = vmatprep.subr.mxu0 0.0
        %1795 = vmatpush1.msra.mxu0 0.0
        %1796 = vmatprep.subr.mxu0 0.0
        %1797 = vmatpush1.msra.mxu0 0.0
        %1798 = vmatprep.subr.mxu0 0.0
        %1799 = vmatpush1.msra.mxu0 0.0
        %1800 = vmatprep.subr.mxu0 0.0
        %1801 = vmatpush1.msra.mxu0 0.0
        %1802 = vmatprep.subr.mxu0 0.0
        %1803 = vmatpush1.msra.mxu0 0.0
        %1804 = vmatprep.subr.mxu0 0.0
        %1805 = vmatpush1.msra.mxu0 0.0
        %1806 = vmatprep.subr.mxu0 0.0
        %1807 = vmatpush1.msra.mxu0 0.0
        %1808 = vmatprep.subr.mxu0 0.0
        %1809 = vmatpush1.msra.mxu0 0.0
        %1810 = vmatprep.subr.mxu0 0.0
        %1811 = vmatpush1.msra.mxu0 0.0
        %1812 = vmatprep.subr.mxu0 0.0
        %1813 = vmatpush1.msra.mxu0 0.0
        %1814 = vmatprep.subr.mxu0 0.0
        %1815 = vmatpush1.msra.mxu0 0.0
        %1816 = vmatprep.subr.mxu0 0.0
        %1817 = vmatpush1.msra.mxu0 0.0
        %1818 = vmatprep.subr.mxu0 0.0
        %1819 = vmatpush1.msra.mxu0 0.0
        %1820 = vmatprep.subr.mxu0 0.0
        %1821 = vmatpush1.msra.mxu0 0.0
        %1822 = vmatprep.subr.mxu0 0.0
        %1823 = vmatpush1.msra.mxu0 0.0
        %1824 = vmatprep.subr.mxu0 0.0
        %1825 = vmatpush1.msra.mxu0 0.0
        %1826 = vmatprep.mubr.f32.mxu0 0.0
        %v1827 = vand.u32 %v352, 4294901760
        %1828 = vmatmul.mubr.f32.gmra.mrb[0].mxu0 %v1827
        %v1829 = vpop.f32.mrb[0].mxu0
        %v1830 = vadd.f32 %v1743, %v1829
        %v1831 = vpop.f32.mrb[0].mxu0
        %v1832 = vadd.f32 %v1745, %v1831
        %1833 = vmatprep.mubr.f32.mxu0 0.0
        %v1834 = vand.u32 %v355, 4294901760
        %1835 = vmatmul.mubr.f32.gmra.mrb[0].mxu0 %v1834
        %v1836 = vpop.f32.mrb[0].mxu0
        %v1837 = vadd.f32 %v1752, %v1836
        %v1838 = vpop.f32.mrb[0].mxu0
        %v1839 = vadd.f32 %v1754, %v1838
        %1840 = vdwg.mxu0
        %v1841 = vand.u32 %v1407, 4294901760
        %1842 = vmatprep.subr.mxu0 %v1841
        %v1843 = vand.u32 %v1406, 4294901760
        %1844 = vmatpush1.msra.mxu0 %v1843
        %1845 = vmatprep.subr.mxu0 0.0
        %1846 = vmatpush1.msra.mxu0 0.0
        %1847 = vmatprep.subr.mxu0 0.0
        %1848 = vmatpush1.msra.mxu0 0.0
        %1849 = vmatprep.subr.mxu0 0.0
        %1850 = vmatpush1.msra.mxu0 0.0
        %1851 = vmatprep.subr.mxu0 0.0
        %1852 = vmatpush1.msra.mxu0 0.0
        %1853 = vmatprep.subr.mxu0 0.0
        %1854 = vmatpush1.msra.mxu0 0.0
        %1855 = vmatprep.subr.mxu0 0.0
        %1856 = vmatpush1.msra.mxu0 0.0
        %1857 = vmatprep.subr.mxu0 0.0
        %1858 = vmatpush1.msra.mxu0 0.0
        %1859 = vmatprep.subr.mxu0 0.0
        %1860 = vmatpush1.msra.mxu0 0.0
        %1861 = vmatprep.subr.mxu0 0.0
        %1862 = vmatpush1.msra.mxu0 0.0
        %1863 = vmatprep.subr.mxu0 0.0
        %1864 = vmatpush1.msra.mxu0 0.0
        %1865 = vmatprep.subr.mxu0 0.0
        %1866 = vmatpush1.msra.mxu0 0.0
        %1867 = vmatprep.subr.mxu0 0.0
        %1868 = vmatpush1.msra.mxu0 0.0
        %1869 = vmatprep.subr.mxu0 0.0
        %1870 = vmatpush1.msra.mxu0 0.0
        %1871 = vmatprep.subr.mxu0 0.0
        %1872 = vmatpush1.msra.mxu0 0.0
        %1873 = vmatprep.subr.mxu0 0.0
        %1874 = vmatpush1.msra.mxu0 0.0
        %1875 = vmatprep.subr.mxu0 0.0
        %1876 = vmatpush1.msra.mxu0 0.0
        %1877 = vmatprep.subr.mxu0 0.0
        %1878 = vmatpush1.msra.mxu0 0.0
        %1879 = vmatprep.subr.mxu0 0.0
        %1880 = vmatpush1.msra.mxu0 0.0
        %1881 = vmatprep.subr.mxu0 0.0
        %1882 = vmatpush1.msra.mxu0 0.0
        %1883 = vmatprep.subr.mxu0 0.0
        %1884 = vmatpush1.msra.mxu0 0.0
        %1885 = vmatprep.subr.mxu0 0.0
        %1886 = vmatpush1.msra.mxu0 0.0
        %1887 = vmatprep.subr.mxu0 0.0
        %1888 = vmatpush1.msra.mxu0 0.0
        %1889 = vmatprep.subr.mxu0 0.0
        %1890 = vmatpush1.msra.mxu0 0.0
        %1891 = vmatprep.subr.mxu0 0.0
        %1892 = vmatpush1.msra.mxu0 0.0
        %1893 = vmatprep.subr.mxu0 0.0
        %1894 = vmatpush1.msra.mxu0 0.0
        %1895 = vmatprep.subr.mxu0 0.0
        %1896 = vmatpush1.msra.mxu0 0.0
        %1897 = vmatprep.subr.mxu0 0.0
        %1898 = vmatpush1.msra.mxu0 0.0
        %1899 = vmatprep.subr.mxu0 0.0
        %1900 = vmatpush1.msra.mxu0 0.0
        %1901 = vmatprep.subr.mxu0 0.0
        %1902 = vmatpush1.msra.mxu0 0.0
        %1903 = vmatprep.subr.mxu0 0.0
        %1904 = vmatpush1.msra.mxu0 0.0
        %1905 = vmatprep.subr.mxu0 0.0
        %1906 = vmatpush1.msra.mxu0 0.0
        %1907 = vmatprep.mubr.f32.mxu0 0.0
        %v1908 = vand.u32 %v352, 4294901760
        %1909 = vmatmul.mubr.f32.gmra.mrb[0].mxu0 %v1908
        %v1910 = vpop.f32.mrb[0].mxu0
        %v1911 = vadd.f32 %v1830, %v1910
        %v1912 = vpop.f32.mrb[0].mxu0
        %v1913 = vadd.f32 %v1832, %v1912
        %1914 = vmatprep.mubr.f32.mxu0 0.0
        %v1915 = vand.u32 %v355, 4294901760
        %1916 = vmatmul.mubr.f32.gmra.mrb[0].mxu0 %v1915
        %v1917 = vpop.f32.mrb[0].mxu0
        %v1918 = vadd.f32 %v1837, %v1917
        %v1919 = vpop.f32.mrb[0].mxu0
        %v1920 = vadd.f32 %v1839, %v1919
        %1921 = vdwg.mxu0
        %v1922 = vmax.f32 %v1911, 0.0
        %v1923 = vmax.f32 %v1913, 0.0
        %v1924 = vmax.f32 %v1918, 0.0
        %v1925 = vmax.f32 %v1920, 0.0
        %s1926 = scalar_lea.vmem [#allocation2], 64
        %1927 = vst [vmem:[%s1926] sm:$0xff] %v1922
        %1928 = vst [vmem:[%s1926 + $0x8] sm:$0xff] %v1923
        %1929 = vst [vmem:[%s1926 + $0x10] sm:$0xff] %v1924
        %1930 = vst [vmem:[%s1926 + $0x18] sm:$0xff] %v1925
        %s1931 = scalar_lea.vmem %s291, 48 [#allocation3]
        %v1932 = vld [vmem:[%s1931] sm:$0xff]
        %v1933 = vld [vmem:[%s1931 + $0x8] sm:$0xff]
        %v1934 = vand.u32 %v1933, 4294901760
        %1935 = vmatprep.subr.mxu0 %v1934
        %v1936 = vand.u32 %v1932, 4294901760
        %1937 = vmatpush1.msra.mxu0 %v1936
        %1938 = vmatprep.subr.mxu0 0.0
        %1939 = vmatpush1.msra.mxu0 0.0
        %1940 = vmatprep.subr.mxu0 0.0
        %1941 = vmatpush1.msra.mxu0 0.0
        %1942 = vmatprep.subr.mxu0 0.0
        %1943 = vmatpush1.msra.mxu0 0.0
        %1944 = vmatprep.subr.mxu0 0.0
        %1945 = vmatpush1.msra.mxu0 0.0
        %1946 = vmatprep.subr.mxu0 0.0
        %1947 = vmatpush1.msra.mxu0 0.0
        %1948 = vmatprep.subr.mxu0 0.0
        %1949 = vmatpush1.msra.mxu0 0.0
        %1950 = vmatprep.subr.mxu0 0.0
        %1951 = vmatpush1.msra.mxu0 0.0
        %1952 = vmatprep.subr.mxu0 0.0
        %1953 = vmatpush1.msra.mxu0 0.0
        %1954 = vmatprep.subr.mxu0 0.0
        %1955 = vmatpush1.msra.mxu0 0.0
        %1956 = vmatprep.subr.mxu0 0.0
        %1957 = vmatpush1.msra.mxu0 0.0
        %1958 = vmatprep.subr.mxu0 0.0
        %1959 = vmatpush1.msra.mxu0 0.0
        %1960 = vmatprep.subr.mxu0 0.0
        %1961 = vmatpush1.msra.mxu0 0.0
        %1962 = vmatprep.subr.mxu0 0.0
        %1963 = vmatpush1.msra.mxu0 0.0
        %1964 = vmatprep.subr.mxu0 0.0
        %1965 = vmatpush1.msra.mxu0 0.0
        %1966 = vmatprep.subr.mxu0 0.0
        %1967 = vmatpush1.msra.mxu0 0.0
        %1968 = vmatprep.subr.mxu0 0.0
        %1969 = vmatpush1.msra.mxu0 0.0
        %1970 = vmatprep.subr.mxu0 0.0
        %1971 = vmatpush1.msra.mxu0 0.0
        %1972 = vmatprep.subr.mxu0 0.0
        %1973 = vmatpush1.msra.mxu0 0.0
        %1974 = vmatprep.subr.mxu0 0.0
        %1975 = vmatpush1.msra.mxu0 0.0
        %1976 = vmatprep.subr.mxu0 0.0
        %1977 = vmatpush1.msra.mxu0 0.0
        %1978 = vmatprep.subr.mxu0 0.0
        %1979 = vmatpush1.msra.mxu0 0.0
        %1980 = vmatprep.subr.mxu0 0.0
        %1981 = vmatpush1.msra.mxu0 0.0
        %1982 = vmatprep.subr.mxu0 0.0
        %1983 = vmatpush1.msra.mxu0 0.0
        %1984 = vmatprep.subr.mxu0 0.0
        %1985 = vmatpush1.msra.mxu0 0.0
        %1986 = vmatprep.subr.mxu0 0.0
        %1987 = vmatpush1.msra.mxu0 0.0
        %1988 = vmatprep.subr.mxu0 0.0
        %1989 = vmatpush1.msra.mxu0 0.0
        %1990 = vmatprep.subr.mxu0 0.0
        %1991 = vmatpush1.msra.mxu0 0.0
        %1992 = vmatprep.subr.mxu0 0.0
        %1993 = vmatpush1.msra.mxu0 0.0
        %1994 = vmatprep.subr.mxu0 0.0
        %1995 = vmatpush1.msra.mxu0 0.0
        %1996 = vmatprep.subr.mxu0 0.0
        %1997 = vmatpush1.msra.mxu0 0.0
        %1998 = vmatprep.subr.mxu0 0.0
        %1999 = vmatpush1.msra.mxu0 0.0
        %2000 = vmatprep.mubr.f32.mxu0 0.0
        %v2001 = vand.u32 %v352, 4294901760
        %v2002 = vsub.f32 %v352, %v2001
        %v2003 = vand.u32 %v2002, 4294901760
        %v2004 = vsub.f32 %v2002, %v2003
        %v2005 = vand.u32 %v2004, 4294901760
        %2006 = vmatmul.mubr.f32.gmra.mrb[0].mxu0 %v2005
        %v2007 = vpop.f32.mrb[0].mxu0
        %v2008 = vadd.f32 %v343, %v2007
        %v2009 = vpop.f32.mrb[0].mxu0
        %v2010 = vadd.f32 %v343, %v2009
        %2011 = vmatprep.mubr.f32.mxu0 0.0
        %v2012 = vand.u32 %v355, 4294901760
        %v2013 = vsub.f32 %v355, %v2012
        %v2014 = vand.u32 %v2013, 4294901760
        %v2015 = vsub.f32 %v2013, %v2014
        %v2016 = vand.u32 %v2015, 4294901760
        %2017 = vmatmul.mubr.f32.gmra.mrb[0].mxu0 %v2016
        %v2018 = vpop.f32.mrb[0].mxu0
        %v2019 = vadd.f32 %v348, %v2018
        %v2020 = vpop.f32.mrb[0].mxu0
        %v2021 = vadd.f32 %v348, %v2020
        %2022 = vdwg.mxu0
        %v2023 = vand.u32 %v1933, 4294901760
        %v2024 = vsub.f32 %v1933, %v2023
        %v2025 = vand.u32 %v2024, 4294901760
        %v2026 = vsub.f32 %v2024, %v2025
        %v2027 = vand.u32 %v2026, 4294901760
        %2028 = vmatprep.subr.mxu0 %v2027
        %v2029 = vand.u32 %v1932, 4294901760
        %v2030 = vsub.f32 %v1932, %v2029
        %v2031 = vand.u32 %v2030, 4294901760
        %v2032 = vsub.f32 %v2030, %v2031
        %v2033 = vand.u32 %v2032, 4294901760
        %2034 = vmatpush1.msra.mxu0 %v2033
        %2035 = vmatprep.subr.mxu0 0.0
        %2036 = vmatpush1.msra.mxu0 0.0
        %2037 = vmatprep.subr.mxu0 0.0
        %2038 = vmatpush1.msra.mxu0 0.0
        %2039 = vmatprep.subr.mxu0 0.0
        %2040 = vmatpush1.msra.mxu0 0.0
        %2041 = vmatprep.subr.mxu0 0.0
        %2042 = vmatpush1.msra.mxu0 0.0
        %2043 = vmatprep.subr.mxu0 0.0
        %2044 = vmatpush1.msra.mxu0 0.0
        %2045 = vmatprep.subr.mxu0 0.0
        %2046 = vmatpush1.msra.mxu0 0.0
        %2047 = vmatprep.subr.mxu0 0.0
        %2048 = vmatpush1.msra.mxu0 0.0
        %2049 = vmatprep.subr.mxu0 0.0
        %2050 = vmatpush1.msra.mxu0 0.0
        %2051 = vmatprep.subr.mxu0 0.0
        %2052 = vmatpush1.msra.mxu0 0.0
        %2053 = vmatprep.subr.mxu0 0.0
        %2054 = vmatpush1.msra.mxu0 0.0
        %2055 = vmatprep.subr.mxu0 0.0
        %2056 = vmatpush1.msra.mxu0 0.0
        %2057 = vmatprep.subr.mxu0 0.0
        %2058 = vmatpush1.msra.mxu0 0.0
        %2059 = vmatprep.subr.mxu0 0.0
        %2060 = vmatpush1.msra.mxu0 0.0
        %2061 = vmatprep.subr.mxu0 0.0
        %2062 = vmatpush1.msra.mxu0 0.0
        %2063 = vmatprep.subr.mxu0 0.0
        %2064 = vmatpush1.msra.mxu0 0.0
        %2065 = vmatprep.subr.mxu0 0.0
        %2066 = vmatpush1.msra.mxu0 0.0
        %2067 = vmatprep.subr.mxu0 0.0
        %2068 = vmatpush1.msra.mxu0 0.0
        %2069 = vmatprep.subr.mxu0 0.0
        %2070 = vmatpush1.msra.mxu0 0.0
        %2071 = vmatprep.subr.mxu0 0.0
        %2072 = vmatpush1.msra.mxu0 0.0
        %2073 = vmatprep.subr.mxu0 0.0
        %2074 = vmatpush1.msra.mxu0 0.0
        %2075 = vmatprep.subr.mxu0 0.0
        %2076 = vmatpush1.msra.mxu0 0.0
        %2077 = vmatprep.subr.mxu0 0.0
        %2078 = vmatpush1.msra.mxu0 0.0
        %2079 = vmatprep.subr.mxu0 0.0
        %2080 = vmatpush1.msra.mxu0 0.0
        %2081 = vmatprep.subr.mxu0 0.0
        %2082 = vmatpush1.msra.mxu0 0.0
        %2083 = vmatprep.subr.mxu0 0.0
        %2084 = vmatpush1.msra.mxu0 0.0
        %2085 = vmatprep.subr.mxu0 0.0
        %2086 = vmatpush1.msra.mxu0 0.0
        %2087 = vmatprep.subr.mxu0 0.0
        %2088 = vmatpush1.msra.mxu0 0.0
        %2089 = vmatprep.subr.mxu0 0.0
        %2090 = vmatpush1.msra.mxu0 0.0
        %2091 = vmatprep.subr.mxu0 0.0
        %2092 = vmatpush1.msra.mxu0 0.0
        %2093 = vmatprep.subr.mxu0 0.0
        %2094 = vmatpush1.msra.mxu0 0.0
        %2095 = vmatprep.subr.mxu0 0.0
        %2096 = vmatpush1.msra.mxu0 0.0
        %2097 = vmatprep.mubr.f32.mxu0 0.0
        %v2098 = vand.u32 %v352, 4294901760
        %2099 = vmatmul.mubr.f32.gmra.mrb[0].mxu0 %v2098
        %v2100 = vpop.f32.mrb[0].mxu0
        %v2101 = vadd.f32 %v2008, %v2100
        %v2102 = vpop.f32.mrb[0].mxu0
        %v2103 = vadd.f32 %v2010, %v2102
        %2104 = vmatprep.mubr.f32.mxu0 0.0
        %v2105 = vand.u32 %v355, 4294901760
        %2106 = vmatmul.mubr.f32.gmra.mrb[0].mxu0 %v2105
        %v2107 = vpop.f32.mrb[0].mxu0
        %v2108 = vadd.f32 %v2019, %v2107
        %v2109 = vpop.f32.mrb[0].mxu0
        %v2110 = vadd.f32 %v2021, %v2109
        %2111 = vdwg.mxu0
        %v2112 = vand.u32 %v1933, 4294901760
        %v2113 = vsub.f32 %v1933, %v2112
        %2114 = vmatprep.subr.mxu0 %v2113
        %v2115 = vand.u32 %v1932, 4294901760
        %v2116 = vsub.f32 %v1932, %v2115
        %2117 = vmatpush1.msra.mxu0 %v2116
        %2118 = vmatprep.subr.mxu0 0.0
        %2119 = vmatpush1.msra.mxu0 0.0
        %2120 = vmatprep.subr.mxu0 0.0
        %2121 = vmatpush1.msra.mxu0 0.0
        %2122 = vmatprep.subr.mxu0 0.0
        %2123 = vmatpush1.msra.mxu0 0.0
        %2124 = vmatprep.subr.mxu0 0.0
        %2125 = vmatpush1.msra.mxu0 0.0
        %2126 = vmatprep.subr.mxu0 0.0
        %2127 = vmatpush1.msra.mxu0 0.0
        %2128 = vmatprep.subr.mxu0 0.0
        %2129 = vmatpush1.msra.mxu0 0.0
        %2130 = vmatprep.subr.mxu0 0.0
        %2131 = vmatpush1.msra.mxu0 0.0
        %2132 = vmatprep.subr.mxu0 0.0
        %2133 = vmatpush1.msra.mxu0 0.0
        %2134 = vmatprep.subr.mxu0 0.0
        %2135 = vmatpush1.msra.mxu0 0.0
        %2136 = vmatprep.subr.mxu0 0.0
        %2137 = vmatpush1.msra.mxu0 0.0
        %2138 = vmatprep.subr.mxu0 0.0
        %2139 = vmatpush1.msra.mxu0 0.0
        %2140 = vmatprep.subr.mxu0 0.0
        %2141 = vmatpush1.msra.mxu0 0.0
        %2142 = vmatprep.subr.mxu0 0.0
        %2143 = vmatpush1.msra.mxu0 0.0
        %2144 = vmatprep.subr.mxu0 0.0
        %2145 = vmatpush1.msra.mxu0 0.0
        %2146 = vmatprep.subr.mxu0 0.0
        %2147 = vmatpush1.msra.mxu0 0.0
        %2148 = vmatprep.subr.mxu0 0.0
        %2149 = vmatpush1.msra.mxu0 0.0
        %2150 = vmatprep.subr.mxu0 0.0
        %2151 = vmatpush1.msra.mxu0 0.0
        %2152 = vmatprep.subr.mxu0 0.0
        %2153 = vmatpush1.msra.mxu0 0.0
        %2154 = vmatprep.subr.mxu0 0.0
        %2155 = vmatpush1.msra.mxu0 0.0
        %2156 = vmatprep.subr.mxu0 0.0
        %2157 = vmatpush1.msra.mxu0 0.0
        %2158 = vmatprep.subr.mxu0 0.0
        %2159 = vmatpush1.msra.mxu0 0.0
        %2160 = vmatprep.subr.mxu0 0.0
        %2161 = vmatpush1.msra.mxu0 0.0
        %2162 = vmatprep.subr.mxu0 0.0
        %2163 = vmatpush1.msra.mxu0 0.0
        %2164 = vmatprep.subr.mxu0 0.0
        %2165 = vmatpush1.msra.mxu0 0.0
        %2166 = vmatprep.subr.mxu0 0.0
        %2167 = vmatpush1.msra.mxu0 0.0
        %2168 = vmatprep.subr.mxu0 0.0
        %2169 = vmatpush1.msra.mxu0 0.0
        %2170 = vmatprep.subr.mxu0 0.0
        %2171 = vmatpush1.msra.mxu0 0.0
        %2172 = vmatprep.subr.mxu0 0.0
        %2173 = vmatpush1.msra.mxu0 0.0
        %2174 = vmatprep.subr.mxu0 0.0
        %2175 = vmatpush1.msra.mxu0 0.0
        %2176 = vmatprep.subr.mxu0 0.0
        %2177 = vmatpush1.msra.mxu0 0.0
        %2178 = vmatprep.subr.mxu0 0.0
        %2179 = vmatpush1.msra.mxu0 0.0
        %2180 = vmatprep.mubr.f32.mxu0 0.0
        %v2181 = vand.u32 %v352, 4294901760
        %v2182 = vsub.f32 %v352, %v2181
        %2183 = vmatmul.mubr.f32.gmra.mrb[0].mxu0 %v2182
        %v2184 = vpop.f32.mrb[0].mxu0
        %v2185 = vadd.f32 %v2101, %v2184
        %v2186 = vpop.f32.mrb[0].mxu0
        %v2187 = vadd.f32 %v2103, %v2186
        %2188 = vmatprep.mubr.f32.mxu0 0.0
        %v2189 = vand.u32 %v355, 4294901760
        %v2190 = vsub.f32 %v355, %v2189
        %2191 = vmatmul.mubr.f32.gmra.mrb[0].mxu0 %v2190
        %v2192 = vpop.f32.mrb[0].mxu0
        %v2193 = vadd.f32 %v2108, %v2192
        %v2194 = vpop.f32.mrb[0].mxu0
        %v2195 = vadd.f32 %v2110, %v2194
        %2196 = vdwg.mxu0
        %v2197 = vand.u32 %v1933, 4294901760
        %2198 = vmatprep.subr.mxu0 %v2197
        %v2199 = vand.u32 %v1932, 4294901760
        %2200 = vmatpush1.msra.mxu0 %v2199
        %2201 = vmatprep.subr.mxu0 0.0
        %2202 = vmatpush1.msra.mxu0 0.0
        %2203 = vmatprep.subr.mxu0 0.0
        %2204 = vmatpush1.msra.mxu0 0.0
        %2205 = vmatprep.subr.mxu0 0.0
        %2206 = vmatpush1.msra.mxu0 0.0
        %2207 = vmatprep.subr.mxu0 0.0
        %2208 = vmatpush1.msra.mxu0 0.0
        %2209 = vmatprep.subr.mxu0 0.0
        %2210 = vmatpush1.msra.mxu0 0.0
        %2211 = vmatprep.subr.mxu0 0.0
        %2212 = vmatpush1.msra.mxu0 0.0
        %2213 = vmatprep.subr.mxu0 0.0
        %2214 = vmatpush1.msra.mxu0 0.0
        %2215 = vmatprep.subr.mxu0 0.0
        %2216 = vmatpush1.msra.mxu0 0.0
        %2217 = vmatprep.subr.mxu0 0.0
        %2218 = vmatpush1.msra.mxu0 0.0
        %2219 = vmatprep.subr.mxu0 0.0
        %2220 = vmatpush1.msra.mxu0 0.0
        %2221 = vmatprep.subr.mxu0 0.0
        %2222 = vmatpush1.msra.mxu0 0.0
        %2223 = vmatprep.subr.mxu0 0.0
        %2224 = vmatpush1.msra.mxu0 0.0
        %2225 = vmatprep.subr.mxu0 0.0
        %2226 = vmatpush1.msra.mxu0 0.0
        %2227 = vmatprep.subr.mxu0 0.0
        %2228 = vmatpush1.msra.mxu0 0.0
        %2229 = vmatprep.subr.mxu0 0.0
        %2230 = vmatpush1.msra.mxu0 0.0
        %2231 = vmatprep.subr.mxu0 0.0
        %2232 = vmatpush1.msra.mxu0 0.0
        %2233 = vmatprep.subr.mxu0 0.0
        %2234 = vmatpush1.msra.mxu0 0.0
        %2235 = vmatprep.subr.mxu0 0.0
        %2236 = vmatpush1.msra.mxu0 0.0
        %2237 = vmatprep.subr.mxu0 0.0
        %2238 = vmatpush1.msra.mxu0 0.0
        %2239 = vmatprep.subr.mxu0 0.0
        %2240 = vmatpush1.msra.mxu0 0.0
        %2241 = vmatprep.subr.mxu0 0.0
        %2242 = vmatpush1.msra.mxu0 0.0
        %2243 = vmatprep.subr.mxu0 0.0
        %2244 = vmatpush1.msra.mxu0 0.0
        %2245 = vmatprep.subr.mxu0 0.0
        %2246 = vmatpush1.msra.mxu0 0.0
        %2247 = vmatprep.subr.mxu0 0.0
        %2248 = vmatpush1.msra.mxu0 0.0
        %2249 = vmatprep.subr.mxu0 0.0
        %2250 = vmatpush1.msra.mxu0 0.0
        %2251 = vmatprep.subr.mxu0 0.0
        %2252 = vmatpush1.msra.mxu0 0.0
        %2253 = vmatprep.subr.mxu0 0.0
        %2254 = vmatpush1.msra.mxu0 0.0
        %2255 = vmatprep.subr.mxu0 0.0
        %2256 = vmatpush1.msra.mxu0 0.0
        %2257 = vmatprep.subr.mxu0 0.0
        %2258 = vmatpush1.msra.mxu0 0.0
        %2259 = vmatprep.subr.mxu0 0.0
        %2260 = vmatpush1.msra.mxu0 0.0
        %2261 = vmatprep.subr.mxu0 0.0
        %2262 = vmatpush1.msra.mxu0 0.0
        %2263 = vmatprep.mubr.f32.mxu0 0.0
        %v2264 = vand.u32 %v352, 4294901760
        %v2265 = vsub.f32 %v352, %v2264
        %v2266 = vand.u32 %v2265, 4294901760
        %2267 = vmatmul.mubr.f32.gmra.mrb[0].mxu0 %v2266
        %v2268 = vpop.f32.mrb[0].mxu0
        %v2269 = vadd.f32 %v2185, %v2268
        %v2270 = vpop.f32.mrb[0].mxu0
        %v2271 = vadd.f32 %v2187, %v2270
        %2272 = vmatprep.mubr.f32.mxu0 0.0
        %v2273 = vand.u32 %v355, 4294901760
        %v2274 = vsub.f32 %v355, %v2273
        %v2275 = vand.u32 %v2274, 4294901760
        %2276 = vmatmul.mubr.f32.gmra.mrb[0].mxu0 %v2275
        %v2277 = vpop.f32.mrb[0].mxu0
        %v2278 = vadd.f32 %v2193, %v2277
        %v2279 = vpop.f32.mrb[0].mxu0
        %v2280 = vadd.f32 %v2195, %v2279
        %2281 = vdwg.mxu0
        %v2282 = vand.u32 %v1933, 4294901760
        %v2283 = vsub.f32 %v1933, %v2282
        %v2284 = vand.u32 %v2283, 4294901760
        %2285 = vmatprep.subr.mxu0 %v2284
        %v2286 = vand.u32 %v1932, 4294901760
        %v2287 = vsub.f32 %v1932, %v2286
        %v2288 = vand.u32 %v2287, 4294901760
        %2289 = vmatpush1.msra.mxu0 %v2288
        %2290 = vmatprep.subr.mxu0 0.0
        %2291 = vmatpush1.msra.mxu0 0.0
        %2292 = vmatprep.subr.mxu0 0.0
        %2293 = vmatpush1.msra.mxu0 0.0
        %2294 = vmatprep.subr.mxu0 0.0
        %2295 = vmatpush1.msra.mxu0 0.0
        %2296 = vmatprep.subr.mxu0 0.0
        %2297 = vmatpush1.msra.mxu0 0.0
        %2298 = vmatprep.subr.mxu0 0.0
        %2299 = vmatpush1.msra.mxu0 0.0
        %2300 = vmatprep.subr.mxu0 0.0
        %2301 = vmatpush1.msra.mxu0 0.0
        %2302 = vmatprep.subr.mxu0 0.0
        %2303 = vmatpush1.msra.mxu0 0.0
        %2304 = vmatprep.subr.mxu0 0.0
        %2305 = vmatpush1.msra.mxu0 0.0
        %2306 = vmatprep.subr.mxu0 0.0
        %2307 = vmatpush1.msra.mxu0 0.0
        %2308 = vmatprep.subr.mxu0 0.0
        %2309 = vmatpush1.msra.mxu0 0.0
        %2310 = vmatprep.subr.mxu0 0.0
        %2311 = vmatpush1.msra.mxu0 0.0
        %2312 = vmatprep.subr.mxu0 0.0
        %2313 = vmatpush1.msra.mxu0 0.0
        %2314 = vmatprep.subr.mxu0 0.0
        %2315 = vmatpush1.msra.mxu0 0.0
        %2316 = vmatprep.subr.mxu0 0.0
        %2317 = vmatpush1.msra.mxu0 0.0
        %2318 = vmatprep.subr.mxu0 0.0
        %2319 = vmatpush1.msra.mxu0 0.0
        %2320 = vmatprep.subr.mxu0 0.0
        %2321 = vmatpush1.msra.mxu0 0.0
        %2322 = vmatprep.subr.mxu0 0.0
        %2323 = vmatpush1.msra.mxu0 0.0
        %2324 = vmatprep.subr.mxu0 0.0
        %2325 = vmatpush1.msra.mxu0 0.0
        %2326 = vmatprep.subr.mxu0 0.0
        %2327 = vmatpush1.msra.mxu0 0.0
        %2328 = vmatprep.subr.mxu0 0.0
        %2329 = vmatpush1.msra.mxu0 0.0
        %2330 = vmatprep.subr.mxu0 0.0
        %2331 = vmatpush1.msra.mxu0 0.0
        %2332 = vmatprep.subr.mxu0 0.0
        %2333 = vmatpush1.msra.mxu0 0.0
        %2334 = vmatprep.subr.mxu0 0.0
        %2335 = vmatpush1.msra.mxu0 0.0
        %2336 = vmatprep.subr.mxu0 0.0
        %2337 = vmatpush1.msra.mxu0 0.0
        %2338 = vmatprep.subr.mxu0 0.0
        %2339 = vmatpush1.msra.mxu0 0.0
        %2340 = vmatprep.subr.mxu0 0.0
        %2341 = vmatpush1.msra.mxu0 0.0
        %2342 = vmatprep.subr.mxu0 0.0
        %2343 = vmatpush1.msra.mxu0 0.0
        %2344 = vmatprep.subr.mxu0 0.0
        %2345 = vmatpush1.msra.mxu0 0.0
        %2346 = vmatprep.subr.mxu0 0.0
        %2347 = vmatpush1.msra.mxu0 0.0
        %2348 = vmatprep.subr.mxu0 0.0
        %2349 = vmatpush1.msra.mxu0 0.0
        %2350 = vmatprep.subr.mxu0 0.0
        %2351 = vmatpush1.msra.mxu0 0.0
        %2352 = vmatprep.mubr.f32.mxu0 0.0
        %v2353 = vand.u32 %v352, 4294901760
        %2354 = vmatmul.mubr.f32.gmra.mrb[0].mxu0 %v2353
        %v2355 = vpop.f32.mrb[0].mxu0
        %v2356 = vadd.f32 %v2269, %v2355
        %v2357 = vpop.f32.mrb[0].mxu0
        %v2358 = vadd.f32 %v2271, %v2357
        %2359 = vmatprep.mubr.f32.mxu0 0.0
        %v2360 = vand.u32 %v355, 4294901760
        %2361 = vmatmul.mubr.f32.gmra.mrb[0].mxu0 %v2360
        %v2362 = vpop.f32.mrb[0].mxu0
        %v2363 = vadd.f32 %v2278, %v2362
        %v2364 = vpop.f32.mrb[0].mxu0
        %v2365 = vadd.f32 %v2280, %v2364
        %2366 = vdwg.mxu0
        %v2367 = vand.u32 %v1933, 4294901760
        %2368 = vmatprep.subr.mxu0 %v2367
        %v2369 = vand.u32 %v1932, 4294901760
        %2370 = vmatpush1.msra.mxu0 %v2369
        %2371 = vmatprep.subr.mxu0 0.0
        %2372 = vmatpush1.msra.mxu0 0.0
        %2373 = vmatprep.subr.mxu0 0.0
        %2374 = vmatpush1.msra.mxu0 0.0
        %2375 = vmatprep.subr.mxu0 0.0
        %2376 = vmatpush1.msra.mxu0 0.0
        %2377 = vmatprep.subr.mxu0 0.0
        %2378 = vmatpush1.msra.mxu0 0.0
        %2379 = vmatprep.subr.mxu0 0.0
        %2380 = vmatpush1.msra.mxu0 0.0
        %2381 = vmatprep.subr.mxu0 0.0
        %2382 = vmatpush1.msra.mxu0 0.0
        %2383 = vmatprep.subr.mxu0 0.0
        %2384 = vmatpush1.msra.mxu0 0.0
        %2385 = vmatprep.subr.mxu0 0.0
        %2386 = vmatpush1.msra.mxu0 0.0
        %2387 = vmatprep.subr.mxu0 0.0
        %2388 = vmatpush1.msra.mxu0 0.0
        %2389 = vmatprep.subr.mxu0 0.0
        %2390 = vmatpush1.msra.mxu0 0.0
        %2391 = vmatprep.subr.mxu0 0.0
        %2392 = vmatpush1.msra.mxu0 0.0
        %2393 = vmatprep.subr.mxu0 0.0
        %2394 = vmatpush1.msra.mxu0 0.0
        %2395 = vmatprep.subr.mxu0 0.0
        %2396 = vmatpush1.msra.mxu0 0.0
        %2397 = vmatprep.subr.mxu0 0.0
        %2398 = vmatpush1.msra.mxu0 0.0
        %2399 = vmatprep.subr.mxu0 0.0
        %2400 = vmatpush1.msra.mxu0 0.0
        %2401 = vmatprep.subr.mxu0 0.0
        %2402 = vmatpush1.msra.mxu0 0.0
        %2403 = vmatprep.subr.mxu0 0.0
        %2404 = vmatpush1.msra.mxu0 0.0
        %2405 = vmatprep.subr.mxu0 0.0
        %2406 = vmatpush1.msra.mxu0 0.0
        %2407 = vmatprep.subr.mxu0 0.0
        %2408 = vmatpush1.msra.mxu0 0.0
        %2409 = vmatprep.subr.mxu0 0.0
        %2410 = vmatpush1.msra.mxu0 0.0
        %2411 = vmatprep.subr.mxu0 0.0
        %2412 = vmatpush1.msra.mxu0 0.0
        %2413 = vmatprep.subr.mxu0 0.0
        %2414 = vmatpush1.msra.mxu0 0.0
        %2415 = vmatprep.subr.mxu0 0.0
        %2416 = vmatpush1.msra.mxu0 0.0
        %2417 = vmatprep.subr.mxu0 0.0
        %2418 = vmatpush1.msra.mxu0 0.0
        %2419 = vmatprep.subr.mxu0 0.0
        %2420 = vmatpush1.msra.mxu0 0.0
        %2421 = vmatprep.subr.mxu0 0.0
        %2422 = vmatpush1.msra.mxu0 0.0
        %2423 = vmatprep.subr.mxu0 0.0
        %2424 = vmatpush1.msra.mxu0 0.0
        %2425 = vmatprep.subr.mxu0 0.0
        %2426 = vmatpush1.msra.mxu0 0.0
        %2427 = vmatprep.subr.mxu0 0.0
        %2428 = vmatpush1.msra.mxu0 0.0
        %2429 = vmatprep.subr.mxu0 0.0
        %2430 = vmatpush1.msra.mxu0 0.0
        %2431 = vmatprep.subr.mxu0 0.0
        %2432 = vmatpush1.msra.mxu0 0.0
        %2433 = vmatprep.mubr.f32.mxu0 0.0
        %v2434 = vand.u32 %v352, 4294901760
        %2435 = vmatmul.mubr.f32.gmra.mrb[0].mxu0 %v2434
        %v2436 = vpop.f32.mrb[0].mxu0
        %v2437 = vadd.f32 %v2356, %v2436
        %v2438 = vpop.f32.mrb[0].mxu0
        %v2439 = vadd.f32 %v2358, %v2438
        %2440 = vmatprep.mubr.f32.mxu0 0.0
        %v2441 = vand.u32 %v355, 4294901760
        %2442 = vmatmul.mubr.f32.gmra.mrb[0].mxu0 %v2441
        %v2443 = vpop.f32.mrb[0].mxu0
        %v2444 = vadd.f32 %v2363, %v2443
        %v2445 = vpop.f32.mrb[0].mxu0
        %v2446 = vadd.f32 %v2365, %v2445
        %2447 = vdwg.mxu0
        %v2448 = vmax.f32 %v2437, 0.0
        %v2449 = vmax.f32 %v2439, 0.0
        %v2450 = vmax.f32 %v2444, 0.0
        %v2451 = vmax.f32 %v2446, 0.0
        %s2452 = scalar_lea.vmem [#allocation2], 96
        %2453 = vst [vmem:[%s2452] sm:$0xff] %v2448
        %2454 = vst [vmem:[%s2452 + $0x8] sm:$0xff] %v2449
        %2455 = vst [vmem:[%s2452 + $0x10] sm:$0xff] %v2450
        %2456 = vst [vmem:[%s2452 + $0x18] sm:$0xff] %v2451
        %v2457 = vld [vmem:[#allocation2] sm:$0xff]
        %v2458 = vld [vmem:[#allocation2 + $0x8] sm:$0xff]
        %v2459 = vld [vmem:[#allocation2 + $0x10] sm:$0xff]
        %v2460 = vld [vmem:[#allocation2 + $0x18] sm:$0xff]
        %v2461 = vld [vmem:[%s1400] sm:$0xff]
        %v2462 = vld [vmem:[%s1400 + $0x8] sm:$0xff]
        %v2463 = vld [vmem:[%s1400 + $0x10] sm:$0xff]
        %v2464 = vld [vmem:[%s1400 + $0x18] sm:$0xff]
        %2466 = vset.pattern.permute.xlu0 9
        %2467 = vperm.xlu0 %2466, %v328
        %v2468 = vpop.permute.xlu0 %2467
        %2471 = vset.pattern.permute.xlu0 9
        %2472 = vperm.xlu0 %2471, %v329
        %v2473 = vpop.permute.xlu0 %2472
        %v2475 = vmul.f32 %v2457, %v2468
        %v2476 = vmul.f32 %v2458, %v2468
        %v2477 = vmul.f32 %v2459, %v2473
        %v2478 = vmul.f32 %v2460, %v2473
        %2479 = vset.pattern.permute.xlu0 18
        %2480 = vperm.xlu0 %2479, %v328
        %v2481 = vpop.permute.xlu0 %2480
        %2483 = vset.pattern.permute.xlu0 18
        %2484 = vperm.xlu0 %2483, %v329
        %v2485 = vpop.permute.xlu0 %2484
        %v2487 = vmul.f32 %v2461, %v2481
        %v2488 = vmul.f32 %v2462, %v2481
        %v2489 = vmul.f32 %v2463, %v2485
        %v2490 = vmul.f32 %v2464, %v2485
        %v2491 = vadd.f32 %v2475, %v2487
        %v2492 = vadd.f32 %v2476, %v2488
        %v2493 = vadd.f32 %v2477, %v2489
        %v2494 = vadd.f32 %v2478, %v2490
        %2495 = vrot.lane.b32.xlu0 %v2491, 17
        %v2496 = vpop.permute.xlu0 %2495
        %2497 = vrot.lane.b32.xlu0 %v2493, 17
        %v2498 = vpop.permute.xlu0 %2497
        %2499 = vrot.lane.b32.xlu0 %v2492, 17
        %v2500 = vpop.permute.xlu0 %2499
        %2501 = vrot.lane.b32.xlu0 %v2494, 17
        %v2502 = vpop.permute.xlu0 %2501
        %v2503 = vlaneseq
        %v2504 = vand.u32 %v2503, 127
        %vm2505 = vcmp.lt.s32.totalorder %v2504, 17
        %v2506 = vsel %vm2505, %v2496, %v2500
        %v2507 = vsel %vm2505, %v2498, %v2502
        %v2508 = vsel %vm2505, %v2500, %v2496
        %v2509 = vsel %vm2505, %v2502, %v2498
        %v2510 = vlaneseq
        %v2511 = vshrl.u32 %v2510, 7
        %v2512 = vsub.s32 0, %v2511
        %v2513 = vrot.slane %v334, %v2512
        %v2514 = vlaneseq
        %v2515 = vshrl.u32 %v2514, 7
        %v2516 = vsub.s32 0, %v2515
        %v2517 = vrot.slane %v335, %v2516
        %v2518 = vmul.f32 %v2508, %v2513
        %v2519 = vmul.f32 %v2506, %v2517
        %v2520 = vmul.f32 %v2509, %v2513
        %v2521 = vmul.f32 %v2507, %v2517
        %v2522 = vadd.f32 %v2518, 0.0
        %v2523 = vadd.f32 %v2519, 0.0
        %v2524 = vadd.f32 %v2520, 0.0
        %v2525 = vadd.f32 %v2521, 0.0
        %2526 = vset.pattern.permute.xlu0 10
        %2527 = vperm.xlu0 %2526, %v328
        %v2528 = vpop.permute.xlu0 %2527
        %2530 = vset.pattern.permute.xlu0 10
        %2531 = vperm.xlu0 %2530, %v329
        %v2532 = vpop.permute.xlu0 %2531
        %v2534 = vmul.f32 %v2457, %v2528
        %v2535 = vmul.f32 %v2458, %v2528
        %v2536 = vmul.f32 %v2459, %v2532
        %v2537 = vmul.f32 %v2460, %v2532
        %2538 = vset.pattern.permute.xlu0 19
        %2539 = vperm.xlu0 %2538, %v328
        %v2540 = vpop.permute.xlu0 %2539
        %2542 = vset.pattern.permute.xlu0 19
        %2543 = vperm.xlu0 %2542, %v329
        %v2544 = vpop.permute.xlu0 %2543
        %v2546 = vmul.f32 %v2461, %v2540
        %v2547 = vmul.f32 %v2462, %v2540
        %v2548 = vmul.f32 %v2463, %v2544
        %v2549 = vmul.f32 %v2464, %v2544
        %v2550 = vadd.f32 %v2534, %v2546
        %v2551 = vadd.f32 %v2535, %v2547
        %v2552 = vadd.f32 %v2536, %v2548
        %v2553 = vadd.f32 %v2537, %v2549
        %2554 = vrot.lane.b32.xlu0 %v2550, 16
        %v2555 = vpop.permute.xlu0 %2554
        %2556 = vrot.lane.b32.xlu0 %v2552, 16
        %v2557 = vpop.permute.xlu0 %2556
        %2558 = vrot.lane.b32.xlu0 %v2551, 16
        %v2559 = vpop.permute.xlu0 %2558
        %2560 = vrot.lane.b32.xlu0 %v2553, 16
        %v2561 = vpop.permute.xlu0 %2560
        %vm2562 = vcmp.lt.s32.totalorder %v2504, 16
        %v2563 = vsel %vm2562, %v2555, %v2559
        %v2564 = vsel %vm2562, %v2557, %v2561
        %v2565 = vsel %vm2562, %v2559, %v2555
        %v2566 = vsel %vm2562, %v2561, %v2557
        %v2567 = vlaneseq
        %v2568 = vshrl.u32 %v2567, 7
        %v2569 = vsub.s32 1, %v2568
        %v2570 = vrot.slane %v334, %v2569
        %v2571 = vlaneseq
        %v2572 = vshrl.u32 %v2571, 7
        %v2573 = vsub.s32 1, %v2572
        %v2574 = vrot.slane %v335, %v2573
        %v2575 = vmul.f32 %v2565, %v2570
        %v2576 = vmul.f32 %v2563, %v2574
        %v2577 = vmul.f32 %v2566, %v2570
        %v2578 = vmul.f32 %v2564, %v2574
        %v2579 = vadd.f32 %v2522, %v2575
        %v2580 = vadd.f32 %v2523, %v2576
        %v2581 = vadd.f32 %v2524, %v2577
        %v2582 = vadd.f32 %v2525, %v2578
        %2583 = vset.pattern.permute.xlu0 11
        %2584 = vperm.xlu0 %2583, %v328
        %v2585 = vpop.permute.xlu0 %2584
        %2587 = vset.pattern.permute.xlu0 11
        %2588 = vperm.xlu0 %2587, %v329
        %v2589 = vpop.permute.xlu0 %2588
        %v2591 = vmul.f32 %v2457, %v2585
        %v2592 = vmul.f32 %v2458, %v2585
        %v2593 = vmul.f32 %v2459, %v2589
        %v2594 = vmul.f32 %v2460, %v2589
        %2595 = vset.pattern.permute.xlu0 20
        %2596 = vperm.xlu0 %2595, %v328
        %v2597 = vpop.permute.xlu0 %2596
        %2599 = vset.pattern.permute.xlu0 20
        %2600 = vperm.xlu0 %2599, %v329
        %v2601 = vpop.permute.xlu0 %2600
        %v2603 = vmul.f32 %v2461, %v2597
        %v2604 = vmul.f32 %v2462, %v2597
        %v2605 = vmul.f32 %v2463, %v2601
        %v2606 = vmul.f32 %v2464, %v2601
        %v2607 = vadd.f32 %v2591, %v2603
        %v2608 = vadd.f32 %v2592, %v2604
        %v2609 = vadd.f32 %v2593, %v2605
        %v2610 = vadd.f32 %v2594, %v2606
        %2611 = vrot.lane.b32.xlu0 %v2607, 15
        %v2612 = vpop.permute.xlu0 %2611
        %2613 = vrot.lane.b32.xlu0 %v2609, 15
        %v2614 = vpop.permute.xlu0 %2613
        %2615 = vrot.lane.b32.xlu0 %v2608, 15
        %v2616 = vpop.permute.xlu0 %2615
        %2617 = vrot.lane.b32.xlu0 %v2610, 15
        %v2618 = vpop.permute.xlu0 %2617
        %vm2619 = vcmp.lt.s32.totalorder %v2504, 15
        %v2620 = vsel %vm2619, %v2612, %v2616
        %v2621 = vsel %vm2619, %v2614, %v2618
        %v2622 = vsel %vm2619, %v2616, %v2612
        %v2623 = vsel %vm2619, %v2618, %v2614
        %v2624 = vlaneseq
        %v2625 = vshrl.u32 %v2624, 7
        %v2626 = vsub.s32 2, %v2625
        %v2627 = vrot.slane %v334, %v2626
        %v2628 = vlaneseq
        %v2629 = vshrl.u32 %v2628, 7
        %v2630 = vsub.s32 2, %v2629
        %v2631 = vrot.slane %v335, %v2630
        %v2632 = vmul.f32 %v2622, %v2627
        %v2633 = vmul.f32 %v2620, %v2631
        %v2634 = vmul.f32 %v2623, %v2627
        %v2635 = vmul.f32 %v2621, %v2631
        %v2636 = vadd.f32 %v2579, %v2632
        %v2637 = vadd.f32 %v2580, %v2633
        %v2638 = vadd.f32 %v2581, %v2634
        %v2639 = vadd.f32 %v2582, %v2635
        %2640 = vset.pattern.permute.xlu0 12
        %2641 = vperm.xlu0 %2640, %v328
        %v2642 = vpop.permute.xlu0 %2641
        %2644 = vset.pattern.permute.xlu0 12
        %2645 = vperm.xlu0 %2644, %v329
        %v2646 = vpop.permute.xlu0 %2645
        %v2648 = vmul.f32 %v2457, %v2642
        %v2649 = vmul.f32 %v2458, %v2642
        %v2650 = vmul.f32 %v2459, %v2646
        %v2651 = vmul.f32 %v2460, %v2646
        %2652 = vset.pattern.permute.xlu0 21
        %2653 = vperm.xlu0 %2652, %v328
        %v2654 = vpop.permute.xlu0 %2653
        %2656 = vset.pattern.permute.xlu0 21
        %2657 = vperm.xlu0 %2656, %v329
        %v2658 = vpop.permute.xlu0 %2657
        %v2660 = vmul.f32 %v2461, %v2654
        %v2661 = vmul.f32 %v2462, %v2654
        %v2662 = vmul.f32 %v2463, %v2658
        %v2663 = vmul.f32 %v2464, %v2658
        %v2664 = vadd.f32 %v2648, %v2660
        %v2665 = vadd.f32 %v2649, %v2661
        %v2666 = vadd.f32 %v2650, %v2662
        %v2667 = vadd.f32 %v2651, %v2663
        %2668 = vrot.lane.b32.xlu0 %v2664, 1
        %v2669 = vpop.permute.xlu0 %2668
        %2670 = vrot.lane.b32.xlu0 %v2666, 1
        %v2671 = vpop.permute.xlu0 %2670
        %2672 = vrot.lane.b32.xlu0 %v2665, 1
        %v2673 = vpop.permute.xlu0 %2672
        %2674 = vrot.lane.b32.xlu0 %v2667, 1
        %v2675 = vpop.permute.xlu0 %2674
        %vm2676 = vcmp.lt.s32.totalorder %v2504, 1
        %v2677 = vsel %vm2676, %v2669, %v2673
        %v2678 = vsel %vm2676, %v2671, %v2675
        %v2679 = vsel %vm2676, %v2673, %v2669
        %v2680 = vsel %vm2676, %v2675, %v2671
        %v2681 = vlaneseq
        %v2682 = vshrl.u32 %v2681, 7
        %v2683 = vsub.s32 3, %v2682
        %v2684 = vrot.slane %v334, %v2683
        %v2685 = vlaneseq
        %v2686 = vshrl.u32 %v2685, 7
        %v2687 = vsub.s32 3, %v2686
        %v2688 = vrot.slane %v335, %v2687
        %v2689 = vmul.f32 %v2679, %v2684
        %v2690 = vmul.f32 %v2677, %v2688
        %v2691 = vmul.f32 %v2680, %v2684
        %v2692 = vmul.f32 %v2678, %v2688
        %v2693 = vadd.f32 %v2636, %v2689
        %v2694 = vadd.f32 %v2637, %v2690
        %v2695 = vadd.f32 %v2638, %v2691
        %v2696 = vadd.f32 %v2639, %v2692
        %2697 = vset.pattern.permute.xlu0 13
        %2698 = vperm.xlu0 %2697, %v328
        %v2699 = vpop.permute.xlu0 %2698
        %2701 = vset.pattern.permute.xlu0 13
        %2702 = vperm.xlu0 %2701, %v329
        %v2703 = vpop.permute.xlu0 %2702
        %v2705 = vmul.f32 %v2457, %v2699
        %v2706 = vmul.f32 %v2458, %v2699
        %v2707 = vmul.f32 %v2459, %v2703
        %v2708 = vmul.f32 %v2460, %v2703
        %2709 = vset.pattern.permute.xlu0 22
        %2710 = vperm.xlu0 %2709, %v328
        %v2711 = vpop.permute.xlu0 %2710
        %2713 = vset.pattern.permute.xlu0 22
        %2714 = vperm.xlu0 %2713, %v329
        %v2715 = vpop.permute.xlu0 %2714
        %v2717 = vmul.f32 %v2461, %v2711
        %v2718 = vmul.f32 %v2462, %v2711
        %v2719 = vmul.f32 %v2463, %v2715
        %v2720 = vmul.f32 %v2464, %v2715
        %v2721 = vadd.f32 %v2705, %v2717
        %v2722 = vadd.f32 %v2706, %v2718
        %v2723 = vadd.f32 %v2707, %v2719
        %v2724 = vadd.f32 %v2708, %v2720
        %v2725 = vadd.f32 %v2693, %v2721
        %v2726 = vadd.f32 %v2694, %v2722
        %v2727 = vadd.f32 %v2695, %v2723
        %v2728 = vadd.f32 %v2696, %v2724
        %2729 = vset.pattern.permute.xlu0 14
        %2730 = vperm.xlu0 %2729, %v328
        %v2731 = vpop.permute.xlu0 %2730
        %2733 = vset.pattern.permute.xlu0 14
        %2734 = vperm.xlu0 %2733, %v329
        %v2735 = vpop.permute.xlu0 %2734
        %v2737 = vmul.f32 %v2457, %v2731
        %v2738 = vmul.f32 %v2458, %v2731
        %v2739 = vmul.f32 %v2459, %v2735
        %v2740 = vmul.f32 %v2460, %v2735
        %2741 = vset.pattern.permute.xlu0 23
        %2742 = vperm.xlu0 %2741, %v328
        %v2743 = vpop.permute.xlu0 %2742
        %2745 = vset.pattern.permute.xlu0 23
        %2746 = vperm.xlu0 %2745, %v329
        %v2747 = vpop.permute.xlu0 %2746
        %v2749 = vmul.f32 %v2461, %v2743
        %v2750 = vmul.f32 %v2462, %v2743
        %v2751 = vmul.f32 %v2463, %v2747
        %v2752 = vmul.f32 %v2464, %v2747
        %v2753 = vadd.f32 %v2737, %v2749
        %v2754 = vadd.f32 %v2738, %v2750
        %v2755 = vadd.f32 %v2739, %v2751
        %v2756 = vadd.f32 %v2740, %v2752
        %2757 = vrot.lane.b32.xlu0 %v2753, 127
        %v2758 = vpop.permute.xlu0 %2757
        %2759 = vrot.lane.b32.xlu0 %v2755, 127
        %v2760 = vpop.permute.xlu0 %2759
        %2761 = vrot.lane.b32.xlu0 %v2754, 127
        %v2762 = vpop.permute.xlu0 %2761
        %2763 = vrot.lane.b32.xlu0 %v2756, 127
        %v2764 = vpop.permute.xlu0 %2763
        %vm2765 = vcmp.lt.s32.totalorder %v2504, 127
        %v2766 = vsel %vm2765, %v2758, %v2762
        %v2767 = vsel %vm2765, %v2760, %v2764
        %v2768 = vsel %vm2765, %v2762, %v2758
        %v2769 = vsel %vm2765, %v2764, %v2760
        %v2770 = vlaneseq
        %v2771 = vshrl.u32 %v2770, 7
        %v2772 = vsub.s32 5, %v2771
        %v2773 = vrot.slane %v334, %v2772
        %v2774 = vlaneseq
        %v2775 = vshrl.u32 %v2774, 7
        %v2776 = vsub.s32 5, %v2775
        %v2777 = vrot.slane %v335, %v2776
        %v2778 = vmul.f32 %v2766, %v2773
        %v2779 = vmul.f32 %v2768, %v2777
        %v2780 = vmul.f32 %v2767, %v2773
        %v2781 = vmul.f32 %v2769, %v2777
        %v2782 = vadd.f32 %v2725, %v2778
        %v2783 = vadd.f32 %v2726, %v2779
        %v2784 = vadd.f32 %v2727, %v2780
        %v2785 = vadd.f32 %v2728, %v2781
        %2786 = vset.pattern.permute.xlu0 15
        %2787 = vperm.xlu0 %2786, %v328
        %v2788 = vpop.permute.xlu0 %2787
        %2790 = vset.pattern.permute.xlu0 15
        %2791 = vperm.xlu0 %2790, %v329
        %v2792 = vpop.permute.xlu0 %2791
        %v2794 = vmul.f32 %v2457, %v2788
        %v2795 = vmul.f32 %v2458, %v2788
        %v2796 = vmul.f32 %v2459, %v2792
        %v2797 = vmul.f32 %v2460, %v2792
        %2798 = vset.pattern.permute.xlu0 24
        %2799 = vperm.xlu0 %2798, %v328
        %v2800 = vpop.permute.xlu0 %2799
        %2802 = vset.pattern.permute.xlu0 24
        %2803 = vperm.xlu0 %2802, %v329
        %v2804 = vpop.permute.xlu0 %2803
        %v2806 = vmul.f32 %v2461, %v2800
        %v2807 = vmul.f32 %v2462, %v2800
        %v2808 = vmul.f32 %v2463, %v2804
        %v2809 = vmul.f32 %v2464, %v2804
        %v2810 = vadd.f32 %v2794, %v2806
        %v2811 = vadd.f32 %v2795, %v2807
        %v2812 = vadd.f32 %v2796, %v2808
        %v2813 = vadd.f32 %v2797, %v2809
        %2814 = vrot.lane.b32.xlu0 %v2810, 113
        %v2815 = vpop.permute.xlu0 %2814
        %2816 = vrot.lane.b32.xlu0 %v2812, 113
        %v2817 = vpop.permute.xlu0 %2816
        %2818 = vrot.lane.b32.xlu0 %v2811, 113
        %v2819 = vpop.permute.xlu0 %2818
        %2820 = vrot.lane.b32.xlu0 %v2813, 113
        %v2821 = vpop.permute.xlu0 %2820
        %vm2822 = vcmp.lt.s32.totalorder %v2504, 113
        %v2823 = vsel %vm2822, %v2815, %v2819
        %v2824 = vsel %vm2822, %v2817, %v2821
        %v2825 = vsel %vm2822, %v2819, %v2815
        %v2826 = vsel %vm2822, %v2821, %v2817
        %v2827 = vlaneseq
        %v2828 = vshrl.u32 %v2827, 7
        %v2829 = vsub.s32 6, %v2828
        %v2830 = vrot.slane %v334, %v2829
        %v2831 = vlaneseq
        %v2832 = vshrl.u32 %v2831, 7
        %v2833 = vsub.s32 6, %v2832
        %v2834 = vrot.slane %v335, %v2833
        %v2835 = vmul.f32 %v2823, %v2830
        %v2836 = vmul.f32 %v2825, %v2834
        %v2837 = vmul.f32 %v2824, %v2830
        %v2838 = vmul.f32 %v2826, %v2834
        %v2839 = vadd.f32 %v2782, %v2835
        %v2840 = vadd.f32 %v2783, %v2836
        %v2841 = vadd.f32 %v2784, %v2837
        %v2842 = vadd.f32 %v2785, %v2838
        %2843 = vset.pattern.permute.xlu0 16
        %2844 = vperm.xlu0 %2843, %v328
        %v2845 = vpop.permute.xlu0 %2844
        %2847 = vset.pattern.permute.xlu0 16
        %2848 = vperm.xlu0 %2847, %v329
        %v2849 = vpop.permute.xlu0 %2848
        %v2851 = vmul.f32 %v2457, %v2845
        %v2852 = vmul.f32 %v2458, %v2845
        %v2853 = vmul.f32 %v2459, %v2849
        %v2854 = vmul.f32 %v2460, %v2849
        %2855 = vset.pattern.permute.xlu0 25
        %2856 = vperm.xlu0 %2855, %v328
        %v2857 = vpop.permute.xlu0 %2856
        %2859 = vset.pattern.permute.xlu0 25
        %2860 = vperm.xlu0 %2859, %v329
        %v2861 = vpop.permute.xlu0 %2860
        %v2863 = vmul.f32 %v2461, %v2857
        %v2864 = vmul.f32 %v2462, %v2857
        %v2865 = vmul.f32 %v2463, %v2861
        %v2866 = vmul.f32 %v2464, %v2861
        %v2867 = vadd.f32 %v2851, %v2863
        %v2868 = vadd.f32 %v2852, %v2864
        %v2869 = vadd.f32 %v2853, %v2865
        %v2870 = vadd.f32 %v2854, %v2866
        %2871 = vrot.lane.b32.xlu0 %v2867, 112
        %v2872 = vpop.permute.xlu0 %2871
        %2873 = vrot.lane.b32.xlu0 %v2869, 112
        %v2874 = vpop.permute.xlu0 %2873
        %2875 = vrot.lane.b32.xlu0 %v2868, 112
        %v2876 = vpop.permute.xlu0 %2875
        %2877 = vrot.lane.b32.xlu0 %v2870, 112
        %v2878 = vpop.permute.xlu0 %2877
        %vm2879 = vcmp.lt.s32.totalorder %v2504, 112
        %v2880 = vsel %vm2879, %v2872, %v2876
        %v2881 = vsel %vm2879, %v2874, %v2878
        %v2882 = vsel %vm2879, %v2876, %v2872
        %v2883 = vsel %vm2879, %v2878, %v2874
        %v2884 = vlaneseq
        %v2885 = vshrl.u32 %v2884, 7
        %v2886 = vsub.s32 7, %v2885
        %v2887 = vrot.slane %v334, %v2886
        %v2888 = vlaneseq
        %v2889 = vshrl.u32 %v2888, 7
        %v2890 = vsub.s32 7, %v2889
        %v2891 = vrot.slane %v335, %v2890
        %v2892 = vmul.f32 %v2880, %v2887
        %v2893 = vmul.f32 %v2882, %v2891
        %v2894 = vmul.f32 %v2881, %v2887
        %v2895 = vmul.f32 %v2883, %v2891
        %v2896 = vadd.f32 %v2839, %v2892
        %v2897 = vadd.f32 %v2840, %v2893
        %v2898 = vadd.f32 %v2841, %v2894
        %v2899 = vadd.f32 %v2842, %v2895
        %2900 = vset.pattern.permute.xlu0 17
        %2901 = vperm.xlu0 %2900, %v328
        %v2902 = vpop.permute.xlu0 %2901
        %2904 = vset.pattern.permute.xlu0 17
        %2905 = vperm.xlu0 %2904, %v329
        %v2906 = vpop.permute.xlu0 %2905
        %v2908 = vmul.f32 %v2457, %v2902
        %v2909 = vmul.f32 %v2458, %v2902
        %v2910 = vmul.f32 %v2459, %v2906
        %v2911 = vmul.f32 %v2460, %v2906
        %2912 = vset.pattern.permute.xlu0 26
        %2913 = vperm.xlu0 %2912, %v328
        %v2914 = vpop.permute.xlu0 %2913
        %2916 = vset.pattern.permute.xlu0 26
        %2917 = vperm.xlu0 %2916, %v329
        %v2918 = vpop.permute.xlu0 %2917
        %v2920 = vmul.f32 %v2461, %v2914
        %v2921 = vmul.f32 %v2462, %v2914
        %v2922 = vmul.f32 %v2463, %v2918
        %v2923 = vmul.f32 %v2464, %v2918
        %v2924 = vadd.f32 %v2908, %v2920
        %v2925 = vadd.f32 %v2909, %v2921
        %v2926 = vadd.f32 %v2910, %v2922
        %v2927 = vadd.f32 %v2911, %v2923
        %2928 = vrot.lane.b32.xlu0 %v2924, 111
        %v2929 = vpop.permute.xlu0 %2928
        %2930 = vrot.lane.b32.xlu0 %v2926, 111
        %v2931 = vpop.permute.xlu0 %2930
        %2932 = vrot.lane.b32.xlu0 %v2925, 111
        %v2933 = vpop.permute.xlu0 %2932
        %2934 = vrot.lane.b32.xlu0 %v2927, 111
        %v2935 = vpop.permute.xlu0 %2934
        %vm2936 = vcmp.lt.s32.totalorder %v2504, 111
        %v2937 = vsel %vm2936, %v2929, %v2933
        %v2938 = vsel %vm2936, %v2931, %v2935
        %v2939 = vsel %vm2936, %v2933, %v2929
        %v2940 = vsel %vm2936, %v2935, %v2931
        %v2941 = vlaneseq
        %v2942 = vshrl.u32 %v2941, 7
        %v2943 = vsub.s32 0, %v2942
        %v2944 = vrot.slane %v336, %v2943
        %v2945 = vlaneseq
        %v2946 = vshrl.u32 %v2945, 7
        %v2947 = vsub.s32 0, %v2946
        %v2948 = vrot.slane %v337, %v2947
        %v2949 = vmul.f32 %v2937, %v2944
        %v2950 = vmul.f32 %v2939, %v2948
        %v2951 = vmul.f32 %v2938, %v2944
        %v2952 = vmul.f32 %v2940, %v2948
        %v2953 = vadd.f32 %v2896, %v2949
        %v2954 = vadd.f32 %v2897, %v2950
        %v2955 = vadd.f32 %v2898, %v2951
        %v2956 = vadd.f32 %v2899, %v2952
        %2958 = vset.pattern.permute.xlu0 0
        %2959 = vperm.xlu0 %2958, %v330
        %v2960 = vpop.permute.xlu0 %2959
        %2963 = vset.pattern.permute.xlu0 0
        %2964 = vperm.xlu0 %2963, %v331
        %v2965 = vpop.permute.xlu0 %2964
        %v2967 = vadd.f32 %v2953, %v2960
        %v2968 = vadd.f32 %v2954, %v2960
        %v2969 = vadd.f32 %v2955, %v2965
        %v2970 = vadd.f32 %v2956, %v2965
        %v2971 = vmax.f32 %v2967, 0.0
        %v2972 = vmax.f32 %v2968, 0.0
        %v2973 = vmax.f32 %v2969, 0.0
        %v2974 = vmax.f32 %v2970, 0.0
        %2976 = vset.pattern.permute.xlu0 0
        %2977 = vperm.xlu0 %2976, %v333
        %v2978 = vpop.permute.xlu0 %2977
        %vm2980 = vcmask 130048
        %v2982 = vsel %vm2980, %v332, 0
        %v2984 = vand.u32 %v2972, 4294901760
        %2985 = vmatprep.subr.mxu0 %v2984
        %v2986 = vand.u32 %v2971, 4294901760
        %2987 = vmatpush1.msra.mxu0 %v2986
        %v2988 = vand.u32 %v2974, 4294901760
        %2989 = vmatprep.subr.mxu0 %v2988
        %v2990 = vand.u32 %v2973, 4294901760
        %2991 = vmatpush1.msra.mxu0 %v2990
        %2992 = vmatprep.subr.mxu0 0.0
        %2993 = vmatpush1.msra.mxu0 0.0
        %2994 = vmatprep.subr.mxu0 0.0
        %2995 = vmatpush1.msra.mxu0 0.0
        %2996 = vmatprep.subr.mxu0 0.0
        %2997 = vmatpush1.msra.mxu0 0.0
        %2998 = vmatprep.subr.mxu0 0.0
        %2999 = vmatpush1.msra.mxu0 0.0
        %3000 = vmatprep.subr.mxu0 0.0
        %3001 = vmatpush1.msra.mxu0 0.0
        %3002 = vmatprep.subr.mxu0 0.0
        %3003 = vmatpush1.msra.mxu0 0.0
        %3004 = vmatprep.subr.mxu0 0.0
        %3005 = vmatpush1.msra.mxu0 0.0
        %3006 = vmatprep.subr.mxu0 0.0
        %3007 = vmatpush1.msra.mxu0 0.0
        %3008 = vmatprep.subr.mxu0 0.0
        %3009 = vmatpush1.msra.mxu0 0.0
        %3010 = vmatprep.subr.mxu0 0.0
        %3011 = vmatpush1.msra.mxu0 0.0
        %3012 = vmatprep.subr.mxu0 0.0
        %3013 = vmatpush1.msra.mxu0 0.0
        %3014 = vmatprep.subr.mxu0 0.0
        %3015 = vmatpush1.msra.mxu0 0.0
        %3016 = vmatprep.subr.mxu0 0.0
        %3017 = vmatpush1.msra.mxu0 0.0
        %3018 = vmatprep.subr.mxu0 0.0
        %3019 = vmatpush1.msra.mxu0 0.0
        %3020 = vmatprep.subr.mxu0 0.0
        %3021 = vmatpush1.msra.mxu0 0.0
        %3022 = vmatprep.subr.mxu0 0.0
        %3023 = vmatpush1.msra.mxu0 0.0
        %3024 = vmatprep.subr.mxu0 0.0
        %3025 = vmatpush1.msra.mxu0 0.0
        %3026 = vmatprep.subr.mxu0 0.0
        %3027 = vmatpush1.msra.mxu0 0.0
        %3028 = vmatprep.subr.mxu0 0.0
        %3029 = vmatpush1.msra.mxu0 0.0
        %3030 = vmatprep.subr.mxu0 0.0
        %3031 = vmatpush1.msra.mxu0 0.0
        %3032 = vmatprep.subr.mxu0 0.0
        %3033 = vmatpush1.msra.mxu0 0.0
        %3034 = vmatprep.subr.mxu0 0.0
        %3035 = vmatpush1.msra.mxu0 0.0
        %3036 = vmatprep.subr.mxu0 0.0
        %3037 = vmatpush1.msra.mxu0 0.0
        %3038 = vmatprep.subr.mxu0 0.0
        %3039 = vmatpush1.msra.mxu0 0.0
        %3040 = vmatprep.subr.mxu0 0.0
        %3041 = vmatpush1.msra.mxu0 0.0
        %3042 = vmatprep.subr.mxu0 0.0
        %3043 = vmatpush1.msra.mxu0 0.0
        %3044 = vmatprep.subr.mxu0 0.0
        %3045 = vmatpush1.msra.mxu0 0.0
        %3046 = vmatprep.subr.mxu0 0.0
        %3047 = vmatpush1.msra.mxu0 0.0
        %3048 = vmatprep.subr.mxu0 0.0
        %3049 = vmatpush1.msra.mxu0 0.0
        %3050 = vmatprep.subr.mxu0 0.0
        %3051 = vmatpush1.msra.mxu0 0.0
        %3052 = vmatprep.mubr.f32.mxu0 0.0
        %v3053 = vand.u32 %v2982, 4294901760
        %v3054 = vsub.f32 %v2982, %v3053
        %v3055 = vand.u32 %v3054, 4294901760
        %v3056 = vsub.f32 %v3054, %v3055
        %v3057 = vand.u32 %v3056, 4294901760
        %3058 = vmatmul.mubr.f32.gmra.mrb[0].mxu0 %v3057
        %v3059 = vpop.f32.mrb[0].mxu0
        %v3060 = vadd.f32 %v2978, %v3059
        %v3061 = vpop.f32.mrb[0].mxu0
        %v3062 = vadd.f32 %v2978, %v3061
        %3063 = vdwg.mxu0
        %v3064 = vand.u32 %v2972, 4294901760
        %v3065 = vsub.f32 %v2972, %v3064
        %v3066 = vand.u32 %v3065, 4294901760
        %v3067 = vsub.f32 %v3065, %v3066
        %v3068 = vand.u32 %v3067, 4294901760
        %3069 = vmatprep.subr.mxu0 %v3068
        %v3070 = vand.u32 %v2971, 4294901760
        %v3071 = vsub.f32 %v2971, %v3070
        %v3072 = vand.u32 %v3071, 4294901760
        %v3073 = vsub.f32 %v3071, %v3072
        %v3074 = vand.u32 %v3073, 4294901760
        %3075 = vmatpush1.msra.mxu0 %v3074
        %v3076 = vand.u32 %v2974, 4294901760
        %v3077 = vsub.f32 %v2974, %v3076
        %v3078 = vand.u32 %v3077, 4294901760
        %v3079 = vsub.f32 %v3077, %v3078
        %v3080 = vand.u32 %v3079, 4294901760
        %3081 = vmatprep.subr.mxu0 %v3080
        %v3082 = vand.u32 %v2973, 4294901760
        %v3083 = vsub.f32 %v2973, %v3082
        %v3084 = vand.u32 %v3083, 4294901760
        %v3085 = vsub.f32 %v3083, %v3084
        %v3086 = vand.u32 %v3085, 4294901760
        %3087 = vmatpush1.msra.mxu0 %v3086
        %3088 = vmatprep.subr.mxu0 0.0
        %3089 = vmatpush1.msra.mxu0 0.0
        %3090 = vmatprep.subr.mxu0 0.0
        %3091 = vmatpush1.msra.mxu0 0.0
        %3092 = vmatprep.subr.mxu0 0.0
        %3093 = vmatpush1.msra.mxu0 0.0
        %3094 = vmatprep.subr.mxu0 0.0
        %3095 = vmatpush1.msra.mxu0 0.0
        %3096 = vmatprep.subr.mxu0 0.0
        %3097 = vmatpush1.msra.mxu0 0.0
        %3098 = vmatprep.subr.mxu0 0.0
        %3099 = vmatpush1.msra.mxu0 0.0
        %3100 = vmatprep.subr.mxu0 0.0
        %3101 = vmatpush1.msra.mxu0 0.0
        %3102 = vmatprep.subr.mxu0 0.0
        %3103 = vmatpush1.msra.mxu0 0.0
        %3104 = vmatprep.subr.mxu0 0.0
        %3105 = vmatpush1.msra.mxu0 0.0
        %3106 = vmatprep.subr.mxu0 0.0
        %3107 = vmatpush1.msra.mxu0 0.0
        %3108 = vmatprep.subr.mxu0 0.0
        %3109 = vmatpush1.msra.mxu0 0.0
        %3110 = vmatprep.subr.mxu0 0.0
        %3111 = vmatpush1.msra.mxu0 0.0
        %3112 = vmatprep.subr.mxu0 0.0
        %3113 = vmatpush1.msra.mxu0 0.0
        %3114 = vmatprep.subr.mxu0 0.0
        %3115 = vmatpush1.msra.mxu0 0.0
        %3116 = vmatprep.subr.mxu0 0.0
        %3117 = vmatpush1.msra.mxu0 0.0
        %3118 = vmatprep.subr.mxu0 0.0
        %3119 = vmatpush1.msra.mxu0 0.0
        %3120 = vmatprep.subr.mxu0 0.0
        %3121 = vmatpush1.msra.mxu0 0.0
        %3122 = vmatprep.subr.mxu0 0.0
        %3123 = vmatpush1.msra.mxu0 0.0
        %3124 = vmatprep.subr.mxu0 0.0
        %3125 = vmatpush1.msra.mxu0 0.0
        %3126 = vmatprep.subr.mxu0 0.0
        %3127 = vmatpush1.msra.mxu0 0.0
        %3128 = vmatprep.subr.mxu0 0.0
        %3129 = vmatpush1.msra.mxu0 0.0
        %3130 = vmatprep.subr.mxu0 0.0
        %3131 = vmatpush1.msra.mxu0 0.0
        %3132 = vmatprep.subr.mxu0 0.0
        %3133 = vmatpush1.msra.mxu0 0.0
        %3134 = vmatprep.subr.mxu0 0.0
        %3135 = vmatpush1.msra.mxu0 0.0
        %3136 = vmatprep.subr.mxu0 0.0
        %3137 = vmatpush1.msra.mxu0 0.0
        %3138 = vmatprep.subr.mxu0 0.0
        %3139 = vmatpush1.msra.mxu0 0.0
        %3140 = vmatprep.subr.mxu0 0.0
        %3141 = vmatpush1.msra.mxu0 0.0
        %3142 = vmatprep.subr.mxu0 0.0
        %3143 = vmatpush1.msra.mxu0 0.0
        %3144 = vmatprep.subr.mxu0 0.0
        %3145 = vmatpush1.msra.mxu0 0.0
        %3146 = vmatprep.subr.mxu0 0.0
        %3147 = vmatpush1.msra.mxu0 0.0
        %3148 = vmatprep.mubr.f32.mxu0 0.0
        %v3149 = vand.u32 %v2982, 4294901760
        %3150 = vmatmul.mubr.f32.gmra.mrb[0].mxu0 %v3149
        %v3151 = vpop.f32.mrb[0].mxu0
        %v3152 = vadd.f32 %v3060, %v3151
        %v3153 = vpop.f32.mrb[0].mxu0
        %v3154 = vadd.f32 %v3062, %v3153
        %3155 = vdwg.mxu0
        %v3156 = vand.u32 %v2972, 4294901760
        %v3157 = vsub.f32 %v2972, %v3156
        %3158 = vmatprep.subr.mxu0 %v3157
        %v3159 = vand.u32 %v2971, 4294901760
        %v3160 = vsub.f32 %v2971, %v3159
        %3161 = vmatpush1.msra.mxu0 %v3160
        %v3162 = vand.u32 %v2974, 4294901760
        %v3163 = vsub.f32 %v2974, %v3162
        %3164 = vmatprep.subr.mxu0 %v3163
        %v3165 = vand.u32 %v2973, 4294901760
        %v3166 = vsub.f32 %v2973, %v3165
        %3167 = vmatpush1.msra.mxu0 %v3166
        %3168 = vmatprep.subr.mxu0 0.0
        %3169 = vmatpush1.msra.mxu0 0.0
        %3170 = vmatprep.subr.mxu0 0.0
        %3171 = vmatpush1.msra.mxu0 0.0
        %3172 = vmatprep.subr.mxu0 0.0
        %3173 = vmatpush1.msra.mxu0 0.0
        %3174 = vmatprep.subr.mxu0 0.0
        %3175 = vmatpush1.msra.mxu0 0.0
        %3176 = vmatprep.subr.mxu0 0.0
        %3177 = vmatpush1.msra.mxu0 0.0
        %3178 = vmatprep.subr.mxu0 0.0
        %3179 = vmatpush1.msra.mxu0 0.0
        %3180 = vmatprep.subr.mxu0 0.0
        %3181 = vmatpush1.msra.mxu0 0.0
        %3182 = vmatprep.subr.mxu0 0.0
        %3183 = vmatpush1.msra.mxu0 0.0
        %3184 = vmatprep.subr.mxu0 0.0
        %3185 = vmatpush1.msra.mxu0 0.0
        %3186 = vmatprep.subr.mxu0 0.0
        %3187 = vmatpush1.msra.mxu0 0.0
        %3188 = vmatprep.subr.mxu0 0.0
        %3189 = vmatpush1.msra.mxu0 0.0
        %3190 = vmatprep.subr.mxu0 0.0
        %3191 = vmatpush1.msra.mxu0 0.0
        %3192 = vmatprep.subr.mxu0 0.0
        %3193 = vmatpush1.msra.mxu0 0.0
        %3194 = vmatprep.subr.mxu0 0.0
        %3195 = vmatpush1.msra.mxu0 0.0
        %3196 = vmatprep.subr.mxu0 0.0
        %3197 = vmatpush1.msra.mxu0 0.0
        %3198 = vmatprep.subr.mxu0 0.0
        %3199 = vmatpush1.msra.mxu0 0.0
        %3200 = vmatprep.subr.mxu0 0.0
        %3201 = vmatpush1.msra.mxu0 0.0
        %3202 = vmatprep.subr.mxu0 0.0
        %3203 = vmatpush1.msra.mxu0 0.0
        %3204 = vmatprep.subr.mxu0 0.0
        %3205 = vmatpush1.msra.mxu0 0.0
        %3206 = vmatprep.subr.mxu0 0.0
        %3207 = vmatpush1.msra.mxu0 0.0
        %3208 = vmatprep.subr.mxu0 0.0
        %3209 = vmatpush1.msra.mxu0 0.0
        %3210 = vmatprep.subr.mxu0 0.0
        %3211 = vmatpush1.msra.mxu0 0.0
        %3212 = vmatprep.subr.mxu0 0.0
        %3213 = vmatpush1.msra.mxu0 0.0
        %3214 = vmatprep.subr.mxu0 0.0
        %3215 = vmatpush1.msra.mxu0 0.0
        %3216 = vmatprep.subr.mxu0 0.0
        %3217 = vmatpush1.msra.mxu0 0.0
        %3218 = vmatprep.subr.mxu0 0.0
        %3219 = vmatpush1.msra.mxu0 0.0
        %3220 = vmatprep.subr.mxu0 0.0
        %3221 = vmatpush1.msra.mxu0 0.0
        %3222 = vmatprep.subr.mxu0 0.0
        %3223 = vmatpush1.msra.mxu0 0.0
        %3224 = vmatprep.subr.mxu0 0.0
        %3225 = vmatpush1.msra.mxu0 0.0
        %3226 = vmatprep.subr.mxu0 0.0
        %3227 = vmatpush1.msra.mxu0 0.0
        %3228 = vmatprep.mubr.f32.mxu0 0.0
        %v3229 = vand.u32 %v2982, 4294901760
        %v3230 = vsub.f32 %v2982, %v3229
        %3231 = vmatmul.mubr.f32.gmra.mrb[0].mxu0 %v3230
        %v3232 = vpop.f32.mrb[0].mxu0
        %v3233 = vadd.f32 %v3152, %v3232
        %v3234 = vpop.f32.mrb[0].mxu0
        %v3235 = vadd.f32 %v3154, %v3234
        %3236 = vdwg.mxu0
        %v3237 = vand.u32 %v2972, 4294901760
        %3238 = vmatprep.subr.mxu0 %v3237
        %v3239 = vand.u32 %v2971, 4294901760
        %3240 = vmatpush1.msra.mxu0 %v3239
        %v3241 = vand.u32 %v2974, 4294901760
        %3242 = vmatprep.subr.mxu0 %v3241
        %v3243 = vand.u32 %v2973, 4294901760
        %3244 = vmatpush1.msra.mxu0 %v3243
        %3245 = vmatprep.subr.mxu0 0.0
        %3246 = vmatpush1.msra.mxu0 0.0
        %3247 = vmatprep.subr.mxu0 0.0
        %3248 = vmatpush1.msra.mxu0 0.0
        %3249 = vmatprep.subr.mxu0 0.0
        %3250 = vmatpush1.msra.mxu0 0.0
        %3251 = vmatprep.subr.mxu0 0.0
        %3252 = vmatpush1.msra.mxu0 0.0
        %3253 = vmatprep.subr.mxu0 0.0
        %3254 = vmatpush1.msra.mxu0 0.0
        %3255 = vmatprep.subr.mxu0 0.0
        %3256 = vmatpush1.msra.mxu0 0.0
        %3257 = vmatprep.subr.mxu0 0.0
        %3258 = vmatpush1.msra.mxu0 0.0
        %3259 = vmatprep.subr.mxu0 0.0
        %3260 = vmatpush1.msra.mxu0 0.0
        %3261 = vmatprep.subr.mxu0 0.0
        %3262 = vmatpush1.msra.mxu0 0.0
        %3263 = vmatprep.subr.mxu0 0.0
        %3264 = vmatpush1.msra.mxu0 0.0
        %3265 = vmatprep.subr.mxu0 0.0
        %3266 = vmatpush1.msra.mxu0 0.0
        %3267 = vmatprep.subr.mxu0 0.0
        %3268 = vmatpush1.msra.mxu0 0.0
        %3269 = vmatprep.subr.mxu0 0.0
        %3270 = vmatpush1.msra.mxu0 0.0
        %3271 = vmatprep.subr.mxu0 0.0
        %3272 = vmatpush1.msra.mxu0 0.0
        %3273 = vmatprep.subr.mxu0 0.0
        %3274 = vmatpush1.msra.mxu0 0.0
        %3275 = vmatprep.subr.mxu0 0.0
        %3276 = vmatpush1.msra.mxu0 0.0
        %3277 = vmatprep.subr.mxu0 0.0
        %3278 = vmatpush1.msra.mxu0 0.0
        %3279 = vmatprep.subr.mxu0 0.0
        %3280 = vmatpush1.msra.mxu0 0.0
        %3281 = vmatprep.subr.mxu0 0.0
        %3282 = vmatpush1.msra.mxu0 0.0
        %3283 = vmatprep.subr.mxu0 0.0
        %3284 = vmatpush1.msra.mxu0 0.0
        %3285 = vmatprep.subr.mxu0 0.0
        %3286 = vmatpush1.msra.mxu0 0.0
        %3287 = vmatprep.subr.mxu0 0.0
        %3288 = vmatpush1.msra.mxu0 0.0
        %3289 = vmatprep.subr.mxu0 0.0
        %3290 = vmatpush1.msra.mxu0 0.0
        %3291 = vmatprep.subr.mxu0 0.0
        %3292 = vmatpush1.msra.mxu0 0.0
        %3293 = vmatprep.subr.mxu0 0.0
        %3294 = vmatpush1.msra.mxu0 0.0
        %3295 = vmatprep.subr.mxu0 0.0
        %3296 = vmatpush1.msra.mxu0 0.0
        %3297 = vmatprep.subr.mxu0 0.0
        %3298 = vmatpush1.msra.mxu0 0.0
        %3299 = vmatprep.subr.mxu0 0.0
        %3300 = vmatpush1.msra.mxu0 0.0
        %3301 = vmatprep.subr.mxu0 0.0
        %3302 = vmatpush1.msra.mxu0 0.0
        %3303 = vmatprep.subr.mxu0 0.0
        %3304 = vmatpush1.msra.mxu0 0.0
        %3305 = vmatprep.mubr.f32.mxu0 0.0
        %v3306 = vand.u32 %v2982, 4294901760
        %v3307 = vsub.f32 %v2982, %v3306
        %v3308 = vand.u32 %v3307, 4294901760
        %3309 = vmatmul.mubr.f32.gmra.mrb[0].mxu0 %v3308
        %v3310 = vpop.f32.mrb[0].mxu0
        %v3311 = vadd.f32 %v3233, %v3310
        %v3312 = vpop.f32.mrb[0].mxu0
        %v3313 = vadd.f32 %v3235, %v3312
        %3314 = vdwg.mxu0
        %v3315 = vand.u32 %v2972, 4294901760
        %v3316 = vsub.f32 %v2972, %v3315
        %v3317 = vand.u32 %v3316, 4294901760
        %3318 = vmatprep.subr.mxu0 %v3317
        %v3319 = vand.u32 %v2971, 4294901760
        %v3320 = vsub.f32 %v2971, %v3319
        %v3321 = vand.u32 %v3320, 4294901760
        %3322 = vmatpush1.msra.mxu0 %v3321
        %v3323 = vand.u32 %v2974, 4294901760
        %v3324 = vsub.f32 %v2974, %v3323
        %v3325 = vand.u32 %v3324, 4294901760
        %3326 = vmatprep.subr.mxu0 %v3325
        %v3327 = vand.u32 %v2973, 4294901760
        %v3328 = vsub.f32 %v2973, %v3327
        %v3329 = vand.u32 %v3328, 4294901760
        %3330 = vmatpush1.msra.mxu0 %v3329
        %3331 = vmatprep.subr.mxu0 0.0
        %3332 = vmatpush1.msra.mxu0 0.0
        %3333 = vmatprep.subr.mxu0 0.0
        %3334 = vmatpush1.msra.mxu0 0.0
        %3335 = vmatprep.subr.mxu0 0.0
        %3336 = vmatpush1.msra.mxu0 0.0
        %3337 = vmatprep.subr.mxu0 0.0
        %3338 = vmatpush1.msra.mxu0 0.0
        %3339 = vmatprep.subr.mxu0 0.0
        %3340 = vmatpush1.msra.mxu0 0.0
        %3341 = vmatprep.subr.mxu0 0.0
        %3342 = vmatpush1.msra.mxu0 0.0
        %3343 = vmatprep.subr.mxu0 0.0
        %3344 = vmatpush1.msra.mxu0 0.0
        %3345 = vmatprep.subr.mxu0 0.0
        %3346 = vmatpush1.msra.mxu0 0.0
        %3347 = vmatprep.subr.mxu0 0.0
        %3348 = vmatpush1.msra.mxu0 0.0
        %3349 = vmatprep.subr.mxu0 0.0
        %3350 = vmatpush1.msra.mxu0 0.0
        %3351 = vmatprep.subr.mxu0 0.0
        %3352 = vmatpush1.msra.mxu0 0.0
        %3353 = vmatprep.subr.mxu0 0.0
        %3354 = vmatpush1.msra.mxu0 0.0
        %3355 = vmatprep.subr.mxu0 0.0
        %3356 = vmatpush1.msra.mxu0 0.0
        %3357 = vmatprep.subr.mxu0 0.0
        %3358 = vmatpush1.msra.mxu0 0.0
        %3359 = vmatprep.subr.mxu0 0.0
        %3360 = vmatpush1.msra.mxu0 0.0
        %3361 = vmatprep.subr.mxu0 0.0
        %3362 = vmatpush1.msra.mxu0 0.0
        %3363 = vmatprep.subr.mxu0 0.0
        %3364 = vmatpush1.msra.mxu0 0.0
        %3365 = vmatprep.subr.mxu0 0.0
        %3366 = vmatpush1.msra.mxu0 0.0
        %3367 = vmatprep.subr.mxu0 0.0
        %3368 = vmatpush1.msra.mxu0 0.0
        %3369 = vmatprep.subr.mxu0 0.0
        %3370 = vmatpush1.msra.mxu0 0.0
        %3371 = vmatprep.subr.mxu0 0.0
        %3372 = vmatpush1.msra.mxu0 0.0
        %3373 = vmatprep.subr.mxu0 0.0
        %3374 = vmatpush1.msra.mxu0 0.0
        %3375 = vmatprep.subr.mxu0 0.0
        %3376 = vmatpush1.msra.mxu0 0.0
        %3377 = vmatprep.subr.mxu0 0.0
        %3378 = vmatpush1.msra.mxu0 0.0
        %3379 = vmatprep.subr.mxu0 0.0
        %3380 = vmatpush1.msra.mxu0 0.0
        %3381 = vmatprep.subr.mxu0 0.0
        %3382 = vmatpush1.msra.mxu0 0.0
        %3383 = vmatprep.subr.mxu0 0.0
        %3384 = vmatpush1.msra.mxu0 0.0
        %3385 = vmatprep.subr.mxu0 0.0
        %3386 = vmatpush1.msra.mxu0 0.0
        %3387 = vmatprep.subr.mxu0 0.0
        %3388 = vmatpush1.msra.mxu0 0.0
        %3389 = vmatprep.subr.mxu0 0.0
        %3390 = vmatpush1.msra.mxu0 0.0
        %3391 = vmatprep.mubr.f32.mxu0 0.0
        %v3392 = vand.u32 %v2982, 4294901760
        %3393 = vmatmul.mubr.f32.gmra.mrb[0].mxu0 %v3392
        %v3394 = vpop.f32.mrb[0].mxu0
        %v3395 = vadd.f32 %v3311, %v3394
        %v3396 = vpop.f32.mrb[0].mxu0
        %v3397 = vadd.f32 %v3313, %v3396
        %3398 = vdwg.mxu0
        %v3399 = vand.u32 %v2972, 4294901760
        %3400 = vmatprep.subr.mxu0 %v3399
        %v3401 = vand.u32 %v2971, 4294901760
        %3402 = vmatpush1.msra.mxu0 %v3401
        %v3403 = vand.u32 %v2974, 4294901760
        %3404 = vmatprep.subr.mxu0 %v3403
        %v3405 = vand.u32 %v2973, 4294901760
        %3406 = vmatpush1.msra.mxu0 %v3405
        %3407 = vmatprep.subr.mxu0 0.0
        %3408 = vmatpush1.msra.mxu0 0.0
        %3409 = vmatprep.subr.mxu0 0.0
        %3410 = vmatpush1.msra.mxu0 0.0
        %3411 = vmatprep.subr.mxu0 0.0
        %3412 = vmatpush1.msra.mxu0 0.0
        %3413 = vmatprep.subr.mxu0 0.0
        %3414 = vmatpush1.msra.mxu0 0.0
        %3415 = vmatprep.subr.mxu0 0.0
        %3416 = vmatpush1.msra.mxu0 0.0
        %3417 = vmatprep.subr.mxu0 0.0
        %3418 = vmatpush1.msra.mxu0 0.0
        %3419 = vmatprep.subr.mxu0 0.0
        %3420 = vmatpush1.msra.mxu0 0.0
        %3421 = vmatprep.subr.mxu0 0.0
        %3422 = vmatpush1.msra.mxu0 0.0
        %3423 = vmatprep.subr.mxu0 0.0
        %3424 = vmatpush1.msra.mxu0 0.0
        %3425 = vmatprep.subr.mxu0 0.0
        %3426 = vmatpush1.msra.mxu0 0.0
        %3427 = vmatprep.subr.mxu0 0.0
        %3428 = vmatpush1.msra.mxu0 0.0
        %3429 = vmatprep.subr.mxu0 0.0
        %3430 = vmatpush1.msra.mxu0 0.0
        %3431 = vmatprep.subr.mxu0 0.0
        %3432 = vmatpush1.msra.mxu0 0.0
        %3433 = vmatprep.subr.mxu0 0.0
        %3434 = vmatpush1.msra.mxu0 0.0
        %3435 = vmatprep.subr.mxu0 0.0
        %3436 = vmatpush1.msra.mxu0 0.0
        %3437 = vmatprep.subr.mxu0 0.0
        %3438 = vmatpush1.msra.mxu0 0.0
        %3439 = vmatprep.subr.mxu0 0.0
        %3440 = vmatpush1.msra.mxu0 0.0
        %3441 = vmatprep.subr.mxu0 0.0
        %3442 = vmatpush1.msra.mxu0 0.0
        %3443 = vmatprep.subr.mxu0 0.0
        %3444 = vmatpush1.msra.mxu0 0.0
        %3445 = vmatprep.subr.mxu0 0.0
        %3446 = vmatpush1.msra.mxu0 0.0
        %3447 = vmatprep.subr.mxu0 0.0
        %3448 = vmatpush1.msra.mxu0 0.0
        %3449 = vmatprep.subr.mxu0 0.0
        %3450 = vmatpush1.msra.mxu0 0.0
        %3451 = vmatprep.subr.mxu0 0.0
        %3452 = vmatpush1.msra.mxu0 0.0
        %3453 = vmatprep.subr.mxu0 0.0
        %3454 = vmatpush1.msra.mxu0 0.0
        %3455 = vmatprep.subr.mxu0 0.0
        %3456 = vmatpush1.msra.mxu0 0.0
        %3457 = vmatprep.subr.mxu0 0.0
        %3458 = vmatpush1.msra.mxu0 0.0
        %3459 = vmatprep.subr.mxu0 0.0
        %3460 = vmatpush1.msra.mxu0 0.0
        %3461 = vmatprep.subr.mxu0 0.0
        %3462 = vmatpush1.msra.mxu0 0.0
        %3463 = vmatprep.subr.mxu0 0.0
        %3464 = vmatpush1.msra.mxu0 0.0
        %3465 = vmatprep.subr.mxu0 0.0
        %3466 = vmatpush1.msra.mxu0 0.0
        %3467 = vmatprep.mubr.f32.mxu0 0.0
        %v3468 = vand.u32 %v2982, 4294901760
        %3469 = vmatmul.mubr.f32.gmra.mrb[0].mxu0 %v3468
        %v3470 = vpop.f32.mrb[0].mxu0
        %v3471 = vadd.f32 %v3395, %v3470
        %v3472 = vpop.f32.mrb[0].mxu0
        %v3473 = vadd.f32 %v3397, %v3472
        %3474 = vdwg.mxu0
        %v3475 = vld [vmem:[%s291] sm:$0xff]
        %v3476 = vld [vmem:[%s291 + $0x8] sm:$0xff]
        %v3477 = vadd.f32 %v3471, %v3475
        %v3478 = vadd.f32 %v3473, %v3476
        %v3479 = vmax.f32 %v3477, 0.0
        %v3480 = vmax.f32 %v3478, 0.0
        %3481 = vst [vmem:[%s323] sm:$0xff] %v3479
        %3482 = vst [vmem:[%s323 + $0x8] sm:$0xff] %v3480
        %v3483 = vld [vmem:[#allocation2] sm:$0xff]
        %v3484 = vld [vmem:[#allocation2 + $0x8] sm:$0xff]
        %v3485 = vld [vmem:[#allocation2 + $0x10] sm:$0xff]
        %v3486 = vld [vmem:[#allocation2 + $0x18] sm:$0xff]
        %v3487 = vld [vmem:[%s1400] sm:$0xff]
        %v3488 = vld [vmem:[%s1400 + $0x8] sm:$0xff]
        %v3489 = vld [vmem:[%s1400 + $0x10] sm:$0xff]
        %v3490 = vld [vmem:[%s1400 + $0x18] sm:$0xff]
        %v3491 = vld [vmem:[%s1926] sm:$0xff]
        %v3492 = vld [vmem:[%s1926 + $0x8] sm:$0xff]
        %v3493 = vld [vmem:[%s1926 + $0x10] sm:$0xff]
        %v3494 = vld [vmem:[%s1926 + $0x18] sm:$0xff]
        %3495 = vset.pattern.permute.xlu0 0
        %3496 = vperm.xlu0 %3495, %v328
        %v3497 = vpop.permute.xlu0 %3496
        %3499 = vset.pattern.permute.xlu0 0
        %3500 = vperm.xlu0 %3499, %v329
        %v3501 = vpop.permute.xlu0 %3500
        %v3503 = vmul.f32 %v3483, %v3497
        %v3504 = vmul.f32 %v3484, %v3497
        %v3505 = vmul.f32 %v3485, %v3501
        %v3506 = vmul.f32 %v3486, %v3501
        %v3507 = vmul.f32 %v3487, %v2468
        %v3508 = vmul.f32 %v3488, %v2468
        %v3509 = vmul.f32 %v3489, %v2473
        %v3510 = vmul.f32 %v3490, %v2473
        %v3511 = vadd.f32 %v3503, %v3507
        %v3512 = vadd.f32 %v3504, %v3508
        %v3513 = vadd.f32 %v3505, %v3509
        %v3514 = vadd.f32 %v3506, %v3510
        %v3515 = vmul.f32 %v3491, %v2481
        %v3516 = vmul.f32 %v3492, %v2481
        %v3517 = vmul.f32 %v3493, %v2485
        %v3518 = vmul.f32 %v3494, %v2485
        %v3519 = vadd.f32 %v3511, %v3515
        %v3520 = vadd.f32 %v3512, %v3516
        %v3521 = vadd.f32 %v3513, %v3517
        %v3522 = vadd.f32 %v3514, %v3518
        %3523 = vrot.lane.b32.xlu0 %v3519, 17
        %v3524 = vpop.permute.xlu0 %3523
        %3525 = vrot.lane.b32.xlu0 %v3521, 17
        %v3526 = vpop.permute.xlu0 %3525
        %3527 = vrot.lane.b32.xlu0 %v3520, 17
        %v3528 = vpop.permute.xlu0 %3527
        %3529 = vrot.lane.b32.xlu0 %v3522, 17
        %v3530 = vpop.permute.xlu0 %3529
        %v3531 = vsel %vm2505, %v3524, %v3528
        %v3532 = vsel %vm2505, %v3526, %v3530
        %v3533 = vsel %vm2505, %v3528, %v3524
        %v3534 = vsel %vm2505, %v3530, %v3526
        %v3535 = vmul.f32 %v3533, %v2513
        %v3536 = vmul.f32 %v3531, %v2517
        %v3537 = vmul.f32 %v3534, %v2513
        %v3538 = vmul.f32 %v3532, %v2517
        %v3539 = vadd.f32 %v3535, 0.0
        %v3540 = vadd.f32 %v3536, 0.0
        %v3541 = vadd.f32 %v3537, 0.0
        %v3542 = vadd.f32 %v3538, 0.0
        %3543 = vset.pattern.permute.xlu0 1
        %3544 = vperm.xlu0 %3543, %v328
        %v3545 = vpop.permute.xlu0 %3544
        %3547 = vset.pattern.permute.xlu0 1
        %3548 = vperm.xlu0 %3547, %v329
        %v3549 = vpop.permute.xlu0 %3548
        %v3551 = vmul.f32 %v3483, %v3545
        %v3552 = vmul.f32 %v3484, %v3545
        %v3553 = vmul.f32 %v3485, %v3549
        %v3554 = vmul.f32 %v3486, %v3549
        %v3555 = vmul.f32 %v3487, %v2528
        %v3556 = vmul.f32 %v3488, %v2528
        %v3557 = vmul.f32 %v3489, %v2532
        %v3558 = vmul.f32 %v3490, %v2532
        %v3559 = vadd.f32 %v3551, %v3555
        %v3560 = vadd.f32 %v3552, %v3556
        %v3561 = vadd.f32 %v3553, %v3557
        %v3562 = vadd.f32 %v3554, %v3558
        %v3563 = vmul.f32 %v3491, %v2540
        %v3564 = vmul.f32 %v3492, %v2540
        %v3565 = vmul.f32 %v3493, %v2544
        %v3566 = vmul.f32 %v3494, %v2544
        %v3567 = vadd.f32 %v3559, %v3563
        %v3568 = vadd.f32 %v3560, %v3564
        %v3569 = vadd.f32 %v3561, %v3565
        %v3570 = vadd.f32 %v3562, %v3566
        %3571 = vrot.lane.b32.xlu0 %v3567, 16
        %v3572 = vpop.permute.xlu0 %3571
        %3573 = vrot.lane.b32.xlu0 %v3569, 16
        %v3574 = vpop.permute.xlu0 %3573
        %3575 = vrot.lane.b32.xlu0 %v3568, 16
        %v3576 = vpop.permute.xlu0 %3575
        %3577 = vrot.lane.b32.xlu0 %v3570, 16
        %v3578 = vpop.permute.xlu0 %3577
        %v3579 = vsel %vm2562, %v3572, %v3576
        %v3580 = vsel %vm2562, %v3574, %v3578
        %v3581 = vsel %vm2562, %v3576, %v3572
        %v3582 = vsel %vm2562, %v3578, %v3574
        %v3583 = vmul.f32 %v3581, %v2570
        %v3584 = vmul.f32 %v3579, %v2574
        %v3585 = vmul.f32 %v3582, %v2570
        %v3586 = vmul.f32 %v3580, %v2574
        %v3587 = vadd.f32 %v3539, %v3583
        %v3588 = vadd.f32 %v3540, %v3584
        %v3589 = vadd.f32 %v3541, %v3585
        %v3590 = vadd.f32 %v3542, %v3586
        %3591 = vset.pattern.permute.xlu0 2
        %3592 = vperm.xlu0 %3591, %v328
        %v3593 = vpop.permute.xlu0 %3592
        %3595 = vset.pattern.permute.xlu0 2
        %3596 = vperm.xlu0 %3595, %v329
        %v3597 = vpop.permute.xlu0 %3596
        %v3599 = vmul.f32 %v3483, %v3593
        %v3600 = vmul.f32 %v3484, %v3593
        %v3601 = vmul.f32 %v3485, %v3597
        %v3602 = vmul.f32 %v3486, %v3597
        %v3603 = vmul.f32 %v3487, %v2585
        %v3604 = vmul.f32 %v3488, %v2585
        %v3605 = vmul.f32 %v3489, %v2589
        %v3606 = vmul.f32 %v3490, %v2589
        %v3607 = vadd.f32 %v3599, %v3603
        %v3608 = vadd.f32 %v3600, %v3604
        %v3609 = vadd.f32 %v3601, %v3605
        %v3610 = vadd.f32 %v3602, %v3606
        %v3611 = vmul.f32 %v3491, %v2597
        %v3612 = vmul.f32 %v3492, %v2597
        %v3613 = vmul.f32 %v3493, %v2601
        %v3614 = vmul.f32 %v3494, %v2601
        %v3615 = vadd.f32 %v3607, %v3611
        %v3616 = vadd.f32 %v3608, %v3612
        %v3617 = vadd.f32 %v3609, %v3613
        %v3618 = vadd.f32 %v3610, %v3614
        %3619 = vrot.lane.b32.xlu0 %v3615, 15
        %v3620 = vpop.permute.xlu0 %3619
        %3621 = vrot.lane.b32.xlu0 %v3617, 15
        %v3622 = vpop.permute.xlu0 %3621
        %3623 = vrot.lane.b32.xlu0 %v3616, 15
        %v3624 = vpop.permute.xlu0 %3623
        %3625 = vrot.lane.b32.xlu0 %v3618, 15
        %v3626 = vpop.permute.xlu0 %3625
        %v3627 = vsel %vm2619, %v3620, %v3624
        %v3628 = vsel %vm2619, %v3622, %v3626
        %v3629 = vsel %vm2619, %v3624, %v3620
        %v3630 = vsel %vm2619, %v3626, %v3622
        %v3631 = vmul.f32 %v3629, %v2627
        %v3632 = vmul.f32 %v3627, %v2631
        %v3633 = vmul.f32 %v3630, %v2627
        %v3634 = vmul.f32 %v3628, %v2631
        %v3635 = vadd.f32 %v3587, %v3631
        %v3636 = vadd.f32 %v3588, %v3632
        %v3637 = vadd.f32 %v3589, %v3633
        %v3638 = vadd.f32 %v3590, %v3634
        %3639 = vset.pattern.permute.xlu0 3
        %3640 = vperm.xlu0 %3639, %v328
        %v3641 = vpop.permute.xlu0 %3640
        %3643 = vset.pattern.permute.xlu0 3
        %3644 = vperm.xlu0 %3643, %v329
        %v3645 = vpop.permute.xlu0 %3644
        %v3647 = vmul.f32 %v3483, %v3641
        %v3648 = vmul.f32 %v3484, %v3641
        %v3649 = vmul.f32 %v3485, %v3645
        %v3650 = vmul.f32 %v3486, %v3645
        %v3651 = vmul.f32 %v3487, %v2642
        %v3652 = vmul.f32 %v3488, %v2642
        %v3653 = vmul.f32 %v3489, %v2646
        %v3654 = vmul.f32 %v3490, %v2646
        %v3655 = vadd.f32 %v3647, %v3651
        %v3656 = vadd.f32 %v3648, %v3652
        %v3657 = vadd.f32 %v3649, %v3653
        %v3658 = vadd.f32 %v3650, %v3654
        %v3659 = vmul.f32 %v3491, %v2654
        %v3660 = vmul.f32 %v3492, %v2654
        %v3661 = vmul.f32 %v3493, %v2658
        %v3662 = vmul.f32 %v3494, %v2658
        %v3663 = vadd.f32 %v3655, %v3659
        %v3664 = vadd.f32 %v3656, %v3660
        %v3665 = vadd.f32 %v3657, %v3661
        %v3666 = vadd.f32 %v3658, %v3662
        %3667 = vrot.lane.b32.xlu0 %v3663, 1
        %v3668 = vpop.permute.xlu0 %3667
        %3669 = vrot.lane.b32.xlu0 %v3665, 1
        %v3670 = vpop.permute.xlu0 %3669
        %3671 = vrot.lane.b32.xlu0 %v3664, 1
        %v3672 = vpop.permute.xlu0 %3671
        %3673 = vrot.lane.b32.xlu0 %v3666, 1
        %v3674 = vpop.permute.xlu0 %3673
        %v3675 = vsel %vm2676, %v3668, %v3672
        %v3676 = vsel %vm2676, %v3670, %v3674
        %v3677 = vsel %vm2676, %v3672, %v3668
        %v3678 = vsel %vm2676, %v3674, %v3670
        %v3679 = vmul.f32 %v3677, %v2684
        %v3680 = vmul.f32 %v3675, %v2688
        %v3681 = vmul.f32 %v3678, %v2684
        %v3682 = vmul.f32 %v3676, %v2688
        %v3683 = vadd.f32 %v3635, %v3679
        %v3684 = vadd.f32 %v3636, %v3680
        %v3685 = vadd.f32 %v3637, %v3681
        %v3686 = vadd.f32 %v3638, %v3682
        %3687 = vset.pattern.permute.xlu0 4
        %3688 = vperm.xlu0 %3687, %v328
        %v3689 = vpop.permute.xlu0 %3688
        %3691 = vset.pattern.permute.xlu0 4
        %3692 = vperm.xlu0 %3691, %v329
        %v3693 = vpop.permute.xlu0 %3692
        %v3695 = vmul.f32 %v3483, %v3689
        %v3696 = vmul.f32 %v3484, %v3689
        %v3697 = vmul.f32 %v3485, %v3693
        %v3698 = vmul.f32 %v3486, %v3693
        %v3699 = vmul.f32 %v3487, %v2699
        %v3700 = vmul.f32 %v3488, %v2699
        %v3701 = vmul.f32 %v3489, %v2703
        %v3702 = vmul.f32 %v3490, %v2703
        %v3703 = vadd.f32 %v3695, %v3699
        %v3704 = vadd.f32 %v3696, %v3700
        %v3705 = vadd.f32 %v3697, %v3701
        %v3706 = vadd.f32 %v3698, %v3702
        %v3707 = vmul.f32 %v3491, %v2711
        %v3708 = vmul.f32 %v3492, %v2711
        %v3709 = vmul.f32 %v3493, %v2715
        %v3710 = vmul.f32 %v3494, %v2715
        %v3711 = vadd.f32 %v3703, %v3707
        %v3712 = vadd.f32 %v3704, %v3708
        %v3713 = vadd.f32 %v3705, %v3709
        %v3714 = vadd.f32 %v3706, %v3710
        %v3715 = vadd.f32 %v3683, %v3711
        %v3716 = vadd.f32 %v3684, %v3712
        %v3717 = vadd.f32 %v3685, %v3713
        %v3718 = vadd.f32 %v3686, %v3714
        %3719 = vset.pattern.permute.xlu0 5
        %3720 = vperm.xlu0 %3719, %v328
        %v3721 = vpop.permute.xlu0 %3720
        %3723 = vset.pattern.permute.xlu0 5
        %3724 = vperm.xlu0 %3723, %v329
        %v3725 = vpop.permute.xlu0 %3724
        %v3727 = vmul.f32 %v3483, %v3721
        %v3728 = vmul.f32 %v3484, %v3721
        %v3729 = vmul.f32 %v3485, %v3725
        %v3730 = vmul.f32 %v3486, %v3725
        %v3731 = vmul.f32 %v3487, %v2731
        %v3732 = vmul.f32 %v3488, %v2731
        %v3733 = vmul.f32 %v3489, %v2735
        %v3734 = vmul.f32 %v3490, %v2735
        %v3735 = vadd.f32 %v3727, %v3731
        %v3736 = vadd.f32 %v3728, %v3732
        %v3737 = vadd.f32 %v3729, %v3733
        %v3738 = vadd.f32 %v3730, %v3734
        %v3739 = vmul.f32 %v3491, %v2743
        %v3740 = vmul.f32 %v3492, %v2743
        %v3741 = vmul.f32 %v3493, %v2747
        %v3742 = vmul.f32 %v3494, %v2747
        %v3743 = vadd.f32 %v3735, %v3739
        %v3744 = vadd.f32 %v3736, %v3740
        %v3745 = vadd.f32 %v3737, %v3741
        %v3746 = vadd.f32 %v3738, %v3742
        %3747 = vrot.lane.b32.xlu0 %v3743, 127
        %v3748 = vpop.permute.xlu0 %3747
        %3749 = vrot.lane.b32.xlu0 %v3745, 127
        %v3750 = vpop.permute.xlu0 %3749
        %3751 = vrot.lane.b32.xlu0 %v3744, 127
        %v3752 = vpop.permute.xlu0 %3751
        %3753 = vrot.lane.b32.xlu0 %v3746, 127
        %v3754 = vpop.permute.xlu0 %3753
        %v3755 = vsel %vm2765, %v3748, %v3752
        %v3756 = vsel %vm2765, %v3750, %v3754
        %v3757 = vsel %vm2765, %v3752, %v3748
        %v3758 = vsel %vm2765, %v3754, %v3750
        %v3759 = vmul.f32 %v3755, %v2773
        %v3760 = vmul.f32 %v3757, %v2777
        %v3761 = vmul.f32 %v3756, %v2773
        %v3762 = vmul.f32 %v3758, %v2777
        %v3763 = vadd.f32 %v3715, %v3759
        %v3764 = vadd.f32 %v3716, %v3760
        %v3765 = vadd.f32 %v3717, %v3761
        %v3766 = vadd.f32 %v3718, %v3762
        %3767 = vset.pattern.permute.xlu0 6
        %3768 = vperm.xlu0 %3767, %v328
        %v3769 = vpop.permute.xlu0 %3768
        %3771 = vset.pattern.permute.xlu0 6
        %3772 = vperm.xlu0 %3771, %v329
        %v3773 = vpop.permute.xlu0 %3772
        %v3775 = vmul.f32 %v3483, %v3769
        %v3776 = vmul.f32 %v3484, %v3769
        %v3777 = vmul.f32 %v3485, %v3773
        %v3778 = vmul.f32 %v3486, %v3773
        %v3779 = vmul.f32 %v3487, %v2788
        %v3780 = vmul.f32 %v3488, %v2788
        %v3781 = vmul.f32 %v3489, %v2792
        %v3782 = vmul.f32 %v3490, %v2792
        %v3783 = vadd.f32 %v3775, %v3779
        %v3784 = vadd.f32 %v3776, %v3780
        %v3785 = vadd.f32 %v3777, %v3781
        %v3786 = vadd.f32 %v3778, %v3782
        %v3787 = vmul.f32 %v3491, %v2800
        %v3788 = vmul.f32 %v3492, %v2800
        %v3789 = vmul.f32 %v3493, %v2804
        %v3790 = vmul.f32 %v3494, %v2804
        %v3791 = vadd.f32 %v3783, %v3787
        %v3792 = vadd.f32 %v3784, %v3788
        %v3793 = vadd.f32 %v3785, %v3789
        %v3794 = vadd.f32 %v3786, %v3790
        %3795 = vrot.lane.b32.xlu0 %v3791, 113
        %v3796 = vpop.permute.xlu0 %3795
        %3797 = vrot.lane.b32.xlu0 %v3793, 113
        %v3798 = vpop.permute.xlu0 %3797
        %3799 = vrot.lane.b32.xlu0 %v3792, 113
        %v3800 = vpop.permute.xlu0 %3799
        %3801 = vrot.lane.b32.xlu0 %v3794, 113
        %v3802 = vpop.permute.xlu0 %3801
        %v3803 = vsel %vm2822, %v3796, %v3800
        %v3804 = vsel %vm2822, %v3798, %v3802
        %v3805 = vsel %vm2822, %v3800, %v3796
        %v3806 = vsel %vm2822, %v3802, %v3798
        %v3807 = vmul.f32 %v3803, %v2830
        %v3808 = vmul.f32 %v3805, %v2834
        %v3809 = vmul.f32 %v3804, %v2830
        %v3810 = vmul.f32 %v3806, %v2834
        %v3811 = vadd.f32 %v3763, %v3807
        %v3812 = vadd.f32 %v3764, %v3808
        %v3813 = vadd.f32 %v3765, %v3809
        %v3814 = vadd.f32 %v3766, %v3810
        %3815 = vset.pattern.permute.xlu0 7
        %3816 = vperm.xlu0 %3815, %v328
        %v3817 = vpop.permute.xlu0 %3816
        %3819 = vset.pattern.permute.xlu0 7
        %3820 = vperm.xlu0 %3819, %v329
        %v3821 = vpop.permute.xlu0 %3820
        %v3823 = vmul.f32 %v3483, %v3817
        %v3824 = vmul.f32 %v3484, %v3817
        %v3825 = vmul.f32 %v3485, %v3821
        %v3826 = vmul.f32 %v3486, %v3821
        %v3827 = vmul.f32 %v3487, %v2845
        %v3828 = vmul.f32 %v3488, %v2845
        %v3829 = vmul.f32 %v3489, %v2849
        %v3830 = vmul.f32 %v3490, %v2849
        %v3831 = vadd.f32 %v3823, %v3827
        %v3832 = vadd.f32 %v3824, %v3828
        %v3833 = vadd.f32 %v3825, %v3829
        %v3834 = vadd.f32 %v3826, %v3830
        %v3835 = vmul.f32 %v3491, %v2857
        %v3836 = vmul.f32 %v3492, %v2857
        %v3837 = vmul.f32 %v3493, %v2861
        %v3838 = vmul.f32 %v3494, %v2861
        %v3839 = vadd.f32 %v3831, %v3835
        %v3840 = vadd.f32 %v3832, %v3836
        %v3841 = vadd.f32 %v3833, %v3837
        %v3842 = vadd.f32 %v3834, %v3838
        %3843 = vrot.lane.b32.xlu0 %v3839, 112
        %v3844 = vpop.permute.xlu0 %3843
        %3845 = vrot.lane.b32.xlu0 %v3841, 112
        %v3846 = vpop.permute.xlu0 %3845
        %3847 = vrot.lane.b32.xlu0 %v3840, 112
        %v3848 = vpop.permute.xlu0 %3847
        %3849 = vrot.lane.b32.xlu0 %v3842, 112
        %v3850 = vpop.permute.xlu0 %3849
        %v3851 = vsel %vm2879, %v3844, %v3848
        %v3852 = vsel %vm2879, %v3846, %v3850
        %v3853 = vsel %vm2879, %v3848, %v3844
        %v3854 = vsel %vm2879, %v3850, %v3846
        %v3855 = vmul.f32 %v3851, %v2887
        %v3856 = vmul.f32 %v3853, %v2891
        %v3857 = vmul.f32 %v3852, %v2887
        %v3858 = vmul.f32 %v3854, %v2891
        %v3859 = vadd.f32 %v3811, %v3855
        %v3860 = vadd.f32 %v3812, %v3856
        %v3861 = vadd.f32 %v3813, %v3857
        %v3862 = vadd.f32 %v3814, %v3858
        %3863 = vset.pattern.permute.xlu0 8
        %3864 = vperm.xlu0 %3863, %v328
        %v3865 = vpop.permute.xlu0 %3864
        %3867 = vset.pattern.permute.xlu0 8
        %3868 = vperm.xlu0 %3867, %v329
        %v3869 = vpop.permute.xlu0 %3868
        %v3871 = vmul.f32 %v3483, %v3865
        %v3872 = vmul.f32 %v3484, %v3865
        %v3873 = vmul.f32 %v3485, %v3869
        %v3874 = vmul.f32 %v3486, %v3869
        %v3875 = vmul.f32 %v3487, %v2902
        %v3876 = vmul.f32 %v3488, %v2902
        %v3877 = vmul.f32 %v3489, %v2906
        %v3878 = vmul.f32 %v3490, %v2906
        %v3879 = vadd.f32 %v3871, %v3875
        %v3880 = vadd.f32 %v3872, %v3876
        %v3881 = vadd.f32 %v3873, %v3877
        %v3882 = vadd.f32 %v3874, %v3878
        %v3883 = vmul.f32 %v3491, %v2914
        %v3884 = vmul.f32 %v3492, %v2914
        %v3885 = vmul.f32 %v3493, %v2918
        %v3886 = vmul.f32 %v3494, %v2918
        %v3887 = vadd.f32 %v3879, %v3883
        %v3888 = vadd.f32 %v3880, %v3884
        %v3889 = vadd.f32 %v3881, %v3885
        %v3890 = vadd.f32 %v3882, %v3886
        %3891 = vrot.lane.b32.xlu0 %v3887, 111
        %v3892 = vpop.permute.xlu0 %3891
        %3893 = vrot.lane.b32.xlu0 %v3889, 111
        %v3894 = vpop.permute.xlu0 %3893
        %3895 = vrot.lane.b32.xlu0 %v3888, 111
        %v3896 = vpop.permute.xlu0 %3895
        %3897 = vrot.lane.b32.xlu0 %v3890, 111
        %v3898 = vpop.permute.xlu0 %3897
        %v3899 = vsel %vm2936, %v3892, %v3896
        %v3900 = vsel %vm2936, %v3894, %v3898
        %v3901 = vsel %vm2936, %v3896, %v3892
        %v3902 = vsel %vm2936, %v3898, %v3894
        %v3903 = vmul.f32 %v3899, %v2944
        %v3904 = vmul.f32 %v3901, %v2948
        %v3905 = vmul.f32 %v3900, %v2944
        %v3906 = vmul.f32 %v3902, %v2948
        %v3907 = vadd.f32 %v3859, %v3903
        %v3908 = vadd.f32 %v3860, %v3904
        %v3909 = vadd.f32 %v3861, %v3905
        %v3910 = vadd.f32 %v3862, %v3906
        %v3911 = vadd.f32 %v3907, %v2960
        %v3912 = vadd.f32 %v3908, %v2960
        %v3913 = vadd.f32 %v3909, %v2965
        %v3914 = vadd.f32 %v3910, %v2965
        %v3915 = vmax.f32 %v3911, 0.0
        %v3916 = vmax.f32 %v3912, 0.0
        %v3917 = vmax.f32 %v3913, 0.0
        %v3918 = vmax.f32 %v3914, 0.0
        %v3919 = vand.u32 %v3916, 4294901760
        %3920 = vmatprep.subr.mxu0 %v3919
        %v3921 = vand.u32 %v3915, 4294901760
        %3922 = vmatpush1.msra.mxu0 %v3921
        %v3923 = vand.u32 %v3918, 4294901760
        %3924 = vmatprep.subr.mxu0 %v3923
        %v3925 = vand.u32 %v3917, 4294901760
        %3926 = vmatpush1.msra.mxu0 %v3925
        %3927 = vmatprep.subr.mxu0 0.0
        %3928 = vmatpush1.msra.mxu0 0.0
        %3929 = vmatprep.subr.mxu0 0.0
        %3930 = vmatpush1.msra.mxu0 0.0
        %3931 = vmatprep.subr.mxu0 0.0
        %3932 = vmatpush1.msra.mxu0 0.0
        %3933 = vmatprep.subr.mxu0 0.0
        %3934 = vmatpush1.msra.mxu0 0.0
        %3935 = vmatprep.subr.mxu0 0.0
        %3936 = vmatpush1.msra.mxu0 0.0
        %3937 = vmatprep.subr.mxu0 0.0
        %3938 = vmatpush1.msra.mxu0 0.0
        %3939 = vmatprep.subr.mxu0 0.0
        %3940 = vmatpush1.msra.mxu0 0.0
        %3941 = vmatprep.subr.mxu0 0.0
        %3942 = vmatpush1.msra.mxu0 0.0
        %3943 = vmatprep.subr.mxu0 0.0
        %3944 = vmatpush1.msra.mxu0 0.0
        %3945 = vmatprep.subr.mxu0 0.0
        %3946 = vmatpush1.msra.mxu0 0.0
        %3947 = vmatprep.subr.mxu0 0.0
        %3948 = vmatpush1.msra.mxu0 0.0
        %3949 = vmatprep.subr.mxu0 0.0
        %3950 = vmatpush1.msra.mxu0 0.0
        %3951 = vmatprep.subr.mxu0 0.0
        %3952 = vmatpush1.msra.mxu0 0.0
        %3953 = vmatprep.subr.mxu0 0.0
        %3954 = vmatpush1.msra.mxu0 0.0
        %3955 = vmatprep.subr.mxu0 0.0
        %3956 = vmatpush1.msra.mxu0 0.0
        %3957 = vmatprep.subr.mxu0 0.0
        %3958 = vmatpush1.msra.mxu0 0.0
        %3959 = vmatprep.subr.mxu0 0.0
        %3960 = vmatpush1.msra.mxu0 0.0
        %3961 = vmatprep.subr.mxu0 0.0
        %3962 = vmatpush1.msra.mxu0 0.0
        %3963 = vmatprep.subr.mxu0 0.0
        %3964 = vmatpush1.msra.mxu0 0.0
        %3965 = vmatprep.subr.mxu0 0.0
        %3966 = vmatpush1.msra.mxu0 0.0
        %3967 = vmatprep.subr.mxu0 0.0
        %3968 = vmatpush1.msra.mxu0 0.0
        %3969 = vmatprep.subr.mxu0 0.0
        %3970 = vmatpush1.msra.mxu0 0.0
        %3971 = vmatprep.subr.mxu0 0.0
        %3972 = vmatpush1.msra.mxu0 0.0
        %3973 = vmatprep.subr.mxu0 0.0
        %3974 = vmatpush1.msra.mxu0 0.0
        %3975 = vmatprep.subr.mxu0 0.0
        %3976 = vmatpush1.msra.mxu0 0.0
        %3977 = vmatprep.subr.mxu0 0.0
        %3978 = vmatpush1.msra.mxu0 0.0
        %3979 = vmatprep.subr.mxu0 0.0
        %3980 = vmatpush1.msra.mxu0 0.0
        %3981 = vmatprep.subr.mxu0 0.0
        %3982 = vmatpush1.msra.mxu0 0.0
        %3983 = vmatprep.subr.mxu0 0.0
        %3984 = vmatpush1.msra.mxu0 0.0
        %3985 = vmatprep.subr.mxu0 0.0
        %3986 = vmatpush1.msra.mxu0 0.0
        %3987 = vmatprep.mubr.f32.mxu0 0.0
        %v3988 = vand.u32 %v2982, 4294901760
        %v3989 = vsub.f32 %v2982, %v3988
        %v3990 = vand.u32 %v3989, 4294901760
        %v3991 = vsub.f32 %v3989, %v3990
        %v3992 = vand.u32 %v3991, 4294901760
        %3993 = vmatmul.mubr.f32.gmra.mrb[0].mxu0 %v3992
        %v3994 = vpop.f32.mrb[0].mxu0
        %v3995 = vadd.f32 %v2978, %v3994
        %v3996 = vpop.f32.mrb[0].mxu0
        %v3997 = vadd.f32 %v2978, %v3996
        %3998 = vdwg.mxu0
        %v3999 = vand.u32 %v3916, 4294901760
        %v4000 = vsub.f32 %v3916, %v3999
        %v4001 = vand.u32 %v4000, 4294901760
        %v4002 = vsub.f32 %v4000, %v4001
        %v4003 = vand.u32 %v4002, 4294901760
        %4004 = vmatprep.subr.mxu0 %v4003
        %v4005 = vand.u32 %v3915, 4294901760
        %v4006 = vsub.f32 %v3915, %v4005
        %v4007 = vand.u32 %v4006, 4294901760
        %v4008 = vsub.f32 %v4006, %v4007
        %v4009 = vand.u32 %v4008, 4294901760
        %4010 = vmatpush1.msra.mxu0 %v4009
        %v4011 = vand.u32 %v3918, 4294901760
        %v4012 = vsub.f32 %v3918, %v4011
        %v4013 = vand.u32 %v4012, 4294901760
        %v4014 = vsub.f32 %v4012, %v4013
        %v4015 = vand.u32 %v4014, 4294901760
        %4016 = vmatprep.subr.mxu0 %v4015
        %v4017 = vand.u32 %v3917, 4294901760
        %v4018 = vsub.f32 %v3917, %v4017
        %v4019 = vand.u32 %v4018, 4294901760
        %v4020 = vsub.f32 %v4018, %v4019
        %v4021 = vand.u32 %v4020, 4294901760
        %4022 = vmatpush1.msra.mxu0 %v4021
        %4023 = vmatprep.subr.mxu0 0.0
        %4024 = vmatpush1.msra.mxu0 0.0
        %4025 = vmatprep.subr.mxu0 0.0
        %4026 = vmatpush1.msra.mxu0 0.0
        %4027 = vmatprep.subr.mxu0 0.0
        %4028 = vmatpush1.msra.mxu0 0.0
        %4029 = vmatprep.subr.mxu0 0.0
        %4030 = vmatpush1.msra.mxu0 0.0
        %4031 = vmatprep.subr.mxu0 0.0
        %4032 = vmatpush1.msra.mxu0 0.0
        %4033 = vmatprep.subr.mxu0 0.0
        %4034 = vmatpush1.msra.mxu0 0.0
        %4035 = vmatprep.subr.mxu0 0.0
        %4036 = vmatpush1.msra.mxu0 0.0
        %4037 = vmatprep.subr.mxu0 0.0
        %4038 = vmatpush1.msra.mxu0 0.0
        %4039 = vmatprep.subr.mxu0 0.0
        %4040 = vmatpush1.msra.mxu0 0.0
        %4041 = vmatprep.subr.mxu0 0.0
        %4042 = vmatpush1.msra.mxu0 0.0
        %4043 = vmatprep.subr.mxu0 0.0
        %4044 = vmatpush1.msra.mxu0 0.0
        %4045 = vmatprep.subr.mxu0 0.0
        %4046 = vmatpush1.msra.mxu0 0.0
        %4047 = vmatprep.subr.mxu0 0.0
        %4048 = vmatpush1.msra.mxu0 0.0
        %4049 = vmatprep.subr.mxu0 0.0
        %4050 = vmatpush1.msra.mxu0 0.0
        %4051 = vmatprep.subr.mxu0 0.0
        %4052 = vmatpush1.msra.mxu0 0.0
        %4053 = vmatprep.subr.mxu0 0.0
        %4054 = vmatpush1.msra.mxu0 0.0
        %4055 = vmatprep.subr.mxu0 0.0
        %4056 = vmatpush1.msra.mxu0 0.0
        %4057 = vmatprep.subr.mxu0 0.0
        %4058 = vmatpush1.msra.mxu0 0.0
        %4059 = vmatprep.subr.mxu0 0.0
        %4060 = vmatpush1.msra.mxu0 0.0
        %4061 = vmatprep.subr.mxu0 0.0
        %4062 = vmatpush1.msra.mxu0 0.0
        %4063 = vmatprep.subr.mxu0 0.0
        %4064 = vmatpush1.msra.mxu0 0.0
        %4065 = vmatprep.subr.mxu0 0.0
        %4066 = vmatpush1.msra.mxu0 0.0
        %4067 = vmatprep.subr.mxu0 0.0
        %4068 = vmatpush1.msra.mxu0 0.0
        %4069 = vmatprep.subr.mxu0 0.0
        %4070 = vmatpush1.msra.mxu0 0.0
        %4071 = vmatprep.subr.mxu0 0.0
        %4072 = vmatpush1.msra.mxu0 0.0
        %4073 = vmatprep.subr.mxu0 0.0
        %4074 = vmatpush1.msra.mxu0 0.0
        %4075 = vmatprep.subr.mxu0 0.0
        %4076 = vmatpush1.msra.mxu0 0.0
        %4077 = vmatprep.subr.mxu0 0.0
        %4078 = vmatpush1.msra.mxu0 0.0
        %4079 = vmatprep.subr.mxu0 0.0
        %4080 = vmatpush1.msra.mxu0 0.0
        %4081 = vmatprep.subr.mxu0 0.0
        %4082 = vmatpush1.msra.mxu0 0.0
        %4083 = vmatprep.mubr.f32.mxu0 0.0
        %v4084 = vand.u32 %v2982, 4294901760
        %4085 = vmatmul.mubr.f32.gmra.mrb[0].mxu0 %v4084
        %v4086 = vpop.f32.mrb[0].mxu0
        %v4087 = vadd.f32 %v3995, %v4086
        %v4088 = vpop.f32.mrb[0].mxu0
        %v4089 = vadd.f32 %v3997, %v4088
        %4090 = vdwg.mxu0
        %v4091 = vand.u32 %v3916, 4294901760
        %v4092 = vsub.f32 %v3916, %v4091
        %4093 = vmatprep.subr.mxu0 %v4092
        %v4094 = vand.u32 %v3915, 4294901760
        %v4095 = vsub.f32 %v3915, %v4094
        %4096 = vmatpush1.msra.mxu0 %v4095
        %v4097 = vand.u32 %v3918, 4294901760
        %v4098 = vsub.f32 %v3918, %v4097
        %4099 = vmatprep.subr.mxu0 %v4098
        %v4100 = vand.u32 %v3917, 4294901760
        %v4101 = vsub.f32 %v3917, %v4100
        %4102 = vmatpush1.msra.mxu0 %v4101
        %4103 = vmatprep.subr.mxu0 0.0
        %4104 = vmatpush1.msra.mxu0 0.0
        %4105 = vmatprep.subr.mxu0 0.0
        %4106 = vmatpush1.msra.mxu0 0.0
        %4107 = vmatprep.subr.mxu0 0.0
        %4108 = vmatpush1.msra.mxu0 0.0
        %4109 = vmatprep.subr.mxu0 0.0
        %4110 = vmatpush1.msra.mxu0 0.0
        %4111 = vmatprep.subr.mxu0 0.0
        %4112 = vmatpush1.msra.mxu0 0.0
        %4113 = vmatprep.subr.mxu0 0.0
        %4114 = vmatpush1.msra.mxu0 0.0
        %4115 = vmatprep.subr.mxu0 0.0
        %4116 = vmatpush1.msra.mxu0 0.0
        %4117 = vmatprep.subr.mxu0 0.0
        %4118 = vmatpush1.msra.mxu0 0.0
        %4119 = vmatprep.subr.mxu0 0.0
        %4120 = vmatpush1.msra.mxu0 0.0
        %4121 = vmatprep.subr.mxu0 0.0
        %4122 = vmatpush1.msra.mxu0 0.0
        %4123 = vmatprep.subr.mxu0 0.0
        %4124 = vmatpush1.msra.mxu0 0.0
        %4125 = vmatprep.subr.mxu0 0.0
        %4126 = vmatpush1.msra.mxu0 0.0
        %4127 = vmatprep.subr.mxu0 0.0
        %4128 = vmatpush1.msra.mxu0 0.0
        %4129 = vmatprep.subr.mxu0 0.0
        %4130 = vmatpush1.msra.mxu0 0.0
        %4131 = vmatprep.subr.mxu0 0.0
        %4132 = vmatpush1.msra.mxu0 0.0
        %4133 = vmatprep.subr.mxu0 0.0
        %4134 = vmatpush1.msra.mxu0 0.0
        %4135 = vmatprep.subr.mxu0 0.0
        %4136 = vmatpush1.msra.mxu0 0.0
        %4137 = vmatprep.subr.mxu0 0.0
        %4138 = vmatpush1.msra.mxu0 0.0
        %4139 = vmatprep.subr.mxu0 0.0
        %4140 = vmatpush1.msra.mxu0 0.0
        %4141 = vmatprep.subr.mxu0 0.0
        %4142 = vmatpush1.msra.mxu0 0.0
        %4143 = vmatprep.subr.mxu0 0.0
        %4144 = vmatpush1.msra.mxu0 0.0
        %4145 = vmatprep.subr.mxu0 0.0
        %4146 = vmatpush1.msra.mxu0 0.0
        %4147 = vmatprep.subr.mxu0 0.0
        %4148 = vmatpush1.msra.mxu0 0.0
        %4149 = vmatprep.subr.mxu0 0.0
        %4150 = vmatpush1.msra.mxu0 0.0
        %4151 = vmatprep.subr.mxu0 0.0
        %4152 = vmatpush1.msra.mxu0 0.0
        %4153 = vmatprep.subr.mxu0 0.0
        %4154 = vmatpush1.msra.mxu0 0.0
        %4155 = vmatprep.subr.mxu0 0.0
        %4156 = vmatpush1.msra.mxu0 0.0
        %4157 = vmatprep.subr.mxu0 0.0
        %4158 = vmatpush1.msra.mxu0 0.0
        %4159 = vmatprep.subr.mxu0 0.0
        %4160 = vmatpush1.msra.mxu0 0.0
        %4161 = vmatprep.subr.mxu0 0.0
        %4162 = vmatpush1.msra.mxu0 0.0
        %4163 = vmatprep.mubr.f32.mxu0 0.0
        %v4164 = vand.u32 %v2982, 4294901760
        %v4165 = vsub.f32 %v2982, %v4164
        %4166 = vmatmul.mubr.f32.gmra.mrb[0].mxu0 %v4165
        %v4167 = vpop.f32.mrb[0].mxu0
        %v4168 = vadd.f32 %v4087, %v4167
        %v4169 = vpop.f32.mrb[0].mxu0
        %v4170 = vadd.f32 %v4089, %v4169
        %4171 = vdwg.mxu0
        %v4172 = vand.u32 %v3916, 4294901760
        %4173 = vmatprep.subr.mxu0 %v4172
        %v4174 = vand.u32 %v3915, 4294901760
        %4175 = vmatpush1.msra.mxu0 %v4174
        %v4176 = vand.u32 %v3918, 4294901760
        %4177 = vmatprep.subr.mxu0 %v4176
        %v4178 = vand.u32 %v3917, 4294901760
        %4179 = vmatpush1.msra.mxu0 %v4178
        %4180 = vmatprep.subr.mxu0 0.0
        %4181 = vmatpush1.msra.mxu0 0.0
        %4182 = vmatprep.subr.mxu0 0.0
        %4183 = vmatpush1.msra.mxu0 0.0
        %4184 = vmatprep.subr.mxu0 0.0
        %4185 = vmatpush1.msra.mxu0 0.0
        %4186 = vmatprep.subr.mxu0 0.0
        %4187 = vmatpush1.msra.mxu0 0.0
        %4188 = vmatprep.subr.mxu0 0.0
        %4189 = vmatpush1.msra.mxu0 0.0
        %4190 = vmatprep.subr.mxu0 0.0
        %4191 = vmatpush1.msra.mxu0 0.0
        %4192 = vmatprep.subr.mxu0 0.0
        %4193 = vmatpush1.msra.mxu0 0.0
        %4194 = vmatprep.subr.mxu0 0.0
        %4195 = vmatpush1.msra.mxu0 0.0
        %4196 = vmatprep.subr.mxu0 0.0
        %4197 = vmatpush1.msra.mxu0 0.0
        %4198 = vmatprep.subr.mxu0 0.0
        %4199 = vmatpush1.msra.mxu0 0.0
        %4200 = vmatprep.subr.mxu0 0.0
        %4201 = vmatpush1.msra.mxu0 0.0
        %4202 = vmatprep.subr.mxu0 0.0
        %4203 = vmatpush1.msra.mxu0 0.0
        %4204 = vmatprep.subr.mxu0 0.0
        %4205 = vmatpush1.msra.mxu0 0.0
        %4206 = vmatprep.subr.mxu0 0.0
        %4207 = vmatpush1.msra.mxu0 0.0
        %4208 = vmatprep.subr.mxu0 0.0
        %4209 = vmatpush1.msra.mxu0 0.0
        %4210 = vmatprep.subr.mxu0 0.0
        %4211 = vmatpush1.msra.mxu0 0.0
        %4212 = vmatprep.subr.mxu0 0.0
        %4213 = vmatpush1.msra.mxu0 0.0
        %4214 = vmatprep.subr.mxu0 0.0
        %4215 = vmatpush1.msra.mxu0 0.0
        %4216 = vmatprep.subr.mxu0 0.0
        %4217 = vmatpush1.msra.mxu0 0.0
        %4218 = vmatprep.subr.mxu0 0.0
        %4219 = vmatpush1.msra.mxu0 0.0
        %4220 = vmatprep.subr.mxu0 0.0
        %4221 = vmatpush1.msra.mxu0 0.0
        %4222 = vmatprep.subr.mxu0 0.0
        %4223 = vmatpush1.msra.mxu0 0.0
        %4224 = vmatprep.subr.mxu0 0.0
        %4225 = vmatpush1.msra.mxu0 0.0
        %4226 = vmatprep.subr.mxu0 0.0
        %4227 = vmatpush1.msra.mxu0 0.0
        %4228 = vmatprep.subr.mxu0 0.0
        %4229 = vmatpush1.msra.mxu0 0.0
        %4230 = vmatprep.subr.mxu0 0.0
        %4231 = vmatpush1.msra.mxu0 0.0
        %4232 = vmatprep.subr.mxu0 0.0
        %4233 = vmatpush1.msra.mxu0 0.0
        %4234 = vmatprep.subr.mxu0 0.0
        %4235 = vmatpush1.msra.mxu0 0.0
        %4236 = vmatprep.subr.mxu0 0.0
        %4237 = vmatpush1.msra.mxu0 0.0
        %4238 = vmatprep.subr.mxu0 0.0
        %4239 = vmatpush1.msra.mxu0 0.0
        %4240 = vmatprep.mubr.f32.mxu0 0.0
        %v4241 = vand.u32 %v2982, 4294901760
        %v4242 = vsub.f32 %v2982, %v4241
        %v4243 = vand.u32 %v4242, 4294901760
        %4244 = vmatmul.mubr.f32.gmra.mrb[0].mxu0 %v4243
        %v4245 = vpop.f32.mrb[0].mxu0
        %v4246 = vadd.f32 %v4168, %v4245
        %v4247 = vpop.f32.mrb[0].mxu0
        %v4248 = vadd.f32 %v4170, %v4247
        %4249 = vdwg.mxu0
        %v4250 = vand.u32 %v3916, 4294901760
        %v4251 = vsub.f32 %v3916, %v4250
        %v4252 = vand.u32 %v4251, 4294901760
        %4253 = vmatprep.subr.mxu0 %v4252
        %v4254 = vand.u32 %v3915, 4294901760
        %v4255 = vsub.f32 %v3915, %v4254
        %v4256 = vand.u32 %v4255, 4294901760
        %4257 = vmatpush1.msra.mxu0 %v4256
        %v4258 = vand.u32 %v3918, 4294901760
        %v4259 = vsub.f32 %v3918, %v4258
        %v4260 = vand.u32 %v4259, 4294901760
        %4261 = vmatprep.subr.mxu0 %v4260
        %v4262 = vand.u32 %v3917, 4294901760
        %v4263 = vsub.f32 %v3917, %v4262
        %v4264 = vand.u32 %v4263, 4294901760
        %4265 = vmatpush1.msra.mxu0 %v4264
        %4266 = vmatprep.subr.mxu0 0.0
        %4267 = vmatpush1.msra.mxu0 0.0
        %4268 = vmatprep.subr.mxu0 0.0
        %4269 = vmatpush1.msra.mxu0 0.0
        %4270 = vmatprep.subr.mxu0 0.0
        %4271 = vmatpush1.msra.mxu0 0.0
        %4272 = vmatprep.subr.mxu0 0.0
        %4273 = vmatpush1.msra.mxu0 0.0
        %4274 = vmatprep.subr.mxu0 0.0
        %4275 = vmatpush1.msra.mxu0 0.0
        %4276 = vmatprep.subr.mxu0 0.0
        %4277 = vmatpush1.msra.mxu0 0.0
        %4278 = vmatprep.subr.mxu0 0.0
        %4279 = vmatpush1.msra.mxu0 0.0
        %4280 = vmatprep.subr.mxu0 0.0
        %4281 = vmatpush1.msra.mxu0 0.0
        %4282 = vmatprep.subr.mxu0 0.0
        %4283 = vmatpush1.msra.mxu0 0.0
        %4284 = vmatprep.subr.mxu0 0.0
        %4285 = vmatpush1.msra.mxu0 0.0
        %4286 = vmatprep.subr.mxu0 0.0
        %4287 = vmatpush1.msra.mxu0 0.0
        %4288 = vmatprep.subr.mxu0 0.0
        %4289 = vmatpush1.msra.mxu0 0.0
        %4290 = vmatprep.subr.mxu0 0.0
        %4291 = vmatpush1.msra.mxu0 0.0
        %4292 = vmatprep.subr.mxu0 0.0
        %4293 = vmatpush1.msra.mxu0 0.0
        %4294 = vmatprep.subr.mxu0 0.0
        %4295 = vmatpush1.msra.mxu0 0.0
        %4296 = vmatprep.subr.mxu0 0.0
        %4297 = vmatpush1.msra.mxu0 0.0
        %4298 = vmatprep.subr.mxu0 0.0
        %4299 = vmatpush1.msra.mxu0 0.0
        %4300 = vmatprep.subr.mxu0 0.0
        %4301 = vmatpush1.msra.mxu0 0.0
        %4302 = vmatprep.subr.mxu0 0.0
        %4303 = vmatpush1.msra.mxu0 0.0
        %4304 = vmatprep.subr.mxu0 0.0
        %4305 = vmatpush1.msra.mxu0 0.0
        %4306 = vmatprep.subr.mxu0 0.0
        %4307 = vmatpush1.msra.mxu0 0.0
        %4308 = vmatprep.subr.mxu0 0.0
        %4309 = vmatpush1.msra.mxu0 0.0
        %4310 = vmatprep.subr.mxu0 0.0
        %4311 = vmatpush1.msra.mxu0 0.0
        %4312 = vmatprep.subr.mxu0 0.0
        %4313 = vmatpush1.msra.mxu0 0.0
        %4314 = vmatprep.subr.mxu0 0.0
        %4315 = vmatpush1.msra.mxu0 0.0
        %4316 = vmatprep.subr.mxu0 0.0
        %4317 = vmatpush1.msra.mxu0 0.0
        %4318 = vmatprep.subr.mxu0 0.0
        %4319 = vmatpush1.msra.mxu0 0.0
        %4320 = vmatprep.subr.mxu0 0.0
        %4321 = vmatpush1.msra.mxu0 0.0
        %4322 = vmatprep.subr.mxu0 0.0
        %4323 = vmatpush1.msra.mxu0 0.0
        %4324 = vmatprep.subr.mxu0 0.0
        %4325 = vmatpush1.msra.mxu0 0.0
        %4326 = vmatprep.mubr.f32.mxu0 0.0
        %v4327 = vand.u32 %v2982, 4294901760
        %4328 = vmatmul.mubr.f32.gmra.mrb[0].mxu0 %v4327
        %v4329 = vpop.f32.mrb[0].mxu0
        %v4330 = vadd.f32 %v4246, %v4329
        %v4331 = vpop.f32.mrb[0].mxu0
        %v4332 = vadd.f32 %v4248, %v4331
        %4333 = vdwg.mxu0
        %v4334 = vand.u32 %v3916, 4294901760
        %4335 = vmatprep.subr.mxu0 %v4334
        %v4336 = vand.u32 %v3915, 4294901760
        %4337 = vmatpush1.msra.mxu0 %v4336
        %v4338 = vand.u32 %v3918, 4294901760
        %4339 = vmatprep.subr.mxu0 %v4338
        %v4340 = vand.u32 %v3917, 4294901760
        %4341 = vmatpush1.msra.mxu0 %v4340
        %4342 = vmatprep.subr.mxu0 0.0
        %4343 = vmatpush1.msra.mxu0 0.0
        %4344 = vmatprep.subr.mxu0 0.0
        %4345 = vmatpush1.msra.mxu0 0.0
        %4346 = vmatprep.subr.mxu0 0.0
        %4347 = vmatpush1.msra.mxu0 0.0
        %4348 = vmatprep.subr.mxu0 0.0
        %4349 = vmatpush1.msra.mxu0 0.0
        %4350 = vmatprep.subr.mxu0 0.0
        %4351 = vmatpush1.msra.mxu0 0.0
        %4352 = vmatprep.subr.mxu0 0.0
        %4353 = vmatpush1.msra.mxu0 0.0
        %4354 = vmatprep.subr.mxu0 0.0
        %4355 = vmatpush1.msra.mxu0 0.0
        %4356 = vmatprep.subr.mxu0 0.0
        %4357 = vmatpush1.msra.mxu0 0.0
        %4358 = vmatprep.subr.mxu0 0.0
        %4359 = vmatpush1.msra.mxu0 0.0
        %4360 = vmatprep.subr.mxu0 0.0
        %4361 = vmatpush1.msra.mxu0 0.0
        %4362 = vmatprep.subr.mxu0 0.0
        %4363 = vmatpush1.msra.mxu0 0.0
        %4364 = vmatprep.subr.mxu0 0.0
        %4365 = vmatpush1.msra.mxu0 0.0
        %4366 = vmatprep.subr.mxu0 0.0
        %4367 = vmatpush1.msra.mxu0 0.0
        %4368 = vmatprep.subr.mxu0 0.0
        %4369 = vmatpush1.msra.mxu0 0.0
        %4370 = vmatprep.subr.mxu0 0.0
        %4371 = vmatpush1.msra.mxu0 0.0
        %4372 = vmatprep.subr.mxu0 0.0
        %4373 = vmatpush1.msra.mxu0 0.0
        %4374 = vmatprep.subr.mxu0 0.0
        %4375 = vmatpush1.msra.mxu0 0.0
        %4376 = vmatprep.subr.mxu0 0.0
        %4377 = vmatpush1.msra.mxu0 0.0
        %4378 = vmatprep.subr.mxu0 0.0
        %4379 = vmatpush1.msra.mxu0 0.0
        %4380 = vmatprep.subr.mxu0 0.0
        %4381 = vmatpush1.msra.mxu0 0.0
        %4382 = vmatprep.subr.mxu0 0.0
        %4383 = vmatpush1.msra.mxu0 0.0
        %4384 = vmatprep.subr.mxu0 0.0
        %4385 = vmatpush1.msra.mxu0 0.0
        %4386 = vmatprep.subr.mxu0 0.0
        %4387 = vmatpush1.msra.mxu0 0.0
        %4388 = vmatprep.subr.mxu0 0.0
        %4389 = vmatpush1.msra.mxu0 0.0
        %4390 = vmatprep.subr.mxu0 0.0
        %4391 = vmatpush1.msra.mxu0 0.0
        %4392 = vmatprep.subr.mxu0 0.0
        %4393 = vmatpush1.msra.mxu0 0.0
        %4394 = vmatprep.subr.mxu0 0.0
        %4395 = vmatpush1.msra.mxu0 0.0
        %4396 = vmatprep.subr.mxu0 0.0
        %4397 = vmatpush1.msra.mxu0 0.0
        %4398 = vmatprep.subr.mxu0 0.0
        %4399 = vmatpush1.msra.mxu0 0.0
        %4400 = vmatprep.subr.mxu0 0.0
        %4401 = vmatpush1.msra.mxu0 0.0
        %4402 = vmatprep.mubr.f32.mxu0 0.0
        %v4403 = vand.u32 %v2982, 4294901760
        %4404 = vmatmul.mubr.f32.gmra.mrb[0].mxu0 %v4403
        %v4405 = vpop.f32.mrb[0].mxu0
        %v4406 = vadd.f32 %v4330, %v4405
        %v4407 = vpop.f32.mrb[0].mxu0
        %v4408 = vadd.f32 %v4332, %v4407
        %4409 = vdwg.mxu0
        %v4410 = vld [vmem:[%s879] sm:$0xff]
        %v4411 = vld [vmem:[%s879 + $0x8] sm:$0xff]
        %v4412 = vadd.f32 %v4406, %v4410
        %v4413 = vadd.f32 %v4408, %v4411
        %v4414 = vmax.f32 %v4412, 0.0
        %v4415 = vmax.f32 %v4413, 0.0
        %s4416 = scalar_lea.vmem %s323, 16 [#allocation6]
        %4417 = vst [vmem:[%s4416] sm:$0xff] %v4414
        %4418 = vst [vmem:[%s4416 + $0x8] sm:$0xff] %v4415
        %v4419 = vld [vmem:[%s1400] sm:$0xff]
        %v4420 = vld [vmem:[%s1400 + $0x8] sm:$0xff]
        %v4421 = vld [vmem:[%s1400 + $0x10] sm:$0xff]
        %v4422 = vld [vmem:[%s1400 + $0x18] sm:$0xff]
        %v4423 = vld [vmem:[%s1926] sm:$0xff]
        %v4424 = vld [vmem:[%s1926 + $0x8] sm:$0xff]
        %v4425 = vld [vmem:[%s1926 + $0x10] sm:$0xff]
        %v4426 = vld [vmem:[%s1926 + $0x18] sm:$0xff]
        %v4427 = vld [vmem:[%s2452] sm:$0xff]
        %v4428 = vld [vmem:[%s2452 + $0x8] sm:$0xff]
        %v4429 = vld [vmem:[%s2452 + $0x10] sm:$0xff]
        %v4430 = vld [vmem:[%s2452 + $0x18] sm:$0xff]
        %v4431 = vmul.f32 %v4419, %v3497
        %v4432 = vmul.f32 %v4420, %v3497
        %v4433 = vmul.f32 %v4421, %v3501
        %v4434 = vmul.f32 %v4422, %v3501
        %v4435 = vmul.f32 %v4423, %v2468
        %v4436 = vmul.f32 %v4424, %v2468
        %v4437 = vmul.f32 %v4425, %v2473
        %v4438 = vmul.f32 %v4426, %v2473
        %v4439 = vadd.f32 %v4431, %v4435
        %v4440 = vadd.f32 %v4432, %v4436
        %v4441 = vadd.f32 %v4433, %v4437
        %v4442 = vadd.f32 %v4434, %v4438
        %v4443 = vmul.f32 %v4427, %v2481
        %v4444 = vmul.f32 %v4428, %v2481
        %v4445 = vmul.f32 %v4429, %v2485
        %v4446 = vmul.f32 %v4430, %v2485
        %v4447 = vadd.f32 %v4439, %v4443
        %v4448 = vadd.f32 %v4440, %v4444
        %v4449 = vadd.f32 %v4441, %v4445
        %v4450 = vadd.f32 %v4442, %v4446
        %4451 = vrot.lane.b32.xlu0 %v4447, 17
        %v4452 = vpop.permute.xlu0 %4451
        %4453 = vrot.lane.b32.xlu0 %v4449, 17
        %v4454 = vpop.permute.xlu0 %4453
        %4455 = vrot.lane.b32.xlu0 %v4448, 17
        %v4456 = vpop.permute.xlu0 %4455
        %4457 = vrot.lane.b32.xlu0 %v4450, 17
        %v4458 = vpop.permute.xlu0 %4457
        %v4459 = vsel %vm2505, %v4452, %v4456
        %v4460 = vsel %vm2505, %v4454, %v4458
        %v4461 = vsel %vm2505, %v4456, %v4452
        %v4462 = vsel %vm2505, %v4458, %v4454
        %v4463 = vmul.f32 %v4461, %v2513
        %v4464 = vmul.f32 %v4459, %v2517
        %v4465 = vmul.f32 %v4462, %v2513
        %v4466 = vmul.f32 %v4460, %v2517
        %v4467 = vadd.f32 %v4463, 0.0
        %v4468 = vadd.f32 %v4464, 0.0
        %v4469 = vadd.f32 %v4465, 0.0
        %v4470 = vadd.f32 %v4466, 0.0
        %v4471 = vmul.f32 %v4419, %v3545
        %v4472 = vmul.f32 %v4420, %v3545
        %v4473 = vmul.f32 %v4421, %v3549
        %v4474 = vmul.f32 %v4422, %v3549
        %v4475 = vmul.f32 %v4423, %v2528
        %v4476 = vmul.f32 %v4424, %v2528
        %v4477 = vmul.f32 %v4425, %v2532
        %v4478 = vmul.f32 %v4426, %v2532
        %v4479 = vadd.f32 %v4471, %v4475
        %v4480 = vadd.f32 %v4472, %v4476
        %v4481 = vadd.f32 %v4473, %v4477
        %v4482 = vadd.f32 %v4474, %v4478
        %v4483 = vmul.f32 %v4427, %v2540
        %v4484 = vmul.f32 %v4428, %v2540
        %v4485 = vmul.f32 %v4429, %v2544
        %v4486 = vmul.f32 %v4430, %v2544
        %v4487 = vadd.f32 %v4479, %v4483
        %v4488 = vadd.f32 %v4480, %v4484
        %v4489 = vadd.f32 %v4481, %v4485
        %v4490 = vadd.f32 %v4482, %v4486
        %4491 = vrot.lane.b32.xlu0 %v4487, 16
        %v4492 = vpop.permute.xlu0 %4491
        %4493 = vrot.lane.b32.xlu0 %v4489, 16
        %v4494 = vpop.permute.xlu0 %4493
        %4495 = vrot.lane.b32.xlu0 %v4488, 16
        %v4496 = vpop.permute.xlu0 %4495
        %4497 = vrot.lane.b32.xlu0 %v4490, 16
        %v4498 = vpop.permute.xlu0 %4497
        %v4499 = vsel %vm2562, %v4492, %v4496
        %v4500 = vsel %vm2562, %v4494, %v4498
        %v4501 = vsel %vm2562, %v4496, %v4492
        %v4502 = vsel %vm2562, %v4498, %v4494
        %v4503 = vmul.f32 %v4501, %v2570
        %v4504 = vmul.f32 %v4499, %v2574
        %v4505 = vmul.f32 %v4502, %v2570
        %v4506 = vmul.f32 %v4500, %v2574
        %v4507 = vadd.f32 %v4467, %v4503
        %v4508 = vadd.f32 %v4468, %v4504
        %v4509 = vadd.f32 %v4469, %v4505
        %v4510 = vadd.f32 %v4470, %v4506
        %v4511 = vmul.f32 %v4419, %v3593
        %v4512 = vmul.f32 %v4420, %v3593
        %v4513 = vmul.f32 %v4421, %v3597
        %v4514 = vmul.f32 %v4422, %v3597
        %v4515 = vmul.f32 %v4423, %v2585
        %v4516 = vmul.f32 %v4424, %v2585
        %v4517 = vmul.f32 %v4425, %v2589
        %v4518 = vmul.f32 %v4426, %v2589
        %v4519 = vadd.f32 %v4511, %v4515
        %v4520 = vadd.f32 %v4512, %v4516
        %v4521 = vadd.f32 %v4513, %v4517
        %v4522 = vadd.f32 %v4514, %v4518
        %v4523 = vmul.f32 %v4427, %v2597
        %v4524 = vmul.f32 %v4428, %v2597
        %v4525 = vmul.f32 %v4429, %v2601
        %v4526 = vmul.f32 %v4430, %v2601
        %v4527 = vadd.f32 %v4519, %v4523
        %v4528 = vadd.f32 %v4520, %v4524
        %v4529 = vadd.f32 %v4521, %v4525
        %v4530 = vadd.f32 %v4522, %v4526
        %4531 = vrot.lane.b32.xlu0 %v4527, 15
        %v4532 = vpop.permute.xlu0 %4531
        %4533 = vrot.lane.b32.xlu0 %v4529, 15
        %v4534 = vpop.permute.xlu0 %4533
        %4535 = vrot.lane.b32.xlu0 %v4528, 15
        %v4536 = vpop.permute.xlu0 %4535
        %4537 = vrot.lane.b32.xlu0 %v4530, 15
        %v4538 = vpop.permute.xlu0 %4537
        %v4539 = vsel %vm2619, %v4532, %v4536
        %v4540 = vsel %vm2619, %v4534, %v4538
        %v4541 = vsel %vm2619, %v4536, %v4532
        %v4542 = vsel %vm2619, %v4538, %v4534
        %v4543 = vmul.f32 %v4541, %v2627
        %v4544 = vmul.f32 %v4539, %v2631
        %v4545 = vmul.f32 %v4542, %v2627
        %v4546 = vmul.f32 %v4540, %v2631
        %v4547 = vadd.f32 %v4507, %v4543
        %v4548 = vadd.f32 %v4508, %v4544
        %v4549 = vadd.f32 %v4509, %v4545
        %v4550 = vadd.f32 %v4510, %v4546
        %v4551 = vmul.f32 %v4419, %v3641
        %v4552 = vmul.f32 %v4420, %v3641
        %v4553 = vmul.f32 %v4421, %v3645
        %v4554 = vmul.f32 %v4422, %v3645
        %v4555 = vmul.f32 %v4423, %v2642
        %v4556 = vmul.f32 %v4424, %v2642
        %v4557 = vmul.f32 %v4425, %v2646
        %v4558 = vmul.f32 %v4426, %v2646
        %v4559 = vadd.f32 %v4551, %v4555
        %v4560 = vadd.f32 %v4552, %v4556
        %v4561 = vadd.f32 %v4553, %v4557
        %v4562 = vadd.f32 %v4554, %v4558
        %v4563 = vmul.f32 %v4427, %v2654
        %v4564 = vmul.f32 %v4428, %v2654
        %v4565 = vmul.f32 %v4429, %v2658
        %v4566 = vmul.f32 %v4430, %v2658
        %v4567 = vadd.f32 %v4559, %v4563
        %v4568 = vadd.f32 %v4560, %v4564
        %v4569 = vadd.f32 %v4561, %v4565
        %v4570 = vadd.f32 %v4562, %v4566
        %4571 = vrot.lane.b32.xlu0 %v4567, 1
        %v4572 = vpop.permute.xlu0 %4571
        %4573 = vrot.lane.b32.xlu0 %v4569, 1
        %v4574 = vpop.permute.xlu0 %4573
        %4575 = vrot.lane.b32.xlu0 %v4568, 1
        %v4576 = vpop.permute.xlu0 %4575
        %4577 = vrot.lane.b32.xlu0 %v4570, 1
        %v4578 = vpop.permute.xlu0 %4577
        %v4579 = vsel %vm2676, %v4572, %v4576
        %v4580 = vsel %vm2676, %v4574, %v4578
        %v4581 = vsel %vm2676, %v4576, %v4572
        %v4582 = vsel %vm2676, %v4578, %v4574
        %v4583 = vmul.f32 %v4581, %v2684
        %v4584 = vmul.f32 %v4579, %v2688
        %v4585 = vmul.f32 %v4582, %v2684
        %v4586 = vmul.f32 %v4580, %v2688
        %v4587 = vadd.f32 %v4547, %v4583
        %v4588 = vadd.f32 %v4548, %v4584
        %v4589 = vadd.f32 %v4549, %v4585
        %v4590 = vadd.f32 %v4550, %v4586
        %v4591 = vmul.f32 %v4419, %v3689
        %v4592 = vmul.f32 %v4420, %v3689
        %v4593 = vmul.f32 %v4421, %v3693
        %v4594 = vmul.f32 %v4422, %v3693
        %v4595 = vmul.f32 %v4423, %v2699
        %v4596 = vmul.f32 %v4424, %v2699
        %v4597 = vmul.f32 %v4425, %v2703
        %v4598 = vmul.f32 %v4426, %v2703
        %v4599 = vadd.f32 %v4591, %v4595
        %v4600 = vadd.f32 %v4592, %v4596
        %v4601 = vadd.f32 %v4593, %v4597
        %v4602 = vadd.f32 %v4594, %v4598
        %v4603 = vmul.f32 %v4427, %v2711
        %v4604 = vmul.f32 %v4428, %v2711
        %v4605 = vmul.f32 %v4429, %v2715
        %v4606 = vmul.f32 %v4430, %v2715
        %v4607 = vadd.f32 %v4599, %v4603
        %v4608 = vadd.f32 %v4600, %v4604
        %v4609 = vadd.f32 %v4601, %v4605
        %v4610 = vadd.f32 %v4602, %v4606
        %v4611 = vadd.f32 %v4587, %v4607
        %v4612 = vadd.f32 %v4588, %v4608
        %v4613 = vadd.f32 %v4589, %v4609
        %v4614 = vadd.f32 %v4590, %v4610
        %v4615 = vmul.f32 %v4419, %v3721
        %v4616 = vmul.f32 %v4420, %v3721
        %v4617 = vmul.f32 %v4421, %v3725
        %v4618 = vmul.f32 %v4422, %v3725
        %v4619 = vmul.f32 %v4423, %v2731
        %v4620 = vmul.f32 %v4424, %v2731
        %v4621 = vmul.f32 %v4425, %v2735
        %v4622 = vmul.f32 %v4426, %v2735
        %v4623 = vadd.f32 %v4615, %v4619
        %v4624 = vadd.f32 %v4616, %v4620
        %v4625 = vadd.f32 %v4617, %v4621
        %v4626 = vadd.f32 %v4618, %v4622
        %v4627 = vmul.f32 %v4427, %v2743
        %v4628 = vmul.f32 %v4428, %v2743
        %v4629 = vmul.f32 %v4429, %v2747
        %v4630 = vmul.f32 %v4430, %v2747
        %v4631 = vadd.f32 %v4623, %v4627
        %v4632 = vadd.f32 %v4624, %v4628
        %v4633 = vadd.f32 %v4625, %v4629
        %v4634 = vadd.f32 %v4626, %v4630
        %4635 = vrot.lane.b32.xlu0 %v4631, 127
        %v4636 = vpop.permute.xlu0 %4635
        %4637 = vrot.lane.b32.xlu0 %v4633, 127
        %v4638 = vpop.permute.xlu0 %4637
        %4639 = vrot.lane.b32.xlu0 %v4632, 127
        %v4640 = vpop.permute.xlu0 %4639
        %4641 = vrot.lane.b32.xlu0 %v4634, 127
        %v4642 = vpop.permute.xlu0 %4641
        %v4643 = vsel %vm2765, %v4636, %v4640
        %v4644 = vsel %vm2765, %v4638, %v4642
        %v4645 = vsel %vm2765, %v4640, %v4636
        %v4646 = vsel %vm2765, %v4642, %v4638
        %v4647 = vmul.f32 %v4643, %v2773
        %v4648 = vmul.f32 %v4645, %v2777
        %v4649 = vmul.f32 %v4644, %v2773
        %v4650 = vmul.f32 %v4646, %v2777
        %v4651 = vadd.f32 %v4611, %v4647
        %v4652 = vadd.f32 %v4612, %v4648
        %v4653 = vadd.f32 %v4613, %v4649
        %v4654 = vadd.f32 %v4614, %v4650
        %v4655 = vmul.f32 %v4419, %v3769
        %v4656 = vmul.f32 %v4420, %v3769
        %v4657 = vmul.f32 %v4421, %v3773
        %v4658 = vmul.f32 %v4422, %v3773
        %v4659 = vmul.f32 %v4423, %v2788
        %v4660 = vmul.f32 %v4424, %v2788
        %v4661 = vmul.f32 %v4425, %v2792
        %v4662 = vmul.f32 %v4426, %v2792
        %v4663 = vadd.f32 %v4655, %v4659
        %v4664 = vadd.f32 %v4656, %v4660
        %v4665 = vadd.f32 %v4657, %v4661
        %v4666 = vadd.f32 %v4658, %v4662
        %v4667 = vmul.f32 %v4427, %v2800
        %v4668 = vmul.f32 %v4428, %v2800
        %v4669 = vmul.f32 %v4429, %v2804
        %v4670 = vmul.f32 %v4430, %v2804
        %v4671 = vadd.f32 %v4663, %v4667
        %v4672 = vadd.f32 %v4664, %v4668
        %v4673 = vadd.f32 %v4665, %v4669
        %v4674 = vadd.f32 %v4666, %v4670
        %4675 = vrot.lane.b32.xlu0 %v4671, 113
        %v4676 = vpop.permute.xlu0 %4675
        %4677 = vrot.lane.b32.xlu0 %v4673, 113
        %v4678 = vpop.permute.xlu0 %4677
        %4679 = vrot.lane.b32.xlu0 %v4672, 113
        %v4680 = vpop.permute.xlu0 %4679
        %4681 = vrot.lane.b32.xlu0 %v4674, 113
        %v4682 = vpop.permute.xlu0 %4681
        %v4683 = vsel %vm2822, %v4676, %v4680
        %v4684 = vsel %vm2822, %v4678, %v4682
        %v4685 = vsel %vm2822, %v4680, %v4676
        %v4686 = vsel %vm2822, %v4682, %v4678
        %v4687 = vmul.f32 %v4683, %v2830
        %v4688 = vmul.f32 %v4685, %v2834
        %v4689 = vmul.f32 %v4684, %v2830
        %v4690 = vmul.f32 %v4686, %v2834
        %v4691 = vadd.f32 %v4651, %v4687
        %v4692 = vadd.f32 %v4652, %v4688
        %v4693 = vadd.f32 %v4653, %v4689
        %v4694 = vadd.f32 %v4654, %v4690
        %v4695 = vmul.f32 %v4419, %v3817
        %v4696 = vmul.f32 %v4420, %v3817
        %v4697 = vmul.f32 %v4421, %v3821
        %v4698 = vmul.f32 %v4422, %v3821
        %v4699 = vmul.f32 %v4423, %v2845
        %v4700 = vmul.f32 %v4424, %v2845
        %v4701 = vmul.f32 %v4425, %v2849
        %v4702 = vmul.f32 %v4426, %v2849
        %v4703 = vadd.f32 %v4695, %v4699
        %v4704 = vadd.f32 %v4696, %v4700
        %v4705 = vadd.f32 %v4697, %v4701
        %v4706 = vadd.f32 %v4698, %v4702
        %v4707 = vmul.f32 %v4427, %v2857
        %v4708 = vmul.f32 %v4428, %v2857
        %v4709 = vmul.f32 %v4429, %v2861
        %v4710 = vmul.f32 %v4430, %v2861
        %v4711 = vadd.f32 %v4703, %v4707
        %v4712 = vadd.f32 %v4704, %v4708
        %v4713 = vadd.f32 %v4705, %v4709
        %v4714 = vadd.f32 %v4706, %v4710
        %4715 = vrot.lane.b32.xlu0 %v4711, 112
        %v4716 = vpop.permute.xlu0 %4715
        %4717 = vrot.lane.b32.xlu0 %v4713, 112
        %v4718 = vpop.permute.xlu0 %4717
        %4719 = vrot.lane.b32.xlu0 %v4712, 112
        %v4720 = vpop.permute.xlu0 %4719
        %4721 = vrot.lane.b32.xlu0 %v4714, 112
        %v4722 = vpop.permute.xlu0 %4721
        %v4723 = vsel %vm2879, %v4716, %v4720
        %v4724 = vsel %vm2879, %v4718, %v4722
        %v4725 = vsel %vm2879, %v4720, %v4716
        %v4726 = vsel %vm2879, %v4722, %v4718
        %v4727 = vmul.f32 %v4723, %v2887
        %v4728 = vmul.f32 %v4725, %v2891
        %v4729 = vmul.f32 %v4724, %v2887
        %v4730 = vmul.f32 %v4726, %v2891
        %v4731 = vadd.f32 %v4691, %v4727
        %v4732 = vadd.f32 %v4692, %v4728
        %v4733 = vadd.f32 %v4693, %v4729
        %v4734 = vadd.f32 %v4694, %v4730
        %v4735 = vmul.f32 %v4419, %v3865
        %v4736 = vmul.f32 %v4420, %v3865
        %v4737 = vmul.f32 %v4421, %v3869
        %v4738 = vmul.f32 %v4422, %v3869
        %v4739 = vmul.f32 %v4423, %v2902
        %v4740 = vmul.f32 %v4424, %v2902
        %v4741 = vmul.f32 %v4425, %v2906
        %v4742 = vmul.f32 %v4426, %v2906
        %v4743 = vadd.f32 %v4735, %v4739
        %v4744 = vadd.f32 %v4736, %v4740
        %v4745 = vadd.f32 %v4737, %v4741
        %v4746 = vadd.f32 %v4738, %v4742
        %v4747 = vmul.f32 %v4427, %v2914
        %v4748 = vmul.f32 %v4428, %v2914
        %v4749 = vmul.f32 %v4429, %v2918
        %v4750 = vmul.f32 %v4430, %v2918
        %v4751 = vadd.f32 %v4743, %v4747
        %v4752 = vadd.f32 %v4744, %v4748
        %v4753 = vadd.f32 %v4745, %v4749
        %v4754 = vadd.f32 %v4746, %v4750
        %4755 = vrot.lane.b32.xlu0 %v4751, 111
        %v4756 = vpop.permute.xlu0 %4755
        %4757 = vrot.lane.b32.xlu0 %v4753, 111
        %v4758 = vpop.permute.xlu0 %4757
        %4759 = vrot.lane.b32.xlu0 %v4752, 111
        %v4760 = vpop.permute.xlu0 %4759
        %4761 = vrot.lane.b32.xlu0 %v4754, 111
        %v4762 = vpop.permute.xlu0 %4761
        %v4763 = vsel %vm2936, %v4756, %v4760
        %v4764 = vsel %vm2936, %v4758, %v4762
        %v4765 = vsel %vm2936, %v4760, %v4756
        %v4766 = vsel %vm2936, %v4762, %v4758
        %v4767 = vmul.f32 %v4763, %v2944
        %v4768 = vmul.f32 %v4765, %v2948
        %v4769 = vmul.f32 %v4764, %v2944
        %v4770 = vmul.f32 %v4766, %v2948
        %v4771 = vadd.f32 %v4731, %v4767
        %v4772 = vadd.f32 %v4732, %v4768
        %v4773 = vadd.f32 %v4733, %v4769
        %v4774 = vadd.f32 %v4734, %v4770
        %v4775 = vadd.f32 %v4771, %v2960
        %v4776 = vadd.f32 %v4772, %v2960
        %v4777 = vadd.f32 %v4773, %v2965
        %v4778 = vadd.f32 %v4774, %v2965
        %v4779 = vmax.f32 %v4775, 0.0
        %v4780 = vmax.f32 %v4776, 0.0
        %v4781 = vmax.f32 %v4777, 0.0
        %v4782 = vmax.f32 %v4778, 0.0
        %v4783 = vand.u32 %v4780, 4294901760
        %4784 = vmatprep.subr.mxu0 %v4783
        %v4785 = vand.u32 %v4779, 4294901760
        %4786 = vmatpush1.msra.mxu0 %v4785
        %v4787 = vand.u32 %v4782, 4294901760
        %4788 = vmatprep.subr.mxu0 %v4787
        %v4789 = vand.u32 %v4781, 4294901760
        %4790 = vmatpush1.msra.mxu0 %v4789
        %4791 = vmatprep.subr.mxu0 0.0
        %4792 = vmatpush1.msra.mxu0 0.0
        %4793 = vmatprep.subr.mxu0 0.0
        %4794 = vmatpush1.msra.mxu0 0.0
        %4795 = vmatprep.subr.mxu0 0.0
        %4796 = vmatpush1.msra.mxu0 0.0
        %4797 = vmatprep.subr.mxu0 0.0
        %4798 = vmatpush1.msra.mxu0 0.0
        %4799 = vmatprep.subr.mxu0 0.0
        %4800 = vmatpush1.msra.mxu0 0.0
        %4801 = vmatprep.subr.mxu0 0.0
        %4802 = vmatpush1.msra.mxu0 0.0
        %4803 = vmatprep.subr.mxu0 0.0
        %4804 = vmatpush1.msra.mxu0 0.0
        %4805 = vmatprep.subr.mxu0 0.0
        %4806 = vmatpush1.msra.mxu0 0.0
        %4807 = vmatprep.subr.mxu0 0.0
        %4808 = vmatpush1.msra.mxu0 0.0
        %4809 = vmatprep.subr.mxu0 0.0
        %4810 = vmatpush1.msra.mxu0 0.0
        %4811 = vmatprep.subr.mxu0 0.0
        %4812 = vmatpush1.msra.mxu0 0.0
        %4813 = vmatprep.subr.mxu0 0.0
        %4814 = vmatpush1.msra.mxu0 0.0
        %4815 = vmatprep.subr.mxu0 0.0
        %4816 = vmatpush1.msra.mxu0 0.0
        %4817 = vmatprep.subr.mxu0 0.0
        %4818 = vmatpush1.msra.mxu0 0.0
        %4819 = vmatprep.subr.mxu0 0.0
        %4820 = vmatpush1.msra.mxu0 0.0
        %4821 = vmatprep.subr.mxu0 0.0
        %4822 = vmatpush1.msra.mxu0 0.0
        %4823 = vmatprep.subr.mxu0 0.0
        %4824 = vmatpush1.msra.mxu0 0.0
        %4825 = vmatprep.subr.mxu0 0.0
        %4826 = vmatpush1.msra.mxu0 0.0
        %4827 = vmatprep.subr.mxu0 0.0
        %4828 = vmatpush1.msra.mxu0 0.0
        %4829 = vmatprep.subr.mxu0 0.0
        %4830 = vmatpush1.msra.mxu0 0.0
        %4831 = vmatprep.subr.mxu0 0.0
        %4832 = vmatpush1.msra.mxu0 0.0
        %4833 = vmatprep.subr.mxu0 0.0
        %4834 = vmatpush1.msra.mxu0 0.0
        %4835 = vmatprep.subr.mxu0 0.0
        %4836 = vmatpush1.msra.mxu0 0.0
        %4837 = vmatprep.subr.mxu0 0.0
        %4838 = vmatpush1.msra.mxu0 0.0
        %4839 = vmatprep.subr.mxu0 0.0
        %4840 = vmatpush1.msra.mxu0 0.0
        %4841 = vmatprep.subr.mxu0 0.0
        %4842 = vmatpush1.msra.mxu0 0.0
        %4843 = vmatprep.subr.mxu0 0.0
        %4844 = vmatpush1.msra.mxu0 0.0
        %4845 = vmatprep.subr.mxu0 0.0
        %4846 = vmatpush1.msra.mxu0 0.0
        %4847 = vmatprep.subr.mxu0 0.0
        %4848 = vmatpush1.msra.mxu0 0.0
        %4849 = vmatprep.subr.mxu0 0.0
        %4850 = vmatpush1.msra.mxu0 0.0
        %4851 = vmatprep.mubr.f32.mxu0 0.0
        %v4852 = vand.u32 %v2982, 4294901760
        %v4853 = vsub.f32 %v2982, %v4852
        %v4854 = vand.u32 %v4853, 4294901760
        %v4855 = vsub.f32 %v4853, %v4854
        %v4856 = vand.u32 %v4855, 4294901760
        %4857 = vmatmul.mubr.f32.gmra.mrb[0].mxu0 %v4856
        %v4858 = vpop.f32.mrb[0].mxu0
        %v4859 = vadd.f32 %v2978, %v4858
        %v4860 = vpop.f32.mrb[0].mxu0
        %v4861 = vadd.f32 %v2978, %v4860
        %4862 = vdwg.mxu0
        %v4863 = vand.u32 %v4780, 4294901760
        %v4864 = vsub.f32 %v4780, %v4863
        %v4865 = vand.u32 %v4864, 4294901760
        %v4866 = vsub.f32 %v4864, %v4865
        %v4867 = vand.u32 %v4866, 4294901760
        %4868 = vmatprep.subr.mxu0 %v4867
        %v4869 = vand.u32 %v4779, 4294901760
        %v4870 = vsub.f32 %v4779, %v4869
        %v4871 = vand.u32 %v4870, 4294901760
        %v4872 = vsub.f32 %v4870, %v4871
        %v4873 = vand.u32 %v4872, 4294901760
        %4874 = vmatpush1.msra.mxu0 %v4873
        %v4875 = vand.u32 %v4782, 4294901760
        %v4876 = vsub.f32 %v4782, %v4875
        %v4877 = vand.u32 %v4876, 4294901760
        %v4878 = vsub.f32 %v4876, %v4877
        %v4879 = vand.u32 %v4878, 4294901760
        %4880 = vmatprep.subr.mxu0 %v4879
        %v4881 = vand.u32 %v4781, 4294901760
        %v4882 = vsub.f32 %v4781, %v4881
        %v4883 = vand.u32 %v4882, 4294901760
        %v4884 = vsub.f32 %v4882, %v4883
        %v4885 = vand.u32 %v4884, 4294901760
        %4886 = vmatpush1.msra.mxu0 %v4885
        %4887 = vmatprep.subr.mxu0 0.0
        %4888 = vmatpush1.msra.mxu0 0.0
        %4889 = vmatprep.subr.mxu0 0.0
        %4890 = vmatpush1.msra.mxu0 0.0
        %4891 = vmatprep.subr.mxu0 0.0
        %4892 = vmatpush1.msra.mxu0 0.0
        %4893 = vmatprep.subr.mxu0 0.0
        %4894 = vmatpush1.msra.mxu0 0.0
        %4895 = vmatprep.subr.mxu0 0.0
        %4896 = vmatpush1.msra.mxu0 0.0
        %4897 = vmatprep.subr.mxu0 0.0
        %4898 = vmatpush1.msra.mxu0 0.0
        %4899 = vmatprep.subr.mxu0 0.0
        %4900 = vmatpush1.msra.mxu0 0.0
        %4901 = vmatprep.subr.mxu0 0.0
        %4902 = vmatpush1.msra.mxu0 0.0
        %4903 = vmatprep.subr.mxu0 0.0
        %4904 = vmatpush1.msra.mxu0 0.0
        %4905 = vmatprep.subr.mxu0 0.0
        %4906 = vmatpush1.msra.mxu0 0.0
        %4907 = vmatprep.subr.mxu0 0.0
        %4908 = vmatpush1.msra.mxu0 0.0
        %4909 = vmatprep.subr.mxu0 0.0
        %4910 = vmatpush1.msra.mxu0 0.0
        %4911 = vmatprep.subr.mxu0 0.0
        %4912 = vmatpush1.msra.mxu0 0.0
        %4913 = vmatprep.subr.mxu0 0.0
        %4914 = vmatpush1.msra.mxu0 0.0
        %4915 = vmatprep.subr.mxu0 0.0
        %4916 = vmatpush1.msra.mxu0 0.0
        %4917 = vmatprep.subr.mxu0 0.0
        %4918 = vmatpush1.msra.mxu0 0.0
        %4919 = vmatprep.subr.mxu0 0.0
        %4920 = vmatpush1.msra.mxu0 0.0
        %4921 = vmatprep.subr.mxu0 0.0
        %4922 = vmatpush1.msra.mxu0 0.0
        %4923 = vmatprep.subr.mxu0 0.0
        %4924 = vmatpush1.msra.mxu0 0.0
        %4925 = vmatprep.subr.mxu0 0.0
        %4926 = vmatpush1.msra.mxu0 0.0
        %4927 = vmatprep.subr.mxu0 0.0
        %4928 = vmatpush1.msra.mxu0 0.0
        %4929 = vmatprep.subr.mxu0 0.0
        %4930 = vmatpush1.msra.mxu0 0.0
        %4931 = vmatprep.subr.mxu0 0.0
        %4932 = vmatpush1.msra.mxu0 0.0
        %4933 = vmatprep.subr.mxu0 0.0
        %4934 = vmatpush1.msra.mxu0 0.0
        %4935 = vmatprep.subr.mxu0 0.0
        %4936 = vmatpush1.msra.mxu0 0.0
        %4937 = vmatprep.subr.mxu0 0.0
        %4938 = vmatpush1.msra.mxu0 0.0
        %4939 = vmatprep.subr.mxu0 0.0
        %4940 = vmatpush1.msra.mxu0 0.0
        %4941 = vmatprep.subr.mxu0 0.0
        %4942 = vmatpush1.msra.mxu0 0.0
        %4943 = vmatprep.subr.mxu0 0.0
        %4944 = vmatpush1.msra.mxu0 0.0
        %4945 = vmatprep.subr.mxu0 0.0
        %4946 = vmatpush1.msra.mxu0 0.0
        %4947 = vmatprep.mubr.f32.mxu0 0.0
        %v4948 = vand.u32 %v2982, 4294901760
        %4949 = vmatmul.mubr.f32.gmra.mrb[0].mxu0 %v4948
        %v4950 = vpop.f32.mrb[0].mxu0
        %v4951 = vadd.f32 %v4859, %v4950
        %v4952 = vpop.f32.mrb[0].mxu0
        %v4953 = vadd.f32 %v4861, %v4952
        %4954 = vdwg.mxu0
        %v4955 = vand.u32 %v4780, 4294901760
        %v4956 = vsub.f32 %v4780, %v4955
        %4957 = vmatprep.subr.mxu0 %v4956
        %v4958 = vand.u32 %v4779, 4294901760
        %v4959 = vsub.f32 %v4779, %v4958
        %4960 = vmatpush1.msra.mxu0 %v4959
        %v4961 = vand.u32 %v4782, 4294901760
        %v4962 = vsub.f32 %v4782, %v4961
        %4963 = vmatprep.subr.mxu0 %v4962
        %v4964 = vand.u32 %v4781, 4294901760
        %v4965 = vsub.f32 %v4781, %v4964
        %4966 = vmatpush1.msra.mxu0 %v4965
        %4967 = vmatprep.subr.mxu0 0.0
        %4968 = vmatpush1.msra.mxu0 0.0
        %4969 = vmatprep.subr.mxu0 0.0
        %4970 = vmatpush1.msra.mxu0 0.0
        %4971 = vmatprep.subr.mxu0 0.0
        %4972 = vmatpush1.msra.mxu0 0.0
        %4973 = vmatprep.subr.mxu0 0.0
        %4974 = vmatpush1.msra.mxu0 0.0
        %4975 = vmatprep.subr.mxu0 0.0
        %4976 = vmatpush1.msra.mxu0 0.0
        %4977 = vmatprep.subr.mxu0 0.0
        %4978 = vmatpush1.msra.mxu0 0.0
        %4979 = vmatprep.subr.mxu0 0.0
        %4980 = vmatpush1.msra.mxu0 0.0
        %4981 = vmatprep.subr.mxu0 0.0
        %4982 = vmatpush1.msra.mxu0 0.0
        %4983 = vmatprep.subr.mxu0 0.0
        %4984 = vmatpush1.msra.mxu0 0.0
        %4985 = vmatprep.subr.mxu0 0.0
        %4986 = vmatpush1.msra.mxu0 0.0
        %4987 = vmatprep.subr.mxu0 0.0
        %4988 = vmatpush1.msra.mxu0 0.0
        %4989 = vmatprep.subr.mxu0 0.0
        %4990 = vmatpush1.msra.mxu0 0.0
        %4991 = vmatprep.subr.mxu0 0.0
        %4992 = vmatpush1.msra.mxu0 0.0
        %4993 = vmatprep.subr.mxu0 0.0
        %4994 = vmatpush1.msra.mxu0 0.0
        %4995 = vmatprep.subr.mxu0 0.0
        %4996 = vmatpush1.msra.mxu0 0.0
        %4997 = vmatprep.subr.mxu0 0.0
        %4998 = vmatpush1.msra.mxu0 0.0
        %4999 = vmatprep.subr.mxu0 0.0
        %5000 = vmatpush1.msra.mxu0 0.0
        %5001 = vmatprep.subr.mxu0 0.0
        %5002 = vmatpush1.msra.mxu0 0.0
        %5003 = vmatprep.subr.mxu0 0.0
        %5004 = vmatpush1.msra.mxu0 0.0
        %5005 = vmatprep.subr.mxu0 0.0
        %5006 = vmatpush1.msra.mxu0 0.0
        %5007 = vmatprep.subr.mxu0 0.0
        %5008 = vmatpush1.msra.mxu0 0.0
        %5009 = vmatprep.subr.mxu0 0.0
        %5010 = vmatpush1.msra.mxu0 0.0
        %5011 = vmatprep.subr.mxu0 0.0
        %5012 = vmatpush1.msra.mxu0 0.0
        %5013 = vmatprep.subr.mxu0 0.0
        %5014 = vmatpush1.msra.mxu0 0.0
        %5015 = vmatprep.subr.mxu0 0.0
        %5016 = vmatpush1.msra.mxu0 0.0
        %5017 = vmatprep.subr.mxu0 0.0
        %5018 = vmatpush1.msra.mxu0 0.0
        %5019 = vmatprep.subr.mxu0 0.0
        %5020 = vmatpush1.msra.mxu0 0.0
        %5021 = vmatprep.subr.mxu0 0.0
        %5022 = vmatpush1.msra.mxu0 0.0
        %5023 = vmatprep.subr.mxu0 0.0
        %5024 = vmatpush1.msra.mxu0 0.0
        %5025 = vmatprep.subr.mxu0 0.0
        %5026 = vmatpush1.msra.mxu0 0.0
        %5027 = vmatprep.mubr.f32.mxu0 0.0
        %v5028 = vand.u32 %v2982, 4294901760
        %v5029 = vsub.f32 %v2982, %v5028
        %5030 = vmatmul.mubr.f32.gmra.mrb[0].mxu0 %v5029
        %v5031 = vpop.f32.mrb[0].mxu0
        %v5032 = vadd.f32 %v4951, %v5031
        %v5033 = vpop.f32.mrb[0].mxu0
        %v5034 = vadd.f32 %v4953, %v5033
        %5035 = vdwg.mxu0
        %v5036 = vand.u32 %v4780, 4294901760
        %5037 = vmatprep.subr.mxu0 %v5036
        %v5038 = vand.u32 %v4779, 4294901760
        %5039 = vmatpush1.msra.mxu0 %v5038
        %v5040 = vand.u32 %v4782, 4294901760
        %5041 = vmatprep.subr.mxu0 %v5040
        %v5042 = vand.u32 %v4781, 4294901760
        %5043 = vmatpush1.msra.mxu0 %v5042
        %5044 = vmatprep.subr.mxu0 0.0
        %5045 = vmatpush1.msra.mxu0 0.0
        %5046 = vmatprep.subr.mxu0 0.0
        %5047 = vmatpush1.msra.mxu0 0.0
        %5048 = vmatprep.subr.mxu0 0.0
        %5049 = vmatpush1.msra.mxu0 0.0
        %5050 = vmatprep.subr.mxu0 0.0
        %5051 = vmatpush1.msra.mxu0 0.0
        %5052 = vmatprep.subr.mxu0 0.0
        %5053 = vmatpush1.msra.mxu0 0.0
        %5054 = vmatprep.subr.mxu0 0.0
        %5055 = vmatpush1.msra.mxu0 0.0
        %5056 = vmatprep.subr.mxu0 0.0
        %5057 = vmatpush1.msra.mxu0 0.0
        %5058 = vmatprep.subr.mxu0 0.0
        %5059 = vmatpush1.msra.mxu0 0.0
        %5060 = vmatprep.subr.mxu0 0.0
        %5061 = vmatpush1.msra.mxu0 0.0
        %5062 = vmatprep.subr.mxu0 0.0
        %5063 = vmatpush1.msra.mxu0 0.0
        %5064 = vmatprep.subr.mxu0 0.0
        %5065 = vmatpush1.msra.mxu0 0.0
        %5066 = vmatprep.subr.mxu0 0.0
        %5067 = vmatpush1.msra.mxu0 0.0
        %5068 = vmatprep.subr.mxu0 0.0
        %5069 = vmatpush1.msra.mxu0 0.0
        %5070 = vmatprep.subr.mxu0 0.0
        %5071 = vmatpush1.msra.mxu0 0.0
        %5072 = vmatprep.subr.mxu0 0.0
        %5073 = vmatpush1.msra.mxu0 0.0
        %5074 = vmatprep.subr.mxu0 0.0
        %5075 = vmatpush1.msra.mxu0 0.0
        %5076 = vmatprep.subr.mxu0 0.0
        %5077 = vmatpush1.msra.mxu0 0.0
        %5078 = vmatprep.subr.mxu0 0.0
        %5079 = vmatpush1.msra.mxu0 0.0
        %5080 = vmatprep.subr.mxu0 0.0
        %5081 = vmatpush1.msra.mxu0 0.0
        %5082 = vmatprep.subr.mxu0 0.0
        %5083 = vmatpush1.msra.mxu0 0.0
        %5084 = vmatprep.subr.mxu0 0.0
        %5085 = vmatpush1.msra.mxu0 0.0
        %5086 = vmatprep.subr.mxu0 0.0
        %5087 = vmatpush1.msra.mxu0 0.0
        %5088 = vmatprep.subr.mxu0 0.0
        %5089 = vmatpush1.msra.mxu0 0.0
        %5090 = vmatprep.subr.mxu0 0.0
        %5091 = vmatpush1.msra.mxu0 0.0
        %5092 = vmatprep.subr.mxu0 0.0
        %5093 = vmatpush1.msra.mxu0 0.0
        %5094 = vmatprep.subr.mxu0 0.0
        %5095 = vmatpush1.msra.mxu0 0.0
        %5096 = vmatprep.subr.mxu0 0.0
        %5097 = vmatpush1.msra.mxu0 0.0
        %5098 = vmatprep.subr.mxu0 0.0
        %5099 = vmatpush1.msra.mxu0 0.0
        %5100 = vmatprep.subr.mxu0 0.0
        %5101 = vmatpush1.msra.mxu0 0.0
        %5102 = vmatprep.subr.mxu0 0.0
        %5103 = vmatpush1.msra.mxu0 0.0
        %5104 = vmatprep.mubr.f32.mxu0 0.0
        %v5105 = vand.u32 %v2982, 4294901760
        %v5106 = vsub.f32 %v2982, %v5105
        %v5107 = vand.u32 %v5106, 4294901760
        %5108 = vmatmul.mubr.f32.gmra.mrb[0].mxu0 %v5107
        %v5109 = vpop.f32.mrb[0].mxu0
        %v5110 = vadd.f32 %v5032, %v5109
        %v5111 = vpop.f32.mrb[0].mxu0
        %v5112 = vadd.f32 %v5034, %v5111
        %5113 = vdwg.mxu0
        %v5114 = vand.u32 %v4780, 4294901760
        %v5115 = vsub.f32 %v4780, %v5114
        %v5116 = vand.u32 %v5115, 4294901760
        %5117 = vmatprep.subr.mxu0 %v5116
        %v5118 = vand.u32 %v4779, 4294901760
        %v5119 = vsub.f32 %v4779, %v5118
        %v5120 = vand.u32 %v5119, 4294901760
        %5121 = vmatpush1.msra.mxu0 %v5120
        %v5122 = vand.u32 %v4782, 4294901760
        %v5123 = vsub.f32 %v4782, %v5122
        %v5124 = vand.u32 %v5123, 4294901760
        %5125 = vmatprep.subr.mxu0 %v5124
        %v5126 = vand.u32 %v4781, 4294901760
        %v5127 = vsub.f32 %v4781, %v5126
        %v5128 = vand.u32 %v5127, 4294901760
        %5129 = vmatpush1.msra.mxu0 %v5128
        %5130 = vmatprep.subr.mxu0 0.0
        %5131 = vmatpush1.msra.mxu0 0.0
        %5132 = vmatprep.subr.mxu0 0.0
        %5133 = vmatpush1.msra.mxu0 0.0
        %5134 = vmatprep.subr.mxu0 0.0
        %5135 = vmatpush1.msra.mxu0 0.0
        %5136 = vmatprep.subr.mxu0 0.0
        %5137 = vmatpush1.msra.mxu0 0.0
        %5138 = vmatprep.subr.mxu0 0.0
        %5139 = vmatpush1.msra.mxu0 0.0
        %5140 = vmatprep.subr.mxu0 0.0
        %5141 = vmatpush1.msra.mxu0 0.0
        %5142 = vmatprep.subr.mxu0 0.0
        %5143 = vmatpush1.msra.mxu0 0.0
        %5144 = vmatprep.subr.mxu0 0.0
        %5145 = vmatpush1.msra.mxu0 0.0
        %5146 = vmatprep.subr.mxu0 0.0
        %5147 = vmatpush1.msra.mxu0 0.0
        %5148 = vmatprep.subr.mxu0 0.0
        %5149 = vmatpush1.msra.mxu0 0.0
        %5150 = vmatprep.subr.mxu0 0.0
        %5151 = vmatpush1.msra.mxu0 0.0
        %5152 = vmatprep.subr.mxu0 0.0
        %5153 = vmatpush1.msra.mxu0 0.0
        %5154 = vmatprep.subr.mxu0 0.0
        %5155 = vmatpush1.msra.mxu0 0.0
        %5156 = vmatprep.subr.mxu0 0.0
        %5157 = vmatpush1.msra.mxu0 0.0
        %5158 = vmatprep.subr.mxu0 0.0
        %5159 = vmatpush1.msra.mxu0 0.0
        %5160 = vmatprep.subr.mxu0 0.0
        %5161 = vmatpush1.msra.mxu0 0.0
        %5162 = vmatprep.subr.mxu0 0.0
        %5163 = vmatpush1.msra.mxu0 0.0
        %5164 = vmatprep.subr.mxu0 0.0
        %5165 = vmatpush1.msra.mxu0 0.0
        %5166 = vmatprep.subr.mxu0 0.0
        %5167 = vmatpush1.msra.mxu0 0.0
        %5168 = vmatprep.subr.mxu0 0.0
        %5169 = vmatpush1.msra.mxu0 0.0
        %5170 = vmatprep.subr.mxu0 0.0
        %5171 = vmatpush1.msra.mxu0 0.0
        %5172 = vmatprep.subr.mxu0 0.0
        %5173 = vmatpush1.msra.mxu0 0.0
        %5174 = vmatprep.subr.mxu0 0.0
        %5175 = vmatpush1.msra.mxu0 0.0
        %5176 = vmatprep.subr.mxu0 0.0
        %5177 = vmatpush1.msra.mxu0 0.0
        %5178 = vmatprep.subr.mxu0 0.0
        %5179 = vmatpush1.msra.mxu0 0.0
        %5180 = vmatprep.subr.mxu0 0.0
        %5181 = vmatpush1.msra.mxu0 0.0
        %5182 = vmatprep.subr.mxu0 0.0
        %5183 = vmatpush1.msra.mxu0 0.0
        %5184 = vmatprep.subr.mxu0 0.0
        %5185 = vmatpush1.msra.mxu0 0.0
        %5186 = vmatprep.subr.mxu0 0.0
        %5187 = vmatpush1.msra.mxu0 0.0
        %5188 = vmatprep.subr.mxu0 0.0
        %5189 = vmatpush1.msra.mxu0 0.0
        %5190 = vmatprep.mubr.f32.mxu0 0.0
        %v5191 = vand.u32 %v2982, 4294901760
        %5192 = vmatmul.mubr.f32.gmra.mrb[0].mxu0 %v5191
        %v5193 = vpop.f32.mrb[0].mxu0
        %v5194 = vadd.f32 %v5110, %v5193
        %v5195 = vpop.f32.mrb[0].mxu0
        %v5196 = vadd.f32 %v5112, %v5195
        %5197 = vdwg.mxu0
        %v5198 = vand.u32 %v4780, 4294901760
        %5199 = vmatprep.subr.mxu0 %v5198
        %v5200 = vand.u32 %v4779, 4294901760
        %5201 = vmatpush1.msra.mxu0 %v5200
        %v5202 = vand.u32 %v4782, 4294901760
        %5203 = vmatprep.subr.mxu0 %v5202
        %v5204 = vand.u32 %v4781, 4294901760
        %5205 = vmatpush1.msra.mxu0 %v5204
        %5206 = vmatprep.subr.mxu0 0.0
        %5207 = vmatpush1.msra.mxu0 0.0
        %5208 = vmatprep.subr.mxu0 0.0
        %5209 = vmatpush1.msra.mxu0 0.0
        %5210 = vmatprep.subr.mxu0 0.0
        %5211 = vmatpush1.msra.mxu0 0.0
        %5212 = vmatprep.subr.mxu0 0.0
        %5213 = vmatpush1.msra.mxu0 0.0
        %5214 = vmatprep.subr.mxu0 0.0
        %5215 = vmatpush1.msra.mxu0 0.0
        %5216 = vmatprep.subr.mxu0 0.0
        %5217 = vmatpush1.msra.mxu0 0.0
        %5218 = vmatprep.subr.mxu0 0.0
        %5219 = vmatpush1.msra.mxu0 0.0
        %5220 = vmatprep.subr.mxu0 0.0
        %5221 = vmatpush1.msra.mxu0 0.0
        %5222 = vmatprep.subr.mxu0 0.0
        %5223 = vmatpush1.msra.mxu0 0.0
        %5224 = vmatprep.subr.mxu0 0.0
        %5225 = vmatpush1.msra.mxu0 0.0
        %5226 = vmatprep.subr.mxu0 0.0
        %5227 = vmatpush1.msra.mxu0 0.0
        %5228 = vmatprep.subr.mxu0 0.0
        %5229 = vmatpush1.msra.mxu0 0.0
        %5230 = vmatprep.subr.mxu0 0.0
        %5231 = vmatpush1.msra.mxu0 0.0
        %5232 = vmatprep.subr.mxu0 0.0
        %5233 = vmatpush1.msra.mxu0 0.0
        %5234 = vmatprep.subr.mxu0 0.0
        %5235 = vmatpush1.msra.mxu0 0.0
        %5236 = vmatprep.subr.mxu0 0.0
        %5237 = vmatpush1.msra.mxu0 0.0
        %5238 = vmatprep.subr.mxu0 0.0
        %5239 = vmatpush1.msra.mxu0 0.0
        %5240 = vmatprep.subr.mxu0 0.0
        %5241 = vmatpush1.msra.mxu0 0.0
        %5242 = vmatprep.subr.mxu0 0.0
        %5243 = vmatpush1.msra.mxu0 0.0
        %5244 = vmatprep.subr.mxu0 0.0
        %5245 = vmatpush1.msra.mxu0 0.0
        %5246 = vmatprep.subr.mxu0 0.0
        %5247 = vmatpush1.msra.mxu0 0.0
        %5248 = vmatprep.subr.mxu0 0.0
        %5249 = vmatpush1.msra.mxu0 0.0
        %5250 = vmatprep.subr.mxu0 0.0
        %5251 = vmatpush1.msra.mxu0 0.0
        %5252 = vmatprep.subr.mxu0 0.0
        %5253 = vmatpush1.msra.mxu0 0.0
        %5254 = vmatprep.subr.mxu0 0.0
        %5255 = vmatpush1.msra.mxu0 0.0
        %5256 = vmatprep.subr.mxu0 0.0
        %5257 = vmatpush1.msra.mxu0 0.0
        %5258 = vmatprep.subr.mxu0 0.0
        %5259 = vmatpush1.msra.mxu0 0.0
        %5260 = vmatprep.subr.mxu0 0.0
        %5261 = vmatpush1.msra.mxu0 0.0
        %5262 = vmatprep.subr.mxu0 0.0
        %5263 = vmatpush1.msra.mxu0 0.0
        %5264 = vmatprep.subr.mxu0 0.0
        %5265 = vmatpush1.msra.mxu0 0.0
        %5266 = vmatprep.mubr.f32.mxu0 0.0
        %v5267 = vand.u32 %v2982, 4294901760
        %5268 = vmatmul.mubr.f32.gmra.mrb[0].mxu0 %v5267
        %v5269 = vpop.f32.mrb[0].mxu0
        %v5270 = vadd.f32 %v5194, %v5269
        %v5271 = vpop.f32.mrb[0].mxu0
        %v5272 = vadd.f32 %v5196, %v5271
        %5273 = vdwg.mxu0
        %v5274 = vld [vmem:[%s1405] sm:$0xff]
        %v5275 = vld [vmem:[%s1405 + $0x8] sm:$0xff]
        %v5276 = vadd.f32 %v5270, %v5274
        %v5277 = vadd.f32 %v5272, %v5275
        %v5278 = vmax.f32 %v5276, 0.0
        %v5279 = vmax.f32 %v5277, 0.0
        %s5280 = scalar_lea.vmem %s323, 32 [#allocation6]
        %5281 = vst [vmem:[%s5280] sm:$0xff] %v5278
        %5282 = vst [vmem:[%s5280 + $0x8] sm:$0xff] %v5279
        %v5283 = vld [vmem:[%s1926] sm:$0xff]
        %v5284 = vld [vmem:[%s1926 + $0x8] sm:$0xff]
        %v5285 = vld [vmem:[%s1926 + $0x10] sm:$0xff]
        %v5286 = vld [vmem:[%s1926 + $0x18] sm:$0xff]
        %v5287 = vld [vmem:[%s2452] sm:$0xff]
        %v5288 = vld [vmem:[%s2452 + $0x8] sm:$0xff]
        %v5289 = vld [vmem:[%s2452 + $0x10] sm:$0xff]
        %v5290 = vld [vmem:[%s2452 + $0x18] sm:$0xff]
        %v5291 = vmul.f32 %v5283, %v3497
        %v5292 = vmul.f32 %v5284, %v3497
        %v5293 = vmul.f32 %v5285, %v3501
        %v5294 = vmul.f32 %v5286, %v3501
        %v5295 = vmul.f32 %v5287, %v2468
        %v5296 = vmul.f32 %v5288, %v2468
        %v5297 = vmul.f32 %v5289, %v2473
        %v5298 = vmul.f32 %v5290, %v2473
        %v5299 = vadd.f32 %v5291, %v5295
        %v5300 = vadd.f32 %v5292, %v5296
        %v5301 = vadd.f32 %v5293, %v5297
        %v5302 = vadd.f32 %v5294, %v5298
        %5303 = vrot.lane.b32.xlu0 %v5299, 17
        %v5304 = vpop.permute.xlu0 %5303
        %5305 = vrot.lane.b32.xlu0 %v5301, 17
        %v5306 = vpop.permute.xlu0 %5305
        %5307 = vrot.lane.b32.xlu0 %v5300, 17
        %v5308 = vpop.permute.xlu0 %5307
        %5309 = vrot.lane.b32.xlu0 %v5302, 17
        %v5310 = vpop.permute.xlu0 %5309
        %v5311 = vsel %vm2505, %v5304, %v5308
        %v5312 = vsel %vm2505, %v5306, %v5310
        %v5313 = vsel %vm2505, %v5308, %v5304
        %v5314 = vsel %vm2505, %v5310, %v5306
        %v5315 = vmul.f32 %v5313, %v2513
        %v5316 = vmul.f32 %v5311, %v2517
        %v5317 = vmul.f32 %v5314, %v2513
        %v5318 = vmul.f32 %v5312, %v2517
        %v5319 = vadd.f32 %v5315, 0.0
        %v5320 = vadd.f32 %v5316, 0.0
        %v5321 = vadd.f32 %v5317, 0.0
        %v5322 = vadd.f32 %v5318, 0.0
        %v5323 = vmul.f32 %v5283, %v3545
        %v5324 = vmul.f32 %v5284, %v3545
        %v5325 = vmul.f32 %v5285, %v3549
        %v5326 = vmul.f32 %v5286, %v3549
        %v5327 = vmul.f32 %v5287, %v2528
        %v5328 = vmul.f32 %v5288, %v2528
        %v5329 = vmul.f32 %v5289, %v2532
        %v5330 = vmul.f32 %v5290, %v2532
        %v5331 = vadd.f32 %v5323, %v5327
        %v5332 = vadd.f32 %v5324, %v5328
        %v5333 = vadd.f32 %v5325, %v5329
        %v5334 = vadd.f32 %v5326, %v5330
        %5335 = vrot.lane.b32.xlu0 %v5331, 16
        %v5336 = vpop.permute.xlu0 %5335
        %5337 = vrot.lane.b32.xlu0 %v5333, 16
        %v5338 = vpop.permute.xlu0 %5337
        %5339 = vrot.lane.b32.xlu0 %v5332, 16
        %v5340 = vpop.permute.xlu0 %5339
        %5341 = vrot.lane.b32.xlu0 %v5334, 16
        %v5342 = vpop.permute.xlu0 %5341
        %v5343 = vsel %vm2562, %v5336, %v5340
        %v5344 = vsel %vm2562, %v5338, %v5342
        %v5345 = vsel %vm2562, %v5340, %v5336
        %v5346 = vsel %vm2562, %v5342, %v5338
        %v5347 = vmul.f32 %v5345, %v2570
        %v5348 = vmul.f32 %v5343, %v2574
        %v5349 = vmul.f32 %v5346, %v2570
        %v5350 = vmul.f32 %v5344, %v2574
        %v5351 = vadd.f32 %v5319, %v5347
        %v5352 = vadd.f32 %v5320, %v5348
        %v5353 = vadd.f32 %v5321, %v5349
        %v5354 = vadd.f32 %v5322, %v5350
        %v5355 = vmul.f32 %v5283, %v3593
        %v5356 = vmul.f32 %v5284, %v3593
        %v5357 = vmul.f32 %v5285, %v3597
        %v5358 = vmul.f32 %v5286, %v3597
        %v5359 = vmul.f32 %v5287, %v2585
        %v5360 = vmul.f32 %v5288, %v2585
        %v5361 = vmul.f32 %v5289, %v2589
        %v5362 = vmul.f32 %v5290, %v2589
        %v5363 = vadd.f32 %v5355, %v5359
        %v5364 = vadd.f32 %v5356, %v5360
        %v5365 = vadd.f32 %v5357, %v5361
        %v5366 = vadd.f32 %v5358, %v5362
        %5367 = vrot.lane.b32.xlu0 %v5363, 15
        %v5368 = vpop.permute.xlu0 %5367
        %5369 = vrot.lane.b32.xlu0 %v5365, 15
        %v5370 = vpop.permute.xlu0 %5369
        %5371 = vrot.lane.b32.xlu0 %v5364, 15
        %v5372 = vpop.permute.xlu0 %5371
        %5373 = vrot.lane.b32.xlu0 %v5366, 15
        %v5374 = vpop.permute.xlu0 %5373
        %v5375 = vsel %vm2619, %v5368, %v5372
        %v5376 = vsel %vm2619, %v5370, %v5374
        %v5377 = vsel %vm2619, %v5372, %v5368
        %v5378 = vsel %vm2619, %v5374, %v5370
        %v5379 = vmul.f32 %v5377, %v2627
        %v5380 = vmul.f32 %v5375, %v2631
        %v5381 = vmul.f32 %v5378, %v2627
        %v5382 = vmul.f32 %v5376, %v2631
        %v5383 = vadd.f32 %v5351, %v5379
        %v5384 = vadd.f32 %v5352, %v5380
        %v5385 = vadd.f32 %v5353, %v5381
        %v5386 = vadd.f32 %v5354, %v5382
        %v5387 = vmul.f32 %v5283, %v3641
        %v5388 = vmul.f32 %v5284, %v3641
        %v5389 = vmul.f32 %v5285, %v3645
        %v5390 = vmul.f32 %v5286, %v3645
        %v5391 = vmul.f32 %v5287, %v2642
        %v5392 = vmul.f32 %v5288, %v2642
        %v5393 = vmul.f32 %v5289, %v2646
        %v5394 = vmul.f32 %v5290, %v2646
        %v5395 = vadd.f32 %v5387, %v5391
        %v5396 = vadd.f32 %v5388, %v5392
        %v5397 = vadd.f32 %v5389, %v5393
        %v5398 = vadd.f32 %v5390, %v5394
        %5399 = vrot.lane.b32.xlu0 %v5395, 1
        %v5400 = vpop.permute.xlu0 %5399
        %5401 = vrot.lane.b32.xlu0 %v5397, 1
        %v5402 = vpop.permute.xlu0 %5401
        %5403 = vrot.lane.b32.xlu0 %v5396, 1
        %v5404 = vpop.permute.xlu0 %5403
        %5405 = vrot.lane.b32.xlu0 %v5398, 1
        %v5406 = vpop.permute.xlu0 %5405
        %v5407 = vsel %vm2676, %v5400, %v5404
        %v5408 = vsel %vm2676, %v5402, %v5406
        %v5409 = vsel %vm2676, %v5404, %v5400
        %v5410 = vsel %vm2676, %v5406, %v5402
        %v5411 = vmul.f32 %v5409, %v2684
        %v5412 = vmul.f32 %v5407, %v2688
        %v5413 = vmul.f32 %v5410, %v2684
        %v5414 = vmul.f32 %v5408, %v2688
        %v5415 = vadd.f32 %v5383, %v5411
        %v5416 = vadd.f32 %v5384, %v5412
        %v5417 = vadd.f32 %v5385, %v5413
        %v5418 = vadd.f32 %v5386, %v5414
        %v5419 = vmul.f32 %v5283, %v3689
        %v5420 = vmul.f32 %v5284, %v3689
        %v5421 = vmul.f32 %v5285, %v3693
        %v5422 = vmul.f32 %v5286, %v3693
        %v5423 = vmul.f32 %v5287, %v2699
        %v5424 = vmul.f32 %v5288, %v2699
        %v5425 = vmul.f32 %v5289, %v2703
        %v5426 = vmul.f32 %v5290, %v2703
        %v5427 = vadd.f32 %v5419, %v5423
        %v5428 = vadd.f32 %v5420, %v5424
        %v5429 = vadd.f32 %v5421, %v5425
        %v5430 = vadd.f32 %v5422, %v5426
        %v5431 = vadd.f32 %v5415, %v5427
        %v5432 = vadd.f32 %v5416, %v5428
        %v5433 = vadd.f32 %v5417, %v5429
        %v5434 = vadd.f32 %v5418, %v5430
        %v5435 = vmul.f32 %v5283, %v3721
        %v5436 = vmul.f32 %v5284, %v3721
        %v5437 = vmul.f32 %v5285, %v3725
        %v5438 = vmul.f32 %v5286, %v3725
        %v5439 = vmul.f32 %v5287, %v2731
        %v5440 = vmul.f32 %v5288, %v2731
        %v5441 = vmul.f32 %v5289, %v2735
        %v5442 = vmul.f32 %v5290, %v2735
        %v5443 = vadd.f32 %v5435, %v5439
        %v5444 = vadd.f32 %v5436, %v5440
        %v5445 = vadd.f32 %v5437, %v5441
        %v5446 = vadd.f32 %v5438, %v5442
        %5447 = vrot.lane.b32.xlu0 %v5443, 127
        %v5448 = vpop.permute.xlu0 %5447
        %5449 = vrot.lane.b32.xlu0 %v5445, 127
        %v5450 = vpop.permute.xlu0 %5449
        %5451 = vrot.lane.b32.xlu0 %v5444, 127
        %v5452 = vpop.permute.xlu0 %5451
        %5453 = vrot.lane.b32.xlu0 %v5446, 127
        %v5454 = vpop.permute.xlu0 %5453
        %v5455 = vsel %vm2765, %v5448, %v5452
        %v5456 = vsel %vm2765, %v5450, %v5454
        %v5457 = vsel %vm2765, %v5452, %v5448
        %v5458 = vsel %vm2765, %v5454, %v5450
        %v5459 = vmul.f32 %v5455, %v2773
        %v5460 = vmul.f32 %v5457, %v2777
        %v5461 = vmul.f32 %v5456, %v2773
        %v5462 = vmul.f32 %v5458, %v2777
        %v5463 = vadd.f32 %v5431, %v5459
        %v5464 = vadd.f32 %v5432, %v5460
        %v5465 = vadd.f32 %v5433, %v5461
        %v5466 = vadd.f32 %v5434, %v5462
        %v5467 = vmul.f32 %v5283, %v3769
        %v5468 = vmul.f32 %v5284, %v3769
        %v5469 = vmul.f32 %v5285, %v3773
        %v5470 = vmul.f32 %v5286, %v3773
        %v5471 = vmul.f32 %v5287, %v2788
        %v5472 = vmul.f32 %v5288, %v2788
        %v5473 = vmul.f32 %v5289, %v2792
        %v5474 = vmul.f32 %v5290, %v2792
        %v5475 = vadd.f32 %v5467, %v5471
        %v5476 = vadd.f32 %v5468, %v5472
        %v5477 = vadd.f32 %v5469, %v5473
        %v5478 = vadd.f32 %v5470, %v5474
        %5479 = vrot.lane.b32.xlu0 %v5475, 113
        %v5480 = vpop.permute.xlu0 %5479
        %5481 = vrot.lane.b32.xlu0 %v5477, 113
        %v5482 = vpop.permute.xlu0 %5481
        %5483 = vrot.lane.b32.xlu0 %v5476, 113
        %v5484 = vpop.permute.xlu0 %5483
        %5485 = vrot.lane.b32.xlu0 %v5478, 113
        %v5486 = vpop.permute.xlu0 %5485
        %v5487 = vsel %vm2822, %v5480, %v5484
        %v5488 = vsel %vm2822, %v5482, %v5486
        %v5489 = vsel %vm2822, %v5484, %v5480
        %v5490 = vsel %vm2822, %v5486, %v5482
        %v5491 = vmul.f32 %v5487, %v2830
        %v5492 = vmul.f32 %v5489, %v2834
        %v5493 = vmul.f32 %v5488, %v2830
        %v5494 = vmul.f32 %v5490, %v2834
        %v5495 = vadd.f32 %v5463, %v5491
        %v5496 = vadd.f32 %v5464, %v5492
        %v5497 = vadd.f32 %v5465, %v5493
        %v5498 = vadd.f32 %v5466, %v5494
        %v5499 = vmul.f32 %v5283, %v3817
        %v5500 = vmul.f32 %v5284, %v3817
        %v5501 = vmul.f32 %v5285, %v3821
        %v5502 = vmul.f32 %v5286, %v3821
        %v5503 = vmul.f32 %v5287, %v2845
        %v5504 = vmul.f32 %v5288, %v2845
        %v5505 = vmul.f32 %v5289, %v2849
        %v5506 = vmul.f32 %v5290, %v2849
        %v5507 = vadd.f32 %v5499, %v5503
        %v5508 = vadd.f32 %v5500, %v5504
        %v5509 = vadd.f32 %v5501, %v5505
        %v5510 = vadd.f32 %v5502, %v5506
        %5511 = vrot.lane.b32.xlu0 %v5507, 112
        %v5512 = vpop.permute.xlu0 %5511
        %5513 = vrot.lane.b32.xlu0 %v5509, 112
        %v5514 = vpop.permute.xlu0 %5513
        %5515 = vrot.lane.b32.xlu0 %v5508, 112
        %v5516 = vpop.permute.xlu0 %5515
        %5517 = vrot.lane.b32.xlu0 %v5510, 112
        %v5518 = vpop.permute.xlu0 %5517
        %v5519 = vsel %vm2879, %v5512, %v5516
        %v5520 = vsel %vm2879, %v5514, %v5518
        %v5521 = vsel %vm2879, %v5516, %v5512
        %v5522 = vsel %vm2879, %v5518, %v5514
        %v5523 = vmul.f32 %v5519, %v2887
        %v5524 = vmul.f32 %v5521, %v2891
        %v5525 = vmul.f32 %v5520, %v2887
        %v5526 = vmul.f32 %v5522, %v2891
        %v5527 = vadd.f32 %v5495, %v5523
        %v5528 = vadd.f32 %v5496, %v5524
        %v5529 = vadd.f32 %v5497, %v5525
        %v5530 = vadd.f32 %v5498, %v5526
        %v5531 = vmul.f32 %v5283, %v3865
        %v5532 = vmul.f32 %v5284, %v3865
        %v5533 = vmul.f32 %v5285, %v3869
        %v5534 = vmul.f32 %v5286, %v3869
        %v5535 = vmul.f32 %v5287, %v2902
        %v5536 = vmul.f32 %v5288, %v2902
        %v5537 = vmul.f32 %v5289, %v2906
        %v5538 = vmul.f32 %v5290, %v2906
        %v5539 = vadd.f32 %v5531, %v5535
        %v5540 = vadd.f32 %v5532, %v5536
        %v5541 = vadd.f32 %v5533, %v5537
        %v5542 = vadd.f32 %v5534, %v5538
        %5543 = vrot.lane.b32.xlu0 %v5539, 111
        %v5544 = vpop.permute.xlu0 %5543
        %5545 = vrot.lane.b32.xlu0 %v5541, 111
        %v5546 = vpop.permute.xlu0 %5545
        %5547 = vrot.lane.b32.xlu0 %v5540, 111
        %v5548 = vpop.permute.xlu0 %5547
        %5549 = vrot.lane.b32.xlu0 %v5542, 111
        %v5550 = vpop.permute.xlu0 %5549
        %v5551 = vsel %vm2936, %v5544, %v5548
        %v5552 = vsel %vm2936, %v5546, %v5550
        %v5553 = vsel %vm2936, %v5548, %v5544
        %v5554 = vsel %vm2936, %v5550, %v5546
        %v5555 = vmul.f32 %v5551, %v2944
        %v5556 = vmul.f32 %v5553, %v2948
        %v5557 = vmul.f32 %v5552, %v2944
        %v5558 = vmul.f32 %v5554, %v2948
        %v5559 = vadd.f32 %v5527, %v5555
        %v5560 = vadd.f32 %v5528, %v5556
        %v5561 = vadd.f32 %v5529, %v5557
        %v5562 = vadd.f32 %v5530, %v5558
        %v5563 = vadd.f32 %v5559, %v2960
        %v5564 = vadd.f32 %v5560, %v2960
        %v5565 = vadd.f32 %v5561, %v2965
        %v5566 = vadd.f32 %v5562, %v2965
        %v5567 = vmax.f32 %v5563, 0.0
        %v5568 = vmax.f32 %v5564, 0.0
        %v5569 = vmax.f32 %v5565, 0.0
        %v5570 = vmax.f32 %v5566, 0.0
        %v5571 = vand.u32 %v5568, 4294901760
        %5572 = vmatprep.subr.mxu0 %v5571
        %v5573 = vand.u32 %v5567, 4294901760
        %5574 = vmatpush1.msra.mxu0 %v5573
        %v5575 = vand.u32 %v5570, 4294901760
        %5576 = vmatprep.subr.mxu0 %v5575
        %v5577 = vand.u32 %v5569, 4294901760
        %5578 = vmatpush1.msra.mxu0 %v5577
        %5579 = vmatprep.subr.mxu0 0.0
        %5580 = vmatpush1.msra.mxu0 0.0
        %5581 = vmatprep.subr.mxu0 0.0
        %5582 = vmatpush1.msra.mxu0 0.0
        %5583 = vmatprep.subr.mxu0 0.0
        %5584 = vmatpush1.msra.mxu0 0.0
        %5585 = vmatprep.subr.mxu0 0.0
        %5586 = vmatpush1.msra.mxu0 0.0
        %5587 = vmatprep.subr.mxu0 0.0
        %5588 = vmatpush1.msra.mxu0 0.0
        %5589 = vmatprep.subr.mxu0 0.0
        %5590 = vmatpush1.msra.mxu0 0.0
        %5591 = vmatprep.subr.mxu0 0.0
        %5592 = vmatpush1.msra.mxu0 0.0
        %5593 = vmatprep.subr.mxu0 0.0
        %5594 = vmatpush1.msra.mxu0 0.0
        %5595 = vmatprep.subr.mxu0 0.0
        %5596 = vmatpush1.msra.mxu0 0.0
        %5597 = vmatprep.subr.mxu0 0.0
        %5598 = vmatpush1.msra.mxu0 0.0
        %5599 = vmatprep.subr.mxu0 0.0
        %5600 = vmatpush1.msra.mxu0 0.0
        %5601 = vmatprep.subr.mxu0 0.0
        %5602 = vmatpush1.msra.mxu0 0.0
        %5603 = vmatprep.subr.mxu0 0.0
        %5604 = vmatpush1.msra.mxu0 0.0
        %5605 = vmatprep.subr.mxu0 0.0
        %5606 = vmatpush1.msra.mxu0 0.0
        %5607 = vmatprep.subr.mxu0 0.0
        %5608 = vmatpush1.msra.mxu0 0.0
        %5609 = vmatprep.subr.mxu0 0.0
        %5610 = vmatpush1.msra.mxu0 0.0
        %5611 = vmatprep.subr.mxu0 0.0
        %5612 = vmatpush1.msra.mxu0 0.0
        %5613 = vmatprep.subr.mxu0 0.0
        %5614 = vmatpush1.msra.mxu0 0.0
        %5615 = vmatprep.subr.mxu0 0.0
        %5616 = vmatpush1.msra.mxu0 0.0
        %5617 = vmatprep.subr.mxu0 0.0
        %5618 = vmatpush1.msra.mxu0 0.0
        %5619 = vmatprep.subr.mxu0 0.0
        %5620 = vmatpush1.msra.mxu0 0.0
        %5621 = vmatprep.subr.mxu0 0.0
        %5622 = vmatpush1.msra.mxu0 0.0
        %5623 = vmatprep.subr.mxu0 0.0
        %5624 = vmatpush1.msra.mxu0 0.0
        %5625 = vmatprep.subr.mxu0 0.0
        %5626 = vmatpush1.msra.mxu0 0.0
        %5627 = vmatprep.subr.mxu0 0.0
        %5628 = vmatpush1.msra.mxu0 0.0
        %5629 = vmatprep.subr.mxu0 0.0
        %5630 = vmatpush1.msra.mxu0 0.0
        %5631 = vmatprep.subr.mxu0 0.0
        %5632 = vmatpush1.msra.mxu0 0.0
        %5633 = vmatprep.subr.mxu0 0.0
        %5634 = vmatpush1.msra.mxu0 0.0
        %5635 = vmatprep.subr.mxu0 0.0
        %5636 = vmatpush1.msra.mxu0 0.0
        %5637 = vmatprep.subr.mxu0 0.0
        %5638 = vmatpush1.msra.mxu0 0.0
        %5639 = vmatprep.mubr.f32.mxu0 0.0
        %v5640 = vand.u32 %v2982, 4294901760
        %v5641 = vsub.f32 %v2982, %v5640
        %v5642 = vand.u32 %v5641, 4294901760
        %v5643 = vsub.f32 %v5641, %v5642
        %v5644 = vand.u32 %v5643, 4294901760
        %5645 = vmatmul.mubr.f32.gmra.mrb[0].mxu0 %v5644
        %v5646 = vpop.f32.mrb[0].mxu0
        %v5647 = vadd.f32 %v2978, %v5646
        %v5648 = vpop.f32.mrb[0].mxu0
        %v5649 = vadd.f32 %v2978, %v5648
        %5650 = vdwg.mxu0
        %v5651 = vand.u32 %v5568, 4294901760
        %v5652 = vsub.f32 %v5568, %v5651
        %v5653 = vand.u32 %v5652, 4294901760
        %v5654 = vsub.f32 %v5652, %v5653
        %v5655 = vand.u32 %v5654, 4294901760
        %5656 = vmatprep.subr.mxu0 %v5655
        %v5657 = vand.u32 %v5567, 4294901760
        %v5658 = vsub.f32 %v5567, %v5657
        %v5659 = vand.u32 %v5658, 4294901760
        %v5660 = vsub.f32 %v5658, %v5659
        %v5661 = vand.u32 %v5660, 4294901760
        %5662 = vmatpush1.msra.mxu0 %v5661
        %v5663 = vand.u32 %v5570, 4294901760
        %v5664 = vsub.f32 %v5570, %v5663
        %v5665 = vand.u32 %v5664, 4294901760
        %v5666 = vsub.f32 %v5664, %v5665
        %v5667 = vand.u32 %v5666, 4294901760
        %5668 = vmatprep.subr.mxu0 %v5667
        %v5669 = vand.u32 %v5569, 4294901760
        %v5670 = vsub.f32 %v5569, %v5669
        %v5671 = vand.u32 %v5670, 4294901760
        %v5672 = vsub.f32 %v5670, %v5671
        %v5673 = vand.u32 %v5672, 4294901760
        %5674 = vmatpush1.msra.mxu0 %v5673
        %5675 = vmatprep.subr.mxu0 0.0
        %5676 = vmatpush1.msra.mxu0 0.0
        %5677 = vmatprep.subr.mxu0 0.0
        %5678 = vmatpush1.msra.mxu0 0.0
        %5679 = vmatprep.subr.mxu0 0.0
        %5680 = vmatpush1.msra.mxu0 0.0
        %5681 = vmatprep.subr.mxu0 0.0
        %5682 = vmatpush1.msra.mxu0 0.0
        %5683 = vmatprep.subr.mxu0 0.0
        %5684 = vmatpush1.msra.mxu0 0.0
        %5685 = vmatprep.subr.mxu0 0.0
        %5686 = vmatpush1.msra.mxu0 0.0
        %5687 = vmatprep.subr.mxu0 0.0
        %5688 = vmatpush1.msra.mxu0 0.0
        %5689 = vmatprep.subr.mxu0 0.0
        %5690 = vmatpush1.msra.mxu0 0.0
        %5691 = vmatprep.subr.mxu0 0.0
        %5692 = vmatpush1.msra.mxu0 0.0
        %5693 = vmatprep.subr.mxu0 0.0
        %5694 = vmatpush1.msra.mxu0 0.0
        %5695 = vmatprep.subr.mxu0 0.0
        %5696 = vmatpush1.msra.mxu0 0.0
        %5697 = vmatprep.subr.mxu0 0.0
        %5698 = vmatpush1.msra.mxu0 0.0
        %5699 = vmatprep.subr.mxu0 0.0
        %5700 = vmatpush1.msra.mxu0 0.0
        %5701 = vmatprep.subr.mxu0 0.0
        %5702 = vmatpush1.msra.mxu0 0.0
        %5703 = vmatprep.subr.mxu0 0.0
        %5704 = vmatpush1.msra.mxu0 0.0
        %5705 = vmatprep.subr.mxu0 0.0
        %5706 = vmatpush1.msra.mxu0 0.0
        %5707 = vmatprep.subr.mxu0 0.0
        %5708 = vmatpush1.msra.mxu0 0.0
        %5709 = vmatprep.subr.mxu0 0.0
        %5710 = vmatpush1.msra.mxu0 0.0
        %5711 = vmatprep.subr.mxu0 0.0
        %5712 = vmatpush1.msra.mxu0 0.0
        %5713 = vmatprep.subr.mxu0 0.0
        %5714 = vmatpush1.msra.mxu0 0.0
        %5715 = vmatprep.subr.mxu0 0.0
        %5716 = vmatpush1.msra.mxu0 0.0
        %5717 = vmatprep.subr.mxu0 0.0
        %5718 = vmatpush1.msra.mxu0 0.0
        %5719 = vmatprep.subr.mxu0 0.0
        %5720 = vmatpush1.msra.mxu0 0.0
        %5721 = vmatprep.subr.mxu0 0.0
        %5722 = vmatpush1.msra.mxu0 0.0
        %5723 = vmatprep.subr.mxu0 0.0
        %5724 = vmatpush1.msra.mxu0 0.0
        %5725 = vmatprep.subr.mxu0 0.0
        %5726 = vmatpush1.msra.mxu0 0.0
        %5727 = vmatprep.subr.mxu0 0.0
        %5728 = vmatpush1.msra.mxu0 0.0
        %5729 = vmatprep.subr.mxu0 0.0
        %5730 = vmatpush1.msra.mxu0 0.0
        %5731 = vmatprep.subr.mxu0 0.0
        %5732 = vmatpush1.msra.mxu0 0.0
        %5733 = vmatprep.subr.mxu0 0.0
        %5734 = vmatpush1.msra.mxu0 0.0
        %5735 = vmatprep.mubr.f32.mxu0 0.0
        %v5736 = vand.u32 %v2982, 4294901760
        %5737 = vmatmul.mubr.f32.gmra.mrb[0].mxu0 %v5736
        %v5738 = vpop.f32.mrb[0].mxu0
        %v5739 = vadd.f32 %v5647, %v5738
        %v5740 = vpop.f32.mrb[0].mxu0
        %v5741 = vadd.f32 %v5649, %v5740
        %5742 = vdwg.mxu0
        %v5743 = vand.u32 %v5568, 4294901760
        %v5744 = vsub.f32 %v5568, %v5743
        %5745 = vmatprep.subr.mxu0 %v5744
        %v5746 = vand.u32 %v5567, 4294901760
        %v5747 = vsub.f32 %v5567, %v5746
        %5748 = vmatpush1.msra.mxu0 %v5747
        %v5749 = vand.u32 %v5570, 4294901760
        %v5750 = vsub.f32 %v5570, %v5749
        %5751 = vmatprep.subr.mxu0 %v5750
        %v5752 = vand.u32 %v5569, 4294901760
        %v5753 = vsub.f32 %v5569, %v5752
        %5754 = vmatpush1.msra.mxu0 %v5753
        %5755 = vmatprep.subr.mxu0 0.0
        %5756 = vmatpush1.msra.mxu0 0.0
        %5757 = vmatprep.subr.mxu0 0.0
        %5758 = vmatpush1.msra.mxu0 0.0
        %5759 = vmatprep.subr.mxu0 0.0
        %5760 = vmatpush1.msra.mxu0 0.0
        %5761 = vmatprep.subr.mxu0 0.0
        %5762 = vmatpush1.msra.mxu0 0.0
        %5763 = vmatprep.subr.mxu0 0.0
        %5764 = vmatpush1.msra.mxu0 0.0
        %5765 = vmatprep.subr.mxu0 0.0
        %5766 = vmatpush1.msra.mxu0 0.0
        %5767 = vmatprep.subr.mxu0 0.0
        %5768 = vmatpush1.msra.mxu0 0.0
        %5769 = vmatprep.subr.mxu0 0.0
        %5770 = vmatpush1.msra.mxu0 0.0
        %5771 = vmatprep.subr.mxu0 0.0
        %5772 = vmatpush1.msra.mxu0 0.0
        %5773 = vmatprep.subr.mxu0 0.0
        %5774 = vmatpush1.msra.mxu0 0.0
        %5775 = vmatprep.subr.mxu0 0.0
        %5776 = vmatpush1.msra.mxu0 0.0
        %5777 = vmatprep.subr.mxu0 0.0
        %5778 = vmatpush1.msra.mxu0 0.0
        %5779 = vmatprep.subr.mxu0 0.0
        %5780 = vmatpush1.msra.mxu0 0.0
        %5781 = vmatprep.subr.mxu0 0.0
        %5782 = vmatpush1.msra.mxu0 0.0
        %5783 = vmatprep.subr.mxu0 0.0
        %5784 = vmatpush1.msra.mxu0 0.0
        %5785 = vmatprep.subr.mxu0 0.0
        %5786 = vmatpush1.msra.mxu0 0.0
        %5787 = vmatprep.subr.mxu0 0.0
        %5788 = vmatpush1.msra.mxu0 0.0
        %5789 = vmatprep.subr.mxu0 0.0
        %5790 = vmatpush1.msra.mxu0 0.0
        %5791 = vmatprep.subr.mxu0 0.0
        %5792 = vmatpush1.msra.mxu0 0.0
        %5793 = vmatprep.subr.mxu0 0.0
        %5794 = vmatpush1.msra.mxu0 0.0
        %5795 = vmatprep.subr.mxu0 0.0
        %5796 = vmatpush1.msra.mxu0 0.0
        %5797 = vmatprep.subr.mxu0 0.0
        %5798 = vmatpush1.msra.mxu0 0.0
        %5799 = vmatprep.subr.mxu0 0.0
        %5800 = vmatpush1.msra.mxu0 0.0
        %5801 = vmatprep.subr.mxu0 0.0
        %5802 = vmatpush1.msra.mxu0 0.0
        %5803 = vmatprep.subr.mxu0 0.0
        %5804 = vmatpush1.msra.mxu0 0.0
        %5805 = vmatprep.subr.mxu0 0.0
        %5806 = vmatpush1.msra.mxu0 0.0
        %5807 = vmatprep.subr.mxu0 0.0
        %5808 = vmatpush1.msra.mxu0 0.0
        %5809 = vmatprep.subr.mxu0 0.0
        %5810 = vmatpush1.msra.mxu0 0.0
        %5811 = vmatprep.subr.mxu0 0.0
        %5812 = vmatpush1.msra.mxu0 0.0
        %5813 = vmatprep.subr.mxu0 0.0
        %5814 = vmatpush1.msra.mxu0 0.0
        %5815 = vmatprep.mubr.f32.mxu0 0.0
        %v5816 = vand.u32 %v2982, 4294901760
        %v5817 = vsub.f32 %v2982, %v5816
        %5818 = vmatmul.mubr.f32.gmra.mrb[0].mxu0 %v5817
        %v5819 = vpop.f32.mrb[0].mxu0
        %v5820 = vadd.f32 %v5739, %v5819
        %v5821 = vpop.f32.mrb[0].mxu0
        %v5822 = vadd.f32 %v5741, %v5821
        %5823 = vdwg.mxu0
        %v5824 = vand.u32 %v5568, 4294901760
        %5825 = vmatprep.subr.mxu0 %v5824
        %v5826 = vand.u32 %v5567, 4294901760
        %5827 = vmatpush1.msra.mxu0 %v5826
        %v5828 = vand.u32 %v5570, 4294901760
        %5829 = vmatprep.subr.mxu0 %v5828
        %v5830 = vand.u32 %v5569, 4294901760
        %5831 = vmatpush1.msra.mxu0 %v5830
        %5832 = vmatprep.subr.mxu0 0.0
        %5833 = vmatpush1.msra.mxu0 0.0
        %5834 = vmatprep.subr.mxu0 0.0
        %5835 = vmatpush1.msra.mxu0 0.0
        %5836 = vmatprep.subr.mxu0 0.0
        %5837 = vmatpush1.msra.mxu0 0.0
        %5838 = vmatprep.subr.mxu0 0.0
        %5839 = vmatpush1.msra.mxu0 0.0
        %5840 = vmatprep.subr.mxu0 0.0
        %5841 = vmatpush1.msra.mxu0 0.0
        %5842 = vmatprep.subr.mxu0 0.0
        %5843 = vmatpush1.msra.mxu0 0.0
        %5844 = vmatprep.subr.mxu0 0.0
        %5845 = vmatpush1.msra.mxu0 0.0
        %5846 = vmatprep.subr.mxu0 0.0
        %5847 = vmatpush1.msra.mxu0 0.0
        %5848 = vmatprep.subr.mxu0 0.0
        %5849 = vmatpush1.msra.mxu0 0.0
        %5850 = vmatprep.subr.mxu0 0.0
        %5851 = vmatpush1.msra.mxu0 0.0
        %5852 = vmatprep.subr.mxu0 0.0
        %5853 = vmatpush1.msra.mxu0 0.0
        %5854 = vmatprep.subr.mxu0 0.0
        %5855 = vmatpush1.msra.mxu0 0.0
        %5856 = vmatprep.subr.mxu0 0.0
        %5857 = vmatpush1.msra.mxu0 0.0
        %5858 = vmatprep.subr.mxu0 0.0
        %5859 = vmatpush1.msra.mxu0 0.0
        %5860 = vmatprep.subr.mxu0 0.0
        %5861 = vmatpush1.msra.mxu0 0.0
        %5862 = vmatprep.subr.mxu0 0.0
        %5863 = vmatpush1.msra.mxu0 0.0
        %5864 = vmatprep.subr.mxu0 0.0
        %5865 = vmatpush1.msra.mxu0 0.0
        %5866 = vmatprep.subr.mxu0 0.0
        %5867 = vmatpush1.msra.mxu0 0.0
        %5868 = vmatprep.subr.mxu0 0.0
        %5869 = vmatpush1.msra.mxu0 0.0
        %5870 = vmatprep.subr.mxu0 0.0
        %5871 = vmatpush1.msra.mxu0 0.0
        %5872 = vmatprep.subr.mxu0 0.0
        %5873 = vmatpush1.msra.mxu0 0.0
        %5874 = vmatprep.subr.mxu0 0.0
        %5875 = vmatpush1.msra.mxu0 0.0
        %5876 = vmatprep.subr.mxu0 0.0
        %5877 = vmatpush1.msra.mxu0 0.0
        %5878 = vmatprep.subr.mxu0 0.0
        %5879 = vmatpush1.msra.mxu0 0.0
        %5880 = vmatprep.subr.mxu0 0.0
        %5881 = vmatpush1.msra.mxu0 0.0
        %5882 = vmatprep.subr.mxu0 0.0
        %5883 = vmatpush1.msra.mxu0 0.0
        %5884 = vmatprep.subr.mxu0 0.0
        %5885 = vmatpush1.msra.mxu0 0.0
        %5886 = vmatprep.subr.mxu0 0.0
        %5887 = vmatpush1.msra.mxu0 0.0
        %5888 = vmatprep.subr.mxu0 0.0
        %5889 = vmatpush1.msra.mxu0 0.0
        %5890 = vmatprep.subr.mxu0 0.0
        %5891 = vmatpush1.msra.mxu0 0.0
        %5892 = vmatprep.mubr.f32.mxu0 0.0
        %v5893 = vand.u32 %v2982, 4294901760
        %v5894 = vsub.f32 %v2982, %v5893
        %v5895 = vand.u32 %v5894, 4294901760
        %5896 = vmatmul.mubr.f32.gmra.mrb[0].mxu0 %v5895
        %v5897 = vpop.f32.mrb[0].mxu0
        %v5898 = vadd.f32 %v5820, %v5897
        %v5899 = vpop.f32.mrb[0].mxu0
        %v5900 = vadd.f32 %v5822, %v5899
        %5901 = vdwg.mxu0
        %v5902 = vand.u32 %v5568, 4294901760
        %v5903 = vsub.f32 %v5568, %v5902
        %v5904 = vand.u32 %v5903, 4294901760
        %5905 = vmatprep.subr.mxu0 %v5904
        %v5906 = vand.u32 %v5567, 4294901760
        %v5907 = vsub.f32 %v5567, %v5906
        %v5908 = vand.u32 %v5907, 4294901760
        %5909 = vmatpush1.msra.mxu0 %v5908
        %v5910 = vand.u32 %v5570, 4294901760
        %v5911 = vsub.f32 %v5570, %v5910
        %v5912 = vand.u32 %v5911, 4294901760
        %5913 = vmatprep.subr.mxu0 %v5912
        %v5914 = vand.u32 %v5569, 4294901760
        %v5915 = vsub.f32 %v5569, %v5914
        %v5916 = vand.u32 %v5915, 4294901760
        %5917 = vmatpush1.msra.mxu0 %v5916
        %5918 = vmatprep.subr.mxu0 0.0
        %5919 = vmatpush1.msra.mxu0 0.0
        %5920 = vmatprep.subr.mxu0 0.0
        %5921 = vmatpush1.msra.mxu0 0.0
        %5922 = vmatprep.subr.mxu0 0.0
        %5923 = vmatpush1.msra.mxu0 0.0
        %5924 = vmatprep.subr.mxu0 0.0
        %5925 = vmatpush1.msra.mxu0 0.0
        %5926 = vmatprep.subr.mxu0 0.0
        %5927 = vmatpush1.msra.mxu0 0.0
        %5928 = vmatprep.subr.mxu0 0.0
        %5929 = vmatpush1.msra.mxu0 0.0
        %5930 = vmatprep.subr.mxu0 0.0
        %5931 = vmatpush1.msra.mxu0 0.0
        %5932 = vmatprep.subr.mxu0 0.0
        %5933 = vmatpush1.msra.mxu0 0.0
        %5934 = vmatprep.subr.mxu0 0.0
        %5935 = vmatpush1.msra.mxu0 0.0
        %5936 = vmatprep.subr.mxu0 0.0
        %5937 = vmatpush1.msra.mxu0 0.0
        %5938 = vmatprep.subr.mxu0 0.0
        %5939 = vmatpush1.msra.mxu0 0.0
        %5940 = vmatprep.subr.mxu0 0.0
        %5941 = vmatpush1.msra.mxu0 0.0
        %5942 = vmatprep.subr.mxu0 0.0
        %5943 = vmatpush1.msra.mxu0 0.0
        %5944 = vmatprep.subr.mxu0 0.0
        %5945 = vmatpush1.msra.mxu0 0.0
        %5946 = vmatprep.subr.mxu0 0.0
        %5947 = vmatpush1.msra.mxu0 0.0
        %5948 = vmatprep.subr.mxu0 0.0
        %5949 = vmatpush1.msra.mxu0 0.0
        %5950 = vmatprep.subr.mxu0 0.0
        %5951 = vmatpush1.msra.mxu0 0.0
        %5952 = vmatprep.subr.mxu0 0.0
        %5953 = vmatpush1.msra.mxu0 0.0
        %5954 = vmatprep.subr.mxu0 0.0
        %5955 = vmatpush1.msra.mxu0 0.0
        %5956 = vmatprep.subr.mxu0 0.0
        %5957 = vmatpush1.msra.mxu0 0.0
        %5958 = vmatprep.subr.mxu0 0.0
        %5959 = vmatpush1.msra.mxu0 0.0
        %5960 = vmatprep.subr.mxu0 0.0
        %5961 = vmatpush1.msra.mxu0 0.0
        %5962 = vmatprep.subr.mxu0 0.0
        %5963 = vmatpush1.msra.mxu0 0.0
        %5964 = vmatprep.subr.mxu0 0.0
        %5965 = vmatpush1.msra.mxu0 0.0
        %5966 = vmatprep.subr.mxu0 0.0
        %5967 = vmatpush1.msra.mxu0 0.0
        %5968 = vmatprep.subr.mxu0 0.0
        %5969 = vmatpush1.msra.mxu0 0.0
        %5970 = vmatprep.subr.mxu0 0.0
        %5971 = vmatpush1.msra.mxu0 0.0
        %5972 = vmatprep.subr.mxu0 0.0
        %5973 = vmatpush1.msra.mxu0 0.0
        %5974 = vmatprep.subr.mxu0 0.0
        %5975 = vmatpush1.msra.mxu0 0.0
        %5976 = vmatprep.subr.mxu0 0.0
        %5977 = vmatpush1.msra.mxu0 0.0
        %5978 = vmatprep.mubr.f32.mxu0 0.0
        %v5979 = vand.u32 %v2982, 4294901760
        %5980 = vmatmul.mubr.f32.gmra.mrb[0].mxu0 %v5979
        %v5981 = vpop.f32.mrb[0].mxu0
        %v5982 = vadd.f32 %v5898, %v5981
        %v5983 = vpop.f32.mrb[0].mxu0
        %v5984 = vadd.f32 %v5900, %v5983
        %5985 = vdwg.mxu0
        %v5986 = vand.u32 %v5568, 4294901760
        %5987 = vmatprep.subr.mxu0 %v5986
        %v5988 = vand.u32 %v5567, 4294901760
        %5989 = vmatpush1.msra.mxu0 %v5988
        %v5990 = vand.u32 %v5570, 4294901760
        %5991 = vmatprep.subr.mxu0 %v5990
        %v5992 = vand.u32 %v5569, 4294901760
        %5993 = vmatpush1.msra.mxu0 %v5992
        %5994 = vmatprep.subr.mxu0 0.0
        %5995 = vmatpush1.msra.mxu0 0.0
        %5996 = vmatprep.subr.mxu0 0.0
        %5997 = vmatpush1.msra.mxu0 0.0
        %5998 = vmatprep.subr.mxu0 0.0
        %5999 = vmatpush1.msra.mxu0 0.0
        %6000 = vmatprep.subr.mxu0 0.0
        %6001 = vmatpush1.msra.mxu0 0.0
        %6002 = vmatprep.subr.mxu0 0.0
        %6003 = vmatpush1.msra.mxu0 0.0
        %6004 = vmatprep.subr.mxu0 0.0
        %6005 = vmatpush1.msra.mxu0 0.0
        %6006 = vmatprep.subr.mxu0 0.0
        %6007 = vmatpush1.msra.mxu0 0.0
        %6008 = vmatprep.subr.mxu0 0.0
        %6009 = vmatpush1.msra.mxu0 0.0
        %6010 = vmatprep.subr.mxu0 0.0
        %6011 = vmatpush1.msra.mxu0 0.0
        %6012 = vmatprep.subr.mxu0 0.0
        %6013 = vmatpush1.msra.mxu0 0.0
        %6014 = vmatprep.subr.mxu0 0.0
        %6015 = vmatpush1.msra.mxu0 0.0
        %6016 = vmatprep.subr.mxu0 0.0
        %6017 = vmatpush1.msra.mxu0 0.0
        %6018 = vmatprep.subr.mxu0 0.0
        %6019 = vmatpush1.msra.mxu0 0.0
        %6020 = vmatprep.subr.mxu0 0.0
        %6021 = vmatpush1.msra.mxu0 0.0
        %6022 = vmatprep.subr.mxu0 0.0
        %6023 = vmatpush1.msra.mxu0 0.0
        %6024 = vmatprep.subr.mxu0 0.0
        %6025 = vmatpush1.msra.mxu0 0.0
        %6026 = vmatprep.subr.mxu0 0.0
        %6027 = vmatpush1.msra.mxu0 0.0
        %6028 = vmatprep.subr.mxu0 0.0
        %6029 = vmatpush1.msra.mxu0 0.0
        %6030 = vmatprep.subr.mxu0 0.0
        %6031 = vmatpush1.msra.mxu0 0.0
        %6032 = vmatprep.subr.mxu0 0.0
        %6033 = vmatpush1.msra.mxu0 0.0
        %6034 = vmatprep.subr.mxu0 0.0
        %6035 = vmatpush1.msra.mxu0 0.0
        %6036 = vmatprep.subr.mxu0 0.0
        %6037 = vmatpush1.msra.mxu0 0.0
        %6038 = vmatprep.subr.mxu0 0.0
        %6039 = vmatpush1.msra.mxu0 0.0
        %6040 = vmatprep.subr.mxu0 0.0
        %6041 = vmatpush1.msra.mxu0 0.0
        %6042 = vmatprep.subr.mxu0 0.0
        %6043 = vmatpush1.msra.mxu0 0.0
        %6044 = vmatprep.subr.mxu0 0.0
        %6045 = vmatpush1.msra.mxu0 0.0
        %6046 = vmatprep.subr.mxu0 0.0
        %6047 = vmatpush1.msra.mxu0 0.0
        %6048 = vmatprep.subr.mxu0 0.0
        %6049 = vmatpush1.msra.mxu0 0.0
        %6050 = vmatprep.subr.mxu0 0.0
        %6051 = vmatpush1.msra.mxu0 0.0
        %6052 = vmatprep.subr.mxu0 0.0
        %6053 = vmatpush1.msra.mxu0 0.0
        %6054 = vmatprep.mubr.f32.mxu0 0.0
        %v6055 = vand.u32 %v2982, 4294901760
        %6056 = vmatmul.mubr.f32.gmra.mrb[0].mxu0 %v6055
        %v6057 = vpop.f32.mrb[0].mxu0
        %v6058 = vadd.f32 %v5982, %v6057
        %v6059 = vpop.f32.mrb[0].mxu0
        %v6060 = vadd.f32 %v5984, %v6059
        %6061 = vdwg.mxu0
        %v6062 = vld [vmem:[%s1931] sm:$0xff]
        %v6063 = vld [vmem:[%s1931 + $0x8] sm:$0xff]
        %v6064 = vadd.f32 %v6058, %v6062
        %v6065 = vadd.f32 %v6060, %v6063
        %v6066 = vmax.f32 %v6064, 0.0
        %v6067 = vmax.f32 %v6065, 0.0
        %s6068 = scalar_lea.vmem %s323, 48 [#allocation6]
        %6069 = vst [vmem:[%s6068] sm:$0xff] %v6066
        %6070 = vst [vmem:[%s6068 + $0x8] sm:$0xff] %v6067
        %s6071 = sand.u32 %s206, 1
        %s6072 = scalar_lea.sflag [#allocation5], %s6071
        %s6073 = sand.u32 %s206, 1
        %s6074 = smul.addr %s6073, 64
        %s6075 = scalar_lea.vmem [#allocation6], %s6074
        // Predicated region
        $region57: #{tpu_custom_call.1} parent=51 // pred_check
          %p6076 = pneg %p216
        $region58: #{tpu_custom_call.1} parent=51 // pred_check_branch
          %6078 = sbr.rel (%p6076) target = $region60
        $region59: #{tpu_custom_call.1} parent=51 // pred_region
          %s6080 = ssub.s32 1024, 1024
          %6081 = vsyncadd %s6072, %s6080
          %s6082 = smul.addr %s25, 8
          %s6083 = smul.addr %s6082, 128
          %s6084 = scalar_lea.hbm %s8, %s6083
          %s6085 = sshll.u32 %s6075, 4
          %s6086 = int_to_ptr.vmem [resolvable:$true] %s6085
          %6091 = dma.vmem_to_hbm [thread:$0]  %s6086, 1024, %s6084, %s6072, 256, 256, 16
        $region60: #{tpu_custom_call.1} parent=51 // pred_fallthru
          _
      $region52: #{tpu_custom_call.1} parent=5 // pred_fallthru
        _
      %p6092 = scmp.le.s32.totalorder 2, %s20
      // Predicated region
      $region61: #{tpu_custom_call.1} parent=5 // pred_check
        %p6093 = pneg %p6092
      $region62: #{tpu_custom_call.1} parent=5 // pred_check_branch
        %6095 = sbr.rel (%p6093) target = $region64
      $region63: #{tpu_custom_call.1} parent=5 // pred_region
        %s6096 = ssub.s32 %s20, 2
        // Predicated region
        $region65: #{tpu_custom_call.1} parent=63 // pred_check
          %p6097 = pneg %p222
        $region66: #{tpu_custom_call.1} parent=63 // pred_check_branch
          %6099 = sbr.rel (%p6097) target = $region68
        $region67: #{tpu_custom_call.1} parent=63 // pred_region
          %s6100 = sand.u32 %s207, 1
          %s6101 = scalar_lea.sflag [#allocation5], %s6100
          %s6102 = sand.u32 %s207, 1
          %s6103 = smul.addr %s6102, 64
          %s6104 = scalar_lea.vmem [#allocation6], %s6103
          %6105 = dma.done %s6101, 1024
        $region68: #{tpu_custom_call.1} parent=63 // pred_fallthru
          _
      $region64: #{tpu_custom_call.1} parent=5 // pred_fallthru
        _
    $region6: #{tpu_custom_call.1} parent=1 // loop_footer
      %s24 = sadd.s32 1, %s20
    $region7: #{tpu_custom_call.1} parent=1 // loop_footer_branch
      %19 = sbr.rel target = $region3
    $region8: #{tpu_custom_call.1} parent=1 // loop_exit
      _
    %6106 = vsyncpa [#allocation4], 1
    %s6107 = scalar_lea.sflag [#allocation4], 1
    %6108 = vsyncpa %s6107, 1
    %6109 = vsyncpa [#allocation5], 1
    %s6110 = scalar_lea.sflag [#allocation5], 1
    %6111 = vsyncpa %s6110, 1

</llo_original>
